<compile_context>
chip_gen: v5e
topology: v5e:2x2
jax: 0.10.0
libtpu: 0.0.40
codegen_flags: <defaults>
</compile_context>

<pallas_src>
import numpy as np
import jax
import jax.numpy as jnp
from jax.experimental import pallas as pl
from jax.experimental.pallas import tpu as pltpu


# ---------------------------------------------------------------------------
# Host-side, one-time weight preparation (pure layout work, no amplification
# of activations).
#
# In-kernel activation layout: 2-D (rows, lanes) with
#   rows  = (sample, row-in-image)       and
#   lanes = (channel, column-in-image)   (channel-major).
# After each 2x2 pool, the pooled value for column pw lives at lane
# channel*W + 2*pw (odd lanes hold garbage); the next matmul's band matrix
# simply has zero rows for the dead lanes.
# ---------------------------------------------------------------------------
def prepare_params(params):
    w1 = np.asarray(params["conv1_w"], np.float32)   # (10, 1, 5, 5)
    b1 = np.asarray(params["conv1_b"], np.float32)   # (10,)
    w2 = np.asarray(params["conv2_w"], np.float32)   # (20, 10, 5, 5)
    b2 = np.asarray(params["conv2_b"], np.float32)   # (20,)
    fw1 = np.asarray(params["fc1_w"], np.float32)    # (50, 320)
    fb1 = np.asarray(params["fc1_b"], np.float32)    # (50,)
    fw2 = np.asarray(params["fc2_w"], np.float32)    # (10, 50)
    fb2 = np.asarray(params["fc2_b"], np.float32)    # (10,)

    # conv1 band matrix: B1[w, (i*10 + co)*24 + ow] = w1[co, 0, i, w - ow]
    B1 = np.zeros((28, 5 * 10 * 24), np.float32)
    co, i, j, ow = np.meshgrid(np.arange(10), np.arange(5), np.arange(5),
                               np.arange(24), indexing="ij")
    B1[(ow + j).ravel(), ((i * 10 + co) * 24 + ow).ravel()] = \
        w1[co.ravel(), 0, i.ravel(), j.ravel()]
    b1r = np.repeat(b1, 24)[None, :]                              # (1, 240)

    # conv2 band matrix over the sparse pooled layout (input lane = ci*24 + 2*w)
    B2 = np.zeros((239, 5 * 20 * 8), np.float32)
    co, ci, i, j, ow = np.meshgrid(np.arange(20), np.arange(10), np.arange(5),
                                   np.arange(5), np.arange(8), indexing="ij")
    B2[(ci * 24 + 2 * (ow + j)).ravel(), ((i * 20 + co) * 8 + ow).ravel()] = \
        w2[co.ravel(), ci.ravel(), i.ravel(), j.ravel()]
    b2r = np.repeat(b2, 8)[None, :]                               # (1, 160)

    # fc1, folded over the 4 pooled rows per sample; the PyTorch .view(-1, 320)
    # flatten order (c*16 + h*4 + w) is baked into the weight scatter, so no
    # in-kernel transpose/flatten is needed (input lane = co*8 + 2*w).
    F1 = np.zeros((4, 159, 50), np.float32)
    co, h2, wv = np.meshgrid(np.arange(20), np.arange(4), np.arange(4),
                             indexing="ij")
    F1[h2.ravel(), (co * 8 + 2 * wv).ravel(), :] = \
        fw1[:, (co * 16 + h2 * 4 + wv).ravel()].T

    return {
        "B1": jnp.asarray(B1, jnp.bfloat16), "b1": jnp.asarray(b1r, jnp.float32),
        "B2": jnp.asarray(B2, jnp.bfloat16), "b2": jnp.asarray(b2r, jnp.float32),
        "F1": jnp.asarray(F1, jnp.bfloat16), "fb1": jnp.asarray(fb1[None, :], jnp.float32),
        "F2": jnp.asarray(fw2.T, jnp.bfloat16), "fb2": jnp.asarray(fb2[None, :], jnp.float32),
    }


# ---------------------------------------------------------------------------
# The fused forward kernel (one batch tile per grid step).
# ---------------------------------------------------------------------------
def _fused_forward_kernel(x_ref, b1w_ref, b1b_ref, b2w_ref, b2b_ref,
                          f1w_ref, f1b_ref, f2w_ref, f2b_ref, o_ref):
    tb = x_ref.shape[0] // 28                         # samples in this tile

    # ---- conv1: one banded matmul over W (K=28, N=1200), bf16 -> f32 acc ----
    x2d = x_ref[...].astype(jnp.bfloat16)             # (tb*28, 28), rows=(n, h)
    t1 = jnp.dot(x2d, b1w_ref[...],
                 preferred_element_type=jnp.float32)  # (tb*28, 1200)
    t1 = t1.reshape(tb, 28, 1200)
    # vertical taps: y1[n, oh, co*24+ow] = sum_i t1[n, oh+i, (i,co,ow)]
    y1 = t1[:, 0:24, 0:240]
    for i in range(1, 5):
        y1 = y1 + t1[:, i:i + 24, i * 240:(i + 1) * 240]
    y1 = y1.reshape(tb * 24, 240) + b1b_ref[...]      # + bias (broadcast)

    # ---- fused 2x2 max-pool + ReLU (epilogue, all in VMEM) ----
    y1 = y1.reshape(tb * 12, 2, 240)
    y1 = jnp.maximum(y1[:, 0, :], y1[:, 1, :])        # pool along H
    y1 = jnp.maximum(y1[:, 0:239], y1[:, 1:240])      # pool along W (even lanes)
    a1 = jnp.maximum(y1, 0.0).astype(jnp.bfloat16)    # (tb*12, 239)

    # ---- conv2 (Dropout2d eval-mode = identity): banded matmul K=239,N=800 ----
    t2 = jnp.dot(a1, b2w_ref[...],
                 preferred_element_type=jnp.float32)  # (tb*12, 800)
    t2 = t2.reshape(tb, 12, 800)
    y2 = t2[:, 0:8, 0:160]
    for i in range(1, 5):
        y2 = y2 + t2[:, i:i + 8, i * 160:(i + 1) * 160]
    y2 = y2.reshape(tb * 8, 160) + b2b_ref[...]

    # ---- fused 2x2 max-pool + ReLU ----
    y2 = y2.reshape(tb * 4, 2, 160)
    y2 = jnp.maximum(y2[:, 0, :], y2[:, 1, :])        # pool along H
    y2 = jnp.maximum(y2[:, 0:159], y2[:, 1:160])      # pool along W (even lanes)
    a2 = jnp.maximum(y2, 0.0)                         # (tb*4, 159)

    # ---- fc1 + ReLU (flatten folded into the 4 per-row weight slabs) ----
    a2 = a2.reshape(tb, 4, 159).astype(jnp.bfloat16)
    h = jnp.dot(a2[:, 0, :], f1w_ref[0], preferred_element_type=jnp.float32)
    for r in range(1, 4):
        h = h + jnp.dot(a2[:, r, :], f1w_ref[r],
                        preferred_element_type=jnp.float32)
    h = jnp.maximum(h + f1b_ref[...], 0.0)            # (tb, 50)
    # F.dropout: eval mode => identity

    # ---- fc2 + log_softmax (f32) ----
    z = jnp.dot(h.astype(jnp.bfloat16), f2w_ref[...],
                preferred_element_type=jnp.float32) + f2b_ref[...]   # (tb, 10)
    m = jnp.max(z, axis=-1, keepdims=True)
    lse = m + jnp.log(jnp.sum(jnp.exp(z - m), axis=-1, keepdims=True))
    o_ref[...] = (z - lse).astype(o_ref.dtype)


def forward(prepped, x, tb=8):
    """x: (N, 1, 28, 28) float32 -> log-probabilities (N, 10)."""
    n = x.shape[0]
    assert x.shape[1:] == (1, 28, 28), "architecture implies 1x28x28 input"
    n_pad = ((n + tb - 1) // tb) * tb
    xr = x.reshape(n, 28, 28)
    if n_pad != n:
        xr = jnp.pad(xr, ((0, n_pad - n), (0, 0), (0, 0)))
    xr = xr.reshape(n_pad * 28, 28)                   # rows = (sample, h)

    out = pl.pallas_call(
        _fused_forward_kernel,
        out_shape=jax.ShapeDtypeStruct((n_pad, 10), jnp.float32),
        grid_spec=pltpu.PrefetchScalarGridSpec(
            num_scalar_prefetch=0,
            grid=(n_pad // tb,),
            in_specs=[
                pl.BlockSpec((tb * 28, 28), lambda i: (i, 0)),      # x tile
                pl.BlockSpec((28, 1200), lambda i: (0, 0)),         # conv1 band
                pl.BlockSpec((1, 240), lambda i: (0, 0)),           # conv1 bias
                pl.BlockSpec((239, 800), lambda i: (0, 0)),         # conv2 band
                pl.BlockSpec((1, 160), lambda i: (0, 0)),           # conv2 bias
                pl.BlockSpec((4, 159, 50), lambda i: (0, 0, 0)),    # fc1 slabs
                pl.BlockSpec((1, 50), lambda i: (0, 0)),            # fc1 bias
                pl.BlockSpec((50, 10), lambda i: (0, 0)),           # fc2 w
                pl.BlockSpec((1, 10), lambda i: (0, 0)),            # fc2 bias
            ],
            out_specs=pl.BlockSpec((tb, 10), lambda i: (i, 0)),
        ),
        compiler_params=pltpu.CompilerParams(
            dimension_semantics=("parallel",),
            vmem_limit_bytes=32 * 1024 * 1024,
        ),
    )(xr, prepped["B1"], prepped["b1"], prepped["B2"], prepped["b2"],
      prepped["F1"], prepped["fb1"], prepped["F2"], prepped["fb2"])
    return out[:n]


# ---------------------------------------------------------------------------
# Parameter init (matches the PyTorch module's shapes) + pure-JAX reference.
# ---------------------------------------------------------------------------
def init_params(key):
    ks = jax.random.split(key, 8)
    s = 0.1
    return {
        "conv1_w": s * jax.random.normal(ks[0], (10, 1, 5, 5), jnp.float32),
        "conv1_b": s * jax.random.normal(ks[1], (10,), jnp.float32),
        "conv2_w": s * jax.random.normal(ks[2], (20, 10, 5, 5), jnp.float32),
        "conv2_b": s * jax.random.normal(ks[3], (20,), jnp.float32),
        "fc1_w": s * jax.random.normal(ks[4], (50, 320), jnp.float32),
        "fc1_b": s * jax.random.normal(ks[5], (50,), jnp.float32),
        "fc2_w": s * jax.random.normal(ks[6], (10, 50), jnp.float32),
        "fc2_b": s * jax.random.normal(ks[7], (10,), jnp.float32),
    }


def reference_forward(params, x):
    """Plain-JAX f32 reference with PyTorch NCHW semantics (no Pallas)."""
    n = x.shape[0]

    def im2col(a, kh, kw):
        _, c, hh, ww = a.shape
        oh, ow = hh - kh + 1, ww - kw + 1
        cols = [a[:, :, i:i + oh, j:j + ow] for i in range(kh) for j in range(kw)]
        p = jnp.stack(cols, axis=2)                      # (n, c, kh*kw, oh, ow)
        return p.transpose(0, 3, 4, 1, 2).reshape(n * oh * ow, c * kh * kw), oh, ow

    def pool_relu(a):
        m = jnp.maximum(jnp.maximum(a[:, :, 0::2, 0::2], a[:, :, 0::2, 1::2]),
                        jnp.maximum(a[:, :, 1::2, 0::2], a[:, :, 1::2, 1::2]))
        return jnp.maximum(m, 0.0)

    p, oh, ow = im2col(x, 5, 5)
    y = p @ params["conv1_w"].reshape(10, 25).T + params["conv1_b"]
    y = pool_relu(y.reshape(n, oh, ow, 10).transpose(0, 3, 1, 2))
    p, oh, ow = im2col(y, 5, 5)
    y = p @ params["conv2_w"].reshape(20, 250).T + params["conv2_b"]
    y = pool_relu(y.reshape(n, oh, ow, 20).transpose(0, 3, 1, 2))
    y = y.reshape(n, 320)
    y = jnp.maximum(y @ params["fc1_w"].T + params["fc1_b"], 0.0)
    z = y @ params["fc2_w"].T + params["fc2_b"]
    return jax.nn.log_softmax(z, axis=-1)


if __name__ == "__main__":
    key = jax.random.PRNGKey(0)
    pkey, xkey = jax.random.split(key)
    params = init_params(pkey)
    # fc1 expects 320 = 20*4*4 => 1x28x28 single-channel input.
    x = jax.random.normal(xkey, (2, 1, 28, 28), jnp.float32)

    prepped = prepare_params(params)
    fwd = jax.jit(forward)
    out = jax.block_until_ready(fwd(prepped, x))

    assert out.shape == (2, 10)
    assert bool(jnp.all(jnp.isfinite(out)))
    # log_softmax rows must sum to ~1 in probability space
    assert jnp.allclose(jnp.sum(jnp.exp(out), axis=-1), 1.0, atol=1e-4)
    # match the pure-f32 reference up to bf16-MXU rounding
    ref = reference_forward(params, x)
    assert jnp.allclose(out, ref, atol=1e-1), (out, ref)
    print("KERNEL_OK")
</pallas_src>

<mosaic_0001>
module attributes {stable_mosaic.version = 11 : i64} {
  func.func @_fused_forward_kernel(%arg0: i32, %arg1: memref<224x28xf32, #tpu.memory_space<vmem>>, %arg2: memref<28x1200xbf16, #tpu.memory_space<vmem>>, %arg3: memref<1x240xf32, #tpu.memory_space<vmem>>, %arg4: memref<239x800xbf16, #tpu.memory_space<vmem>>, %arg5: memref<1x160xf32, #tpu.memory_space<vmem>>, %arg6: memref<4x159x50xbf16, #tpu.memory_space<vmem>>, %arg7: memref<1x50xf32, #tpu.memory_space<vmem>>, %arg8: memref<50x10xbf16, #tpu.memory_space<vmem>>, %arg9: memref<1x10xf32, #tpu.memory_space<vmem>>, %arg10: memref<8x10xf32, #tpu.memory_space<vmem>>) attributes {dimension_semantics = [#tpu.dimension_semantics<parallel>], iteration_bounds = array<i64: 1>, scalar_prefetch = 0 : i64, scratch_operands = 0 : i64, tpu.core_type = #tpu.core_type<tc>, window_params = [{transform_indices = @transform_0, window_bounds = array<i64: 224, 28>}, {pipeline_mode = #tpu.pipeline_mode<synchronous>, transform_indices = @transform_1, window_bounds = array<i64: 28, 1200>}, {pipeline_mode = #tpu.pipeline_mode<synchronous>, transform_indices = @transform_2, window_bounds = array<i64: 1, 240>}, {pipeline_mode = #tpu.pipeline_mode<synchronous>, transform_indices = @transform_3, window_bounds = array<i64: 239, 800>}, {pipeline_mode = #tpu.pipeline_mode<synchronous>, transform_indices = @transform_4, window_bounds = array<i64: 1, 160>}, {pipeline_mode = #tpu.pipeline_mode<synchronous>, transform_indices = @transform_5, window_bounds = array<i64: 4, 159, 50>}, {pipeline_mode = #tpu.pipeline_mode<synchronous>, transform_indices = @transform_6, window_bounds = array<i64: 1, 50>}, {pipeline_mode = #tpu.pipeline_mode<synchronous>, transform_indices = @transform_7, window_bounds = array<i64: 50, 10>}, {pipeline_mode = #tpu.pipeline_mode<synchronous>, transform_indices = @transform_8, window_bounds = array<i64: 1, 10>}, {transform_indices = @transform_9, window_bounds = array<i64: 8, 10>}]} {
    %c0 = arith.constant 0 : index
    %c0_0 = arith.constant 0 : index
    %0 = vector.load %arg1[%c0, %c0_0] : memref<224x28xf32, #tpu.memory_space<vmem>>, vector<224x28xf32>
    %1 = arith.truncf %0 : vector<224x28xf32> to vector<224x28xbf16>
    %c0_1 = arith.constant 0 : index
    %c0_2 = arith.constant 0 : index
    %2 = vector.load %arg2[%c0_1, %c0_2] : memref<28x1200xbf16, #tpu.memory_space<vmem>>, vector<28x1200xbf16>
    %cst = arith.constant dense<0.000000e+00> : vector<224x1200xf32>
    %3 = tpu.matmul %1, %2, %cst {dimension_numbers = #tpu.dot_dimension_numbers<[1], [0], [0], [1], [0, 0, 1, 1], [], []>} : vector<224x28xbf16>, vector<28x1200xbf16>, vector<224x1200xf32> -> vector<224x1200xf32>
    %4 = vector.shape_cast %3 : vector<224x1200xf32> to vector<8x28x1200xf32>
    %5 = vector.extract_strided_slice %4 {offsets = [0, 0, 0], sizes = [8, 24, 240], strides = [1, 1, 1]} : vector<8x28x1200xf32> to vector<8x24x240xf32>
    %6 = vector.extract_strided_slice %4 {offsets = [0, 1, 240], sizes = [8, 24, 240], strides = [1, 1, 1]} : vector<8x28x1200xf32> to vector<8x24x240xf32>
    %7 = arith.addf %5, %6 : vector<8x24x240xf32>
    %8 = vector.extract_strided_slice %4 {offsets = [0, 2, 480], sizes = [8, 24, 240], strides = [1, 1, 1]} : vector<8x28x1200xf32> to vector<8x24x240xf32>
    %9 = arith.addf %7, %8 : vector<8x24x240xf32>
    %10 = vector.extract_strided_slice %4 {offsets = [0, 3, 720], sizes = [8, 24, 240], strides = [1, 1, 1]} : vector<8x28x1200xf32> to vector<8x24x240xf32>
    %11 = arith.addf %9, %10 : vector<8x24x240xf32>
    %12 = vector.extract_strided_slice %4 {offsets = [0, 4, 960], sizes = [8, 24, 240], strides = [1, 1, 1]} : vector<8x28x1200xf32> to vector<8x24x240xf32>
    %13 = arith.addf %11, %12 : vector<8x24x240xf32>
    %14 = vector.shape_cast %13 : vector<8x24x240xf32> to vector<192x240xf32>
    %c0_3 = arith.constant 0 : index
    %c0_4 = arith.constant 0 : index
    %15 = vector.load %arg3[%c0_3, %c0_4] : memref<1x240xf32, #tpu.memory_space<vmem>>, vector<1x240xf32>
    %16 = vector.broadcast %15 : vector<1x240xf32> to vector<192x240xf32>
    %17 = arith.addf %14, %16 : vector<192x240xf32>
    %18 = vector.shape_cast %17 : vector<192x240xf32> to vector<96x2x240xf32>
    %19 = vector.extract_strided_slice %18 {offsets = [0, 0, 0], sizes = [96, 1, 240], strides = [1, 1, 1]} : vector<96x2x240xf32> to vector<96x1x240xf32>
    %20 = vector.shape_cast %19 : vector<96x1x240xf32> to vector<96x240xf32>
    %21 = vector.extract_strided_slice %18 {offsets = [0, 1, 0], sizes = [96, 1, 240], strides = [1, 1, 1]} : vector<96x2x240xf32> to vector<96x1x240xf32>
    %22 = vector.shape_cast %21 : vector<96x1x240xf32> to vector<96x240xf32>
    %23 = arith.maximumf %20, %22 : vector<96x240xf32>
    %24 = vector.extract_strided_slice %23 {offsets = [0, 0], sizes = [96, 239], strides = [1, 1]} : vector<96x240xf32> to vector<96x239xf32>
    %25 = vector.extract_strided_slice %23 {offsets = [0, 1], sizes = [96, 239], strides = [1, 1]} : vector<96x240xf32> to vector<96x239xf32>
    %26 = arith.maximumf %24, %25 : vector<96x239xf32>
    %cst_5 = arith.constant 0.000000e+00 : f32
    %27 = vector.broadcast %cst_5 : f32 to vector<96x239xf32>
    %28 = arith.maximumf %26, %27 : vector<96x239xf32>
    %29 = arith.truncf %28 : vector<96x239xf32> to vector<96x239xbf16>
    %c0_6 = arith.constant 0 : index
    %c0_7 = arith.constant 0 : index
    %30 = vector.load %arg4[%c0_6, %c0_7] : memref<239x800xbf16, #tpu.memory_space<vmem>>, vector<239x800xbf16>
    %cst_8 = arith.constant dense<0.000000e+00> : vector<96x800xf32>
    %31 = tpu.matmul %29, %30, %cst_8 {dimension_numbers = #tpu.dot_dimension_numbers<[1], [0], [0], [1], [0, 0, 1, 1], [], []>} : vector<96x239xbf16>, vector<239x800xbf16>, vector<96x800xf32> -> vector<96x800xf32>
    %32 = vector.shape_cast %31 : vector<96x800xf32> to vector<8x12x800xf32>
    %33 = vector.extract_strided_slice %32 {offsets = [0, 0, 0], sizes = [8, 8, 160], strides = [1, 1, 1]} : vector<8x12x800xf32> to vector<8x8x160xf32>
    %34 = vector.extract_strided_slice %32 {offsets = [0, 1, 160], sizes = [8, 8, 160], strides = [1, 1, 1]} : vector<8x12x800xf32> to vector<8x8x160xf32>
    %35 = arith.addf %33, %34 : vector<8x8x160xf32>
    %36 = vector.extract_strided_slice %32 {offsets = [0, 2, 320], sizes = [8, 8, 160], strides = [1, 1, 1]} : vector<8x12x800xf32> to vector<8x8x160xf32>
    %37 = arith.addf %35, %36 : vector<8x8x160xf32>
    %38 = vector.extract_strided_slice %32 {offsets = [0, 3, 480], sizes = [8, 8, 160], strides = [1, 1, 1]} : vector<8x12x800xf32> to vector<8x8x160xf32>
    %39 = arith.addf %37, %38 : vector<8x8x160xf32>
    %40 = vector.extract_strided_slice %32 {offsets = [0, 4, 640], sizes = [8, 8, 160], strides = [1, 1, 1]} : vector<8x12x800xf32> to vector<8x8x160xf32>
    %41 = arith.addf %39, %40 : vector<8x8x160xf32>
    %42 = vector.shape_cast %41 : vector<8x8x160xf32> to vector<64x160xf32>
    %c0_9 = arith.constant 0 : index
    %c0_10 = arith.constant 0 : index
    %43 = vector.load %arg5[%c0_9, %c0_10] : memref<1x160xf32, #tpu.memory_space<vmem>>, vector<1x160xf32>
    %44 = vector.broadcast %43 : vector<1x160xf32> to vector<64x160xf32>
    %45 = arith.addf %42, %44 : vector<64x160xf32>
    %46 = vector.shape_cast %45 : vector<64x160xf32> to vector<32x2x160xf32>
    %47 = vector.extract_strided_slice %46 {offsets = [0, 0, 0], sizes = [32, 1, 160], strides = [1, 1, 1]} : vector<32x2x160xf32> to vector<32x1x160xf32>
    %48 = vector.shape_cast %47 : vector<32x1x160xf32> to vector<32x160xf32>
    %49 = vector.extract_strided_slice %46 {offsets = [0, 1, 0], sizes = [32, 1, 160], strides = [1, 1, 1]} : vector<32x2x160xf32> to vector<32x1x160xf32>
    %50 = vector.shape_cast %49 : vector<32x1x160xf32> to vector<32x160xf32>
    %51 = arith.maximumf %48, %50 : vector<32x160xf32>
    %52 = vector.extract_strided_slice %51 {offsets = [0, 0], sizes = [32, 159], strides = [1, 1]} : vector<32x160xf32> to vector<32x159xf32>
    %53 = vector.extract_strided_slice %51 {offsets = [0, 1], sizes = [32, 159], strides = [1, 1]} : vector<32x160xf32> to vector<32x159xf32>
    %54 = arith.maximumf %52, %53 : vector<32x159xf32>
    %cst_11 = arith.constant 0.000000e+00 : f32
    %55 = vector.broadcast %cst_11 : f32 to vector<32x159xf32>
    %56 = arith.maximumf %54, %55 : vector<32x159xf32>
    %57 = vector.shape_cast %56 : vector<32x159xf32> to vector<8x4x159xf32>
    %58 = arith.truncf %57 : vector<8x4x159xf32> to vector<8x4x159xbf16>
    %59 = vector.extract_strided_slice %58 {offsets = [0, 0, 0], sizes = [8, 1, 159], strides = [1, 1, 1]} : vector<8x4x159xbf16> to vector<8x1x159xbf16>
    %60 = vector.shape_cast %59 : vector<8x1x159xbf16> to vector<8x159xbf16>
    %c0_12 = arith.constant 0 : index
    %c0_13 = arith.constant 0 : index
    %c0_14 = arith.constant 0 : index
    %61 = vector.load %arg6[%c0_12, %c0_13, %c0_14] : memref<4x159x50xbf16, #tpu.memory_space<vmem>>, vector<1x159x50xbf16>
    %62 = vector.shape_cast %61 : vector<1x159x50xbf16> to vector<159x50xbf16>
    %cst_15 = arith.constant dense<0.000000e+00> : vector<8x50xf32>
    %63 = tpu.matmul %60, %62, %cst_15 {dimension_numbers = #tpu.dot_dimension_numbers<[1], [0], [0], [1], [0, 0, 1, 1], [], []>} : vector<8x159xbf16>, vector<159x50xbf16>, vector<8x50xf32> -> vector<8x50xf32>
    %64 = vector.extract_strided_slice %58 {offsets = [0, 1, 0], sizes = [8, 1, 159], strides = [1, 1, 1]} : vector<8x4x159xbf16> to vector<8x1x159xbf16>
    %65 = vector.shape_cast %64 : vector<8x1x159xbf16> to vector<8x159xbf16>
    %c1 = arith.constant 1 : index
    %c0_16 = arith.constant 0 : index
    %c0_17 = arith.constant 0 : index
    %66 = vector.load %arg6[%c1, %c0_16, %c0_17] : memref<4x159x50xbf16, #tpu.memory_space<vmem>>, vector<1x159x50xbf16>
    %67 = vector.shape_cast %66 : vector<1x159x50xbf16> to vector<159x50xbf16>
    %cst_18 = arith.constant dense<0.000000e+00> : vector<8x50xf32>
    %68 = tpu.matmul %65, %67, %cst_18 {dimension_numbers = #tpu.dot_dimension_numbers<[1], [0], [0], [1], [0, 0, 1, 1], [], []>} : vector<8x159xbf16>, vector<159x50xbf16>, vector<8x50xf32> -> vector<8x50xf32>
    %69 = arith.addf %63, %68 : vector<8x50xf32>
    %70 = vector.extract_strided_slice %58 {offsets = [0, 2, 0], sizes = [8, 1, 159], strides = [1, 1, 1]} : vector<8x4x159xbf16> to vector<8x1x159xbf16>
    %71 = vector.shape_cast %70 : vector<8x1x159xbf16> to vector<8x159xbf16>
    %c2 = arith.constant 2 : index
    %c0_19 = arith.constant 0 : index
    %c0_20 = arith.constant 0 : index
    %72 = vector.load %arg6[%c2, %c0_19, %c0_20] : memref<4x159x50xbf16, #tpu.memory_space<vmem>>, vector<1x159x50xbf16>
    %73 = vector.shape_cast %72 : vector<1x159x50xbf16> to vector<159x50xbf16>
    %cst_21 = arith.constant dense<0.000000e+00> : vector<8x50xf32>
    %74 = tpu.matmul %71, %73, %cst_21 {dimension_numbers = #tpu.dot_dimension_numbers<[1], [0], [0], [1], [0, 0, 1, 1], [], []>} : vector<8x159xbf16>, vector<159x50xbf16>, vector<8x50xf32> -> vector<8x50xf32>
    %75 = arith.addf %69, %74 : vector<8x50xf32>
    %76 = vector.extract_strided_slice %58 {offsets = [0, 3, 0], sizes = [8, 1, 159], strides = [1, 1, 1]} : vector<8x4x159xbf16> to vector<8x1x159xbf16>
    %77 = vector.shape_cast %76 : vector<8x1x159xbf16> to vector<8x159xbf16>
    %c3 = arith.constant 3 : index
    %c0_22 = arith.constant 0 : index
    %c0_23 = arith.constant 0 : index
    %78 = vector.load %arg6[%c3, %c0_22, %c0_23] : memref<4x159x50xbf16, #tpu.memory_space<vmem>>, vector<1x159x50xbf16>
    %79 = vector.shape_cast %78 : vector<1x159x50xbf16> to vector<159x50xbf16>
    %cst_24 = arith.constant dense<0.000000e+00> : vector<8x50xf32>
    %80 = tpu.matmul %77, %79, %cst_24 {dimension_numbers = #tpu.dot_dimension_numbers<[1], [0], [0], [1], [0, 0, 1, 1], [], []>} : vector<8x159xbf16>, vector<159x50xbf16>, vector<8x50xf32> -> vector<8x50xf32>
    %81 = arith.addf %75, %80 : vector<8x50xf32>
    %c0_25 = arith.constant 0 : index
    %c0_26 = arith.constant 0 : index
    %82 = vector.load %arg7[%c0_25, %c0_26] : memref<1x50xf32, #tpu.memory_space<vmem>>, vector<1x50xf32>
    %83 = vector.broadcast %82 : vector<1x50xf32> to vector<8x50xf32>
    %84 = arith.addf %81, %83 : vector<8x50xf32>
    %cst_27 = arith.constant 0.000000e+00 : f32
    %85 = vector.broadcast %cst_27 : f32 to vector<8x50xf32>
    %86 = arith.maximumf %84, %85 : vector<8x50xf32>
    %87 = arith.truncf %86 : vector<8x50xf32> to vector<8x50xbf16>
    %c0_28 = arith.constant 0 : index
    %c0_29 = arith.constant 0 : index
    %88 = vector.load %arg8[%c0_28, %c0_29] : memref<50x10xbf16, #tpu.memory_space<vmem>>, vector<50x10xbf16>
    %cst_30 = arith.constant dense<0.000000e+00> : vector<8x10xf32>
    %89 = tpu.matmul %87, %88, %cst_30 {dimension_numbers = #tpu.dot_dimension_numbers<[1], [0], [0], [1], [0, 0, 1, 1], [], []>} : vector<8x50xbf16>, vector<50x10xbf16>, vector<8x10xf32> -> vector<8x10xf32>
    %c0_31 = arith.constant 0 : index
    %c0_32 = arith.constant 0 : index
    %90 = vector.load %arg9[%c0_31, %c0_32] : memref<1x10xf32, #tpu.memory_space<vmem>>, vector<1x10xf32>
    %91 = vector.broadcast %90 : vector<1x10xf32> to vector<8x10xf32>
    %92 = arith.addf %89, %91 : vector<8x10xf32>
    %cst_33 = arith.constant dense<0xFF800000> : vector<8xf32>
    %93 = vector.multi_reduction <maximumf>, %92, %cst_33 [1] : vector<8x10xf32> to vector<8xf32>
    %94 = vector.shape_cast %93 : vector<8xf32> to vector<8x1xf32>
    %95 = vector.broadcast %94 : vector<8x1xf32> to vector<8x10xf32>
    %96 = arith.subf %92, %95 : vector<8x10xf32>
    %97 = math.exp %96 : vector<8x10xf32>
    %cst_34 = arith.constant dense<0.000000e+00> : vector<8xf32>
    %98 = vector.multi_reduction <add>, %97, %cst_34 [1] : vector<8x10xf32> to vector<8xf32>
    %99 = vector.shape_cast %98 : vector<8xf32> to vector<8x1xf32>
    %100 = math.log %99 : vector<8x1xf32>
    %101 = arith.addf %94, %100 : vector<8x1xf32>
    %102 = vector.broadcast %101 : vector<8x1xf32> to vector<8x10xf32>
    %103 = arith.subf %92, %102 : vector<8x10xf32>
    %c0_35 = arith.constant 0 : index
    %c0_36 = arith.constant 0 : index
    %104 = vector.load %arg10[%c0_35, %c0_36] : memref<8x10xf32, #tpu.memory_space<vmem>>, vector<8x10xf32>
    tpu.vector_store %arg10[%c0_35, %c0_36], %103 {strides = array<i32>} : memref<8x10xf32, #tpu.memory_space<vmem>>, vector<8x10xf32>,
    return
  }
  func.func @transform_0(%arg0: i32) -> (i32, i32) {
    %c0_i32 = arith.constant 0 : i32
    %c0_i32_0 = arith.constant 0 : i32
    return %arg0, %c0_i32 : i32, i32
  }
  func.func @transform_1(%arg0: i32) -> (i32, i32) {
    %c0_i32 = arith.constant 0 : i32
    %c0_i32_0 = arith.constant 0 : i32
    %c0_i32_1 = arith.constant 0 : i32
    return %c0_i32, %c0_i32_0 : i32, i32
  }
  func.func @transform_2(%arg0: i32) -> (i32, i32) {
    %c0_i32 = arith.constant 0 : i32
    %c0_i32_0 = arith.constant 0 : i32
    %c0_i32_1 = arith.constant 0 : i32
    return %c0_i32, %c0_i32_0 : i32, i32
  }
  func.func @transform_3(%arg0: i32) -> (i32, i32) {
    %c0_i32 = arith.constant 0 : i32
    %c0_i32_0 = arith.constant 0 : i32
    %c0_i32_1 = arith.constant 0 : i32
    return %c0_i32, %c0_i32_0 : i32, i32
  }
  func.func @transform_4(%arg0: i32) -> (i32, i32) {
    %c0_i32 = arith.constant 0 : i32
    %c0_i32_0 = arith.constant 0 : i32
    %c0_i32_1 = arith.constant 0 : i32
    return %c0_i32, %c0_i32_0 : i32, i32
  }
  func.func @transform_5(%arg0: i32) -> (i32, i32, i32) {
    %c0_i32 = arith.constant 0 : i32
    %c0_i32_0 = arith.constant 0 : i32
    %c0_i32_1 = arith.constant 0 : i32
    %c0_i32_2 = arith.constant 0 : i32
    return %c0_i32, %c0_i32_0, %c0_i32_1 : i32, i32, i32
  }
  func.func @transform_6(%arg0: i32) -> (i32, i32) {
    %c0_i32 = arith.constant 0 : i32
    %c0_i32_0 = arith.constant 0 : i32
    %c0_i32_1 = arith.constant 0 : i32
    return %c0_i32, %c0_i32_0 : i32, i32
  }
  func.func @transform_7(%arg0: i32) -> (i32, i32) {
    %c0_i32 = arith.constant 0 : i32
    %c0_i32_0 = arith.constant 0 : i32
    %c0_i32_1 = arith.constant 0 : i32
    return %c0_i32, %c0_i32_0 : i32, i32
  }
  func.func @transform_8(%arg0: i32) -> (i32, i32) {
    %c0_i32 = arith.constant 0 : i32
    %c0_i32_0 = arith.constant 0 : i32
    %c0_i32_1 = arith.constant 0 : i32
    return %c0_i32, %c0_i32_0 : i32, i32
  }
  func.func @transform_9(%arg0: i32) -> (i32, i32) {
    %c0_i32 = arith.constant 0 : i32
    %c0_i32_0 = arith.constant 0 : i32
    return %arg0, %c0_i32 : i32, i32
  }
}

</mosaic_0001>

<llo_original>
// kernel: forward.1
$region0: #{forward.1}
  #allocation0 [shape = 'u32[]', space=smem, size = 0x4, offset = 0x4, fixed_abs, tag = 'smem constant byte address 0x4 - core index']
  #allocation1 [shape = 'u32[72,128]{1,0:T(1,128)}', space=vmem, size = 0x9000, scoped, tag = 'internal scratch']
  %s0 = inlined_call_operand.vmem [shape: f32[224,28], index: 0, kind: input, shape index: {}]
  %s1 = inlined_call_operand.vmem [shape: bf16[28,1200], index: 1, kind: input, shape index: {}]
  %s2 = inlined_call_operand.vmem [shape: f32[1,240], index: 2, kind: input, shape index: {}]
  %s3 = inlined_call_operand.vmem [shape: bf16[239,800], index: 3, kind: input, shape index: {}]
  %s4 = inlined_call_operand.vmem [shape: f32[1,160], index: 4, kind: input, shape index: {}]
  %s5 = inlined_call_operand.vmem [shape: bf16[4,159,50], index: 5, kind: input, shape index: {}]
  %s6 = inlined_call_operand.vmem [shape: f32[1,50], index: 6, kind: input, shape index: {}]
  %s7 = inlined_call_operand.vmem [shape: bf16[50,10], index: 7, kind: input, shape index: {}]
  %s8 = inlined_call_operand.vmem [shape: f32[1,10], index: 8, kind: input, shape index: {}]
  %s9 = inlined_call_operand.vmem [shape: f32[8,10], index: 9, kind: output, shape index: {}]
  %s10 = sld [smem:[#allocation0]]
  $region46: #{forward.1} parent=0
    _
  %s12 = ssub.s32 1, %s10
  %s13 = scalar_select 0, %s12, %s10
  // Predicated region
  $region2: #{forward.1} parent=0 // pred_check
    _
  $region3: #{forward.1} parent=0 // pred_check_branch
    %15 = sbr.rel (0) target = $region5
  $region4: #{forward.1} parent=0 // pred_region
    _
  $region5: #{forward.1} parent=0 // pred_fallthru
    _
  // Predicated region
  $region6: #{forward.1} parent=0 // pred_check
    _
  $region7: #{forward.1} parent=0 // pred_check_branch
    %17 = sbr.rel (0) target = $region9
  $region8: #{forward.1} parent=0 // pred_region
    _
  $region9: #{forward.1} parent=0 // pred_fallthru
    _
  // Predicated region
  $region10: #{forward.1} parent=0 // pred_check
    _
  $region11: #{forward.1} parent=0 // pred_check_branch
    %19 = sbr.rel (0) target = $region13
  $region12: #{forward.1} parent=0 // pred_region
    _
  $region13: #{forward.1} parent=0 // pred_fallthru
    _
  // Predicated region
  $region14: #{forward.1} parent=0 // pred_check
    _
  $region15: #{forward.1} parent=0 // pred_check_branch
    %21 = sbr.rel (0) target = $region17
  $region16: #{forward.1} parent=0 // pred_region
    _
  $region17: #{forward.1} parent=0 // pred_fallthru
    _
  // Predicated region
  $region18: #{forward.1} parent=0 // pred_check
    _
  $region19: #{forward.1} parent=0 // pred_check_branch
    %23 = sbr.rel (0) target = $region21
  $region20: #{forward.1} parent=0 // pred_region
    _
  $region21: #{forward.1} parent=0 // pred_fallthru
    _
  // Predicated region
  $region22: #{forward.1} parent=0 // pred_check
    _
  $region23: #{forward.1} parent=0 // pred_check_branch
    %25 = sbr.rel (0) target = $region25
  $region24: #{forward.1} parent=0 // pred_region
    _
  $region25: #{forward.1} parent=0 // pred_fallthru
    _
  // Predicated region
  $region26: #{forward.1} parent=0 // pred_check
    _
  $region27: #{forward.1} parent=0 // pred_check_branch
    %27 = sbr.rel (0) target = $region29
  $region28: #{forward.1} parent=0 // pred_region
    _
  $region29: #{forward.1} parent=0 // pred_fallthru
    _
  // Predicated region
  $region30: #{forward.1} parent=0 // pred_check
    _
  $region31: #{forward.1} parent=0 // pred_check_branch
    %29 = sbr.rel (0) target = $region33
  $region32: #{forward.1} parent=0 // pred_region
    _
  $region33: #{forward.1} parent=0 // pred_fallthru
    _
  // Predicated region
  $region34: #{forward.1} parent=0 // pred_check
    _
  $region35: #{forward.1} parent=0 // pred_check_branch
    %31 = sbr.rel (0) target = $region37
  $region36: #{forward.1} parent=0 // pred_region
    _
  $region37: #{forward.1} parent=0 // pred_fallthru
    _
  %v33 = vld [vmem:[%s0] sm:$0xff]
  %v34 = vld [vmem:[%s0 + $0x8] sm:$0xff]
  %v35 = vld [vmem:[%s0 + $0x10] sm:$0xff]
  %v36 = vld [vmem:[%s0 + $0x18] sm:$0xff]
  %v37 = vld [vmem:[%s0 + $0x20] sm:$0xff]
  %v38 = vld [vmem:[%s0 + $0x28] sm:$0xff]
  %v39 = vld [vmem:[%s0 + $0x30] sm:$0xff]
  %v40 = vld [vmem:[%s0 + $0x38] sm:$0xff]
  %v41 = vld [vmem:[%s0 + $0x40] sm:$0xff]
  %v42 = vld [vmem:[%s0 + $0x48] sm:$0xff]
  %v43 = vld [vmem:[%s0 + $0x50] sm:$0xff]
  %v44 = vld [vmem:[%s0 + $0x58] sm:$0xff]
  %v45 = vld [vmem:[%s0 + $0x60] sm:$0xff]
  %v46 = vld [vmem:[%s0 + $0x68] sm:$0xff]
  %v47 = vld [vmem:[%s0 + $0x70] sm:$0xff]
  %v48 = vld [vmem:[%s0 + $0x78] sm:$0xff]
  %v49 = vld [vmem:[%s0 + $0x80] sm:$0xff]
  %v50 = vld [vmem:[%s0 + $0x88] sm:$0xff]
  %v51 = vld [vmem:[%s0 + $0x90] sm:$0xff]
  %v52 = vld [vmem:[%s0 + $0x98] sm:$0xff]
  %v53 = vld [vmem:[%s0 + $0xa0] sm:$0xff]
  %v54 = vld [vmem:[%s0 + $0xa8] sm:$0xff]
  %v55 = vld [vmem:[%s0 + $0xb0] sm:$0xff]
  %v56 = vld [vmem:[%s0 + $0xb8] sm:$0xff]
  %v57 = vld [vmem:[%s0 + $0xc0] sm:$0xff]
  %v58 = vld [vmem:[%s0 + $0xc8] sm:$0xff]
  %v59 = vld [vmem:[%s0 + $0xd0] sm:$0xff]
  %v60 = vld [vmem:[%s0 + $0xd8] sm:$0xff]
  %v61 = vpack.c.bf16 %v34, %v33
  %v62 = vpack.c.bf16 %v36, %v35
  %v63 = vpack.c.bf16 %v38, %v37
  %v64 = vpack.c.bf16 %v40, %v39
  %v65 = vpack.c.bf16 %v42, %v41
  %v66 = vpack.c.bf16 %v44, %v43
  %v67 = vpack.c.bf16 %v46, %v45
  %v68 = vpack.c.bf16 %v48, %v47
  %v69 = vpack.c.bf16 %v50, %v49
  %v70 = vpack.c.bf16 %v52, %v51
  %v71 = vpack.c.bf16 %v54, %v53
  %v72 = vpack.c.bf16 %v56, %v55
  %v73 = vpack.c.bf16 %v58, %v57
  %v74 = vpack.c.bf16 %v60, %v59
  %v75 = vld [vmem:[%s1] sm:$0xff]
  %v76 = vld [vmem:[%s1 + $0x8] sm:$0xff]
  %v77 = vld [vmem:[%s1 + $0x10] sm:$0xff]
  %v78 = vld [vmem:[%s1 + $0x18] sm:$0xff]
  %v79 = vld [vmem:[%s1 + $0x20] sm:$0xff]
  %v80 = vld [vmem:[%s1 + $0x28] sm:$0xff]
  %v81 = vld [vmem:[%s1 + $0x30] sm:$0xff]
  %v82 = vld [vmem:[%s1 + $0x38] sm:$0xff]
  %v83 = vld [vmem:[%s1 + $0x40] sm:$0xff]
  %v84 = vld [vmem:[%s1 + $0x48] sm:$0xff]
  %v85 = vld [vmem:[%s1 + $0x50] sm:$0xff]
  %v86 = vld [vmem:[%s1 + $0x58] sm:$0xff]
  %v87 = vld [vmem:[%s1 + $0x60] sm:$0xff]
  %v88 = vld [vmem:[%s1 + $0x68] sm:$0xff]
  %v89 = vld [vmem:[%s1 + $0x70] sm:$0xff]
  %v90 = vld [vmem:[%s1 + $0x78] sm:$0x33]
  %v91 = vld [vmem:[%s1 + $0x80] sm:$0x33]
  %v92 = vld [vmem:[%s1 + $0x88] sm:$0x33]
  %v93 = vld [vmem:[%s1 + $0x90] sm:$0x33]
  %v94 = vld [vmem:[%s1 + $0x98] sm:$0x33]
  %v115 = vunpack.c.l.b16 %v75
  %v116 = vunpack.c.h.b16 %v75
  %v117 = vunpack.c.l.b16 %v76
  %v118 = vunpack.c.h.b16 %v76
  %v119 = vunpack.c.l.b16 %v77
  %v120 = vunpack.c.h.b16 %v77
  %v121 = vunpack.c.l.b16 %v78
  %v122 = vunpack.c.h.b16 %v78
  %v123 = vunpack.c.l.b16 %v79
  %v124 = vunpack.c.h.b16 %v79
  %v125 = vunpack.c.l.b16 %v80
  %v126 = vunpack.c.h.b16 %v80
  %v127 = vunpack.c.l.b16 %v81
  %v128 = vunpack.c.h.b16 %v81
  %v129 = vunpack.c.l.b16 %v82
  %v130 = vunpack.c.h.b16 %v82
  %v131 = vunpack.c.l.b16 %v83
  %v132 = vunpack.c.h.b16 %v83
  %v133 = vunpack.c.l.b16 %v84
  %v134 = vunpack.c.h.b16 %v84
  %v135 = vunpack.c.l.b16 %v85
  %v136 = vunpack.c.h.b16 %v85
  %v137 = vunpack.c.l.b16 %v86
  %v138 = vunpack.c.h.b16 %v86
  %v139 = vunpack.c.l.b16 %v87
  %v140 = vunpack.c.h.b16 %v87
  %v141 = vunpack.c.l.b16 %v88
  %v142 = vunpack.c.h.b16 %v88
  %v143 = vunpack.c.l.b16 %v89
  %v144 = vunpack.c.h.b16 %v89
  %v145 = vunpack.c.l.b16 %v90
  %v146 = vunpack.c.h.b16 %v90
  %v147 = vunpack.c.l.b16 %v91
  %v148 = vunpack.c.h.b16 %v91
  %v149 = vunpack.c.l.b16 %v92
  %v150 = vunpack.c.h.b16 %v92
  %v151 = vunpack.c.l.b16 %v93
  %v152 = vunpack.c.h.b16 %v93
  %v153 = vunpack.c.l.b16 %v94
  %v154 = vunpack.c.h.b16 %v94
  %v155 = vpack.c.b16 %v125, %v115
  %v156 = vpack.c.b16 %v126, %v116
  %v157 = vpack.c.b16 %v127, %v117
  %v158 = vpack.c.b16 %v128, %v118
  %v159 = vpack.c.b16 %v129, %v119
  %v160 = vpack.c.b16 %v130, %v120
  %v161 = vpack.c.b16 %v131, %v121
  %v162 = vpack.c.b16 %v132, %v122
  %v163 = vpack.c.b16 %v133, %v123
  %v164 = vpack.c.b16 %v134, %v124
  %v165 = vpack.c.b16 %v145, %v135
  %v166 = vpack.c.b16 %v146, %v136
  %v167 = vpack.c.b16 %v147, %v137
  %v168 = vpack.c.b16 %v148, %v138
  %v169 = vpack.c.b16 %v149, %v139
  %v170 = vpack.c.b16 %v150, %v140
  %v171 = vpack.c.b16 %v151, %v141
  %v172 = vpack.c.b16 %v152, %v142
  %v173 = vpack.c.b16 %v153, %v143
  %v174 = vpack.c.b16 %v154, %v144
  %vm185 = vcmask 228352
  %v187 = vsel %vm185, %v61, 0
  %v190 = vsel %vm185, %v62, 0
  %v193 = vsel %vm185, %v63, 0
  %v196 = vsel %vm185, %v64, 0
  %v199 = vsel %vm185, %v65, 0
  %v202 = vsel %vm185, %v66, 0
  %v205 = vsel %vm185, %v67, 0
  %v208 = vsel %vm185, %v68, 0
  %v211 = vsel %vm185, %v69, 0
  %v214 = vsel %vm185, %v70, 0
  %v217 = vsel %vm185, %v71, 0
  %v220 = vsel %vm185, %v72, 0
  %v223 = vsel %vm185, %v73, 0
  %v226 = vsel %vm185, %v74, 0
  %vm228 = vcmask 1045504
  %v230 = vsel %vm228, %v165, 0
  %v233 = vsel %vm228, %v166, 0
  %v236 = vsel %vm228, %v167, 0
  %v239 = vsel %vm228, %v168, 0
  %v242 = vsel %vm228, %v169, 0
  %v245 = vsel %vm228, %v170, 0
  %v248 = vsel %vm228, %v171, 0
  %v251 = vsel %vm228, %v172, 0
  %v254 = vsel %vm228, %v173, 0
  %v257 = vsel %vm228, %v174, 0
  %259 = vmatpush.bf16.msra.mxu0 0
  %260 = vmatpush.bf16.msra.mxu0 0
  %261 = vmatpush.bf16.msra.mxu0 0
  %262 = vmatpush.bf16.msra.mxu0 0
  %263 = vmatpush.bf16.msra.mxu0 0
  %264 = vmatpush.bf16.msra.mxu0 0
  %265 = vmatpush.bf16.msra.mxu0 %v230
  %266 = vmatpush.bf16.msra.mxu0 %v155
  %267 = vmatmul.bf16.gmra.mxu0 %v187
  %v268 = vpop.f32.mrf.mxu0
  %v269 = vadd.f32 0.0, %v268
  %v270 = vpop.f32.mrf.mxu0
  %v271 = vadd.f32 0.0, %v270
  %272 = vmatmul.bf16.gmra.mxu0 %v190
  %v273 = vpop.f32.mrf.mxu0
  %v274 = vadd.f32 0.0, %v273
  %v275 = vpop.f32.mrf.mxu0
  %v276 = vadd.f32 0.0, %v275
  %277 = vmatmul.bf16.gmra.mxu0 %v193
  %v278 = vpop.f32.mrf.mxu0
  %v279 = vadd.f32 0.0, %v278
  %v280 = vpop.f32.mrf.mxu0
  %v281 = vadd.f32 0.0, %v280
  %282 = vmatmul.bf16.gmra.mxu0 %v196
  %v283 = vpop.f32.mrf.mxu0
  %v284 = vadd.f32 0.0, %v283
  %v285 = vpop.f32.mrf.mxu0
  %v286 = vadd.f32 0.0, %v285
  %287 = vmatmul.bf16.gmra.mxu0 %v199
  %v288 = vpop.f32.mrf.mxu0
  %v289 = vadd.f32 0.0, %v288
  %v290 = vpop.f32.mrf.mxu0
  %v291 = vadd.f32 0.0, %v290
  %292 = vmatmul.bf16.gmra.mxu0 %v202
  %v293 = vpop.f32.mrf.mxu0
  %v294 = vadd.f32 0.0, %v293
  %v295 = vpop.f32.mrf.mxu0
  %v296 = vadd.f32 0.0, %v295
  %297 = vmatmul.bf16.gmra.mxu0 %v205
  %v298 = vpop.f32.mrf.mxu0
  %v299 = vadd.f32 0.0, %v298
  %v300 = vpop.f32.mrf.mxu0
  %v301 = vadd.f32 0.0, %v300
  %302 = vmatmul.bf16.gmra.mxu0 %v208
  %v303 = vpop.f32.mrf.mxu0
  %v304 = vadd.f32 0.0, %v303
  %v305 = vpop.f32.mrf.mxu0
  %v306 = vadd.f32 0.0, %v305
  %307 = vmatmul.bf16.gmra.mxu0 %v211
  %v308 = vpop.f32.mrf.mxu0
  %v309 = vadd.f32 0.0, %v308
  %v310 = vpop.f32.mrf.mxu0
  %v311 = vadd.f32 0.0, %v310
  %312 = vmatmul.bf16.gmra.mxu0 %v214
  %v313 = vpop.f32.mrf.mxu0
  %v314 = vadd.f32 0.0, %v313
  %v315 = vpop.f32.mrf.mxu0
  %v316 = vadd.f32 0.0, %v315
  %317 = vmatmul.bf16.gmra.mxu0 %v217
  %v318 = vpop.f32.mrf.mxu0
  %v319 = vadd.f32 0.0, %v318
  %v320 = vpop.f32.mrf.mxu0
  %v321 = vadd.f32 0.0, %v320
  %322 = vmatmul.bf16.gmra.mxu0 %v220
  %v323 = vpop.f32.mrf.mxu0
  %v324 = vadd.f32 0.0, %v323
  %v325 = vpop.f32.mrf.mxu0
  %v326 = vadd.f32 0.0, %v325
  %327 = vmatmul.bf16.gmra.mxu0 %v223
  %v328 = vpop.f32.mrf.mxu0
  %v329 = vadd.f32 0.0, %v328
  %v330 = vpop.f32.mrf.mxu0
  %v331 = vadd.f32 0.0, %v330
  %332 = vmatmul.bf16.gmra.mxu0 %v226
  %v333 = vpop.f32.mrf.mxu0
  %v334 = vadd.f32 0.0, %v333
  %v335 = vpop.f32.mrf.mxu0
  %v336 = vadd.f32 0.0, %v335
  %337 = vdwg.mxu0
  %338 = vmatpush.bf16.msra.mxu0 0
  %339 = vmatpush.bf16.msra.mxu0 0
  %340 = vmatpush.bf16.msra.mxu0 0
  %341 = vmatpush.bf16.msra.mxu0 0
  %342 = vmatpush.bf16.msra.mxu0 0
  %343 = vmatpush.bf16.msra.mxu0 0
  %344 = vmatpush.bf16.msra.mxu0 %v233
  %345 = vmatpush.bf16.msra.mxu0 %v156
  %346 = vmatmul.bf16.gmra.mxu0 %v187
  %v347 = vpop.f32.mrf.mxu0
  %v348 = vadd.f32 0.0, %v347
  %v349 = vpop.f32.mrf.mxu0
  %v350 = vadd.f32 0.0, %v349
  %351 = vmatmul.bf16.gmra.mxu0 %v190
  %v352 = vpop.f32.mrf.mxu0
  %v353 = vadd.f32 0.0, %v352
  %v354 = vpop.f32.mrf.mxu0
  %v355 = vadd.f32 0.0, %v354
  %356 = vmatmul.bf16.gmra.mxu0 %v193
  %v357 = vpop.f32.mrf.mxu0
  %v358 = vadd.f32 0.0, %v357
  %v359 = vpop.f32.mrf.mxu0
  %v360 = vadd.f32 0.0, %v359
  %361 = vmatmul.bf16.gmra.mxu0 %v196
  %v362 = vpop.f32.mrf.mxu0
  %v363 = vadd.f32 0.0, %v362
  %v364 = vpop.f32.mrf.mxu0
  %v365 = vadd.f32 0.0, %v364
  %366 = vmatmul.bf16.gmra.mxu0 %v199
  %v367 = vpop.f32.mrf.mxu0
  %v368 = vadd.f32 0.0, %v367
  %v369 = vpop.f32.mrf.mxu0
  %v370 = vadd.f32 0.0, %v369
  %371 = vmatmul.bf16.gmra.mxu0 %v202
  %v372 = vpop.f32.mrf.mxu0
  %v373 = vadd.f32 0.0, %v372
  %v374 = vpop.f32.mrf.mxu0
  %v375 = vadd.f32 0.0, %v374
  %376 = vmatmul.bf16.gmra.mxu0 %v205
  %v377 = vpop.f32.mrf.mxu0
  %v378 = vadd.f32 0.0, %v377
  %v379 = vpop.f32.mrf.mxu0
  %v380 = vadd.f32 0.0, %v379
  %381 = vmatmul.bf16.gmra.mxu0 %v208
  %v382 = vpop.f32.mrf.mxu0
  %v383 = vadd.f32 0.0, %v382
  %v384 = vpop.f32.mrf.mxu0
  %v385 = vadd.f32 0.0, %v384
  %386 = vmatmul.bf16.gmra.mxu0 %v211
  %v387 = vpop.f32.mrf.mxu0
  %v388 = vadd.f32 0.0, %v387
  %v389 = vpop.f32.mrf.mxu0
  %v390 = vadd.f32 0.0, %v389
  %391 = vmatmul.bf16.gmra.mxu0 %v214
  %v392 = vpop.f32.mrf.mxu0
  %v393 = vadd.f32 0.0, %v392
  %v394 = vpop.f32.mrf.mxu0
  %v395 = vadd.f32 0.0, %v394
  %396 = vmatmul.bf16.gmra.mxu0 %v217
  %v397 = vpop.f32.mrf.mxu0
  %v398 = vadd.f32 0.0, %v397
  %v399 = vpop.f32.mrf.mxu0
  %v400 = vadd.f32 0.0, %v399
  %401 = vmatmul.bf16.gmra.mxu0 %v220
  %v402 = vpop.f32.mrf.mxu0
  %v403 = vadd.f32 0.0, %v402
  %v404 = vpop.f32.mrf.mxu0
  %v405 = vadd.f32 0.0, %v404
  %406 = vmatmul.bf16.gmra.mxu0 %v223
  %v407 = vpop.f32.mrf.mxu0
  %v408 = vadd.f32 0.0, %v407
  %v409 = vpop.f32.mrf.mxu0
  %v410 = vadd.f32 0.0, %v409
  %411 = vmatmul.bf16.gmra.mxu0 %v226
  %v412 = vpop.f32.mrf.mxu0
  %v413 = vadd.f32 0.0, %v412
  %v414 = vpop.f32.mrf.mxu0
  %v415 = vadd.f32 0.0, %v414
  %416 = vdwg.mxu0
  %417 = vmatpush.bf16.msra.mxu0 0
  %418 = vmatpush.bf16.msra.mxu0 0
  %419 = vmatpush.bf16.msra.mxu0 0
  %420 = vmatpush.bf16.msra.mxu0 0
  %421 = vmatpush.bf16.msra.mxu0 0
  %422 = vmatpush.bf16.msra.mxu0 0
  %423 = vmatpush.bf16.msra.mxu0 %v236
  %424 = vmatpush.bf16.msra.mxu0 %v157
  %425 = vmatmul.bf16.gmra.mxu0 %v187
  %v426 = vpop.f32.mrf.mxu0
  %v427 = vadd.f32 0.0, %v426
  %v428 = vpop.f32.mrf.mxu0
  %v429 = vadd.f32 0.0, %v428
  %430 = vmatmul.bf16.gmra.mxu0 %v190
  %v431 = vpop.f32.mrf.mxu0
  %v432 = vadd.f32 0.0, %v431
  %v433 = vpop.f32.mrf.mxu0
  %v434 = vadd.f32 0.0, %v433
  %435 = vmatmul.bf16.gmra.mxu0 %v193
  %v436 = vpop.f32.mrf.mxu0
  %v437 = vadd.f32 0.0, %v436
  %v438 = vpop.f32.mrf.mxu0
  %v439 = vadd.f32 0.0, %v438
  %440 = vmatmul.bf16.gmra.mxu0 %v196
  %v441 = vpop.f32.mrf.mxu0
  %v442 = vadd.f32 0.0, %v441
  %v443 = vpop.f32.mrf.mxu0
  %v444 = vadd.f32 0.0, %v443
  %445 = vmatmul.bf16.gmra.mxu0 %v199
  %v446 = vpop.f32.mrf.mxu0
  %v447 = vadd.f32 0.0, %v446
  %v448 = vpop.f32.mrf.mxu0
  %v449 = vadd.f32 0.0, %v448
  %450 = vmatmul.bf16.gmra.mxu0 %v202
  %v451 = vpop.f32.mrf.mxu0
  %v452 = vadd.f32 0.0, %v451
  %v453 = vpop.f32.mrf.mxu0
  %v454 = vadd.f32 0.0, %v453
  %455 = vmatmul.bf16.gmra.mxu0 %v205
  %v456 = vpop.f32.mrf.mxu0
  %v457 = vadd.f32 0.0, %v456
  %v458 = vpop.f32.mrf.mxu0
  %v459 = vadd.f32 0.0, %v458
  %460 = vmatmul.bf16.gmra.mxu0 %v208
  %v461 = vpop.f32.mrf.mxu0
  %v462 = vadd.f32 0.0, %v461
  %v463 = vpop.f32.mrf.mxu0
  %v464 = vadd.f32 0.0, %v463
  %465 = vmatmul.bf16.gmra.mxu0 %v211
  %v466 = vpop.f32.mrf.mxu0
  %v467 = vadd.f32 0.0, %v466
  %v468 = vpop.f32.mrf.mxu0
  %v469 = vadd.f32 0.0, %v468
  %470 = vmatmul.bf16.gmra.mxu0 %v214
  %v471 = vpop.f32.mrf.mxu0
  %v472 = vadd.f32 0.0, %v471
  %v473 = vpop.f32.mrf.mxu0
  %v474 = vadd.f32 0.0, %v473
  %475 = vmatmul.bf16.gmra.mxu0 %v217
  %v476 = vpop.f32.mrf.mxu0
  %v477 = vadd.f32 0.0, %v476
  %v478 = vpop.f32.mrf.mxu0
  %v479 = vadd.f32 0.0, %v478
  %480 = vmatmul.bf16.gmra.mxu0 %v220
  %v481 = vpop.f32.mrf.mxu0
  %v482 = vadd.f32 0.0, %v481
  %v483 = vpop.f32.mrf.mxu0
  %v484 = vadd.f32 0.0, %v483
  %485 = vmatmul.bf16.gmra.mxu0 %v223
  %v486 = vpop.f32.mrf.mxu0
  %v487 = vadd.f32 0.0, %v486
  %v488 = vpop.f32.mrf.mxu0
  %v489 = vadd.f32 0.0, %v488
  %490 = vmatmul.bf16.gmra.mxu0 %v226
  %v491 = vpop.f32.mrf.mxu0
  %v492 = vadd.f32 0.0, %v491
  %v493 = vpop.f32.mrf.mxu0
  %v494 = vadd.f32 0.0, %v493
  %495 = vdwg.mxu0
  %496 = vmatpush.bf16.msra.mxu0 0
  %497 = vmatpush.bf16.msra.mxu0 0
  %498 = vmatpush.bf16.msra.mxu0 0
  %499 = vmatpush.bf16.msra.mxu0 0
  %500 = vmatpush.bf16.msra.mxu0 0
  %501 = vmatpush.bf16.msra.mxu0 0
  %502 = vmatpush.bf16.msra.mxu0 %v239
  %503 = vmatpush.bf16.msra.mxu0 %v158
  %504 = vmatmul.bf16.gmra.mxu0 %v187
  %v505 = vpop.f32.mrf.mxu0
  %v506 = vadd.f32 0.0, %v505
  %v507 = vpop.f32.mrf.mxu0
  %v508 = vadd.f32 0.0, %v507
  %509 = vmatmul.bf16.gmra.mxu0 %v190
  %v510 = vpop.f32.mrf.mxu0
  %v511 = vadd.f32 0.0, %v510
  %v512 = vpop.f32.mrf.mxu0
  %v513 = vadd.f32 0.0, %v512
  %514 = vmatmul.bf16.gmra.mxu0 %v193
  %v515 = vpop.f32.mrf.mxu0
  %v516 = vadd.f32 0.0, %v515
  %v517 = vpop.f32.mrf.mxu0
  %v518 = vadd.f32 0.0, %v517
  %519 = vmatmul.bf16.gmra.mxu0 %v196
  %v520 = vpop.f32.mrf.mxu0
  %v521 = vadd.f32 0.0, %v520
  %v522 = vpop.f32.mrf.mxu0
  %v523 = vadd.f32 0.0, %v522
  %524 = vmatmul.bf16.gmra.mxu0 %v199
  %v525 = vpop.f32.mrf.mxu0
  %v526 = vadd.f32 0.0, %v525
  %v527 = vpop.f32.mrf.mxu0
  %v528 = vadd.f32 0.0, %v527
  %529 = vmatmul.bf16.gmra.mxu0 %v202
  %v530 = vpop.f32.mrf.mxu0
  %v531 = vadd.f32 0.0, %v530
  %v532 = vpop.f32.mrf.mxu0
  %v533 = vadd.f32 0.0, %v532
  %534 = vmatmul.bf16.gmra.mxu0 %v205
  %v535 = vpop.f32.mrf.mxu0
  %v536 = vadd.f32 0.0, %v535
  %v537 = vpop.f32.mrf.mxu0
  %v538 = vadd.f32 0.0, %v537
  %539 = vmatmul.bf16.gmra.mxu0 %v208
  %v540 = vpop.f32.mrf.mxu0
  %v541 = vadd.f32 0.0, %v540
  %v542 = vpop.f32.mrf.mxu0
  %v543 = vadd.f32 0.0, %v542
  %544 = vmatmul.bf16.gmra.mxu0 %v211
  %v545 = vpop.f32.mrf.mxu0
  %v546 = vadd.f32 0.0, %v545
  %v547 = vpop.f32.mrf.mxu0
  %v548 = vadd.f32 0.0, %v547
  %549 = vmatmul.bf16.gmra.mxu0 %v214
  %v550 = vpop.f32.mrf.mxu0
  %v551 = vadd.f32 0.0, %v550
  %v552 = vpop.f32.mrf.mxu0
  %v553 = vadd.f32 0.0, %v552
  %554 = vmatmul.bf16.gmra.mxu0 %v217
  %v555 = vpop.f32.mrf.mxu0
  %v556 = vadd.f32 0.0, %v555
  %v557 = vpop.f32.mrf.mxu0
  %v558 = vadd.f32 0.0, %v557
  %559 = vmatmul.bf16.gmra.mxu0 %v220
  %v560 = vpop.f32.mrf.mxu0
  %v561 = vadd.f32 0.0, %v560
  %v562 = vpop.f32.mrf.mxu0
  %v563 = vadd.f32 0.0, %v562
  %564 = vmatmul.bf16.gmra.mxu0 %v223
  %v565 = vpop.f32.mrf.mxu0
  %v566 = vadd.f32 0.0, %v565
  %v567 = vpop.f32.mrf.mxu0
  %v568 = vadd.f32 0.0, %v567
  %569 = vmatmul.bf16.gmra.mxu0 %v226
  %v570 = vpop.f32.mrf.mxu0
  %v571 = vadd.f32 0.0, %v570
  %v572 = vpop.f32.mrf.mxu0
  %v573 = vadd.f32 0.0, %v572
  %574 = vdwg.mxu0
  %575 = vmatpush.bf16.msra.mxu0 0
  %576 = vmatpush.bf16.msra.mxu0 0
  %577 = vmatpush.bf16.msra.mxu0 0
  %578 = vmatpush.bf16.msra.mxu0 0
  %579 = vmatpush.bf16.msra.mxu0 0
  %580 = vmatpush.bf16.msra.mxu0 0
  %581 = vmatpush.bf16.msra.mxu0 %v242
  %582 = vmatpush.bf16.msra.mxu0 %v159
  %583 = vmatmul.bf16.gmra.mxu0 %v187
  %v584 = vpop.f32.mrf.mxu0
  %v585 = vadd.f32 0.0, %v584
  %v586 = vpop.f32.mrf.mxu0
  %v587 = vadd.f32 0.0, %v586
  %588 = vmatmul.bf16.gmra.mxu0 %v190
  %v589 = vpop.f32.mrf.mxu0
  %v590 = vadd.f32 0.0, %v589
  %v591 = vpop.f32.mrf.mxu0
  %v592 = vadd.f32 0.0, %v591
  %593 = vmatmul.bf16.gmra.mxu0 %v193
  %v594 = vpop.f32.mrf.mxu0
  %v595 = vadd.f32 0.0, %v594
  %v596 = vpop.f32.mrf.mxu0
  %v597 = vadd.f32 0.0, %v596
  %598 = vmatmul.bf16.gmra.mxu0 %v196
  %v599 = vpop.f32.mrf.mxu0
  %v600 = vadd.f32 0.0, %v599
  %v601 = vpop.f32.mrf.mxu0
  %v602 = vadd.f32 0.0, %v601
  %603 = vmatmul.bf16.gmra.mxu0 %v199
  %v604 = vpop.f32.mrf.mxu0
  %v605 = vadd.f32 0.0, %v604
  %v606 = vpop.f32.mrf.mxu0
  %v607 = vadd.f32 0.0, %v606
  %608 = vmatmul.bf16.gmra.mxu0 %v202
  %v609 = vpop.f32.mrf.mxu0
  %v610 = vadd.f32 0.0, %v609
  %v611 = vpop.f32.mrf.mxu0
  %v612 = vadd.f32 0.0, %v611
  %613 = vmatmul.bf16.gmra.mxu0 %v205
  %v614 = vpop.f32.mrf.mxu0
  %v615 = vadd.f32 0.0, %v614
  %v616 = vpop.f32.mrf.mxu0
  %v617 = vadd.f32 0.0, %v616
  %618 = vmatmul.bf16.gmra.mxu0 %v208
  %v619 = vpop.f32.mrf.mxu0
  %v620 = vadd.f32 0.0, %v619
  %v621 = vpop.f32.mrf.mxu0
  %v622 = vadd.f32 0.0, %v621
  %623 = vmatmul.bf16.gmra.mxu0 %v211
  %v624 = vpop.f32.mrf.mxu0
  %v625 = vadd.f32 0.0, %v624
  %v626 = vpop.f32.mrf.mxu0
  %v627 = vadd.f32 0.0, %v626
  %628 = vmatmul.bf16.gmra.mxu0 %v214
  %v629 = vpop.f32.mrf.mxu0
  %v630 = vadd.f32 0.0, %v629
  %v631 = vpop.f32.mrf.mxu0
  %v632 = vadd.f32 0.0, %v631
  %633 = vmatmul.bf16.gmra.mxu0 %v217
  %v634 = vpop.f32.mrf.mxu0
  %v635 = vadd.f32 0.0, %v634
  %v636 = vpop.f32.mrf.mxu0
  %v637 = vadd.f32 0.0, %v636
  %638 = vmatmul.bf16.gmra.mxu0 %v220
  %v639 = vpop.f32.mrf.mxu0
  %v640 = vadd.f32 0.0, %v639
  %v641 = vpop.f32.mrf.mxu0
  %v642 = vadd.f32 0.0, %v641
  %643 = vmatmul.bf16.gmra.mxu0 %v223
  %v644 = vpop.f32.mrf.mxu0
  %v645 = vadd.f32 0.0, %v644
  %v646 = vpop.f32.mrf.mxu0
  %v647 = vadd.f32 0.0, %v646
  %648 = vmatmul.bf16.gmra.mxu0 %v226
  %v649 = vpop.f32.mrf.mxu0
  %v650 = vadd.f32 0.0, %v649
  %v651 = vpop.f32.mrf.mxu0
  %v652 = vadd.f32 0.0, %v651
  %653 = vdwg.mxu0
  %654 = vmatpush.bf16.msra.mxu0 0
  %655 = vmatpush.bf16.msra.mxu0 0
  %656 = vmatpush.bf16.msra.mxu0 0
  %657 = vmatpush.bf16.msra.mxu0 0
  %658 = vmatpush.bf16.msra.mxu0 0
  %659 = vmatpush.bf16.msra.mxu0 0
  %660 = vmatpush.bf16.msra.mxu0 %v245
  %661 = vmatpush.bf16.msra.mxu0 %v160
  %662 = vmatmul.bf16.gmra.mxu0 %v187
  %v663 = vpop.f32.mrf.mxu0
  %v664 = vadd.f32 0.0, %v663
  %v665 = vpop.f32.mrf.mxu0
  %v666 = vadd.f32 0.0, %v665
  %667 = vmatmul.bf16.gmra.mxu0 %v190
  %v668 = vpop.f32.mrf.mxu0
  %v669 = vadd.f32 0.0, %v668
  %v670 = vpop.f32.mrf.mxu0
  %v671 = vadd.f32 0.0, %v670
  %672 = vmatmul.bf16.gmra.mxu0 %v193
  %v673 = vpop.f32.mrf.mxu0
  %v674 = vadd.f32 0.0, %v673
  %v675 = vpop.f32.mrf.mxu0
  %v676 = vadd.f32 0.0, %v675
  %677 = vmatmul.bf16.gmra.mxu0 %v196
  %v678 = vpop.f32.mrf.mxu0
  %v679 = vadd.f32 0.0, %v678
  %v680 = vpop.f32.mrf.mxu0
  %v681 = vadd.f32 0.0, %v680
  %682 = vmatmul.bf16.gmra.mxu0 %v199
  %v683 = vpop.f32.mrf.mxu0
  %v684 = vadd.f32 0.0, %v683
  %v685 = vpop.f32.mrf.mxu0
  %v686 = vadd.f32 0.0, %v685
  %687 = vmatmul.bf16.gmra.mxu0 %v202
  %v688 = vpop.f32.mrf.mxu0
  %v689 = vadd.f32 0.0, %v688
  %v690 = vpop.f32.mrf.mxu0
  %v691 = vadd.f32 0.0, %v690
  %692 = vmatmul.bf16.gmra.mxu0 %v205
  %v693 = vpop.f32.mrf.mxu0
  %v694 = vadd.f32 0.0, %v693
  %v695 = vpop.f32.mrf.mxu0
  %v696 = vadd.f32 0.0, %v695
  %697 = vmatmul.bf16.gmra.mxu0 %v208
  %v698 = vpop.f32.mrf.mxu0
  %v699 = vadd.f32 0.0, %v698
  %v700 = vpop.f32.mrf.mxu0
  %v701 = vadd.f32 0.0, %v700
  %702 = vmatmul.bf16.gmra.mxu0 %v211
  %v703 = vpop.f32.mrf.mxu0
  %v704 = vadd.f32 0.0, %v703
  %v705 = vpop.f32.mrf.mxu0
  %v706 = vadd.f32 0.0, %v705
  %707 = vmatmul.bf16.gmra.mxu0 %v214
  %v708 = vpop.f32.mrf.mxu0
  %v709 = vadd.f32 0.0, %v708
  %v710 = vpop.f32.mrf.mxu0
  %v711 = vadd.f32 0.0, %v710
  %712 = vmatmul.bf16.gmra.mxu0 %v217
  %v713 = vpop.f32.mrf.mxu0
  %v714 = vadd.f32 0.0, %v713
  %v715 = vpop.f32.mrf.mxu0
  %v716 = vadd.f32 0.0, %v715
  %717 = vmatmul.bf16.gmra.mxu0 %v220
  %v718 = vpop.f32.mrf.mxu0
  %v719 = vadd.f32 0.0, %v718
  %v720 = vpop.f32.mrf.mxu0
  %v721 = vadd.f32 0.0, %v720
  %722 = vmatmul.bf16.gmra.mxu0 %v223
  %v723 = vpop.f32.mrf.mxu0
  %v724 = vadd.f32 0.0, %v723
  %v725 = vpop.f32.mrf.mxu0
  %v726 = vadd.f32 0.0, %v725
  %727 = vmatmul.bf16.gmra.mxu0 %v226
  %v728 = vpop.f32.mrf.mxu0
  %v729 = vadd.f32 0.0, %v728
  %v730 = vpop.f32.mrf.mxu0
  %v731 = vadd.f32 0.0, %v730
  %732 = vdwg.mxu0
  %733 = vmatpush.bf16.msra.mxu0 0
  %734 = vmatpush.bf16.msra.mxu0 0
  %735 = vmatpush.bf16.msra.mxu0 0
  %736 = vmatpush.bf16.msra.mxu0 0
  %737 = vmatpush.bf16.msra.mxu0 0
  %738 = vmatpush.bf16.msra.mxu0 0
  %739 = vmatpush.bf16.msra.mxu0 %v248
  %740 = vmatpush.bf16.msra.mxu0 %v161
  %741 = vmatmul.bf16.gmra.mxu0 %v187
  %v742 = vpop.f32.mrf.mxu0
  %v743 = vadd.f32 0.0, %v742
  %v744 = vpop.f32.mrf.mxu0
  %v745 = vadd.f32 0.0, %v744
  %746 = vmatmul.bf16.gmra.mxu0 %v190
  %v747 = vpop.f32.mrf.mxu0
  %v748 = vadd.f32 0.0, %v747
  %v749 = vpop.f32.mrf.mxu0
  %v750 = vadd.f32 0.0, %v749
  %751 = vmatmul.bf16.gmra.mxu0 %v193
  %v752 = vpop.f32.mrf.mxu0
  %v753 = vadd.f32 0.0, %v752
  %v754 = vpop.f32.mrf.mxu0
  %v755 = vadd.f32 0.0, %v754
  %756 = vmatmul.bf16.gmra.mxu0 %v196
  %v757 = vpop.f32.mrf.mxu0
  %v758 = vadd.f32 0.0, %v757
  %v759 = vpop.f32.mrf.mxu0
  %v760 = vadd.f32 0.0, %v759
  %761 = vmatmul.bf16.gmra.mxu0 %v199
  %v762 = vpop.f32.mrf.mxu0
  %v763 = vadd.f32 0.0, %v762
  %v764 = vpop.f32.mrf.mxu0
  %v765 = vadd.f32 0.0, %v764
  %766 = vmatmul.bf16.gmra.mxu0 %v202
  %v767 = vpop.f32.mrf.mxu0
  %v768 = vadd.f32 0.0, %v767
  %v769 = vpop.f32.mrf.mxu0
  %v770 = vadd.f32 0.0, %v769
  %771 = vmatmul.bf16.gmra.mxu0 %v205
  %v772 = vpop.f32.mrf.mxu0
  %v773 = vadd.f32 0.0, %v772
  %v774 = vpop.f32.mrf.mxu0
  %v775 = vadd.f32 0.0, %v774
  %776 = vmatmul.bf16.gmra.mxu0 %v208
  %v777 = vpop.f32.mrf.mxu0
  %v778 = vadd.f32 0.0, %v777
  %v779 = vpop.f32.mrf.mxu0
  %v780 = vadd.f32 0.0, %v779
  %781 = vmatmul.bf16.gmra.mxu0 %v211
  %v782 = vpop.f32.mrf.mxu0
  %v783 = vadd.f32 0.0, %v782
  %v784 = vpop.f32.mrf.mxu0
  %v785 = vadd.f32 0.0, %v784
  %786 = vmatmul.bf16.gmra.mxu0 %v214
  %v787 = vpop.f32.mrf.mxu0
  %v788 = vadd.f32 0.0, %v787
  %v789 = vpop.f32.mrf.mxu0
  %v790 = vadd.f32 0.0, %v789
  %791 = vmatmul.bf16.gmra.mxu0 %v217
  %v792 = vpop.f32.mrf.mxu0
  %v793 = vadd.f32 0.0, %v792
  %v794 = vpop.f32.mrf.mxu0
  %v795 = vadd.f32 0.0, %v794
  %796 = vmatmul.bf16.gmra.mxu0 %v220
  %v797 = vpop.f32.mrf.mxu0
  %v798 = vadd.f32 0.0, %v797
  %v799 = vpop.f32.mrf.mxu0
  %v800 = vadd.f32 0.0, %v799
  %801 = vmatmul.bf16.gmra.mxu0 %v223
  %v802 = vpop.f32.mrf.mxu0
  %v803 = vadd.f32 0.0, %v802
  %v804 = vpop.f32.mrf.mxu0
  %v805 = vadd.f32 0.0, %v804
  %806 = vmatmul.bf16.gmra.mxu0 %v226
  %v807 = vpop.f32.mrf.mxu0
  %v808 = vadd.f32 0.0, %v807
  %v809 = vpop.f32.mrf.mxu0
  %v810 = vadd.f32 0.0, %v809
  %811 = vdwg.mxu0
  %812 = vmatpush.bf16.msra.mxu0 0
  %813 = vmatpush.bf16.msra.mxu0 0
  %814 = vmatpush.bf16.msra.mxu0 0
  %815 = vmatpush.bf16.msra.mxu0 0
  %816 = vmatpush.bf16.msra.mxu0 0
  %817 = vmatpush.bf16.msra.mxu0 0
  %818 = vmatpush.bf16.msra.mxu0 %v251
  %819 = vmatpush.bf16.msra.mxu0 %v162
  %820 = vmatmul.bf16.gmra.mxu0 %v187
  %v821 = vpop.f32.mrf.mxu0
  %v822 = vadd.f32 0.0, %v821
  %v823 = vpop.f32.mrf.mxu0
  %v824 = vadd.f32 0.0, %v823
  %825 = vmatmul.bf16.gmra.mxu0 %v190
  %v826 = vpop.f32.mrf.mxu0
  %v827 = vadd.f32 0.0, %v826
  %v828 = vpop.f32.mrf.mxu0
  %v829 = vadd.f32 0.0, %v828
  %830 = vmatmul.bf16.gmra.mxu0 %v193
  %v831 = vpop.f32.mrf.mxu0
  %v832 = vadd.f32 0.0, %v831
  %v833 = vpop.f32.mrf.mxu0
  %v834 = vadd.f32 0.0, %v833
  %835 = vmatmul.bf16.gmra.mxu0 %v196
  %v836 = vpop.f32.mrf.mxu0
  %v837 = vadd.f32 0.0, %v836
  %v838 = vpop.f32.mrf.mxu0
  %v839 = vadd.f32 0.0, %v838
  %840 = vmatmul.bf16.gmra.mxu0 %v199
  %v841 = vpop.f32.mrf.mxu0
  %v842 = vadd.f32 0.0, %v841
  %v843 = vpop.f32.mrf.mxu0
  %v844 = vadd.f32 0.0, %v843
  %845 = vmatmul.bf16.gmra.mxu0 %v202
  %v846 = vpop.f32.mrf.mxu0
  %v847 = vadd.f32 0.0, %v846
  %v848 = vpop.f32.mrf.mxu0
  %v849 = vadd.f32 0.0, %v848
  %850 = vmatmul.bf16.gmra.mxu0 %v205
  %v851 = vpop.f32.mrf.mxu0
  %v852 = vadd.f32 0.0, %v851
  %v853 = vpop.f32.mrf.mxu0
  %v854 = vadd.f32 0.0, %v853
  %855 = vmatmul.bf16.gmra.mxu0 %v208
  %v856 = vpop.f32.mrf.mxu0
  %v857 = vadd.f32 0.0, %v856
  %v858 = vpop.f32.mrf.mxu0
  %v859 = vadd.f32 0.0, %v858
  %860 = vmatmul.bf16.gmra.mxu0 %v211
  %v861 = vpop.f32.mrf.mxu0
  %v862 = vadd.f32 0.0, %v861
  %v863 = vpop.f32.mrf.mxu0
  %v864 = vadd.f32 0.0, %v863
  %865 = vmatmul.bf16.gmra.mxu0 %v214
  %v866 = vpop.f32.mrf.mxu0
  %v867 = vadd.f32 0.0, %v866
  %v868 = vpop.f32.mrf.mxu0
  %v869 = vadd.f32 0.0, %v868
  %870 = vmatmul.bf16.gmra.mxu0 %v217
  %v871 = vpop.f32.mrf.mxu0
  %v872 = vadd.f32 0.0, %v871
  %v873 = vpop.f32.mrf.mxu0
  %v874 = vadd.f32 0.0, %v873
  %875 = vmatmul.bf16.gmra.mxu0 %v220
  %v876 = vpop.f32.mrf.mxu0
  %v877 = vadd.f32 0.0, %v876
  %v878 = vpop.f32.mrf.mxu0
  %v879 = vadd.f32 0.0, %v878
  %880 = vmatmul.bf16.gmra.mxu0 %v223
  %v881 = vpop.f32.mrf.mxu0
  %v882 = vadd.f32 0.0, %v881
  %v883 = vpop.f32.mrf.mxu0
  %v884 = vadd.f32 0.0, %v883
  %885 = vmatmul.bf16.gmra.mxu0 %v226
  %v886 = vpop.f32.mrf.mxu0
  %v887 = vadd.f32 0.0, %v886
  %v888 = vpop.f32.mrf.mxu0
  %v889 = vadd.f32 0.0, %v888
  %890 = vdwg.mxu0
  %891 = vmatpush.bf16.msra.mxu0 0
  %892 = vmatpush.bf16.msra.mxu0 0
  %893 = vmatpush.bf16.msra.mxu0 0
  %894 = vmatpush.bf16.msra.mxu0 0
  %895 = vmatpush.bf16.msra.mxu0 0
  %896 = vmatpush.bf16.msra.mxu0 0
  %897 = vmatpush.bf16.msra.mxu0 %v254
  %898 = vmatpush.bf16.msra.mxu0 %v163
  %899 = vmatmul.bf16.gmra.mxu0 %v187
  %v900 = vpop.f32.mrf.mxu0
  %v901 = vadd.f32 0.0, %v900
  %v902 = vpop.f32.mrf.mxu0
  %v903 = vadd.f32 0.0, %v902
  %904 = vmatmul.bf16.gmra.mxu0 %v190
  %v905 = vpop.f32.mrf.mxu0
  %v906 = vadd.f32 0.0, %v905
  %v907 = vpop.f32.mrf.mxu0
  %v908 = vadd.f32 0.0, %v907
  %909 = vmatmul.bf16.gmra.mxu0 %v193
  %v910 = vpop.f32.mrf.mxu0
  %v911 = vadd.f32 0.0, %v910
  %v912 = vpop.f32.mrf.mxu0
  %v913 = vadd.f32 0.0, %v912
  %914 = vmatmul.bf16.gmra.mxu0 %v196
  %v915 = vpop.f32.mrf.mxu0
  %v916 = vadd.f32 0.0, %v915
  %v917 = vpop.f32.mrf.mxu0
  %v918 = vadd.f32 0.0, %v917
  %919 = vmatmul.bf16.gmra.mxu0 %v199
  %v920 = vpop.f32.mrf.mxu0
  %v921 = vadd.f32 0.0, %v920
  %v922 = vpop.f32.mrf.mxu0
  %v923 = vadd.f32 0.0, %v922
  %924 = vmatmul.bf16.gmra.mxu0 %v202
  %v925 = vpop.f32.mrf.mxu0
  %v926 = vadd.f32 0.0, %v925
  %v927 = vpop.f32.mrf.mxu0
  %v928 = vadd.f32 0.0, %v927
  %929 = vmatmul.bf16.gmra.mxu0 %v205
  %v930 = vpop.f32.mrf.mxu0
  %v931 = vadd.f32 0.0, %v930
  %v932 = vpop.f32.mrf.mxu0
  %v933 = vadd.f32 0.0, %v932
  %934 = vmatmul.bf16.gmra.mxu0 %v208
  %v935 = vpop.f32.mrf.mxu0
  %v936 = vadd.f32 0.0, %v935
  %v937 = vpop.f32.mrf.mxu0
  %v938 = vadd.f32 0.0, %v937
  %939 = vmatmul.bf16.gmra.mxu0 %v211
  %v940 = vpop.f32.mrf.mxu0
  %v941 = vadd.f32 0.0, %v940
  %v942 = vpop.f32.mrf.mxu0
  %v943 = vadd.f32 0.0, %v942
  %944 = vmatmul.bf16.gmra.mxu0 %v214
  %v945 = vpop.f32.mrf.mxu0
  %v946 = vadd.f32 0.0, %v945
  %v947 = vpop.f32.mrf.mxu0
  %v948 = vadd.f32 0.0, %v947
  %949 = vmatmul.bf16.gmra.mxu0 %v217
  %v950 = vpop.f32.mrf.mxu0
  %v951 = vadd.f32 0.0, %v950
  %v952 = vpop.f32.mrf.mxu0
  %v953 = vadd.f32 0.0, %v952
  %954 = vmatmul.bf16.gmra.mxu0 %v220
  %v955 = vpop.f32.mrf.mxu0
  %v956 = vadd.f32 0.0, %v955
  %v957 = vpop.f32.mrf.mxu0
  %v958 = vadd.f32 0.0, %v957
  %959 = vmatmul.bf16.gmra.mxu0 %v223
  %v960 = vpop.f32.mrf.mxu0
  %v961 = vadd.f32 0.0, %v960
  %v962 = vpop.f32.mrf.mxu0
  %v963 = vadd.f32 0.0, %v962
  %964 = vmatmul.bf16.gmra.mxu0 %v226
  %v965 = vpop.f32.mrf.mxu0
  %v966 = vadd.f32 0.0, %v965
  %v967 = vpop.f32.mrf.mxu0
  %v968 = vadd.f32 0.0, %v967
  %969 = vdwg.mxu0
  %970 = vmatpush.bf16.msra.mxu0 0
  %971 = vmatpush.bf16.msra.mxu0 0
  %972 = vmatpush.bf16.msra.mxu0 0
  %973 = vmatpush.bf16.msra.mxu0 0
  %974 = vmatpush.bf16.msra.mxu0 0
  %975 = vmatpush.bf16.msra.mxu0 0
  %976 = vmatpush.bf16.msra.mxu0 %v257
  %977 = vmatpush.bf16.msra.mxu0 %v164
  %978 = vmatmul.bf16.gmra.mxu0 %v187
  %v979 = vpop.f32.mrf.mxu0
  %v980 = vadd.f32 0.0, %v979
  %v981 = vpop.f32.mrf.mxu0
  %v982 = vadd.f32 0.0, %v981
  %983 = vmatmul.bf16.gmra.mxu0 %v190
  %v984 = vpop.f32.mrf.mxu0
  %v985 = vadd.f32 0.0, %v984
  %v986 = vpop.f32.mrf.mxu0
  %v987 = vadd.f32 0.0, %v986
  %988 = vmatmul.bf16.gmra.mxu0 %v193
  %v989 = vpop.f32.mrf.mxu0
  %v990 = vadd.f32 0.0, %v989
  %v991 = vpop.f32.mrf.mxu0
  %v992 = vadd.f32 0.0, %v991
  %993 = vmatmul.bf16.gmra.mxu0 %v196
  %v994 = vpop.f32.mrf.mxu0
  %v995 = vadd.f32 0.0, %v994
  %v996 = vpop.f32.mrf.mxu0
  %v997 = vadd.f32 0.0, %v996
  %998 = vmatmul.bf16.gmra.mxu0 %v199
  %v999 = vpop.f32.mrf.mxu0
  %v1000 = vadd.f32 0.0, %v999
  %v1001 = vpop.f32.mrf.mxu0
  %v1002 = vadd.f32 0.0, %v1001
  %1003 = vmatmul.bf16.gmra.mxu0 %v202
  %v1004 = vpop.f32.mrf.mxu0
  %v1005 = vadd.f32 0.0, %v1004
  %v1006 = vpop.f32.mrf.mxu0
  %v1007 = vadd.f32 0.0, %v1006
  %1008 = vmatmul.bf16.gmra.mxu0 %v205
  %v1009 = vpop.f32.mrf.mxu0
  %v1010 = vadd.f32 0.0, %v1009
  %v1011 = vpop.f32.mrf.mxu0
  %v1012 = vadd.f32 0.0, %v1011
  %1013 = vmatmul.bf16.gmra.mxu0 %v208
  %v1014 = vpop.f32.mrf.mxu0
  %v1015 = vadd.f32 0.0, %v1014
  %v1016 = vpop.f32.mrf.mxu0
  %v1017 = vadd.f32 0.0, %v1016
  %1018 = vmatmul.bf16.gmra.mxu0 %v211
  %v1019 = vpop.f32.mrf.mxu0
  %v1020 = vadd.f32 0.0, %v1019
  %v1021 = vpop.f32.mrf.mxu0
  %v1022 = vadd.f32 0.0, %v1021
  %1023 = vmatmul.bf16.gmra.mxu0 %v214
  %v1024 = vpop.f32.mrf.mxu0
  %v1025 = vadd.f32 0.0, %v1024
  %v1026 = vpop.f32.mrf.mxu0
  %v1027 = vadd.f32 0.0, %v1026
  %1028 = vmatmul.bf16.gmra.mxu0 %v217
  %v1029 = vpop.f32.mrf.mxu0
  %v1030 = vadd.f32 0.0, %v1029
  %v1031 = vpop.f32.mrf.mxu0
  %v1032 = vadd.f32 0.0, %v1031
  %1033 = vmatmul.bf16.gmra.mxu0 %v220
  %v1034 = vpop.f32.mrf.mxu0
  %v1035 = vadd.f32 0.0, %v1034
  %v1036 = vpop.f32.mrf.mxu0
  %v1037 = vadd.f32 0.0, %v1036
  %1038 = vmatmul.bf16.gmra.mxu0 %v223
  %v1039 = vpop.f32.mrf.mxu0
  %v1040 = vadd.f32 0.0, %v1039
  %v1041 = vpop.f32.mrf.mxu0
  %v1042 = vadd.f32 0.0, %v1041
  %1043 = vmatmul.bf16.gmra.mxu0 %v226
  %v1044 = vpop.f32.mrf.mxu0
  %v1045 = vadd.f32 0.0, %v1044
  %v1046 = vpop.f32.mrf.mxu0
  %v1047 = vadd.f32 0.0, %v1046
  %1048 = vdwg.mxu0
  %v1329 = vrot.slane %v348, 4
  %v1330 = vrot.slane %v506, 4
  %v1331 = vrot.slane %v664, 4
  %v1332 = vrot.slane %v822, 4
  %v1333 = vrot.slane %v980, 4
  %v1334 = vrot.slane %v350, 4
  %v1335 = vrot.slane %v508, 4
  %v1336 = vrot.slane %v666, 4
  %v1337 = vrot.slane %v824, 4
  %v1338 = vrot.slane %v982, 4
  %v1339 = vrot.slane %v353, 4
  %v1340 = vrot.slane %v511, 4
  %v1341 = vrot.slane %v669, 4
  %v1342 = vrot.slane %v827, 4
  %v1343 = vrot.slane %v985, 4
  %v1344 = vrot.slane %v355, 4
  %v1345 = vrot.slane %v513, 4
  %v1346 = vrot.slane %v671, 4
  %v1347 = vrot.slane %v829, 4
  %v1348 = vrot.slane %v987, 4
  %v1349 = vrot.slane %v358, 4
  %v1350 = vrot.slane %v516, 4
  %v1351 = vrot.slane %v674, 4
  %v1352 = vrot.slane %v832, 4
  %v1353 = vrot.slane %v990, 4
  %v1354 = vrot.slane %v360, 4
  %v1355 = vrot.slane %v518, 4
  %v1356 = vrot.slane %v676, 4
  %v1357 = vrot.slane %v834, 4
  %v1358 = vrot.slane %v992, 4
  %v1359 = vrot.slane %v363, 4
  %v1360 = vrot.slane %v521, 4
  %v1361 = vrot.slane %v679, 4
  %v1362 = vrot.slane %v837, 4
  %v1363 = vrot.slane %v995, 4
  %v1364 = vrot.slane %v365, 4
  %v1365 = vrot.slane %v523, 4
  %v1366 = vrot.slane %v681, 4
  %v1367 = vrot.slane %v839, 4
  %v1368 = vrot.slane %v997, 4
  %v1369 = vrot.slane %v368, 4
  %v1370 = vrot.slane %v526, 4
  %v1371 = vrot.slane %v684, 4
  %v1372 = vrot.slane %v842, 4
  %v1373 = vrot.slane %v1000, 4
  %v1374 = vrot.slane %v370, 4
  %v1375 = vrot.slane %v528, 4
  %v1376 = vrot.slane %v686, 4
  %v1377 = vrot.slane %v844, 4
  %v1378 = vrot.slane %v1002, 4
  %v1379 = vrot.slane %v373, 4
  %v1380 = vrot.slane %v531, 4
  %v1381 = vrot.slane %v689, 4
  %v1382 = vrot.slane %v847, 4
  %v1383 = vrot.slane %v1005, 4
  %v1384 = vrot.slane %v375, 4
  %v1385 = vrot.slane %v533, 4
  %v1386 = vrot.slane %v691, 4
  %v1387 = vrot.slane %v849, 4
  %v1388 = vrot.slane %v1007, 4
  %v1389 = vrot.slane %v378, 4
  %v1390 = vrot.slane %v536, 4
  %v1391 = vrot.slane %v694, 4
  %v1392 = vrot.slane %v852, 4
  %v1393 = vrot.slane %v1010, 4
  %v1394 = vrot.slane %v380, 4
  %v1395 = vrot.slane %v538, 4
  %v1396 = vrot.slane %v696, 4
  %v1397 = vrot.slane %v854, 4
  %v1398 = vrot.slane %v1012, 4
  %v1399 = vrot.slane %v383, 4
  %v1400 = vrot.slane %v541, 4
  %v1401 = vrot.slane %v699, 4
  %v1402 = vrot.slane %v857, 4
  %v1403 = vrot.slane %v1015, 4
  %v1404 = vrot.slane %v385, 4
  %v1405 = vrot.slane %v543, 4
  %v1406 = vrot.slane %v701, 4
  %v1407 = vrot.slane %v859, 4
  %v1408 = vrot.slane %v1017, 4
  %v1409 = vrot.slane %v388, 4
  %v1410 = vrot.slane %v546, 4
  %v1411 = vrot.slane %v704, 4
  %v1412 = vrot.slane %v862, 4
  %v1413 = vrot.slane %v1020, 4
  %v1414 = vrot.slane %v390, 4
  %v1415 = vrot.slane %v548, 4
  %v1416 = vrot.slane %v706, 4
  %v1417 = vrot.slane %v864, 4
  %v1418 = vrot.slane %v1022, 4
  %v1419 = vrot.slane %v393, 4
  %v1420 = vrot.slane %v551, 4
  %v1421 = vrot.slane %v709, 4
  %v1422 = vrot.slane %v867, 4
  %v1423 = vrot.slane %v1025, 4
  %v1424 = vrot.slane %v395, 4
  %v1425 = vrot.slane %v553, 4
  %v1426 = vrot.slane %v711, 4
  %v1427 = vrot.slane %v869, 4
  %v1428 = vrot.slane %v1027, 4
  %v1429 = vrot.slane %v398, 4
  %v1430 = vrot.slane %v556, 4
  %v1431 = vrot.slane %v714, 4
  %v1432 = vrot.slane %v872, 4
  %v1433 = vrot.slane %v1030, 4
  %v1434 = vrot.slane %v400, 4
  %v1435 = vrot.slane %v558, 4
  %v1436 = vrot.slane %v716, 4
  %v1437 = vrot.slane %v874, 4
  %v1438 = vrot.slane %v1032, 4
  %v1439 = vrot.slane %v403, 4
  %v1440 = vrot.slane %v561, 4
  %v1441 = vrot.slane %v719, 4
  %v1442 = vrot.slane %v877, 4
  %v1443 = vrot.slane %v1035, 4
  %v1444 = vrot.slane %v405, 4
  %v1445 = vrot.slane %v563, 4
  %v1446 = vrot.slane %v721, 4
  %v1447 = vrot.slane %v879, 4
  %v1448 = vrot.slane %v1037, 4
  %v1449 = vrot.slane %v408, 4
  %v1450 = vrot.slane %v566, 4
  %v1451 = vrot.slane %v724, 4
  %v1452 = vrot.slane %v882, 4
  %v1453 = vrot.slane %v1040, 4
  %v1454 = vrot.slane %v410, 4
  %v1455 = vrot.slane %v568, 4
  %v1456 = vrot.slane %v726, 4
  %v1457 = vrot.slane %v884, 4
  %v1458 = vrot.slane %v1042, 4
  %v1459 = vrot.slane %v413, 4
  %v1460 = vrot.slane %v571, 4
  %v1461 = vrot.slane %v729, 4
  %v1462 = vrot.slane %v887, 4
  %v1463 = vrot.slane %v1045, 4
  %v1464 = vrot.slane %v415, 4
  %v1465 = vrot.slane %v573, 4
  %v1466 = vrot.slane %v731, 4
  %v1467 = vrot.slane %v889, 4
  %v1468 = vrot.slane %v1047, 4
  %vm1469 = vcmask 1043456
  %v1470 = vsel %vm1469, %v269, %v1329
  %v1471 = vsel %vm1469, %v427, %v1330
  %v1472 = vsel %vm1469, %v585, %v1331
  %v1473 = vsel %vm1469, %v743, %v1332
  %v1474 = vsel %vm1469, %v1329, %v269
  %v1475 = vrot.slane %v1474, 4
  %v1476 = vsel %vm1469, %v1330, %v427
  %v1477 = vrot.slane %v1476, 4
  %v1478 = vsel %vm1469, %v1331, %v585
  %v1479 = vrot.slane %v1478, 4
  %v1480 = vsel %vm1469, %v1332, %v743
  %v1481 = vrot.slane %v1480, 4
  %v1482 = vsel %vm1469, %v1333, %v901
  %v1483 = vrot.slane %v1482, 4
  %v1484 = vsel %vm1469, %v271, %v1334
  %v1485 = vsel %vm1469, %v429, %v1335
  %v1486 = vsel %vm1469, %v587, %v1336
  %v1487 = vsel %vm1469, %v745, %v1337
  %v1488 = vsel %vm1469, %v903, %v1338
  %v1489 = vsel %vm1469, %v1334, %v271
  %v1490 = vrot.slane %v1489, 4
  %v1491 = vsel %vm1469, %v1335, %v429
  %v1492 = vrot.slane %v1491, 4
  %v1493 = vsel %vm1469, %v1336, %v587
  %v1494 = vrot.slane %v1493, 4
  %v1495 = vsel %vm1469, %v1337, %v745
  %v1496 = vrot.slane %v1495, 4
  %v1497 = vsel %vm1469, %v1338, %v903
  %v1498 = vrot.slane %v1497, 4
  %v1499 = vsel %vm1469, %v274, %v1339
  %v1500 = vsel %vm1469, %v432, %v1340
  %v1501 = vsel %vm1469, %v590, %v1341
  %v1502 = vsel %vm1469, %v748, %v1342
  %v1503 = vsel %vm1469, %v906, %v1343
  %v1504 = vsel %vm1469, %v1339, %v274
  %v1505 = vrot.slane %v1504, 4
  %v1506 = vsel %vm1469, %v1340, %v432
  %v1507 = vrot.slane %v1506, 4
  %v1508 = vsel %vm1469, %v1341, %v590
  %v1509 = vrot.slane %v1508, 4
  %v1510 = vsel %vm1469, %v1342, %v748
  %v1511 = vrot.slane %v1510, 4
  %v1512 = vsel %vm1469, %v1343, %v906
  %v1513 = vrot.slane %v1512, 4
  %v1514 = vsel %vm1469, %v276, %v1344
  %v1515 = vsel %vm1469, %v434, %v1345
  %v1516 = vsel %vm1469, %v592, %v1346
  %v1517 = vsel %vm1469, %v750, %v1347
  %v1518 = vsel %vm1469, %v908, %v1348
  %v1519 = vsel %vm1469, %v1344, %v276
  %v1520 = vrot.slane %v1519, 4
  %v1521 = vsel %vm1469, %v1345, %v434
  %v1522 = vrot.slane %v1521, 4
  %v1523 = vsel %vm1469, %v1346, %v592
  %v1524 = vrot.slane %v1523, 4
  %v1525 = vsel %vm1469, %v1347, %v750
  %v1526 = vrot.slane %v1525, 4
  %v1527 = vsel %vm1469, %v279, %v1349
  %v1528 = vsel %vm1469, %v437, %v1350
  %v1529 = vsel %vm1469, %v595, %v1351
  %v1530 = vsel %vm1469, %v753, %v1352
  %v1531 = vsel %vm1469, %v911, %v1353
  %v1532 = vsel %vm1469, %v1349, %v279
  %v1533 = vrot.slane %v1532, 4
  %v1534 = vsel %vm1469, %v1350, %v437
  %v1535 = vrot.slane %v1534, 4
  %v1536 = vsel %vm1469, %v1351, %v595
  %v1537 = vrot.slane %v1536, 4
  %v1538 = vsel %vm1469, %v1352, %v753
  %v1539 = vrot.slane %v1538, 4
  %v1540 = vsel %vm1469, %v1353, %v911
  %v1541 = vrot.slane %v1540, 4
  %v1542 = vsel %vm1469, %v281, %v1354
  %v1543 = vsel %vm1469, %v439, %v1355
  %v1544 = vsel %vm1469, %v597, %v1356
  %v1545 = vsel %vm1469, %v755, %v1357
  %v1546 = vsel %vm1469, %v913, %v1358
  %v1547 = vsel %vm1469, %v1354, %v281
  %v1548 = vrot.slane %v1547, 4
  %v1549 = vsel %vm1469, %v1355, %v439
  %v1550 = vrot.slane %v1549, 4
  %v1551 = vsel %vm1469, %v1356, %v597
  %v1552 = vrot.slane %v1551, 4
  %v1553 = vsel %vm1469, %v1357, %v755
  %v1554 = vrot.slane %v1553, 4
  %v1555 = vsel %vm1469, %v1358, %v913
  %v1556 = vrot.slane %v1555, 4
  %v1557 = vsel %vm1469, %v284, %v1359
  %v1558 = vsel %vm1469, %v442, %v1360
  %v1559 = vsel %vm1469, %v600, %v1361
  %v1560 = vsel %vm1469, %v758, %v1362
  %v1561 = vsel %vm1469, %v916, %v1363
  %v1562 = vsel %vm1469, %v1359, %v284
  %v1563 = vrot.slane %v1562, 4
  %v1564 = vsel %vm1469, %v1360, %v442
  %v1565 = vrot.slane %v1564, 4
  %v1566 = vsel %vm1469, %v1361, %v600
  %v1567 = vrot.slane %v1566, 4
  %v1568 = vsel %vm1469, %v1362, %v758
  %v1569 = vrot.slane %v1568, 4
  %v1570 = vsel %vm1469, %v1363, %v916
  %v1571 = vrot.slane %v1570, 4
  %v1572 = vsel %vm1469, %v286, %v1364
  %v1573 = vsel %vm1469, %v444, %v1365
  %v1574 = vsel %vm1469, %v602, %v1366
  %v1575 = vsel %vm1469, %v760, %v1367
  %v1576 = vsel %vm1469, %v1364, %v286
  %v1577 = vrot.slane %v1576, 4
  %v1578 = vsel %vm1469, %v1365, %v444
  %v1579 = vrot.slane %v1578, 4
  %v1580 = vsel %vm1469, %v1366, %v602
  %v1581 = vrot.slane %v1580, 4
  %v1582 = vsel %vm1469, %v1367, %v760
  %v1583 = vrot.slane %v1582, 4
  %v1584 = vsel %vm1469, %v1368, %v918
  %v1585 = vrot.slane %v1584, 4
  %v1586 = vsel %vm1469, %v289, %v1369
  %v1587 = vsel %vm1469, %v447, %v1370
  %v1588 = vsel %vm1469, %v605, %v1371
  %v1589 = vsel %vm1469, %v763, %v1372
  %v1590 = vsel %vm1469, %v921, %v1373
  %v1591 = vsel %vm1469, %v1369, %v289
  %v1592 = vrot.slane %v1591, 4
  %v1593 = vsel %vm1469, %v1370, %v447
  %v1594 = vrot.slane %v1593, 4
  %v1595 = vsel %vm1469, %v1371, %v605
  %v1596 = vrot.slane %v1595, 4
  %v1597 = vsel %vm1469, %v1372, %v763
  %v1598 = vrot.slane %v1597, 4
  %v1599 = vsel %vm1469, %v1373, %v921
  %v1600 = vrot.slane %v1599, 4
  %v1601 = vsel %vm1469, %v291, %v1374
  %v1602 = vsel %vm1469, %v449, %v1375
  %v1603 = vsel %vm1469, %v607, %v1376
  %v1604 = vsel %vm1469, %v765, %v1377
  %v1605 = vsel %vm1469, %v923, %v1378
  %v1606 = vsel %vm1469, %v1374, %v291
  %v1607 = vrot.slane %v1606, 4
  %v1608 = vsel %vm1469, %v1375, %v449
  %v1609 = vrot.slane %v1608, 4
  %v1610 = vsel %vm1469, %v1376, %v607
  %v1611 = vrot.slane %v1610, 4
  %v1612 = vsel %vm1469, %v1377, %v765
  %v1613 = vrot.slane %v1612, 4
  %v1614 = vsel %vm1469, %v1378, %v923
  %v1615 = vrot.slane %v1614, 4
  %v1616 = vsel %vm1469, %v294, %v1379
  %v1617 = vsel %vm1469, %v452, %v1380
  %v1618 = vsel %vm1469, %v610, %v1381
  %v1619 = vsel %vm1469, %v768, %v1382
  %v1620 = vsel %vm1469, %v926, %v1383
  %v1621 = vsel %vm1469, %v1379, %v294
  %v1622 = vrot.slane %v1621, 4
  %v1623 = vsel %vm1469, %v1380, %v452
  %v1624 = vrot.slane %v1623, 4
  %v1625 = vsel %vm1469, %v1381, %v610
  %v1626 = vrot.slane %v1625, 4
  %v1627 = vsel %vm1469, %v1382, %v768
  %v1628 = vrot.slane %v1627, 4
  %v1629 = vsel %vm1469, %v296, %v1384
  %v1630 = vsel %vm1469, %v454, %v1385
  %v1631 = vsel %vm1469, %v612, %v1386
  %v1632 = vsel %vm1469, %v770, %v1387
  %v1633 = vsel %vm1469, %v928, %v1388
  %v1634 = vsel %vm1469, %v1384, %v296
  %v1635 = vrot.slane %v1634, 4
  %v1636 = vsel %vm1469, %v1385, %v454
  %v1637 = vrot.slane %v1636, 4
  %v1638 = vsel %vm1469, %v1386, %v612
  %v1639 = vrot.slane %v1638, 4
  %v1640 = vsel %vm1469, %v1387, %v770
  %v1641 = vrot.slane %v1640, 4
  %v1642 = vsel %vm1469, %v1388, %v928
  %v1643 = vrot.slane %v1642, 4
  %v1644 = vsel %vm1469, %v299, %v1389
  %v1645 = vsel %vm1469, %v457, %v1390
  %v1646 = vsel %vm1469, %v615, %v1391
  %v1647 = vsel %vm1469, %v773, %v1392
  %v1648 = vsel %vm1469, %v931, %v1393
  %v1649 = vsel %vm1469, %v1389, %v299
  %v1650 = vrot.slane %v1649, 4
  %v1651 = vsel %vm1469, %v1390, %v457
  %v1652 = vrot.slane %v1651, 4
  %v1653 = vsel %vm1469, %v1391, %v615
  %v1654 = vrot.slane %v1653, 4
  %v1655 = vsel %vm1469, %v1392, %v773
  %v1656 = vrot.slane %v1655, 4
  %v1657 = vsel %vm1469, %v1393, %v931
  %v1658 = vrot.slane %v1657, 4
  %v1659 = vsel %vm1469, %v301, %v1394
  %v1660 = vsel %vm1469, %v459, %v1395
  %v1661 = vsel %vm1469, %v617, %v1396
  %v1662 = vsel %vm1469, %v775, %v1397
  %v1663 = vsel %vm1469, %v933, %v1398
  %v1664 = vsel %vm1469, %v1394, %v301
  %v1665 = vrot.slane %v1664, 4
  %v1666 = vsel %vm1469, %v1395, %v459
  %v1667 = vrot.slane %v1666, 4
  %v1668 = vsel %vm1469, %v1396, %v617
  %v1669 = vrot.slane %v1668, 4
  %v1670 = vsel %vm1469, %v1397, %v775
  %v1671 = vrot.slane %v1670, 4
  %v1672 = vsel %vm1469, %v1398, %v933
  %v1673 = vrot.slane %v1672, 4
  %v1674 = vsel %vm1469, %v304, %v1399
  %v1675 = vsel %vm1469, %v462, %v1400
  %v1676 = vsel %vm1469, %v620, %v1401
  %v1677 = vsel %vm1469, %v778, %v1402
  %v1678 = vsel %vm1469, %v1399, %v304
  %v1679 = vrot.slane %v1678, 4
  %v1680 = vsel %vm1469, %v1400, %v462
  %v1681 = vrot.slane %v1680, 4
  %v1682 = vsel %vm1469, %v1401, %v620
  %v1683 = vrot.slane %v1682, 4
  %v1684 = vsel %vm1469, %v1402, %v778
  %v1685 = vrot.slane %v1684, 4
  %v1686 = vsel %vm1469, %v1403, %v936
  %v1687 = vrot.slane %v1686, 4
  %v1688 = vsel %vm1469, %v306, %v1404
  %v1689 = vsel %vm1469, %v464, %v1405
  %v1690 = vsel %vm1469, %v622, %v1406
  %v1691 = vsel %vm1469, %v780, %v1407
  %v1692 = vsel %vm1469, %v938, %v1408
  %v1693 = vsel %vm1469, %v1404, %v306
  %v1694 = vrot.slane %v1693, 4
  %v1695 = vsel %vm1469, %v1405, %v464
  %v1696 = vrot.slane %v1695, 4
  %v1697 = vsel %vm1469, %v1406, %v622
  %v1698 = vrot.slane %v1697, 4
  %v1699 = vsel %vm1469, %v1407, %v780
  %v1700 = vrot.slane %v1699, 4
  %v1701 = vsel %vm1469, %v1408, %v938
  %v1702 = vrot.slane %v1701, 4
  %v1703 = vsel %vm1469, %v309, %v1409
  %v1704 = vsel %vm1469, %v467, %v1410
  %v1705 = vsel %vm1469, %v625, %v1411
  %v1706 = vsel %vm1469, %v783, %v1412
  %v1707 = vsel %vm1469, %v941, %v1413
  %v1708 = vsel %vm1469, %v1409, %v309
  %v1709 = vrot.slane %v1708, 4
  %v1710 = vsel %vm1469, %v1410, %v467
  %v1711 = vrot.slane %v1710, 4
  %v1712 = vsel %vm1469, %v1411, %v625
  %v1713 = vrot.slane %v1712, 4
  %v1714 = vsel %vm1469, %v1412, %v783
  %v1715 = vrot.slane %v1714, 4
  %v1716 = vsel %vm1469, %v1413, %v941
  %v1717 = vrot.slane %v1716, 4
  %v1718 = vsel %vm1469, %v311, %v1414
  %v1719 = vsel %vm1469, %v469, %v1415
  %v1720 = vsel %vm1469, %v627, %v1416
  %v1721 = vsel %vm1469, %v785, %v1417
  %v1722 = vsel %vm1469, %v943, %v1418
  %v1723 = vsel %vm1469, %v1414, %v311
  %v1724 = vrot.slane %v1723, 4
  %v1725 = vsel %vm1469, %v1415, %v469
  %v1726 = vrot.slane %v1725, 4
  %v1727 = vsel %vm1469, %v1416, %v627
  %v1728 = vrot.slane %v1727, 4
  %v1729 = vsel %vm1469, %v1417, %v785
  %v1730 = vrot.slane %v1729, 4
  %v1731 = vsel %vm1469, %v314, %v1419
  %v1732 = vsel %vm1469, %v472, %v1420
  %v1733 = vsel %vm1469, %v630, %v1421
  %v1734 = vsel %vm1469, %v788, %v1422
  %v1735 = vsel %vm1469, %v946, %v1423
  %v1736 = vsel %vm1469, %v1419, %v314
  %v1737 = vrot.slane %v1736, 4
  %v1738 = vsel %vm1469, %v1420, %v472
  %v1739 = vrot.slane %v1738, 4
  %v1740 = vsel %vm1469, %v1421, %v630
  %v1741 = vrot.slane %v1740, 4
  %v1742 = vsel %vm1469, %v1422, %v788
  %v1743 = vrot.slane %v1742, 4
  %v1744 = vsel %vm1469, %v1423, %v946
  %v1745 = vrot.slane %v1744, 4
  %v1746 = vsel %vm1469, %v316, %v1424
  %v1747 = vsel %vm1469, %v474, %v1425
  %v1748 = vsel %vm1469, %v632, %v1426
  %v1749 = vsel %vm1469, %v790, %v1427
  %v1750 = vsel %vm1469, %v948, %v1428
  %v1751 = vsel %vm1469, %v1424, %v316
  %v1752 = vrot.slane %v1751, 4
  %v1753 = vsel %vm1469, %v1425, %v474
  %v1754 = vrot.slane %v1753, 4
  %v1755 = vsel %vm1469, %v1426, %v632
  %v1756 = vrot.slane %v1755, 4
  %v1757 = vsel %vm1469, %v1427, %v790
  %v1758 = vrot.slane %v1757, 4
  %v1759 = vsel %vm1469, %v1428, %v948
  %v1760 = vrot.slane %v1759, 4
  %v1761 = vsel %vm1469, %v319, %v1429
  %v1762 = vsel %vm1469, %v477, %v1430
  %v1763 = vsel %vm1469, %v635, %v1431
  %v1764 = vsel %vm1469, %v793, %v1432
  %v1765 = vsel %vm1469, %v951, %v1433
  %v1766 = vsel %vm1469, %v1429, %v319
  %v1767 = vrot.slane %v1766, 4
  %v1768 = vsel %vm1469, %v1430, %v477
  %v1769 = vrot.slane %v1768, 4
  %v1770 = vsel %vm1469, %v1431, %v635
  %v1771 = vrot.slane %v1770, 4
  %v1772 = vsel %vm1469, %v1432, %v793
  %v1773 = vrot.slane %v1772, 4
  %v1774 = vsel %vm1469, %v1433, %v951
  %v1775 = vrot.slane %v1774, 4
  %v1776 = vsel %vm1469, %v321, %v1434
  %v1777 = vsel %vm1469, %v479, %v1435
  %v1778 = vsel %vm1469, %v637, %v1436
  %v1779 = vsel %vm1469, %v795, %v1437
  %v1780 = vsel %vm1469, %v1434, %v321
  %v1781 = vrot.slane %v1780, 4
  %v1782 = vsel %vm1469, %v1435, %v479
  %v1783 = vrot.slane %v1782, 4
  %v1784 = vsel %vm1469, %v1436, %v637
  %v1785 = vrot.slane %v1784, 4
  %v1786 = vsel %vm1469, %v1437, %v795
  %v1787 = vrot.slane %v1786, 4
  %v1788 = vsel %vm1469, %v1438, %v953
  %v1789 = vrot.slane %v1788, 4
  %v1790 = vsel %vm1469, %v324, %v1439
  %v1791 = vsel %vm1469, %v482, %v1440
  %v1792 = vsel %vm1469, %v640, %v1441
  %v1793 = vsel %vm1469, %v798, %v1442
  %v1794 = vsel %vm1469, %v956, %v1443
  %v1795 = vsel %vm1469, %v1439, %v324
  %v1796 = vrot.slane %v1795, 4
  %v1797 = vsel %vm1469, %v1440, %v482
  %v1798 = vrot.slane %v1797, 4
  %v1799 = vsel %vm1469, %v1441, %v640
  %v1800 = vrot.slane %v1799, 4
  %v1801 = vsel %vm1469, %v1442, %v798
  %v1802 = vrot.slane %v1801, 4
  %v1803 = vsel %vm1469, %v1443, %v956
  %v1804 = vrot.slane %v1803, 4
  %v1805 = vsel %vm1469, %v326, %v1444
  %v1806 = vsel %vm1469, %v484, %v1445
  %v1807 = vsel %vm1469, %v642, %v1446
  %v1808 = vsel %vm1469, %v800, %v1447
  %v1809 = vsel %vm1469, %v958, %v1448
  %v1810 = vsel %vm1469, %v1444, %v326
  %v1811 = vrot.slane %v1810, 4
  %v1812 = vsel %vm1469, %v1445, %v484
  %v1813 = vrot.slane %v1812, 4
  %v1814 = vsel %vm1469, %v1446, %v642
  %v1815 = vrot.slane %v1814, 4
  %v1816 = vsel %vm1469, %v1447, %v800
  %v1817 = vrot.slane %v1816, 4
  %v1818 = vsel %vm1469, %v1448, %v958
  %v1819 = vrot.slane %v1818, 4
  %v1820 = vsel %vm1469, %v329, %v1449
  %v1821 = vsel %vm1469, %v487, %v1450
  %v1822 = vsel %vm1469, %v645, %v1451
  %v1823 = vsel %vm1469, %v803, %v1452
  %v1824 = vsel %vm1469, %v961, %v1453
  %v1825 = vsel %vm1469, %v1449, %v329
  %v1826 = vrot.slane %v1825, 4
  %v1827 = vsel %vm1469, %v1450, %v487
  %v1828 = vrot.slane %v1827, 4
  %v1829 = vsel %vm1469, %v1451, %v645
  %v1830 = vrot.slane %v1829, 4
  %v1831 = vsel %vm1469, %v1452, %v803
  %v1832 = vrot.slane %v1831, 4
  %v1833 = vsel %vm1469, %v331, %v1454
  %v1834 = vsel %vm1469, %v489, %v1455
  %v1835 = vsel %vm1469, %v647, %v1456
  %v1836 = vsel %vm1469, %v805, %v1457
  %v1837 = vsel %vm1469, %v963, %v1458
  %v1838 = vsel %vm1469, %v1454, %v331
  %v1839 = vrot.slane %v1838, 4
  %v1840 = vsel %vm1469, %v1455, %v489
  %v1841 = vrot.slane %v1840, 4
  %v1842 = vsel %vm1469, %v1456, %v647
  %v1843 = vrot.slane %v1842, 4
  %v1844 = vsel %vm1469, %v1457, %v805
  %v1845 = vrot.slane %v1844, 4
  %v1846 = vsel %vm1469, %v1458, %v963
  %v1847 = vrot.slane %v1846, 4
  %v1848 = vsel %vm1469, %v334, %v1459
  %v1849 = vsel %vm1469, %v492, %v1460
  %v1850 = vsel %vm1469, %v650, %v1461
  %v1851 = vsel %vm1469, %v808, %v1462
  %v1852 = vsel %vm1469, %v966, %v1463
  %v1853 = vsel %vm1469, %v1459, %v334
  %v1854 = vrot.slane %v1853, 4
  %v1855 = vsel %vm1469, %v1460, %v492
  %v1856 = vrot.slane %v1855, 4
  %v1857 = vsel %vm1469, %v1461, %v650
  %v1858 = vrot.slane %v1857, 4
  %v1859 = vsel %vm1469, %v1462, %v808
  %v1860 = vrot.slane %v1859, 4
  %v1861 = vsel %vm1469, %v1463, %v966
  %v1862 = vrot.slane %v1861, 4
  %v1863 = vsel %vm1469, %v336, %v1464
  %v1864 = vsel %vm1469, %v494, %v1465
  %v1865 = vsel %vm1469, %v652, %v1466
  %v1866 = vsel %vm1469, %v810, %v1467
  %v1867 = vsel %vm1469, %v968, %v1468
  %v1868 = vsel %vm1469, %v1464, %v336
  %v1869 = vrot.slane %v1868, 4
  %v1870 = vsel %vm1469, %v1465, %v494
  %v1871 = vrot.slane %v1870, 4
  %v1872 = vsel %vm1469, %v1466, %v652
  %v1873 = vrot.slane %v1872, 4
  %v1874 = vsel %vm1469, %v1467, %v810
  %v1875 = vrot.slane %v1874, 4
  %v1876 = vsel %vm1469, %v1468, %v968
  %v1877 = vrot.slane %v1876, 4
  %vm1926 = vcmask 1042432
  %vm1927 = vcmask 1046532
  %vm1928 = vmor %vm1926, %vm1927
  %v1929 = vrot.slane %v1470, 5
  %v1930 = vrot.slane %v1929, 4
  %v1931 = vrot.slane %v1475, 5
  %v1932 = vsel %vm1928, %v1930, %v1931
  %v1933 = vrot.slane %v1471, 5
  %v1934 = vrot.slane %v1933, 4
  %v1935 = vrot.slane %v1477, 5
  %v1936 = vsel %vm1928, %v1934, %v1935
  %v1937 = vrot.slane %v1931, 4
  %v1938 = vrot.slane %v1484, 5
  %v1939 = vsel %vm1928, %v1937, %v1938
  %v1940 = vrot.slane %v1935, 4
  %v1941 = vrot.slane %v1485, 5
  %v1942 = vsel %vm1928, %v1940, %v1941
  %v1943 = vrot.slane %v1938, 4
  %v1944 = vrot.slane %v1490, 5
  %v1945 = vsel %vm1928, %v1943, %v1944
  %v1946 = vrot.slane %v1941, 4
  %v1947 = vrot.slane %v1492, 5
  %v1948 = vsel %vm1928, %v1946, %v1947
  %v1949 = vrot.slane %v1944, 4
  %v1950 = vrot.slane %v1499, 5
  %v1951 = vsel %vm1928, %v1949, %v1950
  %v1952 = vrot.slane %v1947, 4
  %v1953 = vrot.slane %v1500, 5
  %v1954 = vsel %vm1928, %v1952, %v1953
  %v1955 = vrot.slane %v1950, 4
  %v1956 = vrot.slane %v1505, 5
  %v1957 = vsel %vm1928, %v1955, %v1956
  %v1958 = vrot.slane %v1953, 4
  %v1959 = vrot.slane %v1507, 5
  %v1960 = vsel %vm1928, %v1958, %v1959
  %v1961 = vrot.slane %v1956, 4
  %v1962 = vrot.slane %v1514, 5
  %v1963 = vsel %vm1928, %v1961, %v1962
  %v1964 = vrot.slane %v1959, 4
  %v1965 = vrot.slane %v1515, 5
  %v1966 = vsel %vm1928, %v1964, %v1965
  %v1967 = vrot.slane %v1520, 5
  %v1968 = vrot.slane %v1967, 4
  %v1969 = vrot.slane %v1527, 5
  %v1970 = vsel %vm1928, %v1968, %v1969
  %v1971 = vrot.slane %v1522, 5
  %v1972 = vrot.slane %v1971, 4
  %v1973 = vrot.slane %v1528, 5
  %v1974 = vsel %vm1928, %v1972, %v1973
  %v1975 = vrot.slane %v1969, 4
  %v1976 = vrot.slane %v1533, 5
  %v1977 = vsel %vm1928, %v1975, %v1976
  %v1978 = vrot.slane %v1973, 4
  %v1979 = vrot.slane %v1535, 5
  %v1980 = vsel %vm1928, %v1978, %v1979
  %v1981 = vrot.slane %v1976, 4
  %v1982 = vrot.slane %v1542, 5
  %v1983 = vsel %vm1928, %v1981, %v1982
  %v1984 = vrot.slane %v1979, 4
  %v1985 = vrot.slane %v1543, 5
  %v1986 = vsel %vm1928, %v1984, %v1985
  %v1987 = vrot.slane %v1982, 4
  %v1988 = vrot.slane %v1548, 5
  %v1989 = vsel %vm1928, %v1987, %v1988
  %v1990 = vrot.slane %v1985, 4
  %v1991 = vrot.slane %v1550, 5
  %v1992 = vsel %vm1928, %v1990, %v1991
  %v1993 = vrot.slane %v1988, 4
  %v1994 = vrot.slane %v1557, 5
  %v1995 = vsel %vm1928, %v1993, %v1994
  %v1996 = vrot.slane %v1991, 4
  %v1997 = vrot.slane %v1558, 5
  %v1998 = vsel %vm1928, %v1996, %v1997
  %v1999 = vrot.slane %v1994, 4
  %v2000 = vrot.slane %v1563, 5
  %v2001 = vsel %vm1928, %v1999, %v2000
  %v2002 = vrot.slane %v1997, 4
  %v2003 = vrot.slane %v1565, 5
  %v2004 = vsel %vm1928, %v2002, %v2003
  %v2005 = vrot.slane %v1572, 5
  %v2006 = vrot.slane %v2005, 4
  %v2007 = vrot.slane %v1577, 5
  %v2008 = vsel %vm1928, %v2006, %v2007
  %v2009 = vrot.slane %v1573, 5
  %v2010 = vrot.slane %v2009, 4
  %v2011 = vrot.slane %v1579, 5
  %v2012 = vsel %vm1928, %v2010, %v2011
  %v2013 = vrot.slane %v2007, 4
  %v2014 = vrot.slane %v1586, 5
  %v2015 = vsel %vm1928, %v2013, %v2014
  %v2016 = vrot.slane %v2011, 4
  %v2017 = vrot.slane %v1587, 5
  %v2018 = vsel %vm1928, %v2016, %v2017
  %v2019 = vrot.slane %v2014, 4
  %v2020 = vrot.slane %v1592, 5
  %v2021 = vsel %vm1928, %v2019, %v2020
  %v2022 = vrot.slane %v2017, 4
  %v2023 = vrot.slane %v1594, 5
  %v2024 = vsel %vm1928, %v2022, %v2023
  %v2025 = vrot.slane %v2020, 4
  %v2026 = vrot.slane %v1601, 5
  %v2027 = vsel %vm1928, %v2025, %v2026
  %v2028 = vrot.slane %v2023, 4
  %v2029 = vrot.slane %v1602, 5
  %v2030 = vsel %vm1928, %v2028, %v2029
  %v2031 = vrot.slane %v2026, 4
  %v2032 = vrot.slane %v1607, 5
  %v2033 = vsel %vm1928, %v2031, %v2032
  %v2034 = vrot.slane %v2029, 4
  %v2035 = vrot.slane %v1609, 5
  %v2036 = vsel %vm1928, %v2034, %v2035
  %v2037 = vrot.slane %v2032, 4
  %v2038 = vrot.slane %v1616, 5
  %v2039 = vsel %vm1928, %v2037, %v2038
  %v2040 = vrot.slane %v2035, 4
  %v2041 = vrot.slane %v1617, 5
  %v2042 = vsel %vm1928, %v2040, %v2041
  %v2043 = vrot.slane %v1622, 5
  %v2044 = vrot.slane %v2043, 4
  %v2045 = vrot.slane %v1629, 5
  %v2046 = vsel %vm1928, %v2044, %v2045
  %v2047 = vrot.slane %v1624, 5
  %v2048 = vrot.slane %v2047, 4
  %v2049 = vrot.slane %v1630, 5
  %v2050 = vsel %vm1928, %v2048, %v2049
  %v2051 = vrot.slane %v2045, 4
  %v2052 = vrot.slane %v1635, 5
  %v2053 = vsel %vm1928, %v2051, %v2052
  %v2054 = vrot.slane %v2049, 4
  %v2055 = vrot.slane %v1637, 5
  %v2056 = vsel %vm1928, %v2054, %v2055
  %v2057 = vrot.slane %v2052, 4
  %v2058 = vrot.slane %v1644, 5
  %v2059 = vsel %vm1928, %v2057, %v2058
  %v2060 = vrot.slane %v2055, 4
  %v2061 = vrot.slane %v1645, 5
  %v2062 = vsel %vm1928, %v2060, %v2061
  %v2063 = vrot.slane %v2058, 4
  %v2064 = vrot.slane %v1650, 5
  %v2065 = vsel %vm1928, %v2063, %v2064
  %v2066 = vrot.slane %v2061, 4
  %v2067 = vrot.slane %v1652, 5
  %v2068 = vsel %vm1928, %v2066, %v2067
  %v2069 = vrot.slane %v2064, 4
  %v2070 = vrot.slane %v1659, 5
  %v2071 = vsel %vm1928, %v2069, %v2070
  %v2072 = vrot.slane %v2067, 4
  %v2073 = vrot.slane %v1660, 5
  %v2074 = vsel %vm1928, %v2072, %v2073
  %v2075 = vrot.slane %v2070, 4
  %v2076 = vrot.slane %v1665, 5
  %v2077 = vsel %vm1928, %v2075, %v2076
  %v2078 = vrot.slane %v2073, 4
  %v2079 = vrot.slane %v1667, 5
  %v2080 = vsel %vm1928, %v2078, %v2079
  %v2081 = vrot.slane %v1674, 5
  %v2082 = vrot.slane %v2081, 4
  %v2083 = vrot.slane %v1679, 5
  %v2084 = vsel %vm1928, %v2082, %v2083
  %v2085 = vrot.slane %v1675, 5
  %v2086 = vrot.slane %v2085, 4
  %v2087 = vrot.slane %v1681, 5
  %v2088 = vsel %vm1928, %v2086, %v2087
  %v2089 = vrot.slane %v2083, 4
  %v2090 = vrot.slane %v1688, 5
  %v2091 = vsel %vm1928, %v2089, %v2090
  %v2092 = vrot.slane %v2087, 4
  %v2093 = vrot.slane %v1689, 5
  %v2094 = vsel %vm1928, %v2092, %v2093
  %v2095 = vrot.slane %v2090, 4
  %v2096 = vrot.slane %v1694, 5
  %v2097 = vsel %vm1928, %v2095, %v2096
  %v2098 = vrot.slane %v2093, 4
  %v2099 = vrot.slane %v1696, 5
  %v2100 = vsel %vm1928, %v2098, %v2099
  %v2101 = vrot.slane %v2096, 4
  %v2102 = vrot.slane %v1703, 5
  %v2103 = vsel %vm1928, %v2101, %v2102
  %v2104 = vrot.slane %v2099, 4
  %v2105 = vrot.slane %v1704, 5
  %v2106 = vsel %vm1928, %v2104, %v2105
  %v2107 = vrot.slane %v2102, 4
  %v2108 = vrot.slane %v1709, 5
  %v2109 = vsel %vm1928, %v2107, %v2108
  %v2110 = vrot.slane %v2105, 4
  %v2111 = vrot.slane %v1711, 5
  %v2112 = vsel %vm1928, %v2110, %v2111
  %v2113 = vrot.slane %v2108, 4
  %v2114 = vrot.slane %v1718, 5
  %v2115 = vsel %vm1928, %v2113, %v2114
  %v2116 = vrot.slane %v2111, 4
  %v2117 = vrot.slane %v1719, 5
  %v2118 = vsel %vm1928, %v2116, %v2117
  %v2119 = vrot.slane %v1724, 5
  %v2120 = vrot.slane %v2119, 4
  %v2121 = vrot.slane %v1731, 5
  %v2122 = vsel %vm1928, %v2120, %v2121
  %v2123 = vrot.slane %v1726, 5
  %v2124 = vrot.slane %v2123, 4
  %v2125 = vrot.slane %v1732, 5
  %v2126 = vsel %vm1928, %v2124, %v2125
  %v2127 = vrot.slane %v2121, 4
  %v2128 = vrot.slane %v1737, 5
  %v2129 = vsel %vm1928, %v2127, %v2128
  %v2130 = vrot.slane %v2125, 4
  %v2131 = vrot.slane %v1739, 5
  %v2132 = vsel %vm1928, %v2130, %v2131
  %v2133 = vrot.slane %v2128, 4
  %v2134 = vrot.slane %v1746, 5
  %v2135 = vsel %vm1928, %v2133, %v2134
  %v2136 = vrot.slane %v2131, 4
  %v2137 = vrot.slane %v1747, 5
  %v2138 = vsel %vm1928, %v2136, %v2137
  %v2139 = vrot.slane %v2134, 4
  %v2140 = vrot.slane %v1752, 5
  %v2141 = vsel %vm1928, %v2139, %v2140
  %v2142 = vrot.slane %v2137, 4
  %v2143 = vrot.slane %v1754, 5
  %v2144 = vsel %vm1928, %v2142, %v2143
  %v2145 = vrot.slane %v2140, 4
  %v2146 = vrot.slane %v1761, 5
  %v2147 = vsel %vm1928, %v2145, %v2146
  %v2148 = vrot.slane %v2143, 4
  %v2149 = vrot.slane %v1762, 5
  %v2150 = vsel %vm1928, %v2148, %v2149
  %v2151 = vrot.slane %v2146, 4
  %v2152 = vrot.slane %v1767, 5
  %v2153 = vsel %vm1928, %v2151, %v2152
  %v2154 = vrot.slane %v2149, 4
  %v2155 = vrot.slane %v1769, 5
  %v2156 = vsel %vm1928, %v2154, %v2155
  %v2157 = vrot.slane %v1776, 5
  %v2158 = vrot.slane %v2157, 4
  %v2159 = vrot.slane %v1781, 5
  %v2160 = vsel %vm1928, %v2158, %v2159
  %v2161 = vrot.slane %v1777, 5
  %v2162 = vrot.slane %v2161, 4
  %v2163 = vrot.slane %v1783, 5
  %v2164 = vsel %vm1928, %v2162, %v2163
  %v2165 = vrot.slane %v2159, 4
  %v2166 = vrot.slane %v1790, 5
  %v2167 = vsel %vm1928, %v2165, %v2166
  %v2168 = vrot.slane %v2163, 4
  %v2169 = vrot.slane %v1791, 5
  %v2170 = vsel %vm1928, %v2168, %v2169
  %v2171 = vrot.slane %v2166, 4
  %v2172 = vrot.slane %v1796, 5
  %v2173 = vsel %vm1928, %v2171, %v2172
  %v2174 = vrot.slane %v2169, 4
  %v2175 = vrot.slane %v1798, 5
  %v2176 = vsel %vm1928, %v2174, %v2175
  %v2177 = vrot.slane %v2172, 4
  %v2178 = vrot.slane %v1805, 5
  %v2179 = vsel %vm1928, %v2177, %v2178
  %v2180 = vrot.slane %v2175, 4
  %v2181 = vrot.slane %v1806, 5
  %v2182 = vsel %vm1928, %v2180, %v2181
  %v2183 = vrot.slane %v2178, 4
  %v2184 = vrot.slane %v1811, 5
  %v2185 = vsel %vm1928, %v2183, %v2184
  %v2186 = vrot.slane %v2181, 4
  %v2187 = vrot.slane %v1813, 5
  %v2188 = vsel %vm1928, %v2186, %v2187
  %v2189 = vrot.slane %v2184, 4
  %v2190 = vrot.slane %v1820, 5
  %v2191 = vsel %vm1928, %v2189, %v2190
  %v2192 = vrot.slane %v2187, 4
  %v2193 = vrot.slane %v1821, 5
  %v2194 = vsel %vm1928, %v2192, %v2193
  %v2195 = vrot.slane %v1826, 5
  %v2196 = vrot.slane %v2195, 4
  %v2197 = vrot.slane %v1833, 5
  %v2198 = vsel %vm1928, %v2196, %v2197
  %v2199 = vrot.slane %v1828, 5
  %v2200 = vrot.slane %v2199, 4
  %v2201 = vrot.slane %v1834, 5
  %v2202 = vsel %vm1928, %v2200, %v2201
  %v2203 = vrot.slane %v2197, 4
  %v2204 = vrot.slane %v1839, 5
  %v2205 = vsel %vm1928, %v2203, %v2204
  %v2206 = vrot.slane %v2201, 4
  %v2207 = vrot.slane %v1841, 5
  %v2208 = vsel %vm1928, %v2206, %v2207
  %v2209 = vrot.slane %v2204, 4
  %v2210 = vrot.slane %v1848, 5
  %v2211 = vsel %vm1928, %v2209, %v2210
  %v2212 = vrot.slane %v2207, 4
  %v2213 = vrot.slane %v1849, 5
  %v2214 = vsel %vm1928, %v2212, %v2213
  %v2215 = vrot.slane %v2210, 4
  %v2216 = vrot.slane %v1854, 5
  %v2217 = vsel %vm1928, %v2215, %v2216
  %v2218 = vrot.slane %v2213, 4
  %v2219 = vrot.slane %v1856, 5
  %v2220 = vsel %vm1928, %v2218, %v2219
  %v2221 = vrot.slane %v2216, 4
  %v2222 = vrot.slane %v1863, 5
  %v2223 = vsel %vm1928, %v2221, %v2222
  %v2224 = vrot.slane %v2219, 4
  %v2225 = vrot.slane %v1864, 5
  %v2226 = vsel %vm1928, %v2224, %v2225
  %v2227 = vrot.slane %v2222, 4
  %v2228 = vrot.slane %v1869, 5
  %v2229 = vsel %vm1928, %v2227, %v2228
  %v2230 = vrot.slane %v2225, 4
  %v2231 = vrot.slane %v1871, 5
  %v2232 = vsel %vm1928, %v2230, %v2231
  %2233 = vrot.lane.b32.xlu0 %v1932, 16
  %v2234 = vpop.permute.xlu0 %2233
  %2235 = vrot.lane.b32.xlu0 %v1936, 16
  %v2236 = vpop.permute.xlu0 %2235
  %2237 = vrot.lane.b32.xlu0 %v1939, 16
  %v2238 = vpop.permute.xlu0 %2237
  %2239 = vrot.lane.b32.xlu0 %v1942, 16
  %v2240 = vpop.permute.xlu0 %2239
  %2241 = vrot.lane.b32.xlu0 %v1945, 16
  %v2242 = vpop.permute.xlu0 %2241
  %2243 = vrot.lane.b32.xlu0 %v1948, 16
  %v2244 = vpop.permute.xlu0 %2243
  %2245 = vrot.lane.b32.xlu0 %v1951, 16
  %v2246 = vpop.permute.xlu0 %2245
  %2247 = vrot.lane.b32.xlu0 %v1954, 16
  %v2248 = vpop.permute.xlu0 %2247
  %2249 = vrot.lane.b32.xlu0 %v1957, 16
  %v2250 = vpop.permute.xlu0 %2249
  %2251 = vrot.lane.b32.xlu0 %v1960, 16
  %v2252 = vpop.permute.xlu0 %2251
  %2253 = vrot.lane.b32.xlu0 %v1963, 16
  %v2254 = vpop.permute.xlu0 %2253
  %2255 = vrot.lane.b32.xlu0 %v1966, 16
  %v2256 = vpop.permute.xlu0 %2255
  %2257 = vrot.lane.b32.xlu0 %v1970, 16
  %v2258 = vpop.permute.xlu0 %2257
  %2259 = vrot.lane.b32.xlu0 %v1974, 16
  %v2260 = vpop.permute.xlu0 %2259
  %2261 = vrot.lane.b32.xlu0 %v1977, 16
  %v2262 = vpop.permute.xlu0 %2261
  %2263 = vrot.lane.b32.xlu0 %v1980, 16
  %v2264 = vpop.permute.xlu0 %2263
  %2265 = vrot.lane.b32.xlu0 %v1983, 16
  %v2266 = vpop.permute.xlu0 %2265
  %2267 = vrot.lane.b32.xlu0 %v1986, 16
  %v2268 = vpop.permute.xlu0 %2267
  %2269 = vrot.lane.b32.xlu0 %v1989, 16
  %v2270 = vpop.permute.xlu0 %2269
  %2271 = vrot.lane.b32.xlu0 %v1992, 16
  %v2272 = vpop.permute.xlu0 %2271
  %2273 = vrot.lane.b32.xlu0 %v1995, 16
  %v2274 = vpop.permute.xlu0 %2273
  %2275 = vrot.lane.b32.xlu0 %v1998, 16
  %v2276 = vpop.permute.xlu0 %2275
  %2277 = vrot.lane.b32.xlu0 %v2001, 16
  %v2278 = vpop.permute.xlu0 %2277
  %2279 = vrot.lane.b32.xlu0 %v2004, 16
  %v2280 = vpop.permute.xlu0 %2279
  %2281 = vrot.lane.b32.xlu0 %v2008, 16
  %v2282 = vpop.permute.xlu0 %2281
  %2283 = vrot.lane.b32.xlu0 %v2012, 16
  %v2284 = vpop.permute.xlu0 %2283
  %2285 = vrot.lane.b32.xlu0 %v2015, 16
  %v2286 = vpop.permute.xlu0 %2285
  %2287 = vrot.lane.b32.xlu0 %v2018, 16
  %v2288 = vpop.permute.xlu0 %2287
  %2289 = vrot.lane.b32.xlu0 %v2021, 16
  %v2290 = vpop.permute.xlu0 %2289
  %2291 = vrot.lane.b32.xlu0 %v2024, 16
  %v2292 = vpop.permute.xlu0 %2291
  %2293 = vrot.lane.b32.xlu0 %v2027, 16
  %v2294 = vpop.permute.xlu0 %2293
  %2295 = vrot.lane.b32.xlu0 %v2030, 16
  %v2296 = vpop.permute.xlu0 %2295
  %2297 = vrot.lane.b32.xlu0 %v2033, 16
  %v2298 = vpop.permute.xlu0 %2297
  %2299 = vrot.lane.b32.xlu0 %v2036, 16
  %v2300 = vpop.permute.xlu0 %2299
  %2301 = vrot.lane.b32.xlu0 %v2039, 16
  %v2302 = vpop.permute.xlu0 %2301
  %2303 = vrot.lane.b32.xlu0 %v2042, 16
  %v2304 = vpop.permute.xlu0 %2303
  %2305 = vrot.lane.b32.xlu0 %v2046, 16
  %v2306 = vpop.permute.xlu0 %2305
  %2307 = vrot.lane.b32.xlu0 %v2050, 16
  %v2308 = vpop.permute.xlu0 %2307
  %2309 = vrot.lane.b32.xlu0 %v2053, 16
  %v2310 = vpop.permute.xlu0 %2309
  %2311 = vrot.lane.b32.xlu0 %v2056, 16
  %v2312 = vpop.permute.xlu0 %2311
  %2313 = vrot.lane.b32.xlu0 %v2059, 16
  %v2314 = vpop.permute.xlu0 %2313
  %2315 = vrot.lane.b32.xlu0 %v2062, 16
  %v2316 = vpop.permute.xlu0 %2315
  %2317 = vrot.lane.b32.xlu0 %v2065, 16
  %v2318 = vpop.permute.xlu0 %2317
  %2319 = vrot.lane.b32.xlu0 %v2068, 16
  %v2320 = vpop.permute.xlu0 %2319
  %2321 = vrot.lane.b32.xlu0 %v2071, 16
  %v2322 = vpop.permute.xlu0 %2321
  %2323 = vrot.lane.b32.xlu0 %v2074, 16
  %v2324 = vpop.permute.xlu0 %2323
  %2325 = vrot.lane.b32.xlu0 %v2077, 16
  %v2326 = vpop.permute.xlu0 %2325
  %2327 = vrot.lane.b32.xlu0 %v2080, 16
  %v2328 = vpop.permute.xlu0 %2327
  %2329 = vrot.lane.b32.xlu0 %v2084, 16
  %v2330 = vpop.permute.xlu0 %2329
  %2331 = vrot.lane.b32.xlu0 %v2088, 16
  %v2332 = vpop.permute.xlu0 %2331
  %2333 = vrot.lane.b32.xlu0 %v2091, 16
  %v2334 = vpop.permute.xlu0 %2333
  %2335 = vrot.lane.b32.xlu0 %v2094, 16
  %v2336 = vpop.permute.xlu0 %2335
  %2337 = vrot.lane.b32.xlu0 %v2097, 16
  %v2338 = vpop.permute.xlu0 %2337
  %2339 = vrot.lane.b32.xlu0 %v2100, 16
  %v2340 = vpop.permute.xlu0 %2339
  %2341 = vrot.lane.b32.xlu0 %v2103, 16
  %v2342 = vpop.permute.xlu0 %2341
  %2343 = vrot.lane.b32.xlu0 %v2106, 16
  %v2344 = vpop.permute.xlu0 %2343
  %2345 = vrot.lane.b32.xlu0 %v2109, 16
  %v2346 = vpop.permute.xlu0 %2345
  %2347 = vrot.lane.b32.xlu0 %v2112, 16
  %v2348 = vpop.permute.xlu0 %2347
  %2349 = vrot.lane.b32.xlu0 %v2115, 16
  %v2350 = vpop.permute.xlu0 %2349
  %2351 = vrot.lane.b32.xlu0 %v2118, 16
  %v2352 = vpop.permute.xlu0 %2351
  %2353 = vrot.lane.b32.xlu0 %v2122, 16
  %v2354 = vpop.permute.xlu0 %2353
  %2355 = vrot.lane.b32.xlu0 %v2126, 16
  %v2356 = vpop.permute.xlu0 %2355
  %2357 = vrot.lane.b32.xlu0 %v2129, 16
  %v2358 = vpop.permute.xlu0 %2357
  %2359 = vrot.lane.b32.xlu0 %v2132, 16
  %v2360 = vpop.permute.xlu0 %2359
  %2361 = vrot.lane.b32.xlu0 %v2135, 16
  %v2362 = vpop.permute.xlu0 %2361
  %2363 = vrot.lane.b32.xlu0 %v2138, 16
  %v2364 = vpop.permute.xlu0 %2363
  %2365 = vrot.lane.b32.xlu0 %v2141, 16
  %v2366 = vpop.permute.xlu0 %2365
  %2367 = vrot.lane.b32.xlu0 %v2144, 16
  %v2368 = vpop.permute.xlu0 %2367
  %2369 = vrot.lane.b32.xlu0 %v2147, 16
  %v2370 = vpop.permute.xlu0 %2369
  %2371 = vrot.lane.b32.xlu0 %v2150, 16
  %v2372 = vpop.permute.xlu0 %2371
  %2373 = vrot.lane.b32.xlu0 %v2153, 16
  %v2374 = vpop.permute.xlu0 %2373
  %2375 = vrot.lane.b32.xlu0 %v2156, 16
  %v2376 = vpop.permute.xlu0 %2375
  %2377 = vrot.lane.b32.xlu0 %v2160, 16
  %v2378 = vpop.permute.xlu0 %2377
  %2379 = vrot.lane.b32.xlu0 %v2164, 16
  %v2380 = vpop.permute.xlu0 %2379
  %2381 = vrot.lane.b32.xlu0 %v2167, 16
  %v2382 = vpop.permute.xlu0 %2381
  %2383 = vrot.lane.b32.xlu0 %v2170, 16
  %v2384 = vpop.permute.xlu0 %2383
  %2385 = vrot.lane.b32.xlu0 %v2173, 16
  %v2386 = vpop.permute.xlu0 %2385
  %2387 = vrot.lane.b32.xlu0 %v2176, 16
  %v2388 = vpop.permute.xlu0 %2387
  %2389 = vrot.lane.b32.xlu0 %v2179, 16
  %v2390 = vpop.permute.xlu0 %2389
  %2391 = vrot.lane.b32.xlu0 %v2182, 16
  %v2392 = vpop.permute.xlu0 %2391
  %2393 = vrot.lane.b32.xlu0 %v2185, 16
  %v2394 = vpop.permute.xlu0 %2393
  %2395 = vrot.lane.b32.xlu0 %v2188, 16
  %v2396 = vpop.permute.xlu0 %2395
  %2397 = vrot.lane.b32.xlu0 %v2191, 16
  %v2398 = vpop.permute.xlu0 %2397
  %2399 = vrot.lane.b32.xlu0 %v2194, 16
  %v2400 = vpop.permute.xlu0 %2399
  %2401 = vrot.lane.b32.xlu0 %v2198, 16
  %v2402 = vpop.permute.xlu0 %2401
  %2403 = vrot.lane.b32.xlu0 %v2202, 16
  %v2404 = vpop.permute.xlu0 %2403
  %2405 = vrot.lane.b32.xlu0 %v2205, 16
  %v2406 = vpop.permute.xlu0 %2405
  %2407 = vrot.lane.b32.xlu0 %v2208, 16
  %v2408 = vpop.permute.xlu0 %2407
  %2409 = vrot.lane.b32.xlu0 %v2211, 16
  %v2410 = vpop.permute.xlu0 %2409
  %2411 = vrot.lane.b32.xlu0 %v2214, 16
  %v2412 = vpop.permute.xlu0 %2411
  %2413 = vrot.lane.b32.xlu0 %v2217, 16
  %v2414 = vpop.permute.xlu0 %2413
  %2415 = vrot.lane.b32.xlu0 %v2220, 16
  %v2416 = vpop.permute.xlu0 %2415
  %2417 = vrot.lane.b32.xlu0 %v2223, 16
  %v2418 = vpop.permute.xlu0 %2417
  %2419 = vrot.lane.b32.xlu0 %v2226, 16
  %v2420 = vpop.permute.xlu0 %2419
  %2421 = vrot.lane.b32.xlu0 %v2229, 16
  %v2422 = vpop.permute.xlu0 %2421
  %2423 = vrot.lane.b32.xlu0 %v2232, 16
  %v2424 = vpop.permute.xlu0 %2423
  %v2425 = vrot.slane %v2234, 4
  %v2426 = vrot.slane %v2236, 4
  %v2427 = vrot.slane %v2238, 4
  %v2428 = vrot.slane %v2240, 4
  %v2429 = vrot.slane %v2242, 4
  %v2430 = vrot.slane %v2244, 4
  %v2431 = vrot.slane %v2246, 4
  %v2432 = vrot.slane %v2248, 4
  %v2433 = vrot.slane %v2250, 4
  %v2434 = vrot.slane %v2252, 4
  %v2435 = vrot.slane %v2254, 4
  %v2436 = vrot.slane %v2256, 4
  %v2437 = vrot.slane %v2258, 4
  %v2438 = vrot.slane %v2260, 4
  %v2439 = vrot.slane %v2262, 4
  %v2440 = vrot.slane %v2264, 4
  %v2441 = vrot.slane %v2266, 4
  %v2442 = vrot.slane %v2268, 4
  %v2443 = vrot.slane %v2270, 4
  %v2444 = vrot.slane %v2272, 4
  %v2445 = vrot.slane %v2274, 4
  %v2446 = vrot.slane %v2276, 4
  %v2447 = vrot.slane %v2278, 4
  %v2448 = vrot.slane %v2280, 4
  %v2449 = vrot.slane %v2282, 4
  %v2450 = vrot.slane %v2284, 4
  %v2451 = vrot.slane %v2286, 4
  %v2452 = vrot.slane %v2288, 4
  %v2453 = vrot.slane %v2290, 4
  %v2454 = vrot.slane %v2292, 4
  %v2455 = vrot.slane %v2294, 4
  %v2456 = vrot.slane %v2296, 4
  %v2457 = vrot.slane %v2298, 4
  %v2458 = vrot.slane %v2300, 4
  %v2459 = vrot.slane %v2302, 4
  %v2460 = vrot.slane %v2304, 4
  %v2461 = vrot.slane %v2306, 4
  %v2462 = vrot.slane %v2308, 4
  %v2463 = vrot.slane %v2310, 4
  %v2464 = vrot.slane %v2312, 4
  %v2465 = vrot.slane %v2314, 4
  %v2466 = vrot.slane %v2316, 4
  %v2467 = vrot.slane %v2318, 4
  %v2468 = vrot.slane %v2320, 4
  %v2469 = vrot.slane %v2322, 4
  %v2470 = vrot.slane %v2324, 4
  %v2471 = vrot.slane %v2326, 4
  %v2472 = vrot.slane %v2328, 4
  %v2473 = vrot.slane %v2330, 4
  %v2474 = vrot.slane %v2332, 4
  %v2475 = vrot.slane %v2334, 4
  %v2476 = vrot.slane %v2336, 4
  %v2477 = vrot.slane %v2338, 4
  %v2478 = vrot.slane %v2340, 4
  %v2479 = vrot.slane %v2342, 4
  %v2480 = vrot.slane %v2344, 4
  %v2481 = vrot.slane %v2346, 4
  %v2482 = vrot.slane %v2348, 4
  %v2483 = vrot.slane %v2350, 4
  %v2484 = vrot.slane %v2352, 4
  %v2485 = vrot.slane %v2354, 4
  %v2486 = vrot.slane %v2356, 4
  %v2487 = vrot.slane %v2358, 4
  %v2488 = vrot.slane %v2360, 4
  %v2489 = vrot.slane %v2362, 4
  %v2490 = vrot.slane %v2364, 4
  %v2491 = vrot.slane %v2366, 4
  %v2492 = vrot.slane %v2368, 4
  %v2493 = vrot.slane %v2370, 4
  %v2494 = vrot.slane %v2372, 4
  %v2495 = vrot.slane %v2374, 4
  %v2496 = vrot.slane %v2376, 4
  %v2497 = vrot.slane %v2378, 4
  %v2498 = vrot.slane %v2380, 4
  %v2499 = vrot.slane %v2382, 4
  %v2500 = vrot.slane %v2384, 4
  %v2501 = vrot.slane %v2386, 4
  %v2502 = vrot.slane %v2388, 4
  %v2503 = vrot.slane %v2390, 4
  %v2504 = vrot.slane %v2392, 4
  %v2505 = vrot.slane %v2394, 4
  %v2506 = vrot.slane %v2396, 4
  %v2507 = vrot.slane %v2398, 4
  %v2508 = vrot.slane %v2400, 4
  %v2509 = vrot.slane %v2402, 4
  %v2510 = vrot.slane %v2404, 4
  %v2511 = vrot.slane %v2406, 4
  %v2512 = vrot.slane %v2408, 4
  %v2513 = vrot.slane %v2410, 4
  %v2514 = vrot.slane %v2412, 4
  %v2515 = vrot.slane %v2414, 4
  %v2516 = vrot.slane %v2416, 4
  %v2517 = vrot.slane %v2418, 4
  %v2518 = vrot.slane %v2420, 4
  %v2519 = vrot.slane %v2422, 4
  %v2520 = vrot.slane %v2424, 4
  %v2521 = vsel %vm1469, %v2425, %v2426
  %vm2522 = vcmask 130048
  %v2523 = vsel %vm2522, %v2521, %v2236
  %v2524 = vsel %vm1469, %v2427, %v2428
  %v2525 = vsel %vm2522, %v2524, %v2240
  %v2526 = vsel %vm1469, %v2429, %v2430
  %v2527 = vsel %vm2522, %v2526, %v2244
  %v2528 = vsel %vm1469, %v2431, %v2432
  %v2529 = vsel %vm2522, %v2528, %v2248
  %v2530 = vsel %vm1469, %v2433, %v2434
  %v2531 = vsel %vm2522, %v2530, %v2252
  %v2532 = vsel %vm1469, %v2435, %v2436
  %v2533 = vsel %vm2522, %v2532, %v2256
  %v2534 = vsel %vm1469, %v2437, %v2438
  %v2535 = vsel %vm2522, %v2534, %v2260
  %v2536 = vsel %vm1469, %v2439, %v2440
  %v2537 = vsel %vm2522, %v2536, %v2264
  %v2538 = vsel %vm1469, %v2441, %v2442
  %v2539 = vsel %vm2522, %v2538, %v2268
  %v2540 = vsel %vm1469, %v2443, %v2444
  %v2541 = vsel %vm2522, %v2540, %v2272
  %v2542 = vsel %vm1469, %v2445, %v2446
  %v2543 = vsel %vm2522, %v2542, %v2276
  %v2544 = vsel %vm1469, %v2447, %v2448
  %v2545 = vsel %vm2522, %v2544, %v2280
  %v2546 = vsel %vm1469, %v2449, %v2450
  %v2547 = vsel %vm2522, %v2546, %v2284
  %v2548 = vsel %vm1469, %v2451, %v2452
  %v2549 = vsel %vm2522, %v2548, %v2288
  %v2550 = vsel %vm1469, %v2453, %v2454
  %v2551 = vsel %vm2522, %v2550, %v2292
  %v2552 = vsel %vm1469, %v2455, %v2456
  %v2553 = vsel %vm2522, %v2552, %v2296
  %v2554 = vsel %vm1469, %v2457, %v2458
  %v2555 = vsel %vm2522, %v2554, %v2300
  %v2556 = vsel %vm1469, %v2459, %v2460
  %v2557 = vsel %vm2522, %v2556, %v2304
  %v2558 = vsel %vm1469, %v2461, %v2462
  %v2559 = vsel %vm2522, %v2558, %v2308
  %v2560 = vsel %vm1469, %v2463, %v2464
  %v2561 = vsel %vm2522, %v2560, %v2312
  %v2562 = vsel %vm1469, %v2465, %v2466
  %v2563 = vsel %vm2522, %v2562, %v2316
  %v2564 = vsel %vm1469, %v2467, %v2468
  %v2565 = vsel %vm2522, %v2564, %v2320
  %v2566 = vsel %vm1469, %v2469, %v2470
  %v2567 = vsel %vm2522, %v2566, %v2324
  %v2568 = vsel %vm1469, %v2471, %v2472
  %v2569 = vsel %vm2522, %v2568, %v2328
  %v2570 = vsel %vm1469, %v2473, %v2474
  %v2571 = vsel %vm2522, %v2570, %v2332
  %v2572 = vsel %vm1469, %v2475, %v2476
  %v2573 = vsel %vm2522, %v2572, %v2336
  %v2574 = vsel %vm1469, %v2477, %v2478
  %v2575 = vsel %vm2522, %v2574, %v2340
  %v2576 = vsel %vm1469, %v2479, %v2480
  %v2577 = vsel %vm2522, %v2576, %v2344
  %v2578 = vsel %vm1469, %v2481, %v2482
  %v2579 = vsel %vm2522, %v2578, %v2348
  %v2580 = vsel %vm1469, %v2483, %v2484
  %v2581 = vsel %vm2522, %v2580, %v2352
  %v2582 = vsel %vm1469, %v2485, %v2486
  %v2583 = vsel %vm2522, %v2582, %v2356
  %v2584 = vsel %vm1469, %v2487, %v2488
  %v2585 = vsel %vm2522, %v2584, %v2360
  %v2586 = vsel %vm1469, %v2489, %v2490
  %v2587 = vsel %vm2522, %v2586, %v2364
  %v2588 = vsel %vm1469, %v2491, %v2492
  %v2589 = vsel %vm2522, %v2588, %v2368
  %v2590 = vsel %vm1469, %v2493, %v2494
  %v2591 = vsel %vm2522, %v2590, %v2372
  %v2592 = vsel %vm1469, %v2495, %v2496
  %v2593 = vsel %vm2522, %v2592, %v2376
  %v2594 = vsel %vm1469, %v2497, %v2498
  %v2595 = vsel %vm2522, %v2594, %v2380
  %v2596 = vsel %vm1469, %v2499, %v2500
  %v2597 = vsel %vm2522, %v2596, %v2384
  %v2598 = vsel %vm1469, %v2501, %v2502
  %v2599 = vsel %vm2522, %v2598, %v2388
  %v2600 = vsel %vm1469, %v2503, %v2504
  %v2601 = vsel %vm2522, %v2600, %v2392
  %v2602 = vsel %vm1469, %v2505, %v2506
  %v2603 = vsel %vm2522, %v2602, %v2396
  %v2604 = vsel %vm1469, %v2507, %v2508
  %v2605 = vsel %vm2522, %v2604, %v2400
  %v2606 = vsel %vm1469, %v2509, %v2510
  %v2607 = vsel %vm2522, %v2606, %v2404
  %v2608 = vsel %vm1469, %v2511, %v2512
  %v2609 = vsel %vm2522, %v2608, %v2408
  %v2610 = vsel %vm1469, %v2513, %v2514
  %v2611 = vsel %vm2522, %v2610, %v2412
  %v2612 = vsel %vm1469, %v2515, %v2516
  %v2613 = vsel %vm2522, %v2612, %v2416
  %v2614 = vsel %vm1469, %v2517, %v2518
  %v2615 = vsel %vm2522, %v2614, %v2420
  %v2616 = vsel %vm1469, %v2519, %v2520
  %v2617 = vsel %vm2522, %v2616, %v2424
  %v2666 = vadd.f32 %v1470, %v2523
  %v2667 = vadd.f32 %v1475, %v2525
  %v2668 = vadd.f32 %v1484, %v2527
  %v2669 = vadd.f32 %v1490, %v2529
  %v2670 = vadd.f32 %v1499, %v2531
  %v2671 = vadd.f32 %v1505, %v2533
  %v2672 = vadd.f32 %v1520, %v2535
  %v2673 = vadd.f32 %v1527, %v2537
  %v2674 = vadd.f32 %v1533, %v2539
  %v2675 = vadd.f32 %v1542, %v2541
  %v2676 = vadd.f32 %v1548, %v2543
  %v2677 = vadd.f32 %v1557, %v2545
  %v2678 = vadd.f32 %v1572, %v2547
  %v2679 = vadd.f32 %v1577, %v2549
  %v2680 = vadd.f32 %v1586, %v2551
  %v2681 = vadd.f32 %v1592, %v2553
  %v2682 = vadd.f32 %v1601, %v2555
  %v2683 = vadd.f32 %v1607, %v2557
  %v2684 = vadd.f32 %v1622, %v2559
  %v2685 = vadd.f32 %v1629, %v2561
  %v2686 = vadd.f32 %v1635, %v2563
  %v2687 = vadd.f32 %v1644, %v2565
  %v2688 = vadd.f32 %v1650, %v2567
  %v2689 = vadd.f32 %v1659, %v2569
  %v2690 = vadd.f32 %v1674, %v2571
  %v2691 = vadd.f32 %v1679, %v2573
  %v2692 = vadd.f32 %v1688, %v2575
  %v2693 = vadd.f32 %v1694, %v2577
  %v2694 = vadd.f32 %v1703, %v2579
  %v2695 = vadd.f32 %v1709, %v2581
  %v2696 = vadd.f32 %v1724, %v2583
  %v2697 = vadd.f32 %v1731, %v2585
  %v2698 = vadd.f32 %v1737, %v2587
  %v2699 = vadd.f32 %v1746, %v2589
  %v2700 = vadd.f32 %v1752, %v2591
  %v2701 = vadd.f32 %v1761, %v2593
  %v2702 = vadd.f32 %v1776, %v2595
  %v2703 = vadd.f32 %v1781, %v2597
  %v2704 = vadd.f32 %v1790, %v2599
  %v2705 = vadd.f32 %v1796, %v2601
  %v2706 = vadd.f32 %v1805, %v2603
  %v2707 = vadd.f32 %v1811, %v2605
  %v2708 = vadd.f32 %v1826, %v2607
  %v2709 = vadd.f32 %v1833, %v2609
  %v2710 = vadd.f32 %v1839, %v2611
  %v2711 = vadd.f32 %v1848, %v2613
  %v2712 = vadd.f32 %v1854, %v2615
  %v2713 = vadd.f32 %v1863, %v2617
  %vm2714 = vcmask 1041408
  %vm2715 = vcmask 1045508
  %vm2716 = vmor %vm2714, %vm2715
  %v2717 = vrot.slane %v1471, 6
  %v2718 = vrot.slane %v2717, 4
  %v2719 = vrot.slane %v1477, 6
  %v2720 = vsel %vm2716, %v2718, %v2719
  %v2721 = vrot.slane %v1472, 6
  %v2722 = vrot.slane %v2721, 4
  %v2723 = vrot.slane %v1479, 6
  %v2724 = vsel %vm2716, %v2722, %v2723
  %v2725 = vrot.slane %v2719, 4
  %v2726 = vrot.slane %v1485, 6
  %v2727 = vsel %vm2716, %v2725, %v2726
  %v2728 = vrot.slane %v2723, 4
  %v2729 = vrot.slane %v1486, 6
  %v2730 = vsel %vm2716, %v2728, %v2729
  %v2731 = vrot.slane %v2726, 4
  %v2732 = vrot.slane %v1492, 6
  %v2733 = vsel %vm2716, %v2731, %v2732
  %v2734 = vrot.slane %v2729, 4
  %v2735 = vrot.slane %v1494, 6
  %v2736 = vsel %vm2716, %v2734, %v2735
  %v2737 = vrot.slane %v2732, 4
  %v2738 = vrot.slane %v1500, 6
  %v2739 = vsel %vm2716, %v2737, %v2738
  %v2740 = vrot.slane %v2735, 4
  %v2741 = vrot.slane %v1501, 6
  %v2742 = vsel %vm2716, %v2740, %v2741
  %v2743 = vrot.slane %v2738, 4
  %v2744 = vrot.slane %v1507, 6
  %v2745 = vsel %vm2716, %v2743, %v2744
  %v2746 = vrot.slane %v2741, 4
  %v2747 = vrot.slane %v1509, 6
  %v2748 = vsel %vm2716, %v2746, %v2747
  %v2749 = vrot.slane %v2744, 4
  %v2750 = vrot.slane %v1515, 6
  %v2751 = vsel %vm2716, %v2749, %v2750
  %v2752 = vrot.slane %v2747, 4
  %v2753 = vrot.slane %v1516, 6
  %v2754 = vsel %vm2716, %v2752, %v2753
  %v2755 = vrot.slane %v1522, 6
  %v2756 = vrot.slane %v2755, 4
  %v2757 = vrot.slane %v1528, 6
  %v2758 = vsel %vm2716, %v2756, %v2757
  %v2759 = vrot.slane %v1524, 6
  %v2760 = vrot.slane %v2759, 4
  %v2761 = vrot.slane %v1529, 6
  %v2762 = vsel %vm2716, %v2760, %v2761
  %v2763 = vrot.slane %v2757, 4
  %v2764 = vrot.slane %v1535, 6
  %v2765 = vsel %vm2716, %v2763, %v2764
  %v2766 = vrot.slane %v2761, 4
  %v2767 = vrot.slane %v1537, 6
  %v2768 = vsel %vm2716, %v2766, %v2767
  %v2769 = vrot.slane %v2764, 4
  %v2770 = vrot.slane %v1543, 6
  %v2771 = vsel %vm2716, %v2769, %v2770
  %v2772 = vrot.slane %v2767, 4
  %v2773 = vrot.slane %v1544, 6
  %v2774 = vsel %vm2716, %v2772, %v2773
  %v2775 = vrot.slane %v2770, 4
  %v2776 = vrot.slane %v1550, 6
  %v2777 = vsel %vm2716, %v2775, %v2776
  %v2778 = vrot.slane %v2773, 4
  %v2779 = vrot.slane %v1552, 6
  %v2780 = vsel %vm2716, %v2778, %v2779
  %v2781 = vrot.slane %v2776, 4
  %v2782 = vrot.slane %v1558, 6
  %v2783 = vsel %vm2716, %v2781, %v2782
  %v2784 = vrot.slane %v2779, 4
  %v2785 = vrot.slane %v1559, 6
  %v2786 = vsel %vm2716, %v2784, %v2785
  %v2787 = vrot.slane %v2782, 4
  %v2788 = vrot.slane %v1565, 6
  %v2789 = vsel %vm2716, %v2787, %v2788
  %v2790 = vrot.slane %v2785, 4
  %v2791 = vrot.slane %v1567, 6
  %v2792 = vsel %vm2716, %v2790, %v2791
  %v2793 = vrot.slane %v1573, 6
  %v2794 = vrot.slane %v2793, 4
  %v2795 = vrot.slane %v1579, 6
  %v2796 = vsel %vm2716, %v2794, %v2795
  %v2797 = vrot.slane %v1574, 6
  %v2798 = vrot.slane %v2797, 4
  %v2799 = vrot.slane %v1581, 6
  %v2800 = vsel %vm2716, %v2798, %v2799
  %v2801 = vrot.slane %v2795, 4
  %v2802 = vrot.slane %v1587, 6
  %v2803 = vsel %vm2716, %v2801, %v2802
  %v2804 = vrot.slane %v2799, 4
  %v2805 = vrot.slane %v1588, 6
  %v2806 = vsel %vm2716, %v2804, %v2805
  %v2807 = vrot.slane %v2802, 4
  %v2808 = vrot.slane %v1594, 6
  %v2809 = vsel %vm2716, %v2807, %v2808
  %v2810 = vrot.slane %v2805, 4
  %v2811 = vrot.slane %v1596, 6
  %v2812 = vsel %vm2716, %v2810, %v2811
  %v2813 = vrot.slane %v2808, 4
  %v2814 = vrot.slane %v1602, 6
  %v2815 = vsel %vm2716, %v2813, %v2814
  %v2816 = vrot.slane %v2811, 4
  %v2817 = vrot.slane %v1603, 6
  %v2818 = vsel %vm2716, %v2816, %v2817
  %v2819 = vrot.slane %v2814, 4
  %v2820 = vrot.slane %v1609, 6
  %v2821 = vsel %vm2716, %v2819, %v2820
  %v2822 = vrot.slane %v2817, 4
  %v2823 = vrot.slane %v1611, 6
  %v2824 = vsel %vm2716, %v2822, %v2823
  %v2825 = vrot.slane %v2820, 4
  %v2826 = vrot.slane %v1617, 6
  %v2827 = vsel %vm2716, %v2825, %v2826
  %v2828 = vrot.slane %v2823, 4
  %v2829 = vrot.slane %v1618, 6
  %v2830 = vsel %vm2716, %v2828, %v2829
  %v2831 = vrot.slane %v1624, 6
  %v2832 = vrot.slane %v2831, 4
  %v2833 = vrot.slane %v1630, 6
  %v2834 = vsel %vm2716, %v2832, %v2833
  %v2835 = vrot.slane %v1626, 6
  %v2836 = vrot.slane %v2835, 4
  %v2837 = vrot.slane %v1631, 6
  %v2838 = vsel %vm2716, %v2836, %v2837
  %v2839 = vrot.slane %v2833, 4
  %v2840 = vrot.slane %v1637, 6
  %v2841 = vsel %vm2716, %v2839, %v2840
  %v2842 = vrot.slane %v2837, 4
  %v2843 = vrot.slane %v1639, 6
  %v2844 = vsel %vm2716, %v2842, %v2843
  %v2845 = vrot.slane %v2840, 4
  %v2846 = vrot.slane %v1645, 6
  %v2847 = vsel %vm2716, %v2845, %v2846
  %v2848 = vrot.slane %v2843, 4
  %v2849 = vrot.slane %v1646, 6
  %v2850 = vsel %vm2716, %v2848, %v2849
  %v2851 = vrot.slane %v2846, 4
  %v2852 = vrot.slane %v1652, 6
  %v2853 = vsel %vm2716, %v2851, %v2852
  %v2854 = vrot.slane %v2849, 4
  %v2855 = vrot.slane %v1654, 6
  %v2856 = vsel %vm2716, %v2854, %v2855
  %v2857 = vrot.slane %v2852, 4
  %v2858 = vrot.slane %v1660, 6
  %v2859 = vsel %vm2716, %v2857, %v2858
  %v2860 = vrot.slane %v2855, 4
  %v2861 = vrot.slane %v1661, 6
  %v2862 = vsel %vm2716, %v2860, %v2861
  %v2863 = vrot.slane %v2858, 4
  %v2864 = vrot.slane %v1667, 6
  %v2865 = vsel %vm2716, %v2863, %v2864
  %v2866 = vrot.slane %v2861, 4
  %v2867 = vrot.slane %v1669, 6
  %v2868 = vsel %vm2716, %v2866, %v2867
  %v2869 = vrot.slane %v1675, 6
  %v2870 = vrot.slane %v2869, 4
  %v2871 = vrot.slane %v1681, 6
  %v2872 = vsel %vm2716, %v2870, %v2871
  %v2873 = vrot.slane %v1676, 6
  %v2874 = vrot.slane %v2873, 4
  %v2875 = vrot.slane %v1683, 6
  %v2876 = vsel %vm2716, %v2874, %v2875
  %v2877 = vrot.slane %v2871, 4
  %v2878 = vrot.slane %v1689, 6
  %v2879 = vsel %vm2716, %v2877, %v2878
  %v2880 = vrot.slane %v2875, 4
  %v2881 = vrot.slane %v1690, 6
  %v2882 = vsel %vm2716, %v2880, %v2881
  %v2883 = vrot.slane %v2878, 4
  %v2884 = vrot.slane %v1696, 6
  %v2885 = vsel %vm2716, %v2883, %v2884
  %v2886 = vrot.slane %v2881, 4
  %v2887 = vrot.slane %v1698, 6
  %v2888 = vsel %vm2716, %v2886, %v2887
  %v2889 = vrot.slane %v2884, 4
  %v2890 = vrot.slane %v1704, 6
  %v2891 = vsel %vm2716, %v2889, %v2890
  %v2892 = vrot.slane %v2887, 4
  %v2893 = vrot.slane %v1705, 6
  %v2894 = vsel %vm2716, %v2892, %v2893
  %v2895 = vrot.slane %v2890, 4
  %v2896 = vrot.slane %v1711, 6
  %v2897 = vsel %vm2716, %v2895, %v2896
  %v2898 = vrot.slane %v2893, 4
  %v2899 = vrot.slane %v1713, 6
  %v2900 = vsel %vm2716, %v2898, %v2899
  %v2901 = vrot.slane %v2896, 4
  %v2902 = vrot.slane %v1719, 6
  %v2903 = vsel %vm2716, %v2901, %v2902
  %v2904 = vrot.slane %v2899, 4
  %v2905 = vrot.slane %v1720, 6
  %v2906 = vsel %vm2716, %v2904, %v2905
  %v2907 = vrot.slane %v1726, 6
  %v2908 = vrot.slane %v2907, 4
  %v2909 = vrot.slane %v1732, 6
  %v2910 = vsel %vm2716, %v2908, %v2909
  %v2911 = vrot.slane %v1728, 6
  %v2912 = vrot.slane %v2911, 4
  %v2913 = vrot.slane %v1733, 6
  %v2914 = vsel %vm2716, %v2912, %v2913
  %v2915 = vrot.slane %v2909, 4
  %v2916 = vrot.slane %v1739, 6
  %v2917 = vsel %vm2716, %v2915, %v2916
  %v2918 = vrot.slane %v2913, 4
  %v2919 = vrot.slane %v1741, 6
  %v2920 = vsel %vm2716, %v2918, %v2919
  %v2921 = vrot.slane %v2916, 4
  %v2922 = vrot.slane %v1747, 6
  %v2923 = vsel %vm2716, %v2921, %v2922
  %v2924 = vrot.slane %v2919, 4
  %v2925 = vrot.slane %v1748, 6
  %v2926 = vsel %vm2716, %v2924, %v2925
  %v2927 = vrot.slane %v2922, 4
  %v2928 = vrot.slane %v1754, 6
  %v2929 = vsel %vm2716, %v2927, %v2928
  %v2930 = vrot.slane %v2925, 4
  %v2931 = vrot.slane %v1756, 6
  %v2932 = vsel %vm2716, %v2930, %v2931
  %v2933 = vrot.slane %v2928, 4
  %v2934 = vrot.slane %v1762, 6
  %v2935 = vsel %vm2716, %v2933, %v2934
  %v2936 = vrot.slane %v2931, 4
  %v2937 = vrot.slane %v1763, 6
  %v2938 = vsel %vm2716, %v2936, %v2937
  %v2939 = vrot.slane %v2934, 4
  %v2940 = vrot.slane %v1769, 6
  %v2941 = vsel %vm2716, %v2939, %v2940
  %v2942 = vrot.slane %v2937, 4
  %v2943 = vrot.slane %v1771, 6
  %v2944 = vsel %vm2716, %v2942, %v2943
  %v2945 = vrot.slane %v1777, 6
  %v2946 = vrot.slane %v2945, 4
  %v2947 = vrot.slane %v1783, 6
  %v2948 = vsel %vm2716, %v2946, %v2947
  %v2949 = vrot.slane %v1778, 6
  %v2950 = vrot.slane %v2949, 4
  %v2951 = vrot.slane %v1785, 6
  %v2952 = vsel %vm2716, %v2950, %v2951
  %v2953 = vrot.slane %v2947, 4
  %v2954 = vrot.slane %v1791, 6
  %v2955 = vsel %vm2716, %v2953, %v2954
  %v2956 = vrot.slane %v2951, 4
  %v2957 = vrot.slane %v1792, 6
  %v2958 = vsel %vm2716, %v2956, %v2957
  %v2959 = vrot.slane %v2954, 4
  %v2960 = vrot.slane %v1798, 6
  %v2961 = vsel %vm2716, %v2959, %v2960
  %v2962 = vrot.slane %v2957, 4
  %v2963 = vrot.slane %v1800, 6
  %v2964 = vsel %vm2716, %v2962, %v2963
  %v2965 = vrot.slane %v2960, 4
  %v2966 = vrot.slane %v1806, 6
  %v2967 = vsel %vm2716, %v2965, %v2966
  %v2968 = vrot.slane %v2963, 4
  %v2969 = vrot.slane %v1807, 6
  %v2970 = vsel %vm2716, %v2968, %v2969
  %v2971 = vrot.slane %v2966, 4
  %v2972 = vrot.slane %v1813, 6
  %v2973 = vsel %vm2716, %v2971, %v2972
  %v2974 = vrot.slane %v2969, 4
  %v2975 = vrot.slane %v1815, 6
  %v2976 = vsel %vm2716, %v2974, %v2975
  %v2977 = vrot.slane %v2972, 4
  %v2978 = vrot.slane %v1821, 6
  %v2979 = vsel %vm2716, %v2977, %v2978
  %v2980 = vrot.slane %v2975, 4
  %v2981 = vrot.slane %v1822, 6
  %v2982 = vsel %vm2716, %v2980, %v2981
  %v2983 = vrot.slane %v1828, 6
  %v2984 = vrot.slane %v2983, 4
  %v2985 = vrot.slane %v1834, 6
  %v2986 = vsel %vm2716, %v2984, %v2985
  %v2987 = vrot.slane %v1830, 6
  %v2988 = vrot.slane %v2987, 4
  %v2989 = vrot.slane %v1835, 6
  %v2990 = vsel %vm2716, %v2988, %v2989
  %v2991 = vrot.slane %v2985, 4
  %v2992 = vrot.slane %v1841, 6
  %v2993 = vsel %vm2716, %v2991, %v2992
  %v2994 = vrot.slane %v2989, 4
  %v2995 = vrot.slane %v1843, 6
  %v2996 = vsel %vm2716, %v2994, %v2995
  %v2997 = vrot.slane %v2992, 4
  %v2998 = vrot.slane %v1849, 6
  %v2999 = vsel %vm2716, %v2997, %v2998
  %v3000 = vrot.slane %v2995, 4
  %v3001 = vrot.slane %v1850, 6
  %v3002 = vsel %vm2716, %v3000, %v3001
  %v3003 = vrot.slane %v2998, 4
  %v3004 = vrot.slane %v1856, 6
  %v3005 = vsel %vm2716, %v3003, %v3004
  %v3006 = vrot.slane %v3001, 4
  %v3007 = vrot.slane %v1858, 6
  %v3008 = vsel %vm2716, %v3006, %v3007
  %v3009 = vrot.slane %v3004, 4
  %v3010 = vrot.slane %v1864, 6
  %v3011 = vsel %vm2716, %v3009, %v3010
  %v3012 = vrot.slane %v3007, 4
  %v3013 = vrot.slane %v1865, 6
  %v3014 = vsel %vm2716, %v3012, %v3013
  %v3015 = vrot.slane %v3010, 4
  %v3016 = vrot.slane %v1871, 6
  %v3017 = vsel %vm2716, %v3015, %v3016
  %v3018 = vrot.slane %v3013, 4
  %v3019 = vrot.slane %v1873, 6
  %v3020 = vsel %vm2716, %v3018, %v3019
  %3021 = vrot.lane.b32.xlu0 %v2720, 32
  %v3022 = vpop.permute.xlu0 %3021
  %3023 = vrot.lane.b32.xlu0 %v2724, 32
  %v3024 = vpop.permute.xlu0 %3023
  %3025 = vrot.lane.b32.xlu0 %v2727, 32
  %v3026 = vpop.permute.xlu0 %3025
  %3027 = vrot.lane.b32.xlu0 %v2730, 32
  %v3028 = vpop.permute.xlu0 %3027
  %3029 = vrot.lane.b32.xlu0 %v2733, 32
  %v3030 = vpop.permute.xlu0 %3029
  %3031 = vrot.lane.b32.xlu0 %v2736, 32
  %v3032 = vpop.permute.xlu0 %3031
  %3033 = vrot.lane.b32.xlu0 %v2739, 32
  %v3034 = vpop.permute.xlu0 %3033
  %3035 = vrot.lane.b32.xlu0 %v2742, 32
  %v3036 = vpop.permute.xlu0 %3035
  %3037 = vrot.lane.b32.xlu0 %v2745, 32
  %v3038 = vpop.permute.xlu0 %3037
  %3039 = vrot.lane.b32.xlu0 %v2748, 32
  %v3040 = vpop.permute.xlu0 %3039
  %3041 = vrot.lane.b32.xlu0 %v2751, 32
  %v3042 = vpop.permute.xlu0 %3041
  %3043 = vrot.lane.b32.xlu0 %v2754, 32
  %v3044 = vpop.permute.xlu0 %3043
  %3045 = vrot.lane.b32.xlu0 %v2758, 32
  %v3046 = vpop.permute.xlu0 %3045
  %3047 = vrot.lane.b32.xlu0 %v2762, 32
  %v3048 = vpop.permute.xlu0 %3047
  %3049 = vrot.lane.b32.xlu0 %v2765, 32
  %v3050 = vpop.permute.xlu0 %3049
  %3051 = vrot.lane.b32.xlu0 %v2768, 32
  %v3052 = vpop.permute.xlu0 %3051
  %3053 = vrot.lane.b32.xlu0 %v2771, 32
  %v3054 = vpop.permute.xlu0 %3053
  %3055 = vrot.lane.b32.xlu0 %v2774, 32
  %v3056 = vpop.permute.xlu0 %3055
  %3057 = vrot.lane.b32.xlu0 %v2777, 32
  %v3058 = vpop.permute.xlu0 %3057
  %3059 = vrot.lane.b32.xlu0 %v2780, 32
  %v3060 = vpop.permute.xlu0 %3059
  %3061 = vrot.lane.b32.xlu0 %v2783, 32
  %v3062 = vpop.permute.xlu0 %3061
  %3063 = vrot.lane.b32.xlu0 %v2786, 32
  %v3064 = vpop.permute.xlu0 %3063
  %3065 = vrot.lane.b32.xlu0 %v2789, 32
  %v3066 = vpop.permute.xlu0 %3065
  %3067 = vrot.lane.b32.xlu0 %v2792, 32
  %v3068 = vpop.permute.xlu0 %3067
  %3069 = vrot.lane.b32.xlu0 %v2796, 32
  %v3070 = vpop.permute.xlu0 %3069
  %3071 = vrot.lane.b32.xlu0 %v2800, 32
  %v3072 = vpop.permute.xlu0 %3071
  %3073 = vrot.lane.b32.xlu0 %v2803, 32
  %v3074 = vpop.permute.xlu0 %3073
  %3075 = vrot.lane.b32.xlu0 %v2806, 32
  %v3076 = vpop.permute.xlu0 %3075
  %3077 = vrot.lane.b32.xlu0 %v2809, 32
  %v3078 = vpop.permute.xlu0 %3077
  %3079 = vrot.lane.b32.xlu0 %v2812, 32
  %v3080 = vpop.permute.xlu0 %3079
  %3081 = vrot.lane.b32.xlu0 %v2815, 32
  %v3082 = vpop.permute.xlu0 %3081
  %3083 = vrot.lane.b32.xlu0 %v2818, 32
  %v3084 = vpop.permute.xlu0 %3083
  %3085 = vrot.lane.b32.xlu0 %v2821, 32
  %v3086 = vpop.permute.xlu0 %3085
  %3087 = vrot.lane.b32.xlu0 %v2824, 32
  %v3088 = vpop.permute.xlu0 %3087
  %3089 = vrot.lane.b32.xlu0 %v2827, 32
  %v3090 = vpop.permute.xlu0 %3089
  %3091 = vrot.lane.b32.xlu0 %v2830, 32
  %v3092 = vpop.permute.xlu0 %3091
  %3093 = vrot.lane.b32.xlu0 %v2834, 32
  %v3094 = vpop.permute.xlu0 %3093
  %3095 = vrot.lane.b32.xlu0 %v2838, 32
  %v3096 = vpop.permute.xlu0 %3095
  %3097 = vrot.lane.b32.xlu0 %v2841, 32
  %v3098 = vpop.permute.xlu0 %3097
  %3099 = vrot.lane.b32.xlu0 %v2844, 32
  %v3100 = vpop.permute.xlu0 %3099
  %3101 = vrot.lane.b32.xlu0 %v2847, 32
  %v3102 = vpop.permute.xlu0 %3101
  %3103 = vrot.lane.b32.xlu0 %v2850, 32
  %v3104 = vpop.permute.xlu0 %3103
  %3105 = vrot.lane.b32.xlu0 %v2853, 32
  %v3106 = vpop.permute.xlu0 %3105
  %3107 = vrot.lane.b32.xlu0 %v2856, 32
  %v3108 = vpop.permute.xlu0 %3107
  %3109 = vrot.lane.b32.xlu0 %v2859, 32
  %v3110 = vpop.permute.xlu0 %3109
  %3111 = vrot.lane.b32.xlu0 %v2862, 32
  %v3112 = vpop.permute.xlu0 %3111
  %3113 = vrot.lane.b32.xlu0 %v2865, 32
  %v3114 = vpop.permute.xlu0 %3113
  %3115 = vrot.lane.b32.xlu0 %v2868, 32
  %v3116 = vpop.permute.xlu0 %3115
  %3117 = vrot.lane.b32.xlu0 %v2872, 32
  %v3118 = vpop.permute.xlu0 %3117
  %3119 = vrot.lane.b32.xlu0 %v2876, 32
  %v3120 = vpop.permute.xlu0 %3119
  %3121 = vrot.lane.b32.xlu0 %v2879, 32
  %v3122 = vpop.permute.xlu0 %3121
  %3123 = vrot.lane.b32.xlu0 %v2882, 32
  %v3124 = vpop.permute.xlu0 %3123
  %3125 = vrot.lane.b32.xlu0 %v2885, 32
  %v3126 = vpop.permute.xlu0 %3125
  %3127 = vrot.lane.b32.xlu0 %v2888, 32
  %v3128 = vpop.permute.xlu0 %3127
  %3129 = vrot.lane.b32.xlu0 %v2891, 32
  %v3130 = vpop.permute.xlu0 %3129
  %3131 = vrot.lane.b32.xlu0 %v2894, 32
  %v3132 = vpop.permute.xlu0 %3131
  %3133 = vrot.lane.b32.xlu0 %v2897, 32
  %v3134 = vpop.permute.xlu0 %3133
  %3135 = vrot.lane.b32.xlu0 %v2900, 32
  %v3136 = vpop.permute.xlu0 %3135
  %3137 = vrot.lane.b32.xlu0 %v2903, 32
  %v3138 = vpop.permute.xlu0 %3137
  %3139 = vrot.lane.b32.xlu0 %v2906, 32
  %v3140 = vpop.permute.xlu0 %3139
  %3141 = vrot.lane.b32.xlu0 %v2910, 32
  %v3142 = vpop.permute.xlu0 %3141
  %3143 = vrot.lane.b32.xlu0 %v2914, 32
  %v3144 = vpop.permute.xlu0 %3143
  %3145 = vrot.lane.b32.xlu0 %v2917, 32
  %v3146 = vpop.permute.xlu0 %3145
  %3147 = vrot.lane.b32.xlu0 %v2920, 32
  %v3148 = vpop.permute.xlu0 %3147
  %3149 = vrot.lane.b32.xlu0 %v2923, 32
  %v3150 = vpop.permute.xlu0 %3149
  %3151 = vrot.lane.b32.xlu0 %v2926, 32
  %v3152 = vpop.permute.xlu0 %3151
  %3153 = vrot.lane.b32.xlu0 %v2929, 32
  %v3154 = vpop.permute.xlu0 %3153
  %3155 = vrot.lane.b32.xlu0 %v2932, 32
  %v3156 = vpop.permute.xlu0 %3155
  %3157 = vrot.lane.b32.xlu0 %v2935, 32
  %v3158 = vpop.permute.xlu0 %3157
  %3159 = vrot.lane.b32.xlu0 %v2938, 32
  %v3160 = vpop.permute.xlu0 %3159
  %3161 = vrot.lane.b32.xlu0 %v2941, 32
  %v3162 = vpop.permute.xlu0 %3161
  %3163 = vrot.lane.b32.xlu0 %v2944, 32
  %v3164 = vpop.permute.xlu0 %3163
  %3165 = vrot.lane.b32.xlu0 %v2948, 32
  %v3166 = vpop.permute.xlu0 %3165
  %3167 = vrot.lane.b32.xlu0 %v2952, 32
  %v3168 = vpop.permute.xlu0 %3167
  %3169 = vrot.lane.b32.xlu0 %v2955, 32
  %v3170 = vpop.permute.xlu0 %3169
  %3171 = vrot.lane.b32.xlu0 %v2958, 32
  %v3172 = vpop.permute.xlu0 %3171
  %3173 = vrot.lane.b32.xlu0 %v2961, 32
  %v3174 = vpop.permute.xlu0 %3173
  %3175 = vrot.lane.b32.xlu0 %v2964, 32
  %v3176 = vpop.permute.xlu0 %3175
  %3177 = vrot.lane.b32.xlu0 %v2967, 32
  %v3178 = vpop.permute.xlu0 %3177
  %3179 = vrot.lane.b32.xlu0 %v2970, 32
  %v3180 = vpop.permute.xlu0 %3179
  %3181 = vrot.lane.b32.xlu0 %v2973, 32
  %v3182 = vpop.permute.xlu0 %3181
  %3183 = vrot.lane.b32.xlu0 %v2976, 32
  %v3184 = vpop.permute.xlu0 %3183
  %3185 = vrot.lane.b32.xlu0 %v2979, 32
  %v3186 = vpop.permute.xlu0 %3185
  %3187 = vrot.lane.b32.xlu0 %v2982, 32
  %v3188 = vpop.permute.xlu0 %3187
  %3189 = vrot.lane.b32.xlu0 %v2986, 32
  %v3190 = vpop.permute.xlu0 %3189
  %3191 = vrot.lane.b32.xlu0 %v2990, 32
  %v3192 = vpop.permute.xlu0 %3191
  %3193 = vrot.lane.b32.xlu0 %v2993, 32
  %v3194 = vpop.permute.xlu0 %3193
  %3195 = vrot.lane.b32.xlu0 %v2996, 32
  %v3196 = vpop.permute.xlu0 %3195
  %3197 = vrot.lane.b32.xlu0 %v2999, 32
  %v3198 = vpop.permute.xlu0 %3197
  %3199 = vrot.lane.b32.xlu0 %v3002, 32
  %v3200 = vpop.permute.xlu0 %3199
  %3201 = vrot.lane.b32.xlu0 %v3005, 32
  %v3202 = vpop.permute.xlu0 %3201
  %3203 = vrot.lane.b32.xlu0 %v3008, 32
  %v3204 = vpop.permute.xlu0 %3203
  %3205 = vrot.lane.b32.xlu0 %v3011, 32
  %v3206 = vpop.permute.xlu0 %3205
  %3207 = vrot.lane.b32.xlu0 %v3014, 32
  %v3208 = vpop.permute.xlu0 %3207
  %3209 = vrot.lane.b32.xlu0 %v3017, 32
  %v3210 = vpop.permute.xlu0 %3209
  %3211 = vrot.lane.b32.xlu0 %v3020, 32
  %v3212 = vpop.permute.xlu0 %3211
  %v3213 = vrot.slane %v3022, 4
  %v3214 = vrot.slane %v3024, 4
  %v3215 = vrot.slane %v3026, 4
  %v3216 = vrot.slane %v3028, 4
  %v3217 = vrot.slane %v3030, 4
  %v3218 = vrot.slane %v3032, 4
  %v3219 = vrot.slane %v3034, 4
  %v3220 = vrot.slane %v3036, 4
  %v3221 = vrot.slane %v3038, 4
  %v3222 = vrot.slane %v3040, 4
  %v3223 = vrot.slane %v3042, 4
  %v3224 = vrot.slane %v3044, 4
  %v3225 = vrot.slane %v3046, 4
  %v3226 = vrot.slane %v3048, 4
  %v3227 = vrot.slane %v3050, 4
  %v3228 = vrot.slane %v3052, 4
  %v3229 = vrot.slane %v3054, 4
  %v3230 = vrot.slane %v3056, 4
  %v3231 = vrot.slane %v3058, 4
  %v3232 = vrot.slane %v3060, 4
  %v3233 = vrot.slane %v3062, 4
  %v3234 = vrot.slane %v3064, 4
  %v3235 = vrot.slane %v3066, 4
  %v3236 = vrot.slane %v3068, 4
  %v3237 = vrot.slane %v3070, 4
  %v3238 = vrot.slane %v3072, 4
  %v3239 = vrot.slane %v3074, 4
  %v3240 = vrot.slane %v3076, 4
  %v3241 = vrot.slane %v3078, 4
  %v3242 = vrot.slane %v3080, 4
  %v3243 = vrot.slane %v3082, 4
  %v3244 = vrot.slane %v3084, 4
  %v3245 = vrot.slane %v3086, 4
  %v3246 = vrot.slane %v3088, 4
  %v3247 = vrot.slane %v3090, 4
  %v3248 = vrot.slane %v3092, 4
  %v3249 = vrot.slane %v3094, 4
  %v3250 = vrot.slane %v3096, 4
  %v3251 = vrot.slane %v3098, 4
  %v3252 = vrot.slane %v3100, 4
  %v3253 = vrot.slane %v3102, 4
  %v3254 = vrot.slane %v3104, 4
  %v3255 = vrot.slane %v3106, 4
  %v3256 = vrot.slane %v3108, 4
  %v3257 = vrot.slane %v3110, 4
  %v3258 = vrot.slane %v3112, 4
  %v3259 = vrot.slane %v3114, 4
  %v3260 = vrot.slane %v3116, 4
  %v3261 = vrot.slane %v3118, 4
  %v3262 = vrot.slane %v3120, 4
  %v3263 = vrot.slane %v3122, 4
  %v3264 = vrot.slane %v3124, 4
  %v3265 = vrot.slane %v3126, 4
  %v3266 = vrot.slane %v3128, 4
  %v3267 = vrot.slane %v3130, 4
  %v3268 = vrot.slane %v3132, 4
  %v3269 = vrot.slane %v3134, 4
  %v3270 = vrot.slane %v3136, 4
  %v3271 = vrot.slane %v3138, 4
  %v3272 = vrot.slane %v3140, 4
  %v3273 = vrot.slane %v3142, 4
  %v3274 = vrot.slane %v3144, 4
  %v3275 = vrot.slane %v3146, 4
  %v3276 = vrot.slane %v3148, 4
  %v3277 = vrot.slane %v3150, 4
  %v3278 = vrot.slane %v3152, 4
  %v3279 = vrot.slane %v3154, 4
  %v3280 = vrot.slane %v3156, 4
  %v3281 = vrot.slane %v3158, 4
  %v3282 = vrot.slane %v3160, 4
  %v3283 = vrot.slane %v3162, 4
  %v3284 = vrot.slane %v3164, 4
  %v3285 = vrot.slane %v3166, 4
  %v3286 = vrot.slane %v3168, 4
  %v3287 = vrot.slane %v3170, 4
  %v3288 = vrot.slane %v3172, 4
  %v3289 = vrot.slane %v3174, 4
  %v3290 = vrot.slane %v3176, 4
  %v3291 = vrot.slane %v3178, 4
  %v3292 = vrot.slane %v3180, 4
  %v3293 = vrot.slane %v3182, 4
  %v3294 = vrot.slane %v3184, 4
  %v3295 = vrot.slane %v3186, 4
  %v3296 = vrot.slane %v3188, 4
  %v3297 = vrot.slane %v3190, 4
  %v3298 = vrot.slane %v3192, 4
  %v3299 = vrot.slane %v3194, 4
  %v3300 = vrot.slane %v3196, 4
  %v3301 = vrot.slane %v3198, 4
  %v3302 = vrot.slane %v3200, 4
  %v3303 = vrot.slane %v3202, 4
  %v3304 = vrot.slane %v3204, 4
  %v3305 = vrot.slane %v3206, 4
  %v3306 = vrot.slane %v3208, 4
  %v3307 = vrot.slane %v3210, 4
  %v3308 = vrot.slane %v3212, 4
  %v3309 = vsel %vm1469, %v3213, %v3214
  %vm3310 = vcmask 261120
  %v3311 = vsel %vm3310, %v3309, %v3024
  %v3312 = vsel %vm1469, %v3215, %v3216
  %v3313 = vsel %vm3310, %v3312, %v3028
  %v3314 = vsel %vm1469, %v3217, %v3218
  %v3315 = vsel %vm3310, %v3314, %v3032
  %v3316 = vsel %vm1469, %v3219, %v3220
  %v3317 = vsel %vm3310, %v3316, %v3036
  %v3318 = vsel %vm1469, %v3221, %v3222
  %v3319 = vsel %vm3310, %v3318, %v3040
  %v3320 = vsel %vm1469, %v3223, %v3224
  %v3321 = vsel %vm3310, %v3320, %v3044
  %v3322 = vsel %vm1469, %v3225, %v3226
  %v3323 = vsel %vm3310, %v3322, %v3048
  %v3324 = vsel %vm1469, %v3227, %v3228
  %v3325 = vsel %vm3310, %v3324, %v3052
  %v3326 = vsel %vm1469, %v3229, %v3230
  %v3327 = vsel %vm3310, %v3326, %v3056
  %v3328 = vsel %vm1469, %v3231, %v3232
  %v3329 = vsel %vm3310, %v3328, %v3060
  %v3330 = vsel %vm1469, %v3233, %v3234
  %v3331 = vsel %vm3310, %v3330, %v3064
  %v3332 = vsel %vm1469, %v3235, %v3236
  %v3333 = vsel %vm3310, %v3332, %v3068
  %v3334 = vsel %vm1469, %v3237, %v3238
  %v3335 = vsel %vm3310, %v3334, %v3072
  %v3336 = vsel %vm1469, %v3239, %v3240
  %v3337 = vsel %vm3310, %v3336, %v3076
  %v3338 = vsel %vm1469, %v3241, %v3242
  %v3339 = vsel %vm3310, %v3338, %v3080
  %v3340 = vsel %vm1469, %v3243, %v3244
  %v3341 = vsel %vm3310, %v3340, %v3084
  %v3342 = vsel %vm1469, %v3245, %v3246
  %v3343 = vsel %vm3310, %v3342, %v3088
  %v3344 = vsel %vm1469, %v3247, %v3248
  %v3345 = vsel %vm3310, %v3344, %v3092
  %v3346 = vsel %vm1469, %v3249, %v3250
  %v3347 = vsel %vm3310, %v3346, %v3096
  %v3348 = vsel %vm1469, %v3251, %v3252
  %v3349 = vsel %vm3310, %v3348, %v3100
  %v3350 = vsel %vm1469, %v3253, %v3254
  %v3351 = vsel %vm3310, %v3350, %v3104
  %v3352 = vsel %vm1469, %v3255, %v3256
  %v3353 = vsel %vm3310, %v3352, %v3108
  %v3354 = vsel %vm1469, %v3257, %v3258
  %v3355 = vsel %vm3310, %v3354, %v3112
  %v3356 = vsel %vm1469, %v3259, %v3260
  %v3357 = vsel %vm3310, %v3356, %v3116
  %v3358 = vsel %vm1469, %v3261, %v3262
  %v3359 = vsel %vm3310, %v3358, %v3120
  %v3360 = vsel %vm1469, %v3263, %v3264
  %v3361 = vsel %vm3310, %v3360, %v3124
  %v3362 = vsel %vm1469, %v3265, %v3266
  %v3363 = vsel %vm3310, %v3362, %v3128
  %v3364 = vsel %vm1469, %v3267, %v3268
  %v3365 = vsel %vm3310, %v3364, %v3132
  %v3366 = vsel %vm1469, %v3269, %v3270
  %v3367 = vsel %vm3310, %v3366, %v3136
  %v3368 = vsel %vm1469, %v3271, %v3272
  %v3369 = vsel %vm3310, %v3368, %v3140
  %v3370 = vsel %vm1469, %v3273, %v3274
  %v3371 = vsel %vm3310, %v3370, %v3144
  %v3372 = vsel %vm1469, %v3275, %v3276
  %v3373 = vsel %vm3310, %v3372, %v3148
  %v3374 = vsel %vm1469, %v3277, %v3278
  %v3375 = vsel %vm3310, %v3374, %v3152
  %v3376 = vsel %vm1469, %v3279, %v3280
  %v3377 = vsel %vm3310, %v3376, %v3156
  %v3378 = vsel %vm1469, %v3281, %v3282
  %v3379 = vsel %vm3310, %v3378, %v3160
  %v3380 = vsel %vm1469, %v3283, %v3284
  %v3381 = vsel %vm3310, %v3380, %v3164
  %v3382 = vsel %vm1469, %v3285, %v3286
  %v3383 = vsel %vm3310, %v3382, %v3168
  %v3384 = vsel %vm1469, %v3287, %v3288
  %v3385 = vsel %vm3310, %v3384, %v3172
  %v3386 = vsel %vm1469, %v3289, %v3290
  %v3387 = vsel %vm3310, %v3386, %v3176
  %v3388 = vsel %vm1469, %v3291, %v3292
  %v3389 = vsel %vm3310, %v3388, %v3180
  %v3390 = vsel %vm1469, %v3293, %v3294
  %v3391 = vsel %vm3310, %v3390, %v3184
  %v3392 = vsel %vm1469, %v3295, %v3296
  %v3393 = vsel %vm3310, %v3392, %v3188
  %v3394 = vsel %vm1469, %v3297, %v3298
  %v3395 = vsel %vm3310, %v3394, %v3192
  %v3396 = vsel %vm1469, %v3299, %v3300
  %v3397 = vsel %vm3310, %v3396, %v3196
  %v3398 = vsel %vm1469, %v3301, %v3302
  %v3399 = vsel %vm3310, %v3398, %v3200
  %v3400 = vsel %vm1469, %v3303, %v3304
  %v3401 = vsel %vm3310, %v3400, %v3204
  %v3402 = vsel %vm1469, %v3305, %v3306
  %v3403 = vsel %vm3310, %v3402, %v3208
  %v3404 = vsel %vm1469, %v3307, %v3308
  %v3405 = vsel %vm3310, %v3404, %v3212
  %v3454 = vadd.f32 %v2666, %v3311
  %v3455 = vadd.f32 %v2667, %v3313
  %v3456 = vadd.f32 %v2668, %v3315
  %v3457 = vadd.f32 %v2669, %v3317
  %v3458 = vadd.f32 %v2670, %v3319
  %v3459 = vadd.f32 %v2671, %v3321
  %v3460 = vadd.f32 %v2672, %v3323
  %v3461 = vadd.f32 %v2673, %v3325
  %v3462 = vadd.f32 %v2674, %v3327
  %v3463 = vadd.f32 %v2675, %v3329
  %v3464 = vadd.f32 %v2676, %v3331
  %v3465 = vadd.f32 %v2677, %v3333
  %v3466 = vadd.f32 %v2678, %v3335
  %v3467 = vadd.f32 %v2679, %v3337
  %v3468 = vadd.f32 %v2680, %v3339
  %v3469 = vadd.f32 %v2681, %v3341
  %v3470 = vadd.f32 %v2682, %v3343
  %v3471 = vadd.f32 %v2683, %v3345
  %v3472 = vadd.f32 %v2684, %v3347
  %v3473 = vadd.f32 %v2685, %v3349
  %v3474 = vadd.f32 %v2686, %v3351
  %v3475 = vadd.f32 %v2687, %v3353
  %v3476 = vadd.f32 %v2688, %v3355
  %v3477 = vadd.f32 %v2689, %v3357
  %v3478 = vadd.f32 %v2690, %v3359
  %v3479 = vadd.f32 %v2691, %v3361
  %v3480 = vadd.f32 %v2692, %v3363
  %v3481 = vadd.f32 %v2693, %v3365
  %v3482 = vadd.f32 %v2694, %v3367
  %v3483 = vadd.f32 %v2695, %v3369
  %v3484 = vadd.f32 %v2696, %v3371
  %v3485 = vadd.f32 %v2697, %v3373
  %v3486 = vadd.f32 %v2698, %v3375
  %v3487 = vadd.f32 %v2699, %v3377
  %v3488 = vadd.f32 %v2700, %v3379
  %v3489 = vadd.f32 %v2701, %v3381
  %v3490 = vadd.f32 %v2702, %v3383
  %v3491 = vadd.f32 %v2703, %v3385
  %v3492 = vadd.f32 %v2704, %v3387
  %v3493 = vadd.f32 %v2705, %v3389
  %v3494 = vadd.f32 %v2706, %v3391
  %v3495 = vadd.f32 %v2707, %v3393
  %v3496 = vadd.f32 %v2708, %v3395
  %v3497 = vadd.f32 %v2709, %v3397
  %v3498 = vadd.f32 %v2710, %v3399
  %v3499 = vadd.f32 %v2711, %v3401
  %v3500 = vadd.f32 %v2712, %v3403
  %v3501 = vadd.f32 %v2713, %v3405
  %vm3502 = vcmask 1040384
  %vm3503 = vcmask 1044484
  %vm3504 = vmor %vm3502, %vm3503
  %v3505 = vrot.slane %v1472, 7
  %v3506 = vrot.slane %v3505, 4
  %v3507 = vrot.slane %v1479, 7
  %v3508 = vsel %vm3504, %v3506, %v3507
  %v3509 = vrot.slane %v1473, 7
  %v3510 = vrot.slane %v3509, 4
  %v3511 = vrot.slane %v1481, 7
  %v3512 = vsel %vm3504, %v3510, %v3511
  %v3513 = vrot.slane %v3507, 4
  %v3514 = vrot.slane %v1486, 7
  %v3515 = vsel %vm3504, %v3513, %v3514
  %v3516 = vrot.slane %v3511, 4
  %v3517 = vrot.slane %v1487, 7
  %v3518 = vsel %vm3504, %v3516, %v3517
  %v3519 = vrot.slane %v3514, 4
  %v3520 = vrot.slane %v1494, 7
  %v3521 = vsel %vm3504, %v3519, %v3520
  %v3522 = vrot.slane %v3517, 4
  %v3523 = vrot.slane %v1496, 7
  %v3524 = vsel %vm3504, %v3522, %v3523
  %v3525 = vrot.slane %v3520, 4
  %v3526 = vrot.slane %v1501, 7
  %v3527 = vsel %vm3504, %v3525, %v3526
  %v3528 = vrot.slane %v3523, 4
  %v3529 = vrot.slane %v1502, 7
  %v3530 = vsel %vm3504, %v3528, %v3529
  %v3531 = vrot.slane %v3526, 4
  %v3532 = vrot.slane %v1509, 7
  %v3533 = vsel %vm3504, %v3531, %v3532
  %v3534 = vrot.slane %v3529, 4
  %v3535 = vrot.slane %v1511, 7
  %v3536 = vsel %vm3504, %v3534, %v3535
  %v3537 = vrot.slane %v3532, 4
  %v3538 = vrot.slane %v1516, 7
  %v3539 = vsel %vm3504, %v3537, %v3538
  %v3540 = vrot.slane %v3535, 4
  %v3541 = vrot.slane %v1517, 7
  %v3542 = vsel %vm3504, %v3540, %v3541
  %v3543 = vrot.slane %v1524, 7
  %v3544 = vrot.slane %v3543, 4
  %v3545 = vrot.slane %v1529, 7
  %v3546 = vsel %vm3504, %v3544, %v3545
  %v3547 = vrot.slane %v1526, 7
  %v3548 = vrot.slane %v3547, 4
  %v3549 = vrot.slane %v1530, 7
  %v3550 = vsel %vm3504, %v3548, %v3549
  %v3551 = vrot.slane %v3545, 4
  %v3552 = vrot.slane %v1537, 7
  %v3553 = vsel %vm3504, %v3551, %v3552
  %v3554 = vrot.slane %v3549, 4
  %v3555 = vrot.slane %v1539, 7
  %v3556 = vsel %vm3504, %v3554, %v3555
  %v3557 = vrot.slane %v3552, 4
  %v3558 = vrot.slane %v1544, 7
  %v3559 = vsel %vm3504, %v3557, %v3558
  %v3560 = vrot.slane %v3555, 4
  %v3561 = vrot.slane %v1545, 7
  %v3562 = vsel %vm3504, %v3560, %v3561
  %v3563 = vrot.slane %v3558, 4
  %v3564 = vrot.slane %v1552, 7
  %v3565 = vsel %vm3504, %v3563, %v3564
  %v3566 = vrot.slane %v3561, 4
  %v3567 = vrot.slane %v1554, 7
  %v3568 = vsel %vm3504, %v3566, %v3567
  %v3569 = vrot.slane %v3564, 4
  %v3570 = vrot.slane %v1559, 7
  %v3571 = vsel %vm3504, %v3569, %v3570
  %v3572 = vrot.slane %v3567, 4
  %v3573 = vrot.slane %v1560, 7
  %v3574 = vsel %vm3504, %v3572, %v3573
  %v3575 = vrot.slane %v3570, 4
  %v3576 = vrot.slane %v1567, 7
  %v3577 = vsel %vm3504, %v3575, %v3576
  %v3578 = vrot.slane %v3573, 4
  %v3579 = vrot.slane %v1569, 7
  %v3580 = vsel %vm3504, %v3578, %v3579
  %v3581 = vrot.slane %v1574, 7
  %v3582 = vrot.slane %v3581, 4
  %v3583 = vrot.slane %v1581, 7
  %v3584 = vsel %vm3504, %v3582, %v3583
  %v3585 = vrot.slane %v1575, 7
  %v3586 = vrot.slane %v3585, 4
  %v3587 = vrot.slane %v1583, 7
  %v3588 = vsel %vm3504, %v3586, %v3587
  %v3589 = vrot.slane %v3583, 4
  %v3590 = vrot.slane %v1588, 7
  %v3591 = vsel %vm3504, %v3589, %v3590
  %v3592 = vrot.slane %v3587, 4
  %v3593 = vrot.slane %v1589, 7
  %v3594 = vsel %vm3504, %v3592, %v3593
  %v3595 = vrot.slane %v3590, 4
  %v3596 = vrot.slane %v1596, 7
  %v3597 = vsel %vm3504, %v3595, %v3596
  %v3598 = vrot.slane %v3593, 4
  %v3599 = vrot.slane %v1598, 7
  %v3600 = vsel %vm3504, %v3598, %v3599
  %v3601 = vrot.slane %v3596, 4
  %v3602 = vrot.slane %v1603, 7
  %v3603 = vsel %vm3504, %v3601, %v3602
  %v3604 = vrot.slane %v3599, 4
  %v3605 = vrot.slane %v1604, 7
  %v3606 = vsel %vm3504, %v3604, %v3605
  %v3607 = vrot.slane %v3602, 4
  %v3608 = vrot.slane %v1611, 7
  %v3609 = vsel %vm3504, %v3607, %v3608
  %v3610 = vrot.slane %v3605, 4
  %v3611 = vrot.slane %v1613, 7
  %v3612 = vsel %vm3504, %v3610, %v3611
  %v3613 = vrot.slane %v3608, 4
  %v3614 = vrot.slane %v1618, 7
  %v3615 = vsel %vm3504, %v3613, %v3614
  %v3616 = vrot.slane %v3611, 4
  %v3617 = vrot.slane %v1619, 7
  %v3618 = vsel %vm3504, %v3616, %v3617
  %v3619 = vrot.slane %v1626, 7
  %v3620 = vrot.slane %v3619, 4
  %v3621 = vrot.slane %v1631, 7
  %v3622 = vsel %vm3504, %v3620, %v3621
  %v3623 = vrot.slane %v1628, 7
  %v3624 = vrot.slane %v3623, 4
  %v3625 = vrot.slane %v1632, 7
  %v3626 = vsel %vm3504, %v3624, %v3625
  %v3627 = vrot.slane %v3621, 4
  %v3628 = vrot.slane %v1639, 7
  %v3629 = vsel %vm3504, %v3627, %v3628
  %v3630 = vrot.slane %v3625, 4
  %v3631 = vrot.slane %v1641, 7
  %v3632 = vsel %vm3504, %v3630, %v3631
  %v3633 = vrot.slane %v3628, 4
  %v3634 = vrot.slane %v1646, 7
  %v3635 = vsel %vm3504, %v3633, %v3634
  %v3636 = vrot.slane %v3631, 4
  %v3637 = vrot.slane %v1647, 7
  %v3638 = vsel %vm3504, %v3636, %v3637
  %v3639 = vrot.slane %v3634, 4
  %v3640 = vrot.slane %v1654, 7
  %v3641 = vsel %vm3504, %v3639, %v3640
  %v3642 = vrot.slane %v3637, 4
  %v3643 = vrot.slane %v1656, 7
  %v3644 = vsel %vm3504, %v3642, %v3643
  %v3645 = vrot.slane %v3640, 4
  %v3646 = vrot.slane %v1661, 7
  %v3647 = vsel %vm3504, %v3645, %v3646
  %v3648 = vrot.slane %v3643, 4
  %v3649 = vrot.slane %v1662, 7
  %v3650 = vsel %vm3504, %v3648, %v3649
  %v3651 = vrot.slane %v3646, 4
  %v3652 = vrot.slane %v1669, 7
  %v3653 = vsel %vm3504, %v3651, %v3652
  %v3654 = vrot.slane %v3649, 4
  %v3655 = vrot.slane %v1671, 7
  %v3656 = vsel %vm3504, %v3654, %v3655
  %v3657 = vrot.slane %v1676, 7
  %v3658 = vrot.slane %v3657, 4
  %v3659 = vrot.slane %v1683, 7
  %v3660 = vsel %vm3504, %v3658, %v3659
  %v3661 = vrot.slane %v1677, 7
  %v3662 = vrot.slane %v3661, 4
  %v3663 = vrot.slane %v1685, 7
  %v3664 = vsel %vm3504, %v3662, %v3663
  %v3665 = vrot.slane %v3659, 4
  %v3666 = vrot.slane %v1690, 7
  %v3667 = vsel %vm3504, %v3665, %v3666
  %v3668 = vrot.slane %v3663, 4
  %v3669 = vrot.slane %v1691, 7
  %v3670 = vsel %vm3504, %v3668, %v3669
  %v3671 = vrot.slane %v3666, 4
  %v3672 = vrot.slane %v1698, 7
  %v3673 = vsel %vm3504, %v3671, %v3672
  %v3674 = vrot.slane %v3669, 4
  %v3675 = vrot.slane %v1700, 7
  %v3676 = vsel %vm3504, %v3674, %v3675
  %v3677 = vrot.slane %v3672, 4
  %v3678 = vrot.slane %v1705, 7
  %v3679 = vsel %vm3504, %v3677, %v3678
  %v3680 = vrot.slane %v3675, 4
  %v3681 = vrot.slane %v1706, 7
  %v3682 = vsel %vm3504, %v3680, %v3681
  %v3683 = vrot.slane %v3678, 4
  %v3684 = vrot.slane %v1713, 7
  %v3685 = vsel %vm3504, %v3683, %v3684
  %v3686 = vrot.slane %v3681, 4
  %v3687 = vrot.slane %v1715, 7
  %v3688 = vsel %vm3504, %v3686, %v3687
  %v3689 = vrot.slane %v3684, 4
  %v3690 = vrot.slane %v1720, 7
  %v3691 = vsel %vm3504, %v3689, %v3690
  %v3692 = vrot.slane %v3687, 4
  %v3693 = vrot.slane %v1721, 7
  %v3694 = vsel %vm3504, %v3692, %v3693
  %v3695 = vrot.slane %v1728, 7
  %v3696 = vrot.slane %v3695, 4
  %v3697 = vrot.slane %v1733, 7
  %v3698 = vsel %vm3504, %v3696, %v3697
  %v3699 = vrot.slane %v1730, 7
  %v3700 = vrot.slane %v3699, 4
  %v3701 = vrot.slane %v1734, 7
  %v3702 = vsel %vm3504, %v3700, %v3701
  %v3703 = vrot.slane %v3697, 4
  %v3704 = vrot.slane %v1741, 7
  %v3705 = vsel %vm3504, %v3703, %v3704
  %v3706 = vrot.slane %v3701, 4
  %v3707 = vrot.slane %v1743, 7
  %v3708 = vsel %vm3504, %v3706, %v3707
  %v3709 = vrot.slane %v3704, 4
  %v3710 = vrot.slane %v1748, 7
  %v3711 = vsel %vm3504, %v3709, %v3710
  %v3712 = vrot.slane %v3707, 4
  %v3713 = vrot.slane %v1749, 7
  %v3714 = vsel %vm3504, %v3712, %v3713
  %v3715 = vrot.slane %v3710, 4
  %v3716 = vrot.slane %v1756, 7
  %v3717 = vsel %vm3504, %v3715, %v3716
  %v3718 = vrot.slane %v3713, 4
  %v3719 = vrot.slane %v1758, 7
  %v3720 = vsel %vm3504, %v3718, %v3719
  %v3721 = vrot.slane %v3716, 4
  %v3722 = vrot.slane %v1763, 7
  %v3723 = vsel %vm3504, %v3721, %v3722
  %v3724 = vrot.slane %v3719, 4
  %v3725 = vrot.slane %v1764, 7
  %v3726 = vsel %vm3504, %v3724, %v3725
  %v3727 = vrot.slane %v3722, 4
  %v3728 = vrot.slane %v1771, 7
  %v3729 = vsel %vm3504, %v3727, %v3728
  %v3730 = vrot.slane %v3725, 4
  %v3731 = vrot.slane %v1773, 7
  %v3732 = vsel %vm3504, %v3730, %v3731
  %v3733 = vrot.slane %v1778, 7
  %v3734 = vrot.slane %v3733, 4
  %v3735 = vrot.slane %v1785, 7
  %v3736 = vsel %vm3504, %v3734, %v3735
  %v3737 = vrot.slane %v1779, 7
  %v3738 = vrot.slane %v3737, 4
  %v3739 = vrot.slane %v1787, 7
  %v3740 = vsel %vm3504, %v3738, %v3739
  %v3741 = vrot.slane %v3735, 4
  %v3742 = vrot.slane %v1792, 7
  %v3743 = vsel %vm3504, %v3741, %v3742
  %v3744 = vrot.slane %v3739, 4
  %v3745 = vrot.slane %v1793, 7
  %v3746 = vsel %vm3504, %v3744, %v3745
  %v3747 = vrot.slane %v3742, 4
  %v3748 = vrot.slane %v1800, 7
  %v3749 = vsel %vm3504, %v3747, %v3748
  %v3750 = vrot.slane %v3745, 4
  %v3751 = vrot.slane %v1802, 7
  %v3752 = vsel %vm3504, %v3750, %v3751
  %v3753 = vrot.slane %v3748, 4
  %v3754 = vrot.slane %v1807, 7
  %v3755 = vsel %vm3504, %v3753, %v3754
  %v3756 = vrot.slane %v3751, 4
  %v3757 = vrot.slane %v1808, 7
  %v3758 = vsel %vm3504, %v3756, %v3757
  %v3759 = vrot.slane %v3754, 4
  %v3760 = vrot.slane %v1815, 7
  %v3761 = vsel %vm3504, %v3759, %v3760
  %v3762 = vrot.slane %v3757, 4
  %v3763 = vrot.slane %v1817, 7
  %v3764 = vsel %vm3504, %v3762, %v3763
  %v3765 = vrot.slane %v3760, 4
  %v3766 = vrot.slane %v1822, 7
  %v3767 = vsel %vm3504, %v3765, %v3766
  %v3768 = vrot.slane %v3763, 4
  %v3769 = vrot.slane %v1823, 7
  %v3770 = vsel %vm3504, %v3768, %v3769
  %v3771 = vrot.slane %v1830, 7
  %v3772 = vrot.slane %v3771, 4
  %v3773 = vrot.slane %v1835, 7
  %v3774 = vsel %vm3504, %v3772, %v3773
  %v3775 = vrot.slane %v1832, 7
  %v3776 = vrot.slane %v3775, 4
  %v3777 = vrot.slane %v1836, 7
  %v3778 = vsel %vm3504, %v3776, %v3777
  %v3779 = vrot.slane %v3773, 4
  %v3780 = vrot.slane %v1843, 7
  %v3781 = vsel %vm3504, %v3779, %v3780
  %v3782 = vrot.slane %v3777, 4
  %v3783 = vrot.slane %v1845, 7
  %v3784 = vsel %vm3504, %v3782, %v3783
  %v3785 = vrot.slane %v3780, 4
  %v3786 = vrot.slane %v1850, 7
  %v3787 = vsel %vm3504, %v3785, %v3786
  %v3788 = vrot.slane %v3783, 4
  %v3789 = vrot.slane %v1851, 7
  %v3790 = vsel %vm3504, %v3788, %v3789
  %v3791 = vrot.slane %v3786, 4
  %v3792 = vrot.slane %v1858, 7
  %v3793 = vsel %vm3504, %v3791, %v3792
  %v3794 = vrot.slane %v3789, 4
  %v3795 = vrot.slane %v1860, 7
  %v3796 = vsel %vm3504, %v3794, %v3795
  %v3797 = vrot.slane %v3792, 4
  %v3798 = vrot.slane %v1865, 7
  %v3799 = vsel %vm3504, %v3797, %v3798
  %v3800 = vrot.slane %v3795, 4
  %v3801 = vrot.slane %v1866, 7
  %v3802 = vsel %vm3504, %v3800, %v3801
  %v3803 = vrot.slane %v3798, 4
  %v3804 = vrot.slane %v1873, 7
  %v3805 = vsel %vm3504, %v3803, %v3804
  %v3806 = vrot.slane %v3801, 4
  %v3807 = vrot.slane %v1875, 7
  %v3808 = vsel %vm3504, %v3806, %v3807
  %3809 = vrot.lane.b32.xlu0 %v3508, 48
  %v3810 = vpop.permute.xlu0 %3809
  %3811 = vrot.lane.b32.xlu0 %v3512, 48
  %v3812 = vpop.permute.xlu0 %3811
  %3813 = vrot.lane.b32.xlu0 %v3515, 48
  %v3814 = vpop.permute.xlu0 %3813
  %3815 = vrot.lane.b32.xlu0 %v3518, 48
  %v3816 = vpop.permute.xlu0 %3815
  %3817 = vrot.lane.b32.xlu0 %v3521, 48
  %v3818 = vpop.permute.xlu0 %3817
  %3819 = vrot.lane.b32.xlu0 %v3524, 48
  %v3820 = vpop.permute.xlu0 %3819
  %3821 = vrot.lane.b32.xlu0 %v3527, 48
  %v3822 = vpop.permute.xlu0 %3821
  %3823 = vrot.lane.b32.xlu0 %v3530, 48
  %v3824 = vpop.permute.xlu0 %3823
  %3825 = vrot.lane.b32.xlu0 %v3533, 48
  %v3826 = vpop.permute.xlu0 %3825
  %3827 = vrot.lane.b32.xlu0 %v3536, 48
  %v3828 = vpop.permute.xlu0 %3827
  %3829 = vrot.lane.b32.xlu0 %v3539, 48
  %v3830 = vpop.permute.xlu0 %3829
  %3831 = vrot.lane.b32.xlu0 %v3542, 48
  %v3832 = vpop.permute.xlu0 %3831
  %3833 = vrot.lane.b32.xlu0 %v3546, 48
  %v3834 = vpop.permute.xlu0 %3833
  %3835 = vrot.lane.b32.xlu0 %v3550, 48
  %v3836 = vpop.permute.xlu0 %3835
  %3837 = vrot.lane.b32.xlu0 %v3553, 48
  %v3838 = vpop.permute.xlu0 %3837
  %3839 = vrot.lane.b32.xlu0 %v3556, 48
  %v3840 = vpop.permute.xlu0 %3839
  %3841 = vrot.lane.b32.xlu0 %v3559, 48
  %v3842 = vpop.permute.xlu0 %3841
  %3843 = vrot.lane.b32.xlu0 %v3562, 48
  %v3844 = vpop.permute.xlu0 %3843
  %3845 = vrot.lane.b32.xlu0 %v3565, 48
  %v3846 = vpop.permute.xlu0 %3845
  %3847 = vrot.lane.b32.xlu0 %v3568, 48
  %v3848 = vpop.permute.xlu0 %3847
  %3849 = vrot.lane.b32.xlu0 %v3571, 48
  %v3850 = vpop.permute.xlu0 %3849
  %3851 = vrot.lane.b32.xlu0 %v3574, 48
  %v3852 = vpop.permute.xlu0 %3851
  %3853 = vrot.lane.b32.xlu0 %v3577, 48
  %v3854 = vpop.permute.xlu0 %3853
  %3855 = vrot.lane.b32.xlu0 %v3580, 48
  %v3856 = vpop.permute.xlu0 %3855
  %3857 = vrot.lane.b32.xlu0 %v3584, 48
  %v3858 = vpop.permute.xlu0 %3857
  %3859 = vrot.lane.b32.xlu0 %v3588, 48
  %v3860 = vpop.permute.xlu0 %3859
  %3861 = vrot.lane.b32.xlu0 %v3591, 48
  %v3862 = vpop.permute.xlu0 %3861
  %3863 = vrot.lane.b32.xlu0 %v3594, 48
  %v3864 = vpop.permute.xlu0 %3863
  %3865 = vrot.lane.b32.xlu0 %v3597, 48
  %v3866 = vpop.permute.xlu0 %3865
  %3867 = vrot.lane.b32.xlu0 %v3600, 48
  %v3868 = vpop.permute.xlu0 %3867
  %3869 = vrot.lane.b32.xlu0 %v3603, 48
  %v3870 = vpop.permute.xlu0 %3869
  %3871 = vrot.lane.b32.xlu0 %v3606, 48
  %v3872 = vpop.permute.xlu0 %3871
  %3873 = vrot.lane.b32.xlu0 %v3609, 48
  %v3874 = vpop.permute.xlu0 %3873
  %3875 = vrot.lane.b32.xlu0 %v3612, 48
  %v3876 = vpop.permute.xlu0 %3875
  %3877 = vrot.lane.b32.xlu0 %v3615, 48
  %v3878 = vpop.permute.xlu0 %3877
  %3879 = vrot.lane.b32.xlu0 %v3618, 48
  %v3880 = vpop.permute.xlu0 %3879
  %3881 = vrot.lane.b32.xlu0 %v3622, 48
  %v3882 = vpop.permute.xlu0 %3881
  %3883 = vrot.lane.b32.xlu0 %v3626, 48
  %v3884 = vpop.permute.xlu0 %3883
  %3885 = vrot.lane.b32.xlu0 %v3629, 48
  %v3886 = vpop.permute.xlu0 %3885
  %3887 = vrot.lane.b32.xlu0 %v3632, 48
  %v3888 = vpop.permute.xlu0 %3887
  %3889 = vrot.lane.b32.xlu0 %v3635, 48
  %v3890 = vpop.permute.xlu0 %3889
  %3891 = vrot.lane.b32.xlu0 %v3638, 48
  %v3892 = vpop.permute.xlu0 %3891
  %3893 = vrot.lane.b32.xlu0 %v3641, 48
  %v3894 = vpop.permute.xlu0 %3893
  %3895 = vrot.lane.b32.xlu0 %v3644, 48
  %v3896 = vpop.permute.xlu0 %3895
  %3897 = vrot.lane.b32.xlu0 %v3647, 48
  %v3898 = vpop.permute.xlu0 %3897
  %3899 = vrot.lane.b32.xlu0 %v3650, 48
  %v3900 = vpop.permute.xlu0 %3899
  %3901 = vrot.lane.b32.xlu0 %v3653, 48
  %v3902 = vpop.permute.xlu0 %3901
  %3903 = vrot.lane.b32.xlu0 %v3656, 48
  %v3904 = vpop.permute.xlu0 %3903
  %3905 = vrot.lane.b32.xlu0 %v3660, 48
  %v3906 = vpop.permute.xlu0 %3905
  %3907 = vrot.lane.b32.xlu0 %v3664, 48
  %v3908 = vpop.permute.xlu0 %3907
  %3909 = vrot.lane.b32.xlu0 %v3667, 48
  %v3910 = vpop.permute.xlu0 %3909
  %3911 = vrot.lane.b32.xlu0 %v3670, 48
  %v3912 = vpop.permute.xlu0 %3911
  %3913 = vrot.lane.b32.xlu0 %v3673, 48
  %v3914 = vpop.permute.xlu0 %3913
  %3915 = vrot.lane.b32.xlu0 %v3676, 48
  %v3916 = vpop.permute.xlu0 %3915
  %3917 = vrot.lane.b32.xlu0 %v3679, 48
  %v3918 = vpop.permute.xlu0 %3917
  %3919 = vrot.lane.b32.xlu0 %v3682, 48
  %v3920 = vpop.permute.xlu0 %3919
  %3921 = vrot.lane.b32.xlu0 %v3685, 48
  %v3922 = vpop.permute.xlu0 %3921
  %3923 = vrot.lane.b32.xlu0 %v3688, 48
  %v3924 = vpop.permute.xlu0 %3923
  %3925 = vrot.lane.b32.xlu0 %v3691, 48
  %v3926 = vpop.permute.xlu0 %3925
  %3927 = vrot.lane.b32.xlu0 %v3694, 48
  %v3928 = vpop.permute.xlu0 %3927
  %3929 = vrot.lane.b32.xlu0 %v3698, 48
  %v3930 = vpop.permute.xlu0 %3929
  %3931 = vrot.lane.b32.xlu0 %v3702, 48
  %v3932 = vpop.permute.xlu0 %3931
  %3933 = vrot.lane.b32.xlu0 %v3705, 48
  %v3934 = vpop.permute.xlu0 %3933
  %3935 = vrot.lane.b32.xlu0 %v3708, 48
  %v3936 = vpop.permute.xlu0 %3935
  %3937 = vrot.lane.b32.xlu0 %v3711, 48
  %v3938 = vpop.permute.xlu0 %3937
  %3939 = vrot.lane.b32.xlu0 %v3714, 48
  %v3940 = vpop.permute.xlu0 %3939
  %3941 = vrot.lane.b32.xlu0 %v3717, 48
  %v3942 = vpop.permute.xlu0 %3941
  %3943 = vrot.lane.b32.xlu0 %v3720, 48
  %v3944 = vpop.permute.xlu0 %3943
  %3945 = vrot.lane.b32.xlu0 %v3723, 48
  %v3946 = vpop.permute.xlu0 %3945
  %3947 = vrot.lane.b32.xlu0 %v3726, 48
  %v3948 = vpop.permute.xlu0 %3947
  %3949 = vrot.lane.b32.xlu0 %v3729, 48
  %v3950 = vpop.permute.xlu0 %3949
  %3951 = vrot.lane.b32.xlu0 %v3732, 48
  %v3952 = vpop.permute.xlu0 %3951
  %3953 = vrot.lane.b32.xlu0 %v3736, 48
  %v3954 = vpop.permute.xlu0 %3953
  %3955 = vrot.lane.b32.xlu0 %v3740, 48
  %v3956 = vpop.permute.xlu0 %3955
  %3957 = vrot.lane.b32.xlu0 %v3743, 48
  %v3958 = vpop.permute.xlu0 %3957
  %3959 = vrot.lane.b32.xlu0 %v3746, 48
  %v3960 = vpop.permute.xlu0 %3959
  %3961 = vrot.lane.b32.xlu0 %v3749, 48
  %v3962 = vpop.permute.xlu0 %3961
  %3963 = vrot.lane.b32.xlu0 %v3752, 48
  %v3964 = vpop.permute.xlu0 %3963
  %3965 = vrot.lane.b32.xlu0 %v3755, 48
  %v3966 = vpop.permute.xlu0 %3965
  %3967 = vrot.lane.b32.xlu0 %v3758, 48
  %v3968 = vpop.permute.xlu0 %3967
  %3969 = vrot.lane.b32.xlu0 %v3761, 48
  %v3970 = vpop.permute.xlu0 %3969
  %3971 = vrot.lane.b32.xlu0 %v3764, 48
  %v3972 = vpop.permute.xlu0 %3971
  %3973 = vrot.lane.b32.xlu0 %v3767, 48
  %v3974 = vpop.permute.xlu0 %3973
  %3975 = vrot.lane.b32.xlu0 %v3770, 48
  %v3976 = vpop.permute.xlu0 %3975
  %3977 = vrot.lane.b32.xlu0 %v3774, 48
  %v3978 = vpop.permute.xlu0 %3977
  %3979 = vrot.lane.b32.xlu0 %v3778, 48
  %v3980 = vpop.permute.xlu0 %3979
  %3981 = vrot.lane.b32.xlu0 %v3781, 48
  %v3982 = vpop.permute.xlu0 %3981
  %3983 = vrot.lane.b32.xlu0 %v3784, 48
  %v3984 = vpop.permute.xlu0 %3983
  %3985 = vrot.lane.b32.xlu0 %v3787, 48
  %v3986 = vpop.permute.xlu0 %3985
  %3987 = vrot.lane.b32.xlu0 %v3790, 48
  %v3988 = vpop.permute.xlu0 %3987
  %3989 = vrot.lane.b32.xlu0 %v3793, 48
  %v3990 = vpop.permute.xlu0 %3989
  %3991 = vrot.lane.b32.xlu0 %v3796, 48
  %v3992 = vpop.permute.xlu0 %3991
  %3993 = vrot.lane.b32.xlu0 %v3799, 48
  %v3994 = vpop.permute.xlu0 %3993
  %3995 = vrot.lane.b32.xlu0 %v3802, 48
  %v3996 = vpop.permute.xlu0 %3995
  %3997 = vrot.lane.b32.xlu0 %v3805, 48
  %v3998 = vpop.permute.xlu0 %3997
  %3999 = vrot.lane.b32.xlu0 %v3808, 48
  %v4000 = vpop.permute.xlu0 %3999
  %v4001 = vrot.slane %v3810, 4
  %v4002 = vrot.slane %v3812, 4
  %v4003 = vrot.slane %v3814, 4
  %v4004 = vrot.slane %v3816, 4
  %v4005 = vrot.slane %v3818, 4
  %v4006 = vrot.slane %v3820, 4
  %v4007 = vrot.slane %v3822, 4
  %v4008 = vrot.slane %v3824, 4
  %v4009 = vrot.slane %v3826, 4
  %v4010 = vrot.slane %v3828, 4
  %v4011 = vrot.slane %v3830, 4
  %v4012 = vrot.slane %v3832, 4
  %v4013 = vrot.slane %v3834, 4
  %v4014 = vrot.slane %v3836, 4
  %v4015 = vrot.slane %v3838, 4
  %v4016 = vrot.slane %v3840, 4
  %v4017 = vrot.slane %v3842, 4
  %v4018 = vrot.slane %v3844, 4
  %v4019 = vrot.slane %v3846, 4
  %v4020 = vrot.slane %v3848, 4
  %v4021 = vrot.slane %v3850, 4
  %v4022 = vrot.slane %v3852, 4
  %v4023 = vrot.slane %v3854, 4
  %v4024 = vrot.slane %v3856, 4
  %v4025 = vrot.slane %v3858, 4
  %v4026 = vrot.slane %v3860, 4
  %v4027 = vrot.slane %v3862, 4
  %v4028 = vrot.slane %v3864, 4
  %v4029 = vrot.slane %v3866, 4
  %v4030 = vrot.slane %v3868, 4
  %v4031 = vrot.slane %v3870, 4
  %v4032 = vrot.slane %v3872, 4
  %v4033 = vrot.slane %v3874, 4
  %v4034 = vrot.slane %v3876, 4
  %v4035 = vrot.slane %v3878, 4
  %v4036 = vrot.slane %v3880, 4
  %v4037 = vrot.slane %v3882, 4
  %v4038 = vrot.slane %v3884, 4
  %v4039 = vrot.slane %v3886, 4
  %v4040 = vrot.slane %v3888, 4
  %v4041 = vrot.slane %v3890, 4
  %v4042 = vrot.slane %v3892, 4
  %v4043 = vrot.slane %v3894, 4
  %v4044 = vrot.slane %v3896, 4
  %v4045 = vrot.slane %v3898, 4
  %v4046 = vrot.slane %v3900, 4
  %v4047 = vrot.slane %v3902, 4
  %v4048 = vrot.slane %v3904, 4
  %v4049 = vrot.slane %v3906, 4
  %v4050 = vrot.slane %v3908, 4
  %v4051 = vrot.slane %v3910, 4
  %v4052 = vrot.slane %v3912, 4
  %v4053 = vrot.slane %v3914, 4
  %v4054 = vrot.slane %v3916, 4
  %v4055 = vrot.slane %v3918, 4
  %v4056 = vrot.slane %v3920, 4
  %v4057 = vrot.slane %v3922, 4
  %v4058 = vrot.slane %v3924, 4
  %v4059 = vrot.slane %v3926, 4
  %v4060 = vrot.slane %v3928, 4
  %v4061 = vrot.slane %v3930, 4
  %v4062 = vrot.slane %v3932, 4
  %v4063 = vrot.slane %v3934, 4
  %v4064 = vrot.slane %v3936, 4
  %v4065 = vrot.slane %v3938, 4
  %v4066 = vrot.slane %v3940, 4
  %v4067 = vrot.slane %v3942, 4
  %v4068 = vrot.slane %v3944, 4
  %v4069 = vrot.slane %v3946, 4
  %v4070 = vrot.slane %v3948, 4
  %v4071 = vrot.slane %v3950, 4
  %v4072 = vrot.slane %v3952, 4
  %v4073 = vrot.slane %v3954, 4
  %v4074 = vrot.slane %v3956, 4
  %v4075 = vrot.slane %v3958, 4
  %v4076 = vrot.slane %v3960, 4
  %v4077 = vrot.slane %v3962, 4
  %v4078 = vrot.slane %v3964, 4
  %v4079 = vrot.slane %v3966, 4
  %v4080 = vrot.slane %v3968, 4
  %v4081 = vrot.slane %v3970, 4
  %v4082 = vrot.slane %v3972, 4
  %v4083 = vrot.slane %v3974, 4
  %v4084 = vrot.slane %v3976, 4
  %v4085 = vrot.slane %v3978, 4
  %v4086 = vrot.slane %v3980, 4
  %v4087 = vrot.slane %v3982, 4
  %v4088 = vrot.slane %v3984, 4
  %v4089 = vrot.slane %v3986, 4
  %v4090 = vrot.slane %v3988, 4
  %v4091 = vrot.slane %v3990, 4
  %v4092 = vrot.slane %v3992, 4
  %v4093 = vrot.slane %v3994, 4
  %v4094 = vrot.slane %v3996, 4
  %v4095 = vrot.slane %v3998, 4
  %v4096 = vrot.slane %v4000, 4
  %v4097 = vsel %vm1469, %v4001, %v4002
  %vm4098 = vcmask 392192
  %v4099 = vsel %vm4098, %v4097, %v3812
  %v4100 = vsel %vm1469, %v4003, %v4004
  %v4101 = vsel %vm4098, %v4100, %v3816
  %v4102 = vsel %vm1469, %v4005, %v4006
  %v4103 = vsel %vm4098, %v4102, %v3820
  %v4104 = vsel %vm1469, %v4007, %v4008
  %v4105 = vsel %vm4098, %v4104, %v3824
  %v4106 = vsel %vm1469, %v4009, %v4010
  %v4107 = vsel %vm4098, %v4106, %v3828
  %v4108 = vsel %vm1469, %v4011, %v4012
  %v4109 = vsel %vm4098, %v4108, %v3832
  %v4110 = vsel %vm1469, %v4013, %v4014
  %v4111 = vsel %vm4098, %v4110, %v3836
  %v4112 = vsel %vm1469, %v4015, %v4016
  %v4113 = vsel %vm4098, %v4112, %v3840
  %v4114 = vsel %vm1469, %v4017, %v4018
  %v4115 = vsel %vm4098, %v4114, %v3844
  %v4116 = vsel %vm1469, %v4019, %v4020
  %v4117 = vsel %vm4098, %v4116, %v3848
  %v4118 = vsel %vm1469, %v4021, %v4022
  %v4119 = vsel %vm4098, %v4118, %v3852
  %v4120 = vsel %vm1469, %v4023, %v4024
  %v4121 = vsel %vm4098, %v4120, %v3856
  %v4122 = vsel %vm1469, %v4025, %v4026
  %v4123 = vsel %vm4098, %v4122, %v3860
  %v4124 = vsel %vm1469, %v4027, %v4028
  %v4125 = vsel %vm4098, %v4124, %v3864
  %v4126 = vsel %vm1469, %v4029, %v4030
  %v4127 = vsel %vm4098, %v4126, %v3868
  %v4128 = vsel %vm1469, %v4031, %v4032
  %v4129 = vsel %vm4098, %v4128, %v3872
  %v4130 = vsel %vm1469, %v4033, %v4034
  %v4131 = vsel %vm4098, %v4130, %v3876
  %v4132 = vsel %vm1469, %v4035, %v4036
  %v4133 = vsel %vm4098, %v4132, %v3880
  %v4134 = vsel %vm1469, %v4037, %v4038
  %v4135 = vsel %vm4098, %v4134, %v3884
  %v4136 = vsel %vm1469, %v4039, %v4040
  %v4137 = vsel %vm4098, %v4136, %v3888
  %v4138 = vsel %vm1469, %v4041, %v4042
  %v4139 = vsel %vm4098, %v4138, %v3892
  %v4140 = vsel %vm1469, %v4043, %v4044
  %v4141 = vsel %vm4098, %v4140, %v3896
  %v4142 = vsel %vm1469, %v4045, %v4046
  %v4143 = vsel %vm4098, %v4142, %v3900
  %v4144 = vsel %vm1469, %v4047, %v4048
  %v4145 = vsel %vm4098, %v4144, %v3904
  %v4146 = vsel %vm1469, %v4049, %v4050
  %v4147 = vsel %vm4098, %v4146, %v3908
  %v4148 = vsel %vm1469, %v4051, %v4052
  %v4149 = vsel %vm4098, %v4148, %v3912
  %v4150 = vsel %vm1469, %v4053, %v4054
  %v4151 = vsel %vm4098, %v4150, %v3916
  %v4152 = vsel %vm1469, %v4055, %v4056
  %v4153 = vsel %vm4098, %v4152, %v3920
  %v4154 = vsel %vm1469, %v4057, %v4058
  %v4155 = vsel %vm4098, %v4154, %v3924
  %v4156 = vsel %vm1469, %v4059, %v4060
  %v4157 = vsel %vm4098, %v4156, %v3928
  %v4158 = vsel %vm1469, %v4061, %v4062
  %v4159 = vsel %vm4098, %v4158, %v3932
  %v4160 = vsel %vm1469, %v4063, %v4064
  %v4161 = vsel %vm4098, %v4160, %v3936
  %v4162 = vsel %vm1469, %v4065, %v4066
  %v4163 = vsel %vm4098, %v4162, %v3940
  %v4164 = vsel %vm1469, %v4067, %v4068
  %v4165 = vsel %vm4098, %v4164, %v3944
  %v4166 = vsel %vm1469, %v4069, %v4070
  %v4167 = vsel %vm4098, %v4166, %v3948
  %v4168 = vsel %vm1469, %v4071, %v4072
  %v4169 = vsel %vm4098, %v4168, %v3952
  %v4170 = vsel %vm1469, %v4073, %v4074
  %v4171 = vsel %vm4098, %v4170, %v3956
  %v4172 = vsel %vm1469, %v4075, %v4076
  %v4173 = vsel %vm4098, %v4172, %v3960
  %v4174 = vsel %vm1469, %v4077, %v4078
  %v4175 = vsel %vm4098, %v4174, %v3964
  %v4176 = vsel %vm1469, %v4079, %v4080
  %v4177 = vsel %vm4098, %v4176, %v3968
  %v4178 = vsel %vm1469, %v4081, %v4082
  %v4179 = vsel %vm4098, %v4178, %v3972
  %v4180 = vsel %vm1469, %v4083, %v4084
  %v4181 = vsel %vm4098, %v4180, %v3976
  %v4182 = vsel %vm1469, %v4085, %v4086
  %v4183 = vsel %vm4098, %v4182, %v3980
  %v4184 = vsel %vm1469, %v4087, %v4088
  %v4185 = vsel %vm4098, %v4184, %v3984
  %v4186 = vsel %vm1469, %v4089, %v4090
  %v4187 = vsel %vm4098, %v4186, %v3988
  %v4188 = vsel %vm1469, %v4091, %v4092
  %v4189 = vsel %vm4098, %v4188, %v3992
  %v4190 = vsel %vm1469, %v4093, %v4094
  %v4191 = vsel %vm4098, %v4190, %v3996
  %v4192 = vsel %vm1469, %v4095, %v4096
  %v4193 = vsel %vm4098, %v4192, %v4000
  %v4242 = vadd.f32 %v3454, %v4099
  %v4243 = vadd.f32 %v3455, %v4101
  %v4244 = vadd.f32 %v3456, %v4103
  %v4245 = vadd.f32 %v3457, %v4105
  %v4246 = vadd.f32 %v3458, %v4107
  %v4247 = vadd.f32 %v3459, %v4109
  %v4248 = vadd.f32 %v3460, %v4111
  %v4249 = vadd.f32 %v3461, %v4113
  %v4250 = vadd.f32 %v3462, %v4115
  %v4251 = vadd.f32 %v3463, %v4117
  %v4252 = vadd.f32 %v3464, %v4119
  %v4253 = vadd.f32 %v3465, %v4121
  %v4254 = vadd.f32 %v3466, %v4123
  %v4255 = vadd.f32 %v3467, %v4125
  %v4256 = vadd.f32 %v3468, %v4127
  %v4257 = vadd.f32 %v3469, %v4129
  %v4258 = vadd.f32 %v3470, %v4131
  %v4259 = vadd.f32 %v3471, %v4133
  %v4260 = vadd.f32 %v3472, %v4135
  %v4261 = vadd.f32 %v3473, %v4137
  %v4262 = vadd.f32 %v3474, %v4139
  %v4263 = vadd.f32 %v3475, %v4141
  %v4264 = vadd.f32 %v3476, %v4143
  %v4265 = vadd.f32 %v3477, %v4145
  %v4266 = vadd.f32 %v3478, %v4147
  %v4267 = vadd.f32 %v3479, %v4149
  %v4268 = vadd.f32 %v3480, %v4151
  %v4269 = vadd.f32 %v3481, %v4153
  %v4270 = vadd.f32 %v3482, %v4155
  %v4271 = vadd.f32 %v3483, %v4157
  %v4272 = vadd.f32 %v3484, %v4159
  %v4273 = vadd.f32 %v3485, %v4161
  %v4274 = vadd.f32 %v3486, %v4163
  %v4275 = vadd.f32 %v3487, %v4165
  %v4276 = vadd.f32 %v3488, %v4167
  %v4277 = vadd.f32 %v3489, %v4169
  %v4278 = vadd.f32 %v3490, %v4171
  %v4279 = vadd.f32 %v3491, %v4173
  %v4280 = vadd.f32 %v3492, %v4175
  %v4281 = vadd.f32 %v3493, %v4177
  %v4282 = vadd.f32 %v3494, %v4179
  %v4283 = vadd.f32 %v3495, %v4181
  %v4284 = vadd.f32 %v3496, %v4183
  %v4285 = vadd.f32 %v3497, %v4185
  %v4286 = vadd.f32 %v3498, %v4187
  %v4287 = vadd.f32 %v3499, %v4189
  %v4288 = vadd.f32 %v3500, %v4191
  %v4289 = vadd.f32 %v3501, %v4193
  %4290 = vrot.lane.b32.xlu0 %v1481, 64
  %v4291 = vpop.permute.xlu0 %4290
  %4292 = vrot.lane.b32.xlu0 %v1483, 64
  %v4293 = vpop.permute.xlu0 %4292
  %4294 = vrot.lane.b32.xlu0 %v1487, 64
  %v4295 = vpop.permute.xlu0 %4294
  %4296 = vrot.lane.b32.xlu0 %v1488, 64
  %v4297 = vpop.permute.xlu0 %4296
  %4298 = vrot.lane.b32.xlu0 %v1496, 64
  %v4299 = vpop.permute.xlu0 %4298
  %4300 = vrot.lane.b32.xlu0 %v1498, 64
  %v4301 = vpop.permute.xlu0 %4300
  %4302 = vrot.lane.b32.xlu0 %v1502, 64
  %v4303 = vpop.permute.xlu0 %4302
  %4304 = vrot.lane.b32.xlu0 %v1503, 64
  %v4305 = vpop.permute.xlu0 %4304
  %4306 = vrot.lane.b32.xlu0 %v1511, 64
  %v4307 = vpop.permute.xlu0 %4306
  %4308 = vrot.lane.b32.xlu0 %v1513, 64
  %v4309 = vpop.permute.xlu0 %4308
  %4310 = vrot.lane.b32.xlu0 %v1517, 64
  %v4311 = vpop.permute.xlu0 %4310
  %4312 = vrot.lane.b32.xlu0 %v1518, 64
  %v4313 = vpop.permute.xlu0 %4312
  %4314 = vrot.lane.b32.xlu0 %v1530, 64
  %v4315 = vpop.permute.xlu0 %4314
  %4316 = vrot.lane.b32.xlu0 %v1531, 64
  %v4317 = vpop.permute.xlu0 %4316
  %4318 = vrot.lane.b32.xlu0 %v1539, 64
  %v4319 = vpop.permute.xlu0 %4318
  %4320 = vrot.lane.b32.xlu0 %v1541, 64
  %v4321 = vpop.permute.xlu0 %4320
  %4322 = vrot.lane.b32.xlu0 %v1545, 64
  %v4323 = vpop.permute.xlu0 %4322
  %4324 = vrot.lane.b32.xlu0 %v1546, 64
  %v4325 = vpop.permute.xlu0 %4324
  %4326 = vrot.lane.b32.xlu0 %v1554, 64
  %v4327 = vpop.permute.xlu0 %4326
  %4328 = vrot.lane.b32.xlu0 %v1556, 64
  %v4329 = vpop.permute.xlu0 %4328
  %4330 = vrot.lane.b32.xlu0 %v1560, 64
  %v4331 = vpop.permute.xlu0 %4330
  %4332 = vrot.lane.b32.xlu0 %v1561, 64
  %v4333 = vpop.permute.xlu0 %4332
  %4334 = vrot.lane.b32.xlu0 %v1569, 64
  %v4335 = vpop.permute.xlu0 %4334
  %4336 = vrot.lane.b32.xlu0 %v1571, 64
  %v4337 = vpop.permute.xlu0 %4336
  %4338 = vrot.lane.b32.xlu0 %v1583, 64
  %v4339 = vpop.permute.xlu0 %4338
  %4340 = vrot.lane.b32.xlu0 %v1585, 64
  %v4341 = vpop.permute.xlu0 %4340
  %4342 = vrot.lane.b32.xlu0 %v1589, 64
  %v4343 = vpop.permute.xlu0 %4342
  %4344 = vrot.lane.b32.xlu0 %v1590, 64
  %v4345 = vpop.permute.xlu0 %4344
  %4346 = vrot.lane.b32.xlu0 %v1598, 64
  %v4347 = vpop.permute.xlu0 %4346
  %4348 = vrot.lane.b32.xlu0 %v1600, 64
  %v4349 = vpop.permute.xlu0 %4348
  %4350 = vrot.lane.b32.xlu0 %v1604, 64
  %v4351 = vpop.permute.xlu0 %4350
  %4352 = vrot.lane.b32.xlu0 %v1605, 64
  %v4353 = vpop.permute.xlu0 %4352
  %4354 = vrot.lane.b32.xlu0 %v1613, 64
  %v4355 = vpop.permute.xlu0 %4354
  %4356 = vrot.lane.b32.xlu0 %v1615, 64
  %v4357 = vpop.permute.xlu0 %4356
  %4358 = vrot.lane.b32.xlu0 %v1619, 64
  %v4359 = vpop.permute.xlu0 %4358
  %4360 = vrot.lane.b32.xlu0 %v1620, 64
  %v4361 = vpop.permute.xlu0 %4360
  %4362 = vrot.lane.b32.xlu0 %v1632, 64
  %v4363 = vpop.permute.xlu0 %4362
  %4364 = vrot.lane.b32.xlu0 %v1633, 64
  %v4365 = vpop.permute.xlu0 %4364
  %4366 = vrot.lane.b32.xlu0 %v1641, 64
  %v4367 = vpop.permute.xlu0 %4366
  %4368 = vrot.lane.b32.xlu0 %v1643, 64
  %v4369 = vpop.permute.xlu0 %4368
  %4370 = vrot.lane.b32.xlu0 %v1647, 64
  %v4371 = vpop.permute.xlu0 %4370
  %4372 = vrot.lane.b32.xlu0 %v1648, 64
  %v4373 = vpop.permute.xlu0 %4372
  %4374 = vrot.lane.b32.xlu0 %v1656, 64
  %v4375 = vpop.permute.xlu0 %4374
  %4376 = vrot.lane.b32.xlu0 %v1658, 64
  %v4377 = vpop.permute.xlu0 %4376
  %4378 = vrot.lane.b32.xlu0 %v1662, 64
  %v4379 = vpop.permute.xlu0 %4378
  %4380 = vrot.lane.b32.xlu0 %v1663, 64
  %v4381 = vpop.permute.xlu0 %4380
  %4382 = vrot.lane.b32.xlu0 %v1671, 64
  %v4383 = vpop.permute.xlu0 %4382
  %4384 = vrot.lane.b32.xlu0 %v1673, 64
  %v4385 = vpop.permute.xlu0 %4384
  %4386 = vrot.lane.b32.xlu0 %v1685, 64
  %v4387 = vpop.permute.xlu0 %4386
  %4388 = vrot.lane.b32.xlu0 %v1687, 64
  %v4389 = vpop.permute.xlu0 %4388
  %4390 = vrot.lane.b32.xlu0 %v1691, 64
  %v4391 = vpop.permute.xlu0 %4390
  %4392 = vrot.lane.b32.xlu0 %v1692, 64
  %v4393 = vpop.permute.xlu0 %4392
  %4394 = vrot.lane.b32.xlu0 %v1700, 64
  %v4395 = vpop.permute.xlu0 %4394
  %4396 = vrot.lane.b32.xlu0 %v1702, 64
  %v4397 = vpop.permute.xlu0 %4396
  %4398 = vrot.lane.b32.xlu0 %v1706, 64
  %v4399 = vpop.permute.xlu0 %4398
  %4400 = vrot.lane.b32.xlu0 %v1707, 64
  %v4401 = vpop.permute.xlu0 %4400
  %4402 = vrot.lane.b32.xlu0 %v1715, 64
  %v4403 = vpop.permute.xlu0 %4402
  %4404 = vrot.lane.b32.xlu0 %v1717, 64
  %v4405 = vpop.permute.xlu0 %4404
  %4406 = vrot.lane.b32.xlu0 %v1721, 64
  %v4407 = vpop.permute.xlu0 %4406
  %4408 = vrot.lane.b32.xlu0 %v1722, 64
  %v4409 = vpop.permute.xlu0 %4408
  %4410 = vrot.lane.b32.xlu0 %v1734, 64
  %v4411 = vpop.permute.xlu0 %4410
  %4412 = vrot.lane.b32.xlu0 %v1735, 64
  %v4413 = vpop.permute.xlu0 %4412
  %4414 = vrot.lane.b32.xlu0 %v1743, 64
  %v4415 = vpop.permute.xlu0 %4414
  %4416 = vrot.lane.b32.xlu0 %v1745, 64
  %v4417 = vpop.permute.xlu0 %4416
  %4418 = vrot.lane.b32.xlu0 %v1749, 64
  %v4419 = vpop.permute.xlu0 %4418
  %4420 = vrot.lane.b32.xlu0 %v1750, 64
  %v4421 = vpop.permute.xlu0 %4420
  %4422 = vrot.lane.b32.xlu0 %v1758, 64
  %v4423 = vpop.permute.xlu0 %4422
  %4424 = vrot.lane.b32.xlu0 %v1760, 64
  %v4425 = vpop.permute.xlu0 %4424
  %4426 = vrot.lane.b32.xlu0 %v1764, 64
  %v4427 = vpop.permute.xlu0 %4426
  %4428 = vrot.lane.b32.xlu0 %v1765, 64
  %v4429 = vpop.permute.xlu0 %4428
  %4430 = vrot.lane.b32.xlu0 %v1773, 64
  %v4431 = vpop.permute.xlu0 %4430
  %4432 = vrot.lane.b32.xlu0 %v1775, 64
  %v4433 = vpop.permute.xlu0 %4432
  %4434 = vrot.lane.b32.xlu0 %v1787, 64
  %v4435 = vpop.permute.xlu0 %4434
  %4436 = vrot.lane.b32.xlu0 %v1789, 64
  %v4437 = vpop.permute.xlu0 %4436
  %4438 = vrot.lane.b32.xlu0 %v1793, 64
  %v4439 = vpop.permute.xlu0 %4438
  %4440 = vrot.lane.b32.xlu0 %v1794, 64
  %v4441 = vpop.permute.xlu0 %4440
  %4442 = vrot.lane.b32.xlu0 %v1802, 64
  %v4443 = vpop.permute.xlu0 %4442
  %4444 = vrot.lane.b32.xlu0 %v1804, 64
  %v4445 = vpop.permute.xlu0 %4444
  %4446 = vrot.lane.b32.xlu0 %v1808, 64
  %v4447 = vpop.permute.xlu0 %4446
  %4448 = vrot.lane.b32.xlu0 %v1809, 64
  %v4449 = vpop.permute.xlu0 %4448
  %4450 = vrot.lane.b32.xlu0 %v1817, 64
  %v4451 = vpop.permute.xlu0 %4450
  %4452 = vrot.lane.b32.xlu0 %v1819, 64
  %v4453 = vpop.permute.xlu0 %4452
  %4454 = vrot.lane.b32.xlu0 %v1823, 64
  %v4455 = vpop.permute.xlu0 %4454
  %4456 = vrot.lane.b32.xlu0 %v1824, 64
  %v4457 = vpop.permute.xlu0 %4456
  %4458 = vrot.lane.b32.xlu0 %v1836, 64
  %v4459 = vpop.permute.xlu0 %4458
  %4460 = vrot.lane.b32.xlu0 %v1837, 64
  %v4461 = vpop.permute.xlu0 %4460
  %4462 = vrot.lane.b32.xlu0 %v1845, 64
  %v4463 = vpop.permute.xlu0 %4462
  %4464 = vrot.lane.b32.xlu0 %v1847, 64
  %v4465 = vpop.permute.xlu0 %4464
  %4466 = vrot.lane.b32.xlu0 %v1851, 64
  %v4467 = vpop.permute.xlu0 %4466
  %4468 = vrot.lane.b32.xlu0 %v1852, 64
  %v4469 = vpop.permute.xlu0 %4468
  %4470 = vrot.lane.b32.xlu0 %v1860, 64
  %v4471 = vpop.permute.xlu0 %4470
  %4472 = vrot.lane.b32.xlu0 %v1862, 64
  %v4473 = vpop.permute.xlu0 %4472
  %4474 = vrot.lane.b32.xlu0 %v1866, 64
  %v4475 = vpop.permute.xlu0 %4474
  %4476 = vrot.lane.b32.xlu0 %v1867, 64
  %v4477 = vpop.permute.xlu0 %4476
  %4478 = vrot.lane.b32.xlu0 %v1875, 64
  %v4479 = vpop.permute.xlu0 %4478
  %4480 = vrot.lane.b32.xlu0 %v1877, 64
  %v4481 = vpop.permute.xlu0 %4480
  %v4482 = vrot.slane %v4291, 4
  %v4483 = vrot.slane %v4293, 4
  %v4484 = vrot.slane %v4295, 4
  %v4485 = vrot.slane %v4297, 4
  %v4486 = vrot.slane %v4299, 4
  %v4487 = vrot.slane %v4301, 4
  %v4488 = vrot.slane %v4303, 4
  %v4489 = vrot.slane %v4305, 4
  %v4490 = vrot.slane %v4307, 4
  %v4491 = vrot.slane %v4309, 4
  %v4492 = vrot.slane %v4311, 4
  %v4493 = vrot.slane %v4313, 4
  %v4494 = vrot.slane %v4315, 4
  %v4495 = vrot.slane %v4317, 4
  %v4496 = vrot.slane %v4319, 4
  %v4497 = vrot.slane %v4321, 4
  %v4498 = vrot.slane %v4323, 4
  %v4499 = vrot.slane %v4325, 4
  %v4500 = vrot.slane %v4327, 4
  %v4501 = vrot.slane %v4329, 4
  %v4502 = vrot.slane %v4331, 4
  %v4503 = vrot.slane %v4333, 4
  %v4504 = vrot.slane %v4335, 4
  %v4505 = vrot.slane %v4337, 4
  %v4506 = vrot.slane %v4339, 4
  %v4507 = vrot.slane %v4341, 4
  %v4508 = vrot.slane %v4343, 4
  %v4509 = vrot.slane %v4345, 4
  %v4510 = vrot.slane %v4347, 4
  %v4511 = vrot.slane %v4349, 4
  %v4512 = vrot.slane %v4351, 4
  %v4513 = vrot.slane %v4353, 4
  %v4514 = vrot.slane %v4355, 4
  %v4515 = vrot.slane %v4357, 4
  %v4516 = vrot.slane %v4359, 4
  %v4517 = vrot.slane %v4361, 4
  %v4518 = vrot.slane %v4363, 4
  %v4519 = vrot.slane %v4365, 4
  %v4520 = vrot.slane %v4367, 4
  %v4521 = vrot.slane %v4369, 4
  %v4522 = vrot.slane %v4371, 4
  %v4523 = vrot.slane %v4373, 4
  %v4524 = vrot.slane %v4375, 4
  %v4525 = vrot.slane %v4377, 4
  %v4526 = vrot.slane %v4379, 4
  %v4527 = vrot.slane %v4381, 4
  %v4528 = vrot.slane %v4383, 4
  %v4529 = vrot.slane %v4385, 4
  %v4530 = vrot.slane %v4387, 4
  %v4531 = vrot.slane %v4389, 4
  %v4532 = vrot.slane %v4391, 4
  %v4533 = vrot.slane %v4393, 4
  %v4534 = vrot.slane %v4395, 4
  %v4535 = vrot.slane %v4397, 4
  %v4536 = vrot.slane %v4399, 4
  %v4537 = vrot.slane %v4401, 4
  %v4538 = vrot.slane %v4403, 4
  %v4539 = vrot.slane %v4405, 4
  %v4540 = vrot.slane %v4407, 4
  %v4541 = vrot.slane %v4409, 4
  %v4542 = vrot.slane %v4411, 4
  %v4543 = vrot.slane %v4413, 4
  %v4544 = vrot.slane %v4415, 4
  %v4545 = vrot.slane %v4417, 4
  %v4546 = vrot.slane %v4419, 4
  %v4547 = vrot.slane %v4421, 4
  %v4548 = vrot.slane %v4423, 4
  %v4549 = vrot.slane %v4425, 4
  %v4550 = vrot.slane %v4427, 4
  %v4551 = vrot.slane %v4429, 4
  %v4552 = vrot.slane %v4431, 4
  %v4553 = vrot.slane %v4433, 4
  %v4554 = vrot.slane %v4435, 4
  %v4555 = vrot.slane %v4437, 4
  %v4556 = vrot.slane %v4439, 4
  %v4557 = vrot.slane %v4441, 4
  %v4558 = vrot.slane %v4443, 4
  %v4559 = vrot.slane %v4445, 4
  %v4560 = vrot.slane %v4447, 4
  %v4561 = vrot.slane %v4449, 4
  %v4562 = vrot.slane %v4451, 4
  %v4563 = vrot.slane %v4453, 4
  %v4564 = vrot.slane %v4455, 4
  %v4565 = vrot.slane %v4457, 4
  %v4566 = vrot.slane %v4459, 4
  %v4567 = vrot.slane %v4461, 4
  %v4568 = vrot.slane %v4463, 4
  %v4569 = vrot.slane %v4465, 4
  %v4570 = vrot.slane %v4467, 4
  %v4571 = vrot.slane %v4469, 4
  %v4572 = vrot.slane %v4471, 4
  %v4573 = vrot.slane %v4473, 4
  %v4574 = vrot.slane %v4475, 4
  %v4575 = vrot.slane %v4477, 4
  %v4576 = vrot.slane %v4479, 4
  %v4577 = vrot.slane %v4481, 4
  %v4578 = vsel %vm1469, %v4482, %v4483
  %vm4579 = vcmask 523264
  %v4580 = vsel %vm4579, %v4578, %v4293
  %v4581 = vsel %vm1469, %v4484, %v4485
  %v4582 = vsel %vm4579, %v4581, %v4297
  %v4583 = vsel %vm1469, %v4486, %v4487
  %v4584 = vsel %vm4579, %v4583, %v4301
  %v4585 = vsel %vm1469, %v4488, %v4489
  %v4586 = vsel %vm4579, %v4585, %v4305
  %v4587 = vsel %vm1469, %v4490, %v4491
  %v4588 = vsel %vm4579, %v4587, %v4309
  %v4589 = vsel %vm1469, %v4492, %v4493
  %v4590 = vsel %vm4579, %v4589, %v4313
  %v4591 = vsel %vm1469, %v4494, %v4495
  %v4592 = vsel %vm4579, %v4591, %v4317
  %v4593 = vsel %vm1469, %v4496, %v4497
  %v4594 = vsel %vm4579, %v4593, %v4321
  %v4595 = vsel %vm1469, %v4498, %v4499
  %v4596 = vsel %vm4579, %v4595, %v4325
  %v4597 = vsel %vm1469, %v4500, %v4501
  %v4598 = vsel %vm4579, %v4597, %v4329
  %v4599 = vsel %vm1469, %v4502, %v4503
  %v4600 = vsel %vm4579, %v4599, %v4333
  %v4601 = vsel %vm1469, %v4504, %v4505
  %v4602 = vsel %vm4579, %v4601, %v4337
  %v4603 = vsel %vm1469, %v4506, %v4507
  %v4604 = vsel %vm4579, %v4603, %v4341
  %v4605 = vsel %vm1469, %v4508, %v4509
  %v4606 = vsel %vm4579, %v4605, %v4345
  %v4607 = vsel %vm1469, %v4510, %v4511
  %v4608 = vsel %vm4579, %v4607, %v4349
  %v4609 = vsel %vm1469, %v4512, %v4513
  %v4610 = vsel %vm4579, %v4609, %v4353
  %v4611 = vsel %vm1469, %v4514, %v4515
  %v4612 = vsel %vm4579, %v4611, %v4357
  %v4613 = vsel %vm1469, %v4516, %v4517
  %v4614 = vsel %vm4579, %v4613, %v4361
  %v4615 = vsel %vm1469, %v4518, %v4519
  %v4616 = vsel %vm4579, %v4615, %v4365
  %v4617 = vsel %vm1469, %v4520, %v4521
  %v4618 = vsel %vm4579, %v4617, %v4369
  %v4619 = vsel %vm1469, %v4522, %v4523
  %v4620 = vsel %vm4579, %v4619, %v4373
  %v4621 = vsel %vm1469, %v4524, %v4525
  %v4622 = vsel %vm4579, %v4621, %v4377
  %v4623 = vsel %vm1469, %v4526, %v4527
  %v4624 = vsel %vm4579, %v4623, %v4381
  %v4625 = vsel %vm1469, %v4528, %v4529
  %v4626 = vsel %vm4579, %v4625, %v4385
  %v4627 = vsel %vm1469, %v4530, %v4531
  %v4628 = vsel %vm4579, %v4627, %v4389
  %v4629 = vsel %vm1469, %v4532, %v4533
  %v4630 = vsel %vm4579, %v4629, %v4393
  %v4631 = vsel %vm1469, %v4534, %v4535
  %v4632 = vsel %vm4579, %v4631, %v4397
  %v4633 = vsel %vm1469, %v4536, %v4537
  %v4634 = vsel %vm4579, %v4633, %v4401
  %v4635 = vsel %vm1469, %v4538, %v4539
  %v4636 = vsel %vm4579, %v4635, %v4405
  %v4637 = vsel %vm1469, %v4540, %v4541
  %v4638 = vsel %vm4579, %v4637, %v4409
  %v4639 = vsel %vm1469, %v4542, %v4543
  %v4640 = vsel %vm4579, %v4639, %v4413
  %v4641 = vsel %vm1469, %v4544, %v4545
  %v4642 = vsel %vm4579, %v4641, %v4417
  %v4643 = vsel %vm1469, %v4546, %v4547
  %v4644 = vsel %vm4579, %v4643, %v4421
  %v4645 = vsel %vm1469, %v4548, %v4549
  %v4646 = vsel %vm4579, %v4645, %v4425
  %v4647 = vsel %vm1469, %v4550, %v4551
  %v4648 = vsel %vm4579, %v4647, %v4429
  %v4649 = vsel %vm1469, %v4552, %v4553
  %v4650 = vsel %vm4579, %v4649, %v4433
  %v4651 = vsel %vm1469, %v4554, %v4555
  %v4652 = vsel %vm4579, %v4651, %v4437
  %v4653 = vsel %vm1469, %v4556, %v4557
  %v4654 = vsel %vm4579, %v4653, %v4441
  %v4655 = vsel %vm1469, %v4558, %v4559
  %v4656 = vsel %vm4579, %v4655, %v4445
  %v4657 = vsel %vm1469, %v4560, %v4561
  %v4658 = vsel %vm4579, %v4657, %v4449
  %v4659 = vsel %vm1469, %v4562, %v4563
  %v4660 = vsel %vm4579, %v4659, %v4453
  %v4661 = vsel %vm1469, %v4564, %v4565
  %v4662 = vsel %vm4579, %v4661, %v4457
  %v4663 = vsel %vm1469, %v4566, %v4567
  %v4664 = vsel %vm4579, %v4663, %v4461
  %v4665 = vsel %vm1469, %v4568, %v4569
  %v4666 = vsel %vm4579, %v4665, %v4465
  %v4667 = vsel %vm1469, %v4570, %v4571
  %v4668 = vsel %vm4579, %v4667, %v4469
  %v4669 = vsel %vm1469, %v4572, %v4573
  %v4670 = vsel %vm4579, %v4669, %v4473
  %v4671 = vsel %vm1469, %v4574, %v4575
  %v4672 = vsel %vm4579, %v4671, %v4477
  %v4673 = vsel %vm1469, %v4576, %v4577
  %v4674 = vsel %vm4579, %v4673, %v4481
  %v4723 = vadd.f32 %v4242, %v4580
  %v4724 = vadd.f32 %v4243, %v4582
  %v4725 = vadd.f32 %v4244, %v4584
  %v4726 = vadd.f32 %v4245, %v4586
  %v4727 = vadd.f32 %v4246, %v4588
  %v4728 = vadd.f32 %v4247, %v4590
  %v4729 = vadd.f32 %v4248, %v4592
  %v4730 = vadd.f32 %v4249, %v4594
  %v4731 = vadd.f32 %v4250, %v4596
  %v4732 = vadd.f32 %v4251, %v4598
  %v4733 = vadd.f32 %v4252, %v4600
  %v4734 = vadd.f32 %v4253, %v4602
  %v4735 = vadd.f32 %v4254, %v4604
  %v4736 = vadd.f32 %v4255, %v4606
  %v4737 = vadd.f32 %v4256, %v4608
  %v4738 = vadd.f32 %v4257, %v4610
  %v4739 = vadd.f32 %v4258, %v4612
  %v4740 = vadd.f32 %v4259, %v4614
  %v4741 = vadd.f32 %v4260, %v4616
  %v4742 = vadd.f32 %v4261, %v4618
  %v4743 = vadd.f32 %v4262, %v4620
  %v4744 = vadd.f32 %v4263, %v4622
  %v4745 = vadd.f32 %v4264, %v4624
  %v4746 = vadd.f32 %v4265, %v4626
  %v4747 = vadd.f32 %v4266, %v4628
  %v4748 = vadd.f32 %v4267, %v4630
  %v4749 = vadd.f32 %v4268, %v4632
  %v4750 = vadd.f32 %v4269, %v4634
  %v4751 = vadd.f32 %v4270, %v4636
  %v4752 = vadd.f32 %v4271, %v4638
  %v4753 = vadd.f32 %v4272, %v4640
  %v4754 = vadd.f32 %v4273, %v4642
  %v4755 = vadd.f32 %v4274, %v4644
  %v4756 = vadd.f32 %v4275, %v4646
  %v4757 = vadd.f32 %v4276, %v4648
  %v4758 = vadd.f32 %v4277, %v4650
  %v4759 = vadd.f32 %v4278, %v4652
  %v4760 = vadd.f32 %v4279, %v4654
  %v4761 = vadd.f32 %v4280, %v4656
  %v4762 = vadd.f32 %v4281, %v4658
  %v4763 = vadd.f32 %v4282, %v4660
  %v4764 = vadd.f32 %v4283, %v4662
  %v4765 = vadd.f32 %v4284, %v4664
  %v4766 = vadd.f32 %v4285, %v4666
  %v4767 = vadd.f32 %v4286, %v4668
  %v4768 = vadd.f32 %v4287, %v4670
  %v4769 = vadd.f32 %v4288, %v4672
  %v4770 = vadd.f32 %v4289, %v4674
  %v4771 = vld [vmem:[%s2] sm:$0x3]
  %v4773 = vperm.slane %v4771, 0
  %v4774 = vperm.slane %v4771, 1
  %v4775 = vrot.slane %v4774, 4
  %v4776 = vsel %vm1469, %v4773, %v4775
  %v4777 = vsel %vm1469, %v4775, %v4773
  %v4778 = vrot.slane %v4777, 4
  %v4781 = vadd.f32 %v4723, %v4776
  %v4782 = vadd.f32 %v4724, %v4778
  %v4783 = vadd.f32 %v4725, %v4776
  %v4784 = vadd.f32 %v4726, %v4778
  %v4785 = vadd.f32 %v4727, %v4776
  %v4786 = vadd.f32 %v4728, %v4778
  %v4787 = vadd.f32 %v4729, %v4776
  %v4788 = vadd.f32 %v4730, %v4778
  %v4789 = vadd.f32 %v4731, %v4776
  %v4790 = vadd.f32 %v4732, %v4778
  %v4791 = vadd.f32 %v4733, %v4776
  %v4792 = vadd.f32 %v4734, %v4778
  %v4793 = vadd.f32 %v4735, %v4776
  %v4794 = vadd.f32 %v4736, %v4778
  %v4795 = vadd.f32 %v4737, %v4776
  %v4796 = vadd.f32 %v4738, %v4778
  %v4797 = vadd.f32 %v4739, %v4776
  %v4798 = vadd.f32 %v4740, %v4778
  %v4799 = vadd.f32 %v4741, %v4776
  %v4800 = vadd.f32 %v4742, %v4778
  %v4801 = vadd.f32 %v4743, %v4776
  %v4802 = vadd.f32 %v4744, %v4778
  %v4803 = vadd.f32 %v4745, %v4776
  %v4804 = vadd.f32 %v4746, %v4778
  %v4805 = vadd.f32 %v4747, %v4776
  %v4806 = vadd.f32 %v4748, %v4778
  %v4807 = vadd.f32 %v4749, %v4776
  %v4808 = vadd.f32 %v4750, %v4778
  %v4809 = vadd.f32 %v4751, %v4776
  %v4810 = vadd.f32 %v4752, %v4778
  %v4811 = vadd.f32 %v4753, %v4776
  %v4812 = vadd.f32 %v4754, %v4778
  %v4813 = vadd.f32 %v4755, %v4776
  %v4814 = vadd.f32 %v4756, %v4778
  %v4815 = vadd.f32 %v4757, %v4776
  %v4816 = vadd.f32 %v4758, %v4778
  %v4817 = vadd.f32 %v4759, %v4776
  %v4818 = vadd.f32 %v4760, %v4778
  %v4819 = vadd.f32 %v4761, %v4776
  %v4820 = vadd.f32 %v4762, %v4778
  %v4821 = vadd.f32 %v4763, %v4776
  %v4822 = vadd.f32 %v4764, %v4778
  %v4823 = vadd.f32 %v4765, %v4776
  %v4824 = vadd.f32 %v4766, %v4778
  %v4825 = vadd.f32 %v4767, %v4776
  %v4826 = vadd.f32 %v4768, %v4778
  %v4827 = vadd.f32 %v4769, %v4776
  %v4828 = vadd.f32 %v4770, %v4778
  %v4877 = vrot.slane %v4781, 2
  %v4878 = vrot.slane %v4782, 2
  %v4879 = vrot.slane %v4783, 2
  %v4880 = vrot.slane %v4784, 2
  %v4881 = vrot.slane %v4785, 2
  %v4882 = vrot.slane %v4786, 2
  %v4883 = vrot.slane %v4787, 2
  %v4884 = vrot.slane %v4788, 2
  %v4885 = vrot.slane %v4789, 2
  %v4886 = vrot.slane %v4790, 2
  %v4887 = vrot.slane %v4791, 2
  %v4888 = vrot.slane %v4792, 2
  %v4889 = vrot.slane %v4793, 2
  %v4890 = vrot.slane %v4794, 2
  %v4891 = vrot.slane %v4795, 2
  %v4892 = vrot.slane %v4796, 2
  %v4893 = vrot.slane %v4797, 2
  %v4894 = vrot.slane %v4798, 2
  %v4895 = vrot.slane %v4799, 2
  %v4896 = vrot.slane %v4800, 2
  %v4897 = vrot.slane %v4801, 2
  %v4898 = vrot.slane %v4802, 2
  %v4899 = vrot.slane %v4803, 2
  %v4900 = vrot.slane %v4804, 2
  %v4901 = vrot.slane %v4805, 2
  %v4902 = vrot.slane %v4806, 2
  %v4903 = vrot.slane %v4807, 2
  %v4904 = vrot.slane %v4808, 2
  %v4905 = vrot.slane %v4809, 2
  %v4906 = vrot.slane %v4810, 2
  %v4907 = vrot.slane %v4811, 2
  %v4908 = vrot.slane %v4812, 2
  %v4909 = vrot.slane %v4813, 2
  %v4910 = vrot.slane %v4814, 2
  %v4911 = vrot.slane %v4815, 2
  %v4912 = vrot.slane %v4816, 2
  %v4913 = vrot.slane %v4817, 2
  %v4914 = vrot.slane %v4818, 2
  %v4915 = vrot.slane %v4819, 2
  %v4916 = vrot.slane %v4820, 2
  %v4917 = vrot.slane %v4821, 2
  %v4918 = vrot.slane %v4822, 2
  %v4919 = vrot.slane %v4823, 2
  %v4920 = vrot.slane %v4824, 2
  %v4921 = vrot.slane %v4825, 2
  %v4922 = vrot.slane %v4826, 2
  %v4923 = vrot.slane %v4827, 2
  %v4924 = vrot.slane %v4828, 2
  %v4925 = vsel %vm2714, %v4781, %v4877
  %vm4926 = vcmask 1043458
  %v4927 = vsel %vm4926, %v4781, %v4877
  %v4928 = vrot.slane %v4927, 2
  %v4929 = vsel %vm2714, %v4782, %v4878
  %v4930 = vsel %vm4926, %v4782, %v4878
  %v4931 = vrot.slane %v4930, 2
  %v4932 = vsel %vm2714, %v4783, %v4879
  %v4933 = vsel %vm4926, %v4783, %v4879
  %v4934 = vrot.slane %v4933, 2
  %v4935 = vsel %vm2714, %v4784, %v4880
  %v4936 = vsel %vm4926, %v4784, %v4880
  %v4937 = vrot.slane %v4936, 2
  %v4938 = vsel %vm2714, %v4785, %v4881
  %v4939 = vsel %vm4926, %v4785, %v4881
  %v4940 = vrot.slane %v4939, 2
  %v4941 = vsel %vm2714, %v4786, %v4882
  %v4942 = vsel %vm4926, %v4786, %v4882
  %v4943 = vrot.slane %v4942, 2
  %v4944 = vsel %vm2714, %v4787, %v4883
  %v4945 = vsel %vm4926, %v4787, %v4883
  %v4946 = vrot.slane %v4945, 2
  %v4947 = vsel %vm2714, %v4788, %v4884
  %v4948 = vsel %vm4926, %v4788, %v4884
  %v4949 = vrot.slane %v4948, 2
  %v4950 = vsel %vm2714, %v4789, %v4885
  %v4951 = vsel %vm4926, %v4789, %v4885
  %v4952 = vrot.slane %v4951, 2
  %v4953 = vsel %vm2714, %v4790, %v4886
  %v4954 = vsel %vm4926, %v4790, %v4886
  %v4955 = vrot.slane %v4954, 2
  %v4956 = vsel %vm2714, %v4791, %v4887
  %v4957 = vsel %vm4926, %v4791, %v4887
  %v4958 = vrot.slane %v4957, 2
  %v4959 = vsel %vm2714, %v4792, %v4888
  %v4960 = vsel %vm4926, %v4792, %v4888
  %v4961 = vrot.slane %v4960, 2
  %v4962 = vsel %vm2714, %v4793, %v4889
  %v4963 = vsel %vm4926, %v4793, %v4889
  %v4964 = vrot.slane %v4963, 2
  %v4965 = vsel %vm2714, %v4794, %v4890
  %v4966 = vsel %vm4926, %v4794, %v4890
  %v4967 = vrot.slane %v4966, 2
  %v4968 = vsel %vm2714, %v4795, %v4891
  %v4969 = vsel %vm4926, %v4795, %v4891
  %v4970 = vrot.slane %v4969, 2
  %v4971 = vsel %vm2714, %v4796, %v4892
  %v4972 = vsel %vm4926, %v4796, %v4892
  %v4973 = vrot.slane %v4972, 2
  %v4974 = vsel %vm2714, %v4797, %v4893
  %v4975 = vsel %vm4926, %v4797, %v4893
  %v4976 = vrot.slane %v4975, 2
  %v4977 = vsel %vm2714, %v4798, %v4894
  %v4978 = vsel %vm4926, %v4798, %v4894
  %v4979 = vrot.slane %v4978, 2
  %v4980 = vsel %vm2714, %v4799, %v4895
  %v4981 = vsel %vm4926, %v4799, %v4895
  %v4982 = vrot.slane %v4981, 2
  %v4983 = vsel %vm2714, %v4800, %v4896
  %v4984 = vsel %vm4926, %v4800, %v4896
  %v4985 = vrot.slane %v4984, 2
  %v4986 = vsel %vm2714, %v4801, %v4897
  %v4987 = vsel %vm4926, %v4801, %v4897
  %v4988 = vrot.slane %v4987, 2
  %v4989 = vsel %vm2714, %v4802, %v4898
  %v4990 = vsel %vm4926, %v4802, %v4898
  %v4991 = vrot.slane %v4990, 2
  %v4992 = vsel %vm2714, %v4803, %v4899
  %v4993 = vsel %vm4926, %v4803, %v4899
  %v4994 = vrot.slane %v4993, 2
  %v4995 = vsel %vm2714, %v4804, %v4900
  %v4996 = vsel %vm4926, %v4804, %v4900
  %v4997 = vrot.slane %v4996, 2
  %v4998 = vsel %vm2714, %v4805, %v4901
  %v4999 = vsel %vm4926, %v4805, %v4901
  %v5000 = vrot.slane %v4999, 2
  %v5001 = vsel %vm2714, %v4806, %v4902
  %v5002 = vsel %vm4926, %v4806, %v4902
  %v5003 = vrot.slane %v5002, 2
  %v5004 = vsel %vm2714, %v4807, %v4903
  %v5005 = vsel %vm4926, %v4807, %v4903
  %v5006 = vrot.slane %v5005, 2
  %v5007 = vsel %vm2714, %v4808, %v4904
  %v5008 = vsel %vm4926, %v4808, %v4904
  %v5009 = vrot.slane %v5008, 2
  %v5010 = vsel %vm2714, %v4809, %v4905
  %v5011 = vsel %vm4926, %v4809, %v4905
  %v5012 = vrot.slane %v5011, 2
  %v5013 = vsel %vm2714, %v4810, %v4906
  %v5014 = vsel %vm4926, %v4810, %v4906
  %v5015 = vrot.slane %v5014, 2
  %v5016 = vsel %vm2714, %v4811, %v4907
  %v5017 = vsel %vm4926, %v4811, %v4907
  %v5018 = vrot.slane %v5017, 2
  %v5019 = vsel %vm2714, %v4812, %v4908
  %v5020 = vsel %vm4926, %v4812, %v4908
  %v5021 = vrot.slane %v5020, 2
  %v5022 = vsel %vm2714, %v4813, %v4909
  %v5023 = vsel %vm4926, %v4813, %v4909
  %v5024 = vrot.slane %v5023, 2
  %v5025 = vsel %vm2714, %v4814, %v4910
  %v5026 = vsel %vm4926, %v4814, %v4910
  %v5027 = vrot.slane %v5026, 2
  %v5028 = vsel %vm2714, %v4815, %v4911
  %v5029 = vsel %vm4926, %v4815, %v4911
  %v5030 = vrot.slane %v5029, 2
  %v5031 = vsel %vm2714, %v4816, %v4912
  %v5032 = vsel %vm4926, %v4816, %v4912
  %v5033 = vrot.slane %v5032, 2
  %v5034 = vsel %vm2714, %v4817, %v4913
  %v5035 = vsel %vm4926, %v4817, %v4913
  %v5036 = vrot.slane %v5035, 2
  %v5037 = vsel %vm2714, %v4818, %v4914
  %v5038 = vsel %vm4926, %v4818, %v4914
  %v5039 = vrot.slane %v5038, 2
  %v5040 = vsel %vm2714, %v4819, %v4915
  %v5041 = vsel %vm4926, %v4819, %v4915
  %v5042 = vrot.slane %v5041, 2
  %v5043 = vsel %vm2714, %v4820, %v4916
  %v5044 = vsel %vm4926, %v4820, %v4916
  %v5045 = vrot.slane %v5044, 2
  %v5046 = vsel %vm2714, %v4821, %v4917
  %v5047 = vsel %vm4926, %v4821, %v4917
  %v5048 = vrot.slane %v5047, 2
  %v5049 = vsel %vm2714, %v4822, %v4918
  %v5050 = vsel %vm4926, %v4822, %v4918
  %v5051 = vrot.slane %v5050, 2
  %v5052 = vsel %vm2714, %v4823, %v4919
  %v5053 = vsel %vm4926, %v4823, %v4919
  %v5054 = vrot.slane %v5053, 2
  %v5055 = vsel %vm2714, %v4824, %v4920
  %v5056 = vsel %vm4926, %v4824, %v4920
  %v5057 = vrot.slane %v5056, 2
  %v5058 = vsel %vm2714, %v4825, %v4921
  %v5059 = vsel %vm4926, %v4825, %v4921
  %v5060 = vrot.slane %v5059, 2
  %v5061 = vsel %vm2714, %v4826, %v4922
  %v5062 = vsel %vm4926, %v4826, %v4922
  %v5063 = vrot.slane %v5062, 2
  %v5064 = vsel %vm2714, %v4827, %v4923
  %v5065 = vsel %vm4926, %v4827, %v4923
  %v5066 = vrot.slane %v5065, 2
  %v5067 = vsel %vm2714, %v4828, %v4924
  %v5068 = vsel %vm4926, %v4828, %v4924
  %v5069 = vrot.slane %v5068, 2
  %v5166 = vrot.slane %v4925, 7
  %v5167 = vrot.slane %v5166, 2
  %v5168 = vrot.slane %v4928, 7
  %v5169 = vrot.slane %v5168, 2
  %v5170 = vrot.slane %v4929, 7
  %v5171 = vrot.slane %v5170, 2
  %v5172 = vrot.slane %v4931, 7
  %v5173 = vrot.slane %v5172, 2
  %v5174 = vrot.slane %v4932, 7
  %v5175 = vrot.slane %v5174, 2
  %v5176 = vrot.slane %v4934, 7
  %v5177 = vrot.slane %v5176, 2
  %v5178 = vrot.slane %v4935, 7
  %v5179 = vrot.slane %v5178, 2
  %v5180 = vrot.slane %v4937, 7
  %v5181 = vrot.slane %v5180, 2
  %v5182 = vrot.slane %v4938, 7
  %v5183 = vrot.slane %v5182, 2
  %v5184 = vrot.slane %v4940, 7
  %v5185 = vrot.slane %v5184, 2
  %v5186 = vrot.slane %v4941, 7
  %v5187 = vrot.slane %v5186, 2
  %v5188 = vrot.slane %v4943, 7
  %v5189 = vrot.slane %v5188, 2
  %v5190 = vrot.slane %v4944, 7
  %v5191 = vrot.slane %v5190, 2
  %v5192 = vrot.slane %v4946, 7
  %v5193 = vrot.slane %v5192, 2
  %v5194 = vrot.slane %v4947, 7
  %v5195 = vrot.slane %v5194, 2
  %v5196 = vrot.slane %v4949, 7
  %v5197 = vrot.slane %v5196, 2
  %v5198 = vrot.slane %v4950, 7
  %v5199 = vrot.slane %v5198, 2
  %v5200 = vrot.slane %v4952, 7
  %v5201 = vrot.slane %v5200, 2
  %v5202 = vrot.slane %v4953, 7
  %v5203 = vrot.slane %v5202, 2
  %v5204 = vrot.slane %v4955, 7
  %v5205 = vrot.slane %v5204, 2
  %v5206 = vrot.slane %v4956, 7
  %v5207 = vrot.slane %v5206, 2
  %v5208 = vrot.slane %v4958, 7
  %v5209 = vrot.slane %v5208, 2
  %v5210 = vrot.slane %v4959, 7
  %v5211 = vrot.slane %v5210, 2
  %v5212 = vrot.slane %v4961, 7
  %v5213 = vrot.slane %v5212, 2
  %v5214 = vrot.slane %v4962, 7
  %v5215 = vrot.slane %v5214, 2
  %v5216 = vrot.slane %v4964, 7
  %v5217 = vrot.slane %v5216, 2
  %v5218 = vrot.slane %v4965, 7
  %v5219 = vrot.slane %v5218, 2
  %v5220 = vrot.slane %v4967, 7
  %v5221 = vrot.slane %v5220, 2
  %v5222 = vrot.slane %v4968, 7
  %v5223 = vrot.slane %v5222, 2
  %v5224 = vrot.slane %v4970, 7
  %v5225 = vrot.slane %v5224, 2
  %v5226 = vrot.slane %v4971, 7
  %v5227 = vrot.slane %v5226, 2
  %v5228 = vrot.slane %v4973, 7
  %v5229 = vrot.slane %v5228, 2
  %v5230 = vrot.slane %v4974, 7
  %v5231 = vrot.slane %v5230, 2
  %v5232 = vrot.slane %v4976, 7
  %v5233 = vrot.slane %v5232, 2
  %v5234 = vrot.slane %v4977, 7
  %v5235 = vrot.slane %v5234, 2
  %v5236 = vrot.slane %v4979, 7
  %v5237 = vrot.slane %v5236, 2
  %v5238 = vrot.slane %v4980, 7
  %v5239 = vrot.slane %v5238, 2
  %v5240 = vrot.slane %v4982, 7
  %v5241 = vrot.slane %v5240, 2
  %v5242 = vrot.slane %v4983, 7
  %v5243 = vrot.slane %v5242, 2
  %v5244 = vrot.slane %v4985, 7
  %v5245 = vrot.slane %v5244, 2
  %v5246 = vrot.slane %v4986, 7
  %v5247 = vrot.slane %v5246, 2
  %v5248 = vrot.slane %v4988, 7
  %v5249 = vrot.slane %v5248, 2
  %v5250 = vrot.slane %v4989, 7
  %v5251 = vrot.slane %v5250, 2
  %v5252 = vrot.slane %v4991, 7
  %v5253 = vrot.slane %v5252, 2
  %v5254 = vrot.slane %v4992, 7
  %v5255 = vrot.slane %v5254, 2
  %v5256 = vrot.slane %v4994, 7
  %v5257 = vrot.slane %v5256, 2
  %v5258 = vrot.slane %v4995, 7
  %v5259 = vrot.slane %v5258, 2
  %v5260 = vrot.slane %v4997, 7
  %v5261 = vrot.slane %v5260, 2
  %v5262 = vrot.slane %v4998, 7
  %v5263 = vrot.slane %v5262, 2
  %v5264 = vrot.slane %v5000, 7
  %v5265 = vrot.slane %v5264, 2
  %v5266 = vrot.slane %v5001, 7
  %v5267 = vrot.slane %v5266, 2
  %v5268 = vrot.slane %v5003, 7
  %v5269 = vrot.slane %v5268, 2
  %v5270 = vrot.slane %v5004, 7
  %v5271 = vrot.slane %v5270, 2
  %v5272 = vrot.slane %v5006, 7
  %v5273 = vrot.slane %v5272, 2
  %v5274 = vrot.slane %v5007, 7
  %v5275 = vrot.slane %v5274, 2
  %v5276 = vrot.slane %v5009, 7
  %v5277 = vrot.slane %v5276, 2
  %v5278 = vrot.slane %v5010, 7
  %v5279 = vrot.slane %v5278, 2
  %v5280 = vrot.slane %v5012, 7
  %v5281 = vrot.slane %v5280, 2
  %v5282 = vrot.slane %v5013, 7
  %v5283 = vrot.slane %v5282, 2
  %v5284 = vrot.slane %v5015, 7
  %v5285 = vrot.slane %v5284, 2
  %v5286 = vrot.slane %v5016, 7
  %v5287 = vrot.slane %v5286, 2
  %v5288 = vrot.slane %v5018, 7
  %v5289 = vrot.slane %v5288, 2
  %v5290 = vrot.slane %v5019, 7
  %v5291 = vrot.slane %v5290, 2
  %v5292 = vrot.slane %v5021, 7
  %v5293 = vrot.slane %v5292, 2
  %v5294 = vrot.slane %v5022, 7
  %v5295 = vrot.slane %v5294, 2
  %v5296 = vrot.slane %v5024, 7
  %v5297 = vrot.slane %v5296, 2
  %v5298 = vrot.slane %v5025, 7
  %v5299 = vrot.slane %v5298, 2
  %v5300 = vrot.slane %v5027, 7
  %v5301 = vrot.slane %v5300, 2
  %v5302 = vrot.slane %v5028, 7
  %v5303 = vrot.slane %v5302, 2
  %v5304 = vrot.slane %v5030, 7
  %v5305 = vrot.slane %v5304, 2
  %v5306 = vrot.slane %v5031, 7
  %v5307 = vrot.slane %v5306, 2
  %v5308 = vrot.slane %v5033, 7
  %v5309 = vrot.slane %v5308, 2
  %v5310 = vrot.slane %v5034, 7
  %v5311 = vrot.slane %v5310, 2
  %v5312 = vrot.slane %v5036, 7
  %v5313 = vrot.slane %v5312, 2
  %v5314 = vrot.slane %v5037, 7
  %v5315 = vrot.slane %v5314, 2
  %v5316 = vrot.slane %v5039, 7
  %v5317 = vrot.slane %v5316, 2
  %v5318 = vrot.slane %v5040, 7
  %v5319 = vrot.slane %v5318, 2
  %v5320 = vrot.slane %v5042, 7
  %v5321 = vrot.slane %v5320, 2
  %v5322 = vrot.slane %v5043, 7
  %v5323 = vrot.slane %v5322, 2
  %v5324 = vrot.slane %v5045, 7
  %v5325 = vrot.slane %v5324, 2
  %v5326 = vrot.slane %v5046, 7
  %v5327 = vrot.slane %v5326, 2
  %v5328 = vrot.slane %v5048, 7
  %v5329 = vrot.slane %v5328, 2
  %v5330 = vrot.slane %v5049, 7
  %v5331 = vrot.slane %v5330, 2
  %v5332 = vrot.slane %v5051, 7
  %v5333 = vrot.slane %v5332, 2
  %v5334 = vrot.slane %v5052, 7
  %v5335 = vrot.slane %v5334, 2
  %v5336 = vrot.slane %v5054, 7
  %v5337 = vrot.slane %v5336, 2
  %v5338 = vrot.slane %v5055, 7
  %v5339 = vrot.slane %v5338, 2
  %v5340 = vrot.slane %v5057, 7
  %v5341 = vrot.slane %v5340, 2
  %v5342 = vrot.slane %v5058, 7
  %v5343 = vrot.slane %v5342, 2
  %v5344 = vrot.slane %v5060, 7
  %v5345 = vrot.slane %v5344, 2
  %v5346 = vrot.slane %v5061, 7
  %v5347 = vrot.slane %v5346, 2
  %v5348 = vrot.slane %v5063, 7
  %v5349 = vrot.slane %v5348, 2
  %v5350 = vrot.slane %v5064, 7
  %v5351 = vrot.slane %v5350, 2
  %v5352 = vrot.slane %v5066, 7
  %v5353 = vrot.slane %v5352, 2
  %v5354 = vrot.slane %v5067, 7
  %v5355 = vrot.slane %v5354, 2
  %v5356 = vrot.slane %v5069, 7
  %v5357 = vrot.slane %v5356, 2
  %v5454 = vmax.f32 %v4925, %v5167
  %v5455 = vmax.f32 %v4928, %v5169
  %v5456 = vmax.f32 %v4929, %v5171
  %v5457 = vmax.f32 %v4931, %v5173
  %v5458 = vmax.f32 %v4932, %v5175
  %v5459 = vmax.f32 %v4934, %v5177
  %v5460 = vmax.f32 %v4935, %v5179
  %v5461 = vmax.f32 %v4937, %v5181
  %v5462 = vmax.f32 %v4938, %v5183
  %v5463 = vmax.f32 %v4940, %v5185
  %v5464 = vmax.f32 %v4941, %v5187
  %v5465 = vmax.f32 %v4943, %v5189
  %v5466 = vmax.f32 %v4944, %v5191
  %v5467 = vmax.f32 %v4946, %v5193
  %v5468 = vmax.f32 %v4947, %v5195
  %v5469 = vmax.f32 %v4949, %v5197
  %v5470 = vmax.f32 %v4950, %v5199
  %v5471 = vmax.f32 %v4952, %v5201
  %v5472 = vmax.f32 %v4953, %v5203
  %v5473 = vmax.f32 %v4955, %v5205
  %v5474 = vmax.f32 %v4956, %v5207
  %v5475 = vmax.f32 %v4958, %v5209
  %v5476 = vmax.f32 %v4959, %v5211
  %v5477 = vmax.f32 %v4961, %v5213
  %v5478 = vmax.f32 %v4962, %v5215
  %v5479 = vmax.f32 %v4964, %v5217
  %v5480 = vmax.f32 %v4965, %v5219
  %v5481 = vmax.f32 %v4967, %v5221
  %v5482 = vmax.f32 %v4968, %v5223
  %v5483 = vmax.f32 %v4970, %v5225
  %v5484 = vmax.f32 %v4971, %v5227
  %v5485 = vmax.f32 %v4973, %v5229
  %v5486 = vmax.f32 %v4974, %v5231
  %v5487 = vmax.f32 %v4976, %v5233
  %v5488 = vmax.f32 %v4977, %v5235
  %v5489 = vmax.f32 %v4979, %v5237
  %v5490 = vmax.f32 %v4980, %v5239
  %v5491 = vmax.f32 %v4982, %v5241
  %v5492 = vmax.f32 %v4983, %v5243
  %v5493 = vmax.f32 %v4985, %v5245
  %v5494 = vmax.f32 %v4986, %v5247
  %v5495 = vmax.f32 %v4988, %v5249
  %v5496 = vmax.f32 %v4989, %v5251
  %v5497 = vmax.f32 %v4991, %v5253
  %v5498 = vmax.f32 %v4992, %v5255
  %v5499 = vmax.f32 %v4994, %v5257
  %v5500 = vmax.f32 %v4995, %v5259
  %v5501 = vmax.f32 %v4997, %v5261
  %v5502 = vmax.f32 %v4998, %v5263
  %v5503 = vmax.f32 %v5000, %v5265
  %v5504 = vmax.f32 %v5001, %v5267
  %v5505 = vmax.f32 %v5003, %v5269
  %v5506 = vmax.f32 %v5004, %v5271
  %v5507 = vmax.f32 %v5006, %v5273
  %v5508 = vmax.f32 %v5007, %v5275
  %v5509 = vmax.f32 %v5009, %v5277
  %v5510 = vmax.f32 %v5010, %v5279
  %v5511 = vmax.f32 %v5012, %v5281
  %v5512 = vmax.f32 %v5013, %v5283
  %v5513 = vmax.f32 %v5015, %v5285
  %v5514 = vmax.f32 %v5016, %v5287
  %v5515 = vmax.f32 %v5018, %v5289
  %v5516 = vmax.f32 %v5019, %v5291
  %v5517 = vmax.f32 %v5021, %v5293
  %v5518 = vmax.f32 %v5022, %v5295
  %v5519 = vmax.f32 %v5024, %v5297
  %v5520 = vmax.f32 %v5025, %v5299
  %v5521 = vmax.f32 %v5027, %v5301
  %v5522 = vmax.f32 %v5028, %v5303
  %v5523 = vmax.f32 %v5030, %v5305
  %v5524 = vmax.f32 %v5031, %v5307
  %v5525 = vmax.f32 %v5033, %v5309
  %v5526 = vmax.f32 %v5034, %v5311
  %v5527 = vmax.f32 %v5036, %v5313
  %v5528 = vmax.f32 %v5037, %v5315
  %v5529 = vmax.f32 %v5039, %v5317
  %v5530 = vmax.f32 %v5040, %v5319
  %v5531 = vmax.f32 %v5042, %v5321
  %v5532 = vmax.f32 %v5043, %v5323
  %v5533 = vmax.f32 %v5045, %v5325
  %v5534 = vmax.f32 %v5046, %v5327
  %v5535 = vmax.f32 %v5048, %v5329
  %v5536 = vmax.f32 %v5049, %v5331
  %v5537 = vmax.f32 %v5051, %v5333
  %v5538 = vmax.f32 %v5052, %v5335
  %v5539 = vmax.f32 %v5054, %v5337
  %v5540 = vmax.f32 %v5055, %v5339
  %v5541 = vmax.f32 %v5057, %v5341
  %v5542 = vmax.f32 %v5058, %v5343
  %v5543 = vmax.f32 %v5060, %v5345
  %v5544 = vmax.f32 %v5061, %v5347
  %v5545 = vmax.f32 %v5063, %v5349
  %v5546 = vmax.f32 %v5064, %v5351
  %v5547 = vmax.f32 %v5066, %v5353
  %v5548 = vmax.f32 %v5067, %v5355
  %v5549 = vmax.f32 %v5069, %v5357
  %5646 = vrot.lane.b32.xlu0 %v5454, 127
  %v5647 = vpop.permute.xlu0 %5646
  %5648 = vrot.lane.b32.xlu0 %v5455, 127
  %v5649 = vpop.permute.xlu0 %5648
  %5650 = vrot.lane.b32.xlu0 %v5456, 127
  %v5651 = vpop.permute.xlu0 %5650
  %5652 = vrot.lane.b32.xlu0 %v5457, 127
  %v5653 = vpop.permute.xlu0 %5652
  %5654 = vrot.lane.b32.xlu0 %v5458, 127
  %v5655 = vpop.permute.xlu0 %5654
  %5656 = vrot.lane.b32.xlu0 %v5459, 127
  %v5657 = vpop.permute.xlu0 %5656
  %5658 = vrot.lane.b32.xlu0 %v5460, 127
  %v5659 = vpop.permute.xlu0 %5658
  %5660 = vrot.lane.b32.xlu0 %v5461, 127
  %v5661 = vpop.permute.xlu0 %5660
  %5662 = vrot.lane.b32.xlu0 %v5462, 127
  %v5663 = vpop.permute.xlu0 %5662
  %5664 = vrot.lane.b32.xlu0 %v5463, 127
  %v5665 = vpop.permute.xlu0 %5664
  %5666 = vrot.lane.b32.xlu0 %v5464, 127
  %v5667 = vpop.permute.xlu0 %5666
  %5668 = vrot.lane.b32.xlu0 %v5465, 127
  %v5669 = vpop.permute.xlu0 %5668
  %5670 = vrot.lane.b32.xlu0 %v5466, 127
  %v5671 = vpop.permute.xlu0 %5670
  %5672 = vrot.lane.b32.xlu0 %v5467, 127
  %v5673 = vpop.permute.xlu0 %5672
  %5674 = vrot.lane.b32.xlu0 %v5468, 127
  %v5675 = vpop.permute.xlu0 %5674
  %5676 = vrot.lane.b32.xlu0 %v5469, 127
  %v5677 = vpop.permute.xlu0 %5676
  %5678 = vrot.lane.b32.xlu0 %v5470, 127
  %v5679 = vpop.permute.xlu0 %5678
  %5680 = vrot.lane.b32.xlu0 %v5471, 127
  %v5681 = vpop.permute.xlu0 %5680
  %5682 = vrot.lane.b32.xlu0 %v5472, 127
  %v5683 = vpop.permute.xlu0 %5682
  %5684 = vrot.lane.b32.xlu0 %v5473, 127
  %v5685 = vpop.permute.xlu0 %5684
  %5686 = vrot.lane.b32.xlu0 %v5474, 127
  %v5687 = vpop.permute.xlu0 %5686
  %5688 = vrot.lane.b32.xlu0 %v5475, 127
  %v5689 = vpop.permute.xlu0 %5688
  %5690 = vrot.lane.b32.xlu0 %v5476, 127
  %v5691 = vpop.permute.xlu0 %5690
  %5692 = vrot.lane.b32.xlu0 %v5477, 127
  %v5693 = vpop.permute.xlu0 %5692
  %5694 = vrot.lane.b32.xlu0 %v5478, 127
  %v5695 = vpop.permute.xlu0 %5694
  %5696 = vrot.lane.b32.xlu0 %v5479, 127
  %v5697 = vpop.permute.xlu0 %5696
  %5698 = vrot.lane.b32.xlu0 %v5480, 127
  %v5699 = vpop.permute.xlu0 %5698
  %5700 = vrot.lane.b32.xlu0 %v5481, 127
  %v5701 = vpop.permute.xlu0 %5700
  %5702 = vrot.lane.b32.xlu0 %v5482, 127
  %v5703 = vpop.permute.xlu0 %5702
  %5704 = vrot.lane.b32.xlu0 %v5483, 127
  %v5705 = vpop.permute.xlu0 %5704
  %5706 = vrot.lane.b32.xlu0 %v5484, 127
  %v5707 = vpop.permute.xlu0 %5706
  %5708 = vrot.lane.b32.xlu0 %v5485, 127
  %v5709 = vpop.permute.xlu0 %5708
  %5710 = vrot.lane.b32.xlu0 %v5486, 127
  %v5711 = vpop.permute.xlu0 %5710
  %5712 = vrot.lane.b32.xlu0 %v5487, 127
  %v5713 = vpop.permute.xlu0 %5712
  %5714 = vrot.lane.b32.xlu0 %v5488, 127
  %v5715 = vpop.permute.xlu0 %5714
  %5716 = vrot.lane.b32.xlu0 %v5489, 127
  %v5717 = vpop.permute.xlu0 %5716
  %5718 = vrot.lane.b32.xlu0 %v5490, 127
  %v5719 = vpop.permute.xlu0 %5718
  %5720 = vrot.lane.b32.xlu0 %v5491, 127
  %v5721 = vpop.permute.xlu0 %5720
  %5722 = vrot.lane.b32.xlu0 %v5492, 127
  %v5723 = vpop.permute.xlu0 %5722
  %5724 = vrot.lane.b32.xlu0 %v5493, 127
  %v5725 = vpop.permute.xlu0 %5724
  %5726 = vrot.lane.b32.xlu0 %v5494, 127
  %v5727 = vpop.permute.xlu0 %5726
  %5728 = vrot.lane.b32.xlu0 %v5495, 127
  %v5729 = vpop.permute.xlu0 %5728
  %5730 = vrot.lane.b32.xlu0 %v5496, 127
  %v5731 = vpop.permute.xlu0 %5730
  %5732 = vrot.lane.b32.xlu0 %v5497, 127
  %v5733 = vpop.permute.xlu0 %5732
  %5734 = vrot.lane.b32.xlu0 %v5498, 127
  %v5735 = vpop.permute.xlu0 %5734
  %5736 = vrot.lane.b32.xlu0 %v5499, 127
  %v5737 = vpop.permute.xlu0 %5736
  %5738 = vrot.lane.b32.xlu0 %v5500, 127
  %v5739 = vpop.permute.xlu0 %5738
  %5740 = vrot.lane.b32.xlu0 %v5501, 127
  %v5741 = vpop.permute.xlu0 %5740
  %5742 = vrot.lane.b32.xlu0 %v5502, 127
  %v5743 = vpop.permute.xlu0 %5742
  %5744 = vrot.lane.b32.xlu0 %v5503, 127
  %v5745 = vpop.permute.xlu0 %5744
  %5746 = vrot.lane.b32.xlu0 %v5504, 127
  %v5747 = vpop.permute.xlu0 %5746
  %5748 = vrot.lane.b32.xlu0 %v5505, 127
  %v5749 = vpop.permute.xlu0 %5748
  %5750 = vrot.lane.b32.xlu0 %v5506, 127
  %v5751 = vpop.permute.xlu0 %5750
  %5752 = vrot.lane.b32.xlu0 %v5507, 127
  %v5753 = vpop.permute.xlu0 %5752
  %5754 = vrot.lane.b32.xlu0 %v5508, 127
  %v5755 = vpop.permute.xlu0 %5754
  %5756 = vrot.lane.b32.xlu0 %v5509, 127
  %v5757 = vpop.permute.xlu0 %5756
  %5758 = vrot.lane.b32.xlu0 %v5510, 127
  %v5759 = vpop.permute.xlu0 %5758
  %5760 = vrot.lane.b32.xlu0 %v5511, 127
  %v5761 = vpop.permute.xlu0 %5760
  %5762 = vrot.lane.b32.xlu0 %v5512, 127
  %v5763 = vpop.permute.xlu0 %5762
  %5764 = vrot.lane.b32.xlu0 %v5513, 127
  %v5765 = vpop.permute.xlu0 %5764
  %5766 = vrot.lane.b32.xlu0 %v5514, 127
  %v5767 = vpop.permute.xlu0 %5766
  %5768 = vrot.lane.b32.xlu0 %v5515, 127
  %v5769 = vpop.permute.xlu0 %5768
  %5770 = vrot.lane.b32.xlu0 %v5516, 127
  %v5771 = vpop.permute.xlu0 %5770
  %5772 = vrot.lane.b32.xlu0 %v5517, 127
  %v5773 = vpop.permute.xlu0 %5772
  %5774 = vrot.lane.b32.xlu0 %v5518, 127
  %v5775 = vpop.permute.xlu0 %5774
  %5776 = vrot.lane.b32.xlu0 %v5519, 127
  %v5777 = vpop.permute.xlu0 %5776
  %5778 = vrot.lane.b32.xlu0 %v5520, 127
  %v5779 = vpop.permute.xlu0 %5778
  %5780 = vrot.lane.b32.xlu0 %v5521, 127
  %v5781 = vpop.permute.xlu0 %5780
  %5782 = vrot.lane.b32.xlu0 %v5522, 127
  %v5783 = vpop.permute.xlu0 %5782
  %5784 = vrot.lane.b32.xlu0 %v5523, 127
  %v5785 = vpop.permute.xlu0 %5784
  %5786 = vrot.lane.b32.xlu0 %v5524, 127
  %v5787 = vpop.permute.xlu0 %5786
  %5788 = vrot.lane.b32.xlu0 %v5525, 127
  %v5789 = vpop.permute.xlu0 %5788
  %5790 = vrot.lane.b32.xlu0 %v5526, 127
  %v5791 = vpop.permute.xlu0 %5790
  %5792 = vrot.lane.b32.xlu0 %v5527, 127
  %v5793 = vpop.permute.xlu0 %5792
  %5794 = vrot.lane.b32.xlu0 %v5528, 127
  %v5795 = vpop.permute.xlu0 %5794
  %5796 = vrot.lane.b32.xlu0 %v5529, 127
  %v5797 = vpop.permute.xlu0 %5796
  %5798 = vrot.lane.b32.xlu0 %v5530, 127
  %v5799 = vpop.permute.xlu0 %5798
  %5800 = vrot.lane.b32.xlu0 %v5531, 127
  %v5801 = vpop.permute.xlu0 %5800
  %5802 = vrot.lane.b32.xlu0 %v5532, 127
  %v5803 = vpop.permute.xlu0 %5802
  %5804 = vrot.lane.b32.xlu0 %v5533, 127
  %v5805 = vpop.permute.xlu0 %5804
  %5806 = vrot.lane.b32.xlu0 %v5534, 127
  %v5807 = vpop.permute.xlu0 %5806
  %5808 = vrot.lane.b32.xlu0 %v5535, 127
  %v5809 = vpop.permute.xlu0 %5808
  %5810 = vrot.lane.b32.xlu0 %v5536, 127
  %v5811 = vpop.permute.xlu0 %5810
  %5812 = vrot.lane.b32.xlu0 %v5537, 127
  %v5813 = vpop.permute.xlu0 %5812
  %5814 = vrot.lane.b32.xlu0 %v5538, 127
  %v5815 = vpop.permute.xlu0 %5814
  %5816 = vrot.lane.b32.xlu0 %v5539, 127
  %v5817 = vpop.permute.xlu0 %5816
  %5818 = vrot.lane.b32.xlu0 %v5540, 127
  %v5819 = vpop.permute.xlu0 %5818
  %5820 = vrot.lane.b32.xlu0 %v5541, 127
  %v5821 = vpop.permute.xlu0 %5820
  %5822 = vrot.lane.b32.xlu0 %v5542, 127
  %v5823 = vpop.permute.xlu0 %5822
  %5824 = vrot.lane.b32.xlu0 %v5543, 127
  %v5825 = vpop.permute.xlu0 %5824
  %5826 = vrot.lane.b32.xlu0 %v5544, 127
  %v5827 = vpop.permute.xlu0 %5826
  %5828 = vrot.lane.b32.xlu0 %v5545, 127
  %v5829 = vpop.permute.xlu0 %5828
  %5830 = vrot.lane.b32.xlu0 %v5546, 127
  %v5831 = vpop.permute.xlu0 %5830
  %5832 = vrot.lane.b32.xlu0 %v5547, 127
  %v5833 = vpop.permute.xlu0 %5832
  %5834 = vrot.lane.b32.xlu0 %v5548, 127
  %v5835 = vpop.permute.xlu0 %5834
  %5836 = vrot.lane.b32.xlu0 %v5549, 127
  %v5837 = vpop.permute.xlu0 %5836
  %v5838 = vrot.slane %v5647, 2
  %v5839 = vrot.slane %v5649, 2
  %v5840 = vrot.slane %v5651, 2
  %v5841 = vrot.slane %v5653, 2
  %v5842 = vrot.slane %v5655, 2
  %v5843 = vrot.slane %v5657, 2
  %v5844 = vrot.slane %v5659, 2
  %v5845 = vrot.slane %v5661, 2
  %v5846 = vrot.slane %v5663, 2
  %v5847 = vrot.slane %v5665, 2
  %v5848 = vrot.slane %v5667, 2
  %v5849 = vrot.slane %v5669, 2
  %v5850 = vrot.slane %v5671, 2
  %v5851 = vrot.slane %v5673, 2
  %v5852 = vrot.slane %v5675, 2
  %v5853 = vrot.slane %v5677, 2
  %v5854 = vrot.slane %v5679, 2
  %v5855 = vrot.slane %v5681, 2
  %v5856 = vrot.slane %v5683, 2
  %v5857 = vrot.slane %v5685, 2
  %v5858 = vrot.slane %v5687, 2
  %v5859 = vrot.slane %v5689, 2
  %v5860 = vrot.slane %v5691, 2
  %v5861 = vrot.slane %v5693, 2
  %v5862 = vrot.slane %v5695, 2
  %v5863 = vrot.slane %v5697, 2
  %v5864 = vrot.slane %v5699, 2
  %v5865 = vrot.slane %v5701, 2
  %v5866 = vrot.slane %v5703, 2
  %v5867 = vrot.slane %v5705, 2
  %v5868 = vrot.slane %v5707, 2
  %v5869 = vrot.slane %v5709, 2
  %v5870 = vrot.slane %v5711, 2
  %v5871 = vrot.slane %v5713, 2
  %v5872 = vrot.slane %v5715, 2
  %v5873 = vrot.slane %v5717, 2
  %v5874 = vrot.slane %v5719, 2
  %v5875 = vrot.slane %v5721, 2
  %v5876 = vrot.slane %v5723, 2
  %v5877 = vrot.slane %v5725, 2
  %v5878 = vrot.slane %v5727, 2
  %v5879 = vrot.slane %v5729, 2
  %v5880 = vrot.slane %v5731, 2
  %v5881 = vrot.slane %v5733, 2
  %v5882 = vrot.slane %v5735, 2
  %v5883 = vrot.slane %v5737, 2
  %v5884 = vrot.slane %v5739, 2
  %v5885 = vrot.slane %v5741, 2
  %v5886 = vrot.slane %v5743, 2
  %v5887 = vrot.slane %v5745, 2
  %v5888 = vrot.slane %v5747, 2
  %v5889 = vrot.slane %v5749, 2
  %v5890 = vrot.slane %v5751, 2
  %v5891 = vrot.slane %v5753, 2
  %v5892 = vrot.slane %v5755, 2
  %v5893 = vrot.slane %v5757, 2
  %v5894 = vrot.slane %v5759, 2
  %v5895 = vrot.slane %v5761, 2
  %v5896 = vrot.slane %v5763, 2
  %v5897 = vrot.slane %v5765, 2
  %v5898 = vrot.slane %v5767, 2
  %v5899 = vrot.slane %v5769, 2
  %v5900 = vrot.slane %v5771, 2
  %v5901 = vrot.slane %v5773, 2
  %v5902 = vrot.slane %v5775, 2
  %v5903 = vrot.slane %v5777, 2
  %v5904 = vrot.slane %v5779, 2
  %v5905 = vrot.slane %v5781, 2
  %v5906 = vrot.slane %v5783, 2
  %v5907 = vrot.slane %v5785, 2
  %v5908 = vrot.slane %v5787, 2
  %v5909 = vrot.slane %v5789, 2
  %v5910 = vrot.slane %v5791, 2
  %v5911 = vrot.slane %v5793, 2
  %v5912 = vrot.slane %v5795, 2
  %v5913 = vrot.slane %v5797, 2
  %v5914 = vrot.slane %v5799, 2
  %v5915 = vrot.slane %v5801, 2
  %v5916 = vrot.slane %v5803, 2
  %v5917 = vrot.slane %v5805, 2
  %v5918 = vrot.slane %v5807, 2
  %v5919 = vrot.slane %v5809, 2
  %v5920 = vrot.slane %v5811, 2
  %v5921 = vrot.slane %v5813, 2
  %v5922 = vrot.slane %v5815, 2
  %v5923 = vrot.slane %v5817, 2
  %v5924 = vrot.slane %v5819, 2
  %v5925 = vrot.slane %v5821, 2
  %v5926 = vrot.slane %v5823, 2
  %v5927 = vrot.slane %v5825, 2
  %v5928 = vrot.slane %v5827, 2
  %v5929 = vrot.slane %v5829, 2
  %v5930 = vrot.slane %v5831, 2
  %v5931 = vrot.slane %v5833, 2
  %v5932 = vrot.slane %v5835, 2
  %v5933 = vrot.slane %v5837, 2
  %vm5934 = vcmask 1039360
  %v5935 = vsel %vm5934, %v5647, %v5838
  %v5936 = vsel %vm5934, %v5649, %v5839
  %v5937 = vsel %vm5934, %v5651, %v5840
  %v5938 = vsel %vm5934, %v5653, %v5841
  %v5939 = vsel %vm5934, %v5655, %v5842
  %v5940 = vsel %vm5934, %v5657, %v5843
  %v5941 = vsel %vm5934, %v5659, %v5844
  %v5942 = vsel %vm5934, %v5661, %v5845
  %v5943 = vsel %vm5934, %v5663, %v5846
  %v5944 = vsel %vm5934, %v5665, %v5847
  %v5945 = vsel %vm5934, %v5667, %v5848
  %v5946 = vsel %vm5934, %v5669, %v5849
  %v5947 = vsel %vm5934, %v5671, %v5850
  %v5948 = vsel %vm5934, %v5673, %v5851
  %v5949 = vsel %vm5934, %v5675, %v5852
  %v5950 = vsel %vm5934, %v5677, %v5853
  %v5951 = vsel %vm5934, %v5679, %v5854
  %v5952 = vsel %vm5934, %v5681, %v5855
  %v5953 = vsel %vm5934, %v5683, %v5856
  %v5954 = vsel %vm5934, %v5685, %v5857
  %v5955 = vsel %vm5934, %v5687, %v5858
  %v5956 = vsel %vm5934, %v5689, %v5859
  %v5957 = vsel %vm5934, %v5691, %v5860
  %v5958 = vsel %vm5934, %v5693, %v5861
  %v5959 = vsel %vm5934, %v5695, %v5862
  %v5960 = vsel %vm5934, %v5697, %v5863
  %v5961 = vsel %vm5934, %v5699, %v5864
  %v5962 = vsel %vm5934, %v5701, %v5865
  %v5963 = vsel %vm5934, %v5703, %v5866
  %v5964 = vsel %vm5934, %v5705, %v5867
  %v5965 = vsel %vm5934, %v5707, %v5868
  %v5966 = vsel %vm5934, %v5709, %v5869
  %v5967 = vsel %vm5934, %v5711, %v5870
  %v5968 = vsel %vm5934, %v5713, %v5871
  %v5969 = vsel %vm5934, %v5715, %v5872
  %v5970 = vsel %vm5934, %v5717, %v5873
  %v5971 = vsel %vm5934, %v5719, %v5874
  %v5972 = vsel %vm5934, %v5721, %v5875
  %v5973 = vsel %vm5934, %v5723, %v5876
  %v5974 = vsel %vm5934, %v5725, %v5877
  %v5975 = vsel %vm5934, %v5727, %v5878
  %v5976 = vsel %vm5934, %v5729, %v5879
  %v5977 = vsel %vm5934, %v5731, %v5880
  %v5978 = vsel %vm5934, %v5733, %v5881
  %v5979 = vsel %vm5934, %v5735, %v5882
  %v5980 = vsel %vm5934, %v5737, %v5883
  %v5981 = vsel %vm5934, %v5739, %v5884
  %v5982 = vsel %vm5934, %v5741, %v5885
  %v5983 = vsel %vm5934, %v5743, %v5886
  %v5984 = vsel %vm5934, %v5745, %v5887
  %v5985 = vsel %vm5934, %v5747, %v5888
  %v5986 = vsel %vm5934, %v5749, %v5889
  %v5987 = vsel %vm5934, %v5751, %v5890
  %v5988 = vsel %vm5934, %v5753, %v5891
  %v5989 = vsel %vm5934, %v5755, %v5892
  %v5990 = vsel %vm5934, %v5757, %v5893
  %v5991 = vsel %vm5934, %v5759, %v5894
  %v5992 = vsel %vm5934, %v5761, %v5895
  %v5993 = vsel %vm5934, %v5763, %v5896
  %v5994 = vsel %vm5934, %v5765, %v5897
  %v5995 = vsel %vm5934, %v5767, %v5898
  %v5996 = vsel %vm5934, %v5769, %v5899
  %v5997 = vsel %vm5934, %v5771, %v5900
  %v5998 = vsel %vm5934, %v5773, %v5901
  %v5999 = vsel %vm5934, %v5775, %v5902
  %v6000 = vsel %vm5934, %v5777, %v5903
  %v6001 = vsel %vm5934, %v5779, %v5904
  %v6002 = vsel %vm5934, %v5781, %v5905
  %v6003 = vsel %vm5934, %v5783, %v5906
  %v6004 = vsel %vm5934, %v5785, %v5907
  %v6005 = vsel %vm5934, %v5787, %v5908
  %v6006 = vsel %vm5934, %v5789, %v5909
  %v6007 = vsel %vm5934, %v5791, %v5910
  %v6008 = vsel %vm5934, %v5793, %v5911
  %v6009 = vsel %vm5934, %v5795, %v5912
  %v6010 = vsel %vm5934, %v5797, %v5913
  %v6011 = vsel %vm5934, %v5799, %v5914
  %v6012 = vsel %vm5934, %v5801, %v5915
  %v6013 = vsel %vm5934, %v5803, %v5916
  %v6014 = vsel %vm5934, %v5805, %v5917
  %v6015 = vsel %vm5934, %v5807, %v5918
  %v6016 = vsel %vm5934, %v5809, %v5919
  %v6017 = vsel %vm5934, %v5811, %v5920
  %v6018 = vsel %vm5934, %v5813, %v5921
  %v6019 = vsel %vm5934, %v5815, %v5922
  %v6020 = vsel %vm5934, %v5817, %v5923
  %v6021 = vsel %vm5934, %v5819, %v5924
  %v6022 = vsel %vm5934, %v5821, %v5925
  %v6023 = vsel %vm5934, %v5823, %v5926
  %v6024 = vsel %vm5934, %v5825, %v5927
  %v6025 = vsel %vm5934, %v5827, %v5928
  %v6026 = vsel %vm5934, %v5829, %v5929
  %v6027 = vsel %vm5934, %v5831, %v5930
  %v6028 = vsel %vm5934, %v5833, %v5931
  %v6029 = vsel %vm5934, %v5835, %v5932
  %v6030 = vsel %vm5934, %v5837, %v5933
  %v6127 = vmax.f32 %v5454, %v5935
  %v6128 = vmax.f32 %v5455, %v5936
  %v6129 = vmax.f32 %v5456, %v5937
  %v6130 = vmax.f32 %v5457, %v5938
  %v6131 = vmax.f32 %v5458, %v5939
  %v6132 = vmax.f32 %v5459, %v5940
  %v6133 = vmax.f32 %v5460, %v5941
  %v6134 = vmax.f32 %v5461, %v5942
  %v6135 = vmax.f32 %v5462, %v5943
  %v6136 = vmax.f32 %v5463, %v5944
  %v6137 = vmax.f32 %v5464, %v5945
  %v6138 = vmax.f32 %v5465, %v5946
  %v6139 = vmax.f32 %v5466, %v5947
  %v6140 = vmax.f32 %v5467, %v5948
  %v6141 = vmax.f32 %v5468, %v5949
  %v6142 = vmax.f32 %v5469, %v5950
  %v6143 = vmax.f32 %v5470, %v5951
  %v6144 = vmax.f32 %v5471, %v5952
  %v6145 = vmax.f32 %v5472, %v5953
  %v6146 = vmax.f32 %v5473, %v5954
  %v6147 = vmax.f32 %v5474, %v5955
  %v6148 = vmax.f32 %v5475, %v5956
  %v6149 = vmax.f32 %v5476, %v5957
  %v6150 = vmax.f32 %v5477, %v5958
  %v6151 = vmax.f32 %v5478, %v5959
  %v6152 = vmax.f32 %v5479, %v5960
  %v6153 = vmax.f32 %v5480, %v5961
  %v6154 = vmax.f32 %v5481, %v5962
  %v6155 = vmax.f32 %v5482, %v5963
  %v6156 = vmax.f32 %v5483, %v5964
  %v6157 = vmax.f32 %v5484, %v5965
  %v6158 = vmax.f32 %v5485, %v5966
  %v6159 = vmax.f32 %v5486, %v5967
  %v6160 = vmax.f32 %v5487, %v5968
  %v6161 = vmax.f32 %v5488, %v5969
  %v6162 = vmax.f32 %v5489, %v5970
  %v6163 = vmax.f32 %v5490, %v5971
  %v6164 = vmax.f32 %v5491, %v5972
  %v6165 = vmax.f32 %v5492, %v5973
  %v6166 = vmax.f32 %v5493, %v5974
  %v6167 = vmax.f32 %v5494, %v5975
  %v6168 = vmax.f32 %v5495, %v5976
  %v6169 = vmax.f32 %v5496, %v5977
  %v6170 = vmax.f32 %v5497, %v5978
  %v6171 = vmax.f32 %v5498, %v5979
  %v6172 = vmax.f32 %v5499, %v5980
  %v6173 = vmax.f32 %v5500, %v5981
  %v6174 = vmax.f32 %v5501, %v5982
  %v6175 = vmax.f32 %v5502, %v5983
  %v6176 = vmax.f32 %v5503, %v5984
  %v6177 = vmax.f32 %v5504, %v5985
  %v6178 = vmax.f32 %v5505, %v5986
  %v6179 = vmax.f32 %v5506, %v5987
  %v6180 = vmax.f32 %v5507, %v5988
  %v6181 = vmax.f32 %v5508, %v5989
  %v6182 = vmax.f32 %v5509, %v5990
  %v6183 = vmax.f32 %v5510, %v5991
  %v6184 = vmax.f32 %v5511, %v5992
  %v6185 = vmax.f32 %v5512, %v5993
  %v6186 = vmax.f32 %v5513, %v5994
  %v6187 = vmax.f32 %v5514, %v5995
  %v6188 = vmax.f32 %v5515, %v5996
  %v6189 = vmax.f32 %v5516, %v5997
  %v6190 = vmax.f32 %v5517, %v5998
  %v6191 = vmax.f32 %v5518, %v5999
  %v6192 = vmax.f32 %v5519, %v6000
  %v6193 = vmax.f32 %v5520, %v6001
  %v6194 = vmax.f32 %v5521, %v6002
  %v6195 = vmax.f32 %v5522, %v6003
  %v6196 = vmax.f32 %v5523, %v6004
  %v6197 = vmax.f32 %v5524, %v6005
  %v6198 = vmax.f32 %v5525, %v6006
  %v6199 = vmax.f32 %v5526, %v6007
  %v6200 = vmax.f32 %v5527, %v6008
  %v6201 = vmax.f32 %v5528, %v6009
  %v6202 = vmax.f32 %v5529, %v6010
  %v6203 = vmax.f32 %v5530, %v6011
  %v6204 = vmax.f32 %v5531, %v6012
  %v6205 = vmax.f32 %v5532, %v6013
  %v6206 = vmax.f32 %v5533, %v6014
  %v6207 = vmax.f32 %v5534, %v6015
  %v6208 = vmax.f32 %v5535, %v6016
  %v6209 = vmax.f32 %v5536, %v6017
  %v6210 = vmax.f32 %v5537, %v6018
  %v6211 = vmax.f32 %v5538, %v6019
  %v6212 = vmax.f32 %v5539, %v6020
  %v6213 = vmax.f32 %v5540, %v6021
  %v6214 = vmax.f32 %v5541, %v6022
  %v6215 = vmax.f32 %v5542, %v6023
  %v6216 = vmax.f32 %v5543, %v6024
  %v6217 = vmax.f32 %v5544, %v6025
  %v6218 = vmax.f32 %v5545, %v6026
  %v6219 = vmax.f32 %v5546, %v6027
  %v6220 = vmax.f32 %v5547, %v6028
  %v6221 = vmax.f32 %v5548, %v6029
  %v6222 = vmax.f32 %v5549, %v6030
  %v6223 = vmax.f32 %v6127, 0.0
  %v6224 = vmax.f32 %v6128, 0.0
  %v6225 = vmax.f32 %v6129, 0.0
  %v6226 = vmax.f32 %v6130, 0.0
  %v6227 = vmax.f32 %v6131, 0.0
  %v6228 = vmax.f32 %v6132, 0.0
  %v6229 = vmax.f32 %v6133, 0.0
  %v6230 = vmax.f32 %v6134, 0.0
  %v6231 = vmax.f32 %v6135, 0.0
  %v6232 = vmax.f32 %v6136, 0.0
  %v6233 = vmax.f32 %v6137, 0.0
  %v6234 = vmax.f32 %v6138, 0.0
  %v6235 = vmax.f32 %v6139, 0.0
  %v6236 = vmax.f32 %v6140, 0.0
  %v6237 = vmax.f32 %v6141, 0.0
  %v6238 = vmax.f32 %v6142, 0.0
  %v6239 = vmax.f32 %v6143, 0.0
  %v6240 = vmax.f32 %v6144, 0.0
  %v6241 = vmax.f32 %v6145, 0.0
  %v6242 = vmax.f32 %v6146, 0.0
  %v6243 = vmax.f32 %v6147, 0.0
  %v6244 = vmax.f32 %v6148, 0.0
  %v6245 = vmax.f32 %v6149, 0.0
  %v6246 = vmax.f32 %v6150, 0.0
  %v6247 = vmax.f32 %v6151, 0.0
  %v6248 = vmax.f32 %v6152, 0.0
  %v6249 = vmax.f32 %v6153, 0.0
  %v6250 = vmax.f32 %v6154, 0.0
  %v6251 = vmax.f32 %v6155, 0.0
  %v6252 = vmax.f32 %v6156, 0.0
  %v6253 = vmax.f32 %v6157, 0.0
  %v6254 = vmax.f32 %v6158, 0.0
  %v6255 = vmax.f32 %v6159, 0.0
  %v6256 = vmax.f32 %v6160, 0.0
  %v6257 = vmax.f32 %v6161, 0.0
  %v6258 = vmax.f32 %v6162, 0.0
  %v6259 = vmax.f32 %v6163, 0.0
  %v6260 = vmax.f32 %v6164, 0.0
  %v6261 = vmax.f32 %v6165, 0.0
  %v6262 = vmax.f32 %v6166, 0.0
  %v6263 = vmax.f32 %v6167, 0.0
  %v6264 = vmax.f32 %v6168, 0.0
  %v6265 = vmax.f32 %v6169, 0.0
  %v6266 = vmax.f32 %v6170, 0.0
  %v6267 = vmax.f32 %v6171, 0.0
  %v6268 = vmax.f32 %v6172, 0.0
  %v6269 = vmax.f32 %v6173, 0.0
  %v6270 = vmax.f32 %v6174, 0.0
  %v6271 = vmax.f32 %v6175, 0.0
  %v6272 = vmax.f32 %v6176, 0.0
  %v6273 = vmax.f32 %v6177, 0.0
  %v6274 = vmax.f32 %v6178, 0.0
  %v6275 = vmax.f32 %v6179, 0.0
  %v6276 = vmax.f32 %v6180, 0.0
  %v6277 = vmax.f32 %v6181, 0.0
  %v6278 = vmax.f32 %v6182, 0.0
  %v6279 = vmax.f32 %v6183, 0.0
  %v6280 = vmax.f32 %v6184, 0.0
  %v6281 = vmax.f32 %v6185, 0.0
  %v6282 = vmax.f32 %v6186, 0.0
  %v6283 = vmax.f32 %v6187, 0.0
  %v6284 = vmax.f32 %v6188, 0.0
  %v6285 = vmax.f32 %v6189, 0.0
  %v6286 = vmax.f32 %v6190, 0.0
  %v6287 = vmax.f32 %v6191, 0.0
  %v6288 = vmax.f32 %v6192, 0.0
  %v6289 = vmax.f32 %v6193, 0.0
  %v6290 = vmax.f32 %v6194, 0.0
  %v6291 = vmax.f32 %v6195, 0.0
  %v6292 = vmax.f32 %v6196, 0.0
  %v6293 = vmax.f32 %v6197, 0.0
  %v6294 = vmax.f32 %v6198, 0.0
  %v6295 = vmax.f32 %v6199, 0.0
  %v6296 = vmax.f32 %v6200, 0.0
  %v6297 = vmax.f32 %v6201, 0.0
  %v6298 = vmax.f32 %v6202, 0.0
  %v6299 = vmax.f32 %v6203, 0.0
  %v6300 = vmax.f32 %v6204, 0.0
  %v6301 = vmax.f32 %v6205, 0.0
  %v6302 = vmax.f32 %v6206, 0.0
  %v6303 = vmax.f32 %v6207, 0.0
  %v6304 = vmax.f32 %v6208, 0.0
  %v6305 = vmax.f32 %v6209, 0.0
  %v6306 = vmax.f32 %v6210, 0.0
  %v6307 = vmax.f32 %v6211, 0.0
  %v6308 = vmax.f32 %v6212, 0.0
  %v6309 = vmax.f32 %v6213, 0.0
  %v6310 = vmax.f32 %v6214, 0.0
  %v6311 = vmax.f32 %v6215, 0.0
  %v6312 = vmax.f32 %v6216, 0.0
  %v6313 = vmax.f32 %v6217, 0.0
  %v6314 = vmax.f32 %v6218, 0.0
  %v6315 = vmax.f32 %v6219, 0.0
  %v6316 = vmax.f32 %v6220, 0.0
  %v6317 = vmax.f32 %v6221, 0.0
  %v6318 = vmax.f32 %v6222, 0.0
  %v6415 = vperm.slane %v6223, 0
  %v6416 = vperm.slane %v6223, 2
  %v6417 = vperm.slane %v6224, 0
  %v6418 = vperm.slane %v6224, 2
  %v6419 = vperm.slane %v6225, 0
  %v6420 = vperm.slane %v6225, 2
  %v6421 = vperm.slane %v6226, 0
  %v6422 = vperm.slane %v6226, 2
  %v6423 = vperm.slane %v6227, 0
  %v6424 = vperm.slane %v6227, 2
  %v6425 = vperm.slane %v6228, 0
  %v6426 = vperm.slane %v6228, 2
  %v6427 = vperm.slane %v6229, 0
  %v6428 = vperm.slane %v6229, 2
  %v6429 = vperm.slane %v6230, 0
  %v6430 = vperm.slane %v6230, 2
  %v6431 = vperm.slane %v6231, 0
  %v6432 = vperm.slane %v6231, 2
  %v6433 = vperm.slane %v6232, 0
  %v6434 = vperm.slane %v6232, 2
  %v6435 = vperm.slane %v6233, 0
  %v6436 = vperm.slane %v6233, 2
  %v6437 = vperm.slane %v6234, 0
  %v6438 = vperm.slane %v6234, 2
  %v6439 = vperm.slane %v6235, 0
  %v6440 = vperm.slane %v6235, 2
  %v6441 = vperm.slane %v6236, 0
  %v6442 = vperm.slane %v6236, 2
  %v6443 = vperm.slane %v6237, 0
  %v6444 = vperm.slane %v6237, 2
  %v6445 = vperm.slane %v6238, 0
  %v6446 = vperm.slane %v6238, 2
  %v6447 = vperm.slane %v6239, 0
  %v6448 = vperm.slane %v6239, 2
  %v6449 = vperm.slane %v6240, 0
  %v6450 = vperm.slane %v6240, 2
  %v6451 = vperm.slane %v6241, 0
  %v6452 = vperm.slane %v6241, 2
  %v6453 = vperm.slane %v6242, 0
  %v6454 = vperm.slane %v6242, 2
  %v6455 = vperm.slane %v6243, 0
  %v6456 = vperm.slane %v6243, 2
  %v6457 = vperm.slane %v6244, 0
  %v6458 = vperm.slane %v6244, 2
  %v6459 = vperm.slane %v6245, 0
  %v6460 = vperm.slane %v6245, 2
  %v6461 = vperm.slane %v6246, 0
  %v6462 = vperm.slane %v6246, 2
  %v6463 = vperm.slane %v6247, 0
  %v6464 = vperm.slane %v6247, 2
  %v6465 = vperm.slane %v6248, 0
  %v6466 = vperm.slane %v6248, 2
  %v6467 = vperm.slane %v6249, 0
  %v6468 = vperm.slane %v6249, 2
  %v6469 = vperm.slane %v6250, 0
  %v6470 = vperm.slane %v6250, 2
  %v6471 = vperm.slane %v6251, 0
  %v6472 = vperm.slane %v6251, 2
  %v6473 = vperm.slane %v6252, 0
  %v6474 = vperm.slane %v6252, 2
  %v6475 = vperm.slane %v6253, 0
  %v6476 = vperm.slane %v6253, 2
  %v6477 = vperm.slane %v6254, 0
  %v6478 = vperm.slane %v6254, 2
  %v6479 = vperm.slane %v6255, 0
  %v6480 = vperm.slane %v6255, 2
  %v6481 = vperm.slane %v6256, 0
  %v6482 = vperm.slane %v6256, 2
  %v6483 = vperm.slane %v6257, 0
  %v6484 = vperm.slane %v6257, 2
  %v6485 = vperm.slane %v6258, 0
  %v6486 = vperm.slane %v6258, 2
  %v6487 = vperm.slane %v6259, 0
  %v6488 = vperm.slane %v6259, 2
  %v6489 = vperm.slane %v6260, 0
  %v6490 = vperm.slane %v6260, 2
  %v6491 = vperm.slane %v6261, 0
  %v6492 = vperm.slane %v6261, 2
  %v6493 = vperm.slane %v6262, 0
  %v6494 = vperm.slane %v6262, 2
  %v6495 = vperm.slane %v6263, 0
  %v6496 = vperm.slane %v6263, 2
  %v6497 = vperm.slane %v6264, 0
  %v6498 = vperm.slane %v6264, 2
  %v6499 = vperm.slane %v6265, 0
  %v6500 = vperm.slane %v6265, 2
  %v6501 = vperm.slane %v6266, 0
  %v6502 = vperm.slane %v6266, 2
  %v6503 = vperm.slane %v6267, 0
  %v6504 = vperm.slane %v6267, 2
  %v6505 = vperm.slane %v6268, 0
  %v6506 = vperm.slane %v6268, 2
  %v6507 = vperm.slane %v6269, 0
  %v6508 = vperm.slane %v6269, 2
  %v6509 = vperm.slane %v6270, 0
  %v6510 = vperm.slane %v6270, 2
  %v6511 = vperm.slane %v6271, 0
  %v6512 = vperm.slane %v6271, 2
  %v6513 = vperm.slane %v6272, 0
  %v6514 = vperm.slane %v6272, 2
  %v6515 = vperm.slane %v6273, 0
  %v6516 = vperm.slane %v6273, 2
  %v6517 = vperm.slane %v6274, 0
  %v6518 = vperm.slane %v6274, 2
  %v6519 = vperm.slane %v6275, 0
  %v6520 = vperm.slane %v6275, 2
  %v6521 = vperm.slane %v6276, 0
  %v6522 = vperm.slane %v6276, 2
  %v6523 = vperm.slane %v6277, 0
  %v6524 = vperm.slane %v6277, 2
  %v6525 = vperm.slane %v6278, 0
  %v6526 = vperm.slane %v6278, 2
  %v6527 = vperm.slane %v6279, 0
  %v6528 = vperm.slane %v6279, 2
  %v6529 = vperm.slane %v6280, 0
  %v6530 = vperm.slane %v6280, 2
  %v6531 = vperm.slane %v6281, 0
  %v6532 = vperm.slane %v6281, 2
  %v6533 = vperm.slane %v6282, 0
  %v6534 = vperm.slane %v6282, 2
  %v6535 = vperm.slane %v6283, 0
  %v6536 = vperm.slane %v6283, 2
  %v6537 = vperm.slane %v6284, 0
  %v6538 = vperm.slane %v6284, 2
  %v6539 = vperm.slane %v6285, 0
  %v6540 = vperm.slane %v6285, 2
  %v6541 = vperm.slane %v6286, 0
  %v6542 = vperm.slane %v6286, 2
  %v6543 = vperm.slane %v6287, 0
  %v6544 = vperm.slane %v6287, 2
  %v6545 = vperm.slane %v6288, 0
  %v6546 = vperm.slane %v6288, 2
  %v6547 = vperm.slane %v6289, 0
  %v6548 = vperm.slane %v6289, 2
  %v6549 = vperm.slane %v6290, 0
  %v6550 = vperm.slane %v6290, 2
  %v6551 = vperm.slane %v6291, 0
  %v6552 = vperm.slane %v6291, 2
  %v6553 = vperm.slane %v6292, 0
  %v6554 = vperm.slane %v6292, 2
  %v6555 = vperm.slane %v6293, 0
  %v6556 = vperm.slane %v6293, 2
  %v6557 = vperm.slane %v6294, 0
  %v6558 = vperm.slane %v6294, 2
  %v6559 = vperm.slane %v6295, 0
  %v6560 = vperm.slane %v6295, 2
  %v6561 = vperm.slane %v6296, 0
  %v6562 = vperm.slane %v6296, 2
  %v6563 = vperm.slane %v6297, 0
  %v6564 = vperm.slane %v6297, 2
  %v6565 = vperm.slane %v6298, 0
  %v6566 = vperm.slane %v6298, 2
  %v6567 = vperm.slane %v6299, 0
  %v6568 = vperm.slane %v6299, 2
  %v6569 = vperm.slane %v6300, 0
  %v6570 = vperm.slane %v6300, 2
  %v6571 = vperm.slane %v6301, 0
  %v6572 = vperm.slane %v6301, 2
  %v6573 = vperm.slane %v6302, 0
  %v6574 = vperm.slane %v6302, 2
  %v6575 = vperm.slane %v6303, 0
  %v6576 = vperm.slane %v6303, 2
  %v6577 = vperm.slane %v6304, 0
  %v6578 = vperm.slane %v6304, 2
  %v6579 = vperm.slane %v6305, 0
  %v6580 = vperm.slane %v6305, 2
  %v6581 = vperm.slane %v6306, 0
  %v6582 = vperm.slane %v6306, 2
  %v6583 = vperm.slane %v6307, 0
  %v6584 = vperm.slane %v6307, 2
  %v6585 = vperm.slane %v6308, 0
  %v6586 = vperm.slane %v6308, 2
  %v6587 = vperm.slane %v6309, 0
  %v6588 = vperm.slane %v6309, 2
  %v6589 = vperm.slane %v6310, 0
  %v6590 = vperm.slane %v6310, 2
  %v6591 = vperm.slane %v6311, 0
  %v6592 = vperm.slane %v6311, 2
  %v6593 = vperm.slane %v6312, 0
  %v6594 = vperm.slane %v6312, 2
  %v6595 = vperm.slane %v6313, 0
  %v6596 = vperm.slane %v6313, 2
  %v6597 = vperm.slane %v6314, 0
  %v6598 = vperm.slane %v6314, 2
  %v6599 = vperm.slane %v6315, 0
  %v6600 = vperm.slane %v6315, 2
  %v6601 = vperm.slane %v6316, 0
  %v6602 = vperm.slane %v6316, 2
  %v6603 = vperm.slane %v6317, 0
  %v6604 = vperm.slane %v6317, 2
  %v6605 = vperm.slane %v6318, 0
  %v6606 = vperm.slane %v6318, 2
  %v6799 = vpack.c.bf16 %v6415, %v6415
  %v6800 = vpack.c.bf16 %v6416, %v6416
  %v6801 = vpack.c.bf16 %v6417, %v6417
  %v6802 = vpack.c.bf16 %v6418, %v6418
  %v6803 = vpack.c.bf16 %v6419, %v6419
  %v6804 = vpack.c.bf16 %v6420, %v6420
  %v6805 = vpack.c.bf16 %v6421, %v6421
  %v6806 = vpack.c.bf16 %v6422, %v6422
  %v6807 = vpack.c.bf16 %v6423, %v6423
  %v6808 = vpack.c.bf16 %v6424, %v6424
  %v6809 = vpack.c.bf16 %v6425, %v6425
  %v6810 = vpack.c.bf16 %v6426, %v6426
  %v6811 = vpack.c.bf16 %v6427, %v6427
  %v6812 = vpack.c.bf16 %v6428, %v6428
  %v6813 = vpack.c.bf16 %v6429, %v6429
  %v6814 = vpack.c.bf16 %v6430, %v6430
  %v6815 = vpack.c.bf16 %v6431, %v6431
  %v6816 = vpack.c.bf16 %v6432, %v6432
  %v6817 = vpack.c.bf16 %v6433, %v6433
  %v6818 = vpack.c.bf16 %v6434, %v6434
  %v6819 = vpack.c.bf16 %v6435, %v6435
  %v6820 = vpack.c.bf16 %v6436, %v6436
  %v6821 = vpack.c.bf16 %v6437, %v6437
  %v6822 = vpack.c.bf16 %v6438, %v6438
  %v6823 = vpack.c.bf16 %v6439, %v6439
  %v6824 = vpack.c.bf16 %v6440, %v6440
  %v6825 = vpack.c.bf16 %v6441, %v6441
  %v6826 = vpack.c.bf16 %v6442, %v6442
  %v6827 = vpack.c.bf16 %v6443, %v6443
  %v6828 = vpack.c.bf16 %v6444, %v6444
  %v6829 = vpack.c.bf16 %v6445, %v6445
  %v6830 = vpack.c.bf16 %v6446, %v6446
  %v6831 = vpack.c.bf16 %v6447, %v6447
  %v6832 = vpack.c.bf16 %v6448, %v6448
  %v6833 = vpack.c.bf16 %v6449, %v6449
  %v6834 = vpack.c.bf16 %v6450, %v6450
  %v6835 = vpack.c.bf16 %v6451, %v6451
  %v6836 = vpack.c.bf16 %v6452, %v6452
  %v6837 = vpack.c.bf16 %v6453, %v6453
  %v6838 = vpack.c.bf16 %v6454, %v6454
  %v6839 = vpack.c.bf16 %v6455, %v6455
  %v6840 = vpack.c.bf16 %v6456, %v6456
  %v6841 = vpack.c.bf16 %v6457, %v6457
  %v6842 = vpack.c.bf16 %v6458, %v6458
  %v6843 = vpack.c.bf16 %v6459, %v6459
  %v6844 = vpack.c.bf16 %v6460, %v6460
  %v6845 = vpack.c.bf16 %v6461, %v6461
  %v6846 = vpack.c.bf16 %v6462, %v6462
  %v6847 = vpack.c.bf16 %v6463, %v6463
  %v6848 = vpack.c.bf16 %v6464, %v6464
  %v6849 = vpack.c.bf16 %v6465, %v6465
  %v6850 = vpack.c.bf16 %v6466, %v6466
  %v6851 = vpack.c.bf16 %v6467, %v6467
  %v6852 = vpack.c.bf16 %v6468, %v6468
  %v6853 = vpack.c.bf16 %v6469, %v6469
  %v6854 = vpack.c.bf16 %v6470, %v6470
  %v6855 = vpack.c.bf16 %v6471, %v6471
  %v6856 = vpack.c.bf16 %v6472, %v6472
  %v6857 = vpack.c.bf16 %v6473, %v6473
  %v6858 = vpack.c.bf16 %v6474, %v6474
  %v6859 = vpack.c.bf16 %v6475, %v6475
  %v6860 = vpack.c.bf16 %v6476, %v6476
  %v6861 = vpack.c.bf16 %v6477, %v6477
  %v6862 = vpack.c.bf16 %v6478, %v6478
  %v6863 = vpack.c.bf16 %v6479, %v6479
  %v6864 = vpack.c.bf16 %v6480, %v6480
  %v6865 = vpack.c.bf16 %v6481, %v6481
  %v6866 = vpack.c.bf16 %v6482, %v6482
  %v6867 = vpack.c.bf16 %v6483, %v6483
  %v6868 = vpack.c.bf16 %v6484, %v6484
  %v6869 = vpack.c.bf16 %v6485, %v6485
  %v6870 = vpack.c.bf16 %v6486, %v6486
  %v6871 = vpack.c.bf16 %v6487, %v6487
  %v6872 = vpack.c.bf16 %v6488, %v6488
  %v6873 = vpack.c.bf16 %v6489, %v6489
  %v6874 = vpack.c.bf16 %v6490, %v6490
  %v6875 = vpack.c.bf16 %v6491, %v6491
  %v6876 = vpack.c.bf16 %v6492, %v6492
  %v6877 = vpack.c.bf16 %v6493, %v6493
  %v6878 = vpack.c.bf16 %v6494, %v6494
  %v6879 = vpack.c.bf16 %v6495, %v6495
  %v6880 = vpack.c.bf16 %v6496, %v6496
  %v6881 = vpack.c.bf16 %v6497, %v6497
  %v6882 = vpack.c.bf16 %v6498, %v6498
  %v6883 = vpack.c.bf16 %v6499, %v6499
  %v6884 = vpack.c.bf16 %v6500, %v6500
  %v6885 = vpack.c.bf16 %v6501, %v6501
  %v6886 = vpack.c.bf16 %v6502, %v6502
  %v6887 = vpack.c.bf16 %v6503, %v6503
  %v6888 = vpack.c.bf16 %v6504, %v6504
  %v6889 = vpack.c.bf16 %v6505, %v6505
  %v6890 = vpack.c.bf16 %v6506, %v6506
  %v6891 = vpack.c.bf16 %v6507, %v6507
  %v6892 = vpack.c.bf16 %v6508, %v6508
  %v6893 = vpack.c.bf16 %v6509, %v6509
  %v6894 = vpack.c.bf16 %v6510, %v6510
  %v6895 = vpack.c.bf16 %v6511, %v6511
  %v6896 = vpack.c.bf16 %v6512, %v6512
  %v6897 = vpack.c.bf16 %v6513, %v6513
  %v6898 = vpack.c.bf16 %v6514, %v6514
  %v6899 = vpack.c.bf16 %v6515, %v6515
  %v6900 = vpack.c.bf16 %v6516, %v6516
  %v6901 = vpack.c.bf16 %v6517, %v6517
  %v6902 = vpack.c.bf16 %v6518, %v6518
  %v6903 = vpack.c.bf16 %v6519, %v6519
  %v6904 = vpack.c.bf16 %v6520, %v6520
  %v6905 = vpack.c.bf16 %v6521, %v6521
  %v6906 = vpack.c.bf16 %v6522, %v6522
  %v6907 = vpack.c.bf16 %v6523, %v6523
  %v6908 = vpack.c.bf16 %v6524, %v6524
  %v6909 = vpack.c.bf16 %v6525, %v6525
  %v6910 = vpack.c.bf16 %v6526, %v6526
  %v6911 = vpack.c.bf16 %v6527, %v6527
  %v6912 = vpack.c.bf16 %v6528, %v6528
  %v6913 = vpack.c.bf16 %v6529, %v6529
  %v6914 = vpack.c.bf16 %v6530, %v6530
  %v6915 = vpack.c.bf16 %v6531, %v6531
  %v6916 = vpack.c.bf16 %v6532, %v6532
  %v6917 = vpack.c.bf16 %v6533, %v6533
  %v6918 = vpack.c.bf16 %v6534, %v6534
  %v6919 = vpack.c.bf16 %v6535, %v6535
  %v6920 = vpack.c.bf16 %v6536, %v6536
  %v6921 = vpack.c.bf16 %v6537, %v6537
  %v6922 = vpack.c.bf16 %v6538, %v6538
  %v6923 = vpack.c.bf16 %v6539, %v6539
  %v6924 = vpack.c.bf16 %v6540, %v6540
  %v6925 = vpack.c.bf16 %v6541, %v6541
  %v6926 = vpack.c.bf16 %v6542, %v6542
  %v6927 = vpack.c.bf16 %v6543, %v6543
  %v6928 = vpack.c.bf16 %v6544, %v6544
  %v6929 = vpack.c.bf16 %v6545, %v6545
  %v6930 = vpack.c.bf16 %v6546, %v6546
  %v6931 = vpack.c.bf16 %v6547, %v6547
  %v6932 = vpack.c.bf16 %v6548, %v6548
  %v6933 = vpack.c.bf16 %v6549, %v6549
  %v6934 = vpack.c.bf16 %v6550, %v6550
  %v6935 = vpack.c.bf16 %v6551, %v6551
  %v6936 = vpack.c.bf16 %v6552, %v6552
  %v6937 = vpack.c.bf16 %v6553, %v6553
  %v6938 = vpack.c.bf16 %v6554, %v6554
  %v6939 = vpack.c.bf16 %v6555, %v6555
  %v6940 = vpack.c.bf16 %v6556, %v6556
  %v6941 = vpack.c.bf16 %v6557, %v6557
  %v6942 = vpack.c.bf16 %v6558, %v6558
  %v6943 = vpack.c.bf16 %v6559, %v6559
  %v6944 = vpack.c.bf16 %v6560, %v6560
  %v6945 = vpack.c.bf16 %v6561, %v6561
  %v6946 = vpack.c.bf16 %v6562, %v6562
  %v6947 = vpack.c.bf16 %v6563, %v6563
  %v6948 = vpack.c.bf16 %v6564, %v6564
  %v6949 = vpack.c.bf16 %v6565, %v6565
  %v6950 = vpack.c.bf16 %v6566, %v6566
  %v6951 = vpack.c.bf16 %v6567, %v6567
  %v6952 = vpack.c.bf16 %v6568, %v6568
  %v6953 = vpack.c.bf16 %v6569, %v6569
  %v6954 = vpack.c.bf16 %v6570, %v6570
  %v6955 = vpack.c.bf16 %v6571, %v6571
  %v6956 = vpack.c.bf16 %v6572, %v6572
  %v6957 = vpack.c.bf16 %v6573, %v6573
  %v6958 = vpack.c.bf16 %v6574, %v6574
  %v6959 = vpack.c.bf16 %v6575, %v6575
  %v6960 = vpack.c.bf16 %v6576, %v6576
  %v6961 = vpack.c.bf16 %v6577, %v6577
  %v6962 = vpack.c.bf16 %v6578, %v6578
  %v6963 = vpack.c.bf16 %v6579, %v6579
  %v6964 = vpack.c.bf16 %v6580, %v6580
  %v6965 = vpack.c.bf16 %v6581, %v6581
  %v6966 = vpack.c.bf16 %v6582, %v6582
  %v6967 = vpack.c.bf16 %v6583, %v6583
  %v6968 = vpack.c.bf16 %v6584, %v6584
  %v6969 = vpack.c.bf16 %v6585, %v6585
  %v6970 = vpack.c.bf16 %v6586, %v6586
  %v6971 = vpack.c.bf16 %v6587, %v6587
  %v6972 = vpack.c.bf16 %v6588, %v6588
  %v6973 = vpack.c.bf16 %v6589, %v6589
  %v6974 = vpack.c.bf16 %v6590, %v6590
  %v6975 = vpack.c.bf16 %v6591, %v6591
  %v6976 = vpack.c.bf16 %v6592, %v6592
  %v6977 = vpack.c.bf16 %v6593, %v6593
  %v6978 = vpack.c.bf16 %v6594, %v6594
  %v6979 = vpack.c.bf16 %v6595, %v6595
  %v6980 = vpack.c.bf16 %v6596, %v6596
  %v6981 = vpack.c.bf16 %v6597, %v6597
  %v6982 = vpack.c.bf16 %v6598, %v6598
  %v6983 = vpack.c.bf16 %v6599, %v6599
  %v6984 = vpack.c.bf16 %v6600, %v6600
  %v6985 = vpack.c.bf16 %v6601, %v6601
  %v6986 = vpack.c.bf16 %v6602, %v6602
  %v6987 = vpack.c.bf16 %v6603, %v6603
  %v6988 = vpack.c.bf16 %v6604, %v6604
  %v6989 = vpack.c.bf16 %v6605, %v6605
  %v6990 = vpack.c.bf16 %v6606, %v6606
  %v6991 = vld [vmem:[%s3] sm:$0xff]
  %v6992 = vld [vmem:[%s3 + $0x8] sm:$0xff]
  %v6993 = vld [vmem:[%s3 + $0x10] sm:$0xff]
  %v6994 = vld [vmem:[%s3 + $0x18] sm:$0xf]
  %v6995 = vld [vmem:[%s3 + $0x1c] sm:$0xff]
  %v6996 = vld [vmem:[%s3 + $0x24] sm:$0xff]
  %v6997 = vld [vmem:[%s3 + $0x2c] sm:$0xff]
  %v6998 = vld [vmem:[%s3 + $0x34] sm:$0xf]
  %v6999 = vld [vmem:[%s3 + $0x38] sm:$0xff]
  %v7000 = vld [vmem:[%s3 + $0x40] sm:$0xff]
  %v7001 = vld [vmem:[%s3 + $0x48] sm:$0xff]
  %v7002 = vld [vmem:[%s3 + $0x50] sm:$0xf]
  %v7003 = vld [vmem:[%s3 + $0x54] sm:$0xff]
  %v7004 = vld [vmem:[%s3 + $0x5c] sm:$0xff]
  %v7005 = vld [vmem:[%s3 + $0x64] sm:$0xff]
  %v7006 = vld [vmem:[%s3 + $0x6c] sm:$0xf]
  %v7007 = vld [vmem:[%s3 + $0x70] sm:$0xff]
  %v7008 = vld [vmem:[%s3 + $0x78] sm:$0xff]
  %v7009 = vld [vmem:[%s3 + $0x80] sm:$0xff]
  %v7010 = vld [vmem:[%s3 + $0x88] sm:$0xf]
  %v7011 = vld [vmem:[%s3 + $0x8c] sm:$0xff]
  %v7012 = vld [vmem:[%s3 + $0x94] sm:$0xff]
  %v7013 = vld [vmem:[%s3 + $0x9c] sm:$0xff]
  %v7014 = vld [vmem:[%s3 + $0xa4] sm:$0xf]
  %v7015 = vld [vmem:[%s3 + $0xa8] sm:$0xff]
  %v7016 = vld [vmem:[%s3 + $0xb0] sm:$0xff]
  %v7017 = vld [vmem:[%s3 + $0xb8] sm:$0xff]
  %v7018 = vld [vmem:[%s3 + $0xc0] sm:$0xf]
  %v7019 = vld [vmem:[%s3 + $0xc4] sm:$0xff]
  %v7020 = vld [vmem:[%s3 + $0xcc] sm:$0xff]
  %v7021 = vld [vmem:[%s3 + $0xd4] sm:$0xff]
  %v7022 = vld [vmem:[%s3 + $0xdc] sm:$0xf]
  %v7023 = vld [vmem:[%s3 + $0xe0] sm:$0xff]
  %v7024 = vld [vmem:[%s3 + $0xe8] sm:$0xff]
  %v7025 = vld [vmem:[%s3 + $0xf0] sm:$0xff]
  %v7026 = vld [vmem:[%s3 + $0xf8] sm:$0xf]
  %v7027 = vld [vmem:[%s3 + $0xfc] sm:$0xff]
  %v7028 = vld [vmem:[%s3 + $0x104] sm:$0xff]
  %v7029 = vld [vmem:[%s3 + $0x10c] sm:$0xff]
  %v7030 = vld [vmem:[%s3 + $0x114] sm:$0xf]
  %v7031 = vld [vmem:[%s3 + $0x118] sm:$0xff]
  %v7032 = vld [vmem:[%s3 + $0x120] sm:$0xff]
  %v7033 = vld [vmem:[%s3 + $0x128] sm:$0xff]
  %v7034 = vld [vmem:[%s3 + $0x130] sm:$0xf]
  %v7035 = vld [vmem:[%s3 + $0x134] sm:$0xff]
  %v7036 = vld [vmem:[%s3 + $0x13c] sm:$0xff]
  %v7037 = vld [vmem:[%s3 + $0x144] sm:$0xff]
  %v7038 = vld [vmem:[%s3 + $0x14c] sm:$0xf]
  %v7039 = vld [vmem:[%s3 + $0x150] sm:$0xff]
  %v7040 = vld [vmem:[%s3 + $0x158] sm:$0xff]
  %v7041 = vld [vmem:[%s3 + $0x160] sm:$0xff]
  %v7042 = vld [vmem:[%s3 + $0x168] sm:$0xf]
  %v7043 = vld [vmem:[%s3 + $0x16c] sm:$0xff]
  %v7044 = vld [vmem:[%s3 + $0x174] sm:$0xff]
  %v7045 = vld [vmem:[%s3 + $0x17c] sm:$0xff]
  %v7046 = vld [vmem:[%s3 + $0x184] sm:$0xf]
  %v7047 = vld [vmem:[%s3 + $0x188] sm:$0xff]
  %v7048 = vld [vmem:[%s3 + $0x190] sm:$0xff]
  %v7049 = vld [vmem:[%s3 + $0x198] sm:$0xff]
  %v7050 = vld [vmem:[%s3 + $0x1a0] sm:$0xf]
  %v7051 = vld [vmem:[%s3 + $0x1a4] sm:$0xff]
  %v7052 = vld [vmem:[%s3 + $0x1ac] sm:$0xff]
  %v7053 = vld [vmem:[%s3 + $0x1b4] sm:$0xff]
  %v7054 = vld [vmem:[%s3 + $0x1bc] sm:$0xf]
  %v7055 = vld [vmem:[%s3 + $0x1c0] sm:$0xff]
  %v7056 = vld [vmem:[%s3 + $0x1c8] sm:$0xff]
  %v7057 = vld [vmem:[%s3 + $0x1d0] sm:$0xff]
  %v7058 = vld [vmem:[%s3 + $0x1d8] sm:$0xf]
  %v7059 = vld [vmem:[%s3 + $0x1dc] sm:$0xff]
  %v7060 = vld [vmem:[%s3 + $0x1e4] sm:$0xff]
  %v7061 = vld [vmem:[%s3 + $0x1ec] sm:$0xff]
  %v7062 = vld [vmem:[%s3 + $0x1f4] sm:$0xf]
  %v7063 = vld [vmem:[%s3 + $0x1f8] sm:$0xff]
  %v7064 = vld [vmem:[%s3 + $0x200] sm:$0xff]
  %v7065 = vld [vmem:[%s3 + $0x208] sm:$0xff]
  %v7066 = vld [vmem:[%s3 + $0x210] sm:$0xf]
  %v7067 = vld [vmem:[%s3 + $0x214] sm:$0xff]
  %v7068 = vld [vmem:[%s3 + $0x21c] sm:$0xff]
  %v7069 = vld [vmem:[%s3 + $0x224] sm:$0xff]
  %v7070 = vld [vmem:[%s3 + $0x22c] sm:$0xf]
  %v7071 = vld [vmem:[%s3 + $0x230] sm:$0xff]
  %v7072 = vld [vmem:[%s3 + $0x238] sm:$0xff]
  %v7073 = vld [vmem:[%s3 + $0x240] sm:$0xff]
  %v7074 = vld [vmem:[%s3 + $0x248] sm:$0xf]
  %v7075 = vld [vmem:[%s3 + $0x24c] sm:$0xff]
  %v7076 = vld [vmem:[%s3 + $0x254] sm:$0xff]
  %v7077 = vld [vmem:[%s3 + $0x25c] sm:$0xff]
  %v7078 = vld [vmem:[%s3 + $0x264] sm:$0xf]
  %v7079 = vld [vmem:[%s3 + $0x268] sm:$0xff]
  %v7080 = vld [vmem:[%s3 + $0x270] sm:$0xff]
  %v7081 = vld [vmem:[%s3 + $0x278] sm:$0xff]
  %v7082 = vld [vmem:[%s3 + $0x280] sm:$0xf]
  %v7083 = vld [vmem:[%s3 + $0x284] sm:$0xff]
  %v7084 = vld [vmem:[%s3 + $0x28c] sm:$0xff]
  %v7085 = vld [vmem:[%s3 + $0x294] sm:$0xff]
  %v7086 = vld [vmem:[%s3 + $0x29c] sm:$0xf]
  %v7087 = vld [vmem:[%s3 + $0x2a0] sm:$0xff]
  %v7088 = vld [vmem:[%s3 + $0x2a8] sm:$0xff]
  %v7089 = vld [vmem:[%s3 + $0x2b0] sm:$0xff]
  %v7090 = vld [vmem:[%s3 + $0x2b8] sm:$0xf]
  %v7091 = vld [vmem:[%s3 + $0x2bc] sm:$0xff]
  %v7092 = vld [vmem:[%s3 + $0x2c4] sm:$0xff]
  %v7093 = vld [vmem:[%s3 + $0x2cc] sm:$0xff]
  %v7094 = vld [vmem:[%s3 + $0x2d4] sm:$0xf]
  %v7095 = vld [vmem:[%s3 + $0x2d8] sm:$0xff]
  %v7096 = vld [vmem:[%s3 + $0x2e0] sm:$0xff]
  %v7097 = vld [vmem:[%s3 + $0x2e8] sm:$0xff]
  %v7098 = vld [vmem:[%s3 + $0x2f0] sm:$0xf]
  %v7099 = vld [vmem:[%s3 + $0x2f4] sm:$0xff]
  %v7100 = vld [vmem:[%s3 + $0x2fc] sm:$0xff]
  %v7101 = vld [vmem:[%s3 + $0x304] sm:$0xff]
  %v7102 = vld [vmem:[%s3 + $0x30c] sm:$0xf]
  %v7103 = vld [vmem:[%s3 + $0x310] sm:$0xff]
  %v7104 = vld [vmem:[%s3 + $0x318] sm:$0xff]
  %v7105 = vld [vmem:[%s3 + $0x320] sm:$0xff]
  %v7106 = vld [vmem:[%s3 + $0x328] sm:$0xf]
  %v7107 = vld [vmem:[%s3 + $0x32c] sm:$0xff]
  %v7108 = vld [vmem:[%s3 + $0x334] sm:$0xff]
  %v7109 = vld [vmem:[%s3 + $0x33c] sm:$0xff]
  %v7110 = vld [vmem:[%s3 + $0x344] sm:$0xf]
  %v7303 = vunpack.c.l.b16 %v6799
  %v7304 = vunpack.c.l.b16 %v6800
  %v7305 = vunpack.c.l.b16 %v6801
  %v7306 = vunpack.c.l.b16 %v6802
  %v7307 = vunpack.c.l.b16 %v6803
  %v7308 = vunpack.c.l.b16 %v6804
  %v7309 = vunpack.c.l.b16 %v6805
  %v7310 = vunpack.c.l.b16 %v6806
  %v7311 = vunpack.c.l.b16 %v6807
  %v7312 = vunpack.c.l.b16 %v6808
  %v7313 = vunpack.c.l.b16 %v6809
  %v7314 = vunpack.c.l.b16 %v6810
  %v7315 = vunpack.c.l.b16 %v6811
  %v7316 = vunpack.c.l.b16 %v6812
  %v7317 = vunpack.c.l.b16 %v6813
  %v7318 = vunpack.c.l.b16 %v6814
  %v7319 = vunpack.c.l.b16 %v6815
  %v7320 = vunpack.c.l.b16 %v6816
  %v7321 = vunpack.c.l.b16 %v6817
  %v7322 = vunpack.c.l.b16 %v6818
  %v7323 = vunpack.c.l.b16 %v6819
  %v7324 = vunpack.c.l.b16 %v6820
  %v7325 = vunpack.c.l.b16 %v6821
  %v7326 = vunpack.c.l.b16 %v6822
  %v7327 = vunpack.c.l.b16 %v6823
  %v7328 = vunpack.c.l.b16 %v6824
  %v7329 = vunpack.c.l.b16 %v6825
  %v7330 = vunpack.c.l.b16 %v6826
  %v7331 = vunpack.c.l.b16 %v6827
  %v7332 = vunpack.c.l.b16 %v6828
  %v7333 = vunpack.c.l.b16 %v6829
  %v7334 = vunpack.c.l.b16 %v6830
  %v7335 = vunpack.c.l.b16 %v6831
  %v7336 = vunpack.c.l.b16 %v6832
  %v7337 = vunpack.c.l.b16 %v6833
  %v7338 = vunpack.c.l.b16 %v6834
  %v7339 = vunpack.c.l.b16 %v6835
  %v7340 = vunpack.c.l.b16 %v6836
  %v7341 = vunpack.c.l.b16 %v6837
  %v7342 = vunpack.c.l.b16 %v6838
  %v7343 = vunpack.c.l.b16 %v6839
  %v7344 = vunpack.c.l.b16 %v6840
  %v7345 = vunpack.c.l.b16 %v6841
  %v7346 = vunpack.c.l.b16 %v6842
  %v7347 = vunpack.c.l.b16 %v6843
  %v7348 = vunpack.c.l.b16 %v6844
  %v7349 = vunpack.c.l.b16 %v6845
  %v7350 = vunpack.c.l.b16 %v6846
  %v7351 = vunpack.c.l.b16 %v6847
  %v7352 = vunpack.c.l.b16 %v6848
  %v7353 = vunpack.c.l.b16 %v6849
  %v7354 = vunpack.c.l.b16 %v6850
  %v7355 = vunpack.c.l.b16 %v6851
  %v7356 = vunpack.c.l.b16 %v6852
  %v7357 = vunpack.c.l.b16 %v6853
  %v7358 = vunpack.c.l.b16 %v6854
  %v7359 = vunpack.c.l.b16 %v6855
  %v7360 = vunpack.c.l.b16 %v6856
  %v7361 = vunpack.c.l.b16 %v6857
  %v7362 = vunpack.c.l.b16 %v6858
  %v7363 = vunpack.c.l.b16 %v6859
  %v7364 = vunpack.c.l.b16 %v6860
  %v7365 = vunpack.c.l.b16 %v6861
  %v7366 = vunpack.c.l.b16 %v6862
  %v7367 = vunpack.c.l.b16 %v6863
  %v7368 = vunpack.c.l.b16 %v6864
  %v7369 = vunpack.c.l.b16 %v6865
  %v7370 = vunpack.c.l.b16 %v6866
  %v7371 = vunpack.c.l.b16 %v6867
  %v7372 = vunpack.c.l.b16 %v6868
  %v7373 = vunpack.c.l.b16 %v6869
  %v7374 = vunpack.c.l.b16 %v6870
  %v7375 = vunpack.c.l.b16 %v6871
  %v7376 = vunpack.c.l.b16 %v6872
  %v7377 = vunpack.c.l.b16 %v6873
  %v7378 = vunpack.c.l.b16 %v6874
  %v7379 = vunpack.c.l.b16 %v6875
  %v7380 = vunpack.c.l.b16 %v6876
  %v7381 = vunpack.c.l.b16 %v6877
  %v7382 = vunpack.c.l.b16 %v6878
  %v7383 = vunpack.c.l.b16 %v6879
  %v7384 = vunpack.c.l.b16 %v6880
  %v7385 = vunpack.c.l.b16 %v6881
  %v7386 = vunpack.c.l.b16 %v6882
  %v7387 = vunpack.c.l.b16 %v6883
  %v7388 = vunpack.c.l.b16 %v6884
  %v7389 = vunpack.c.l.b16 %v6885
  %v7390 = vunpack.c.l.b16 %v6886
  %v7391 = vunpack.c.l.b16 %v6887
  %v7392 = vunpack.c.l.b16 %v6888
  %v7393 = vunpack.c.l.b16 %v6889
  %v7394 = vunpack.c.l.b16 %v6890
  %v7395 = vunpack.c.l.b16 %v6891
  %v7396 = vunpack.c.l.b16 %v6892
  %v7397 = vunpack.c.l.b16 %v6893
  %v7398 = vunpack.c.l.b16 %v6894
  %v7399 = vunpack.c.l.b16 %v6895
  %v7400 = vunpack.c.l.b16 %v6896
  %v7401 = vunpack.c.l.b16 %v6897
  %v7402 = vunpack.c.l.b16 %v6898
  %v7403 = vunpack.c.l.b16 %v6899
  %v7404 = vunpack.c.l.b16 %v6900
  %v7405 = vunpack.c.l.b16 %v6901
  %v7406 = vunpack.c.l.b16 %v6902
  %v7407 = vunpack.c.l.b16 %v6903
  %v7408 = vunpack.c.l.b16 %v6904
  %v7409 = vunpack.c.l.b16 %v6905
  %v7410 = vunpack.c.l.b16 %v6906
  %v7411 = vunpack.c.l.b16 %v6907
  %v7412 = vunpack.c.l.b16 %v6908
  %v7413 = vunpack.c.l.b16 %v6909
  %v7414 = vunpack.c.l.b16 %v6910
  %v7415 = vunpack.c.l.b16 %v6911
  %v7416 = vunpack.c.l.b16 %v6912
  %v7417 = vunpack.c.l.b16 %v6913
  %v7418 = vunpack.c.l.b16 %v6914
  %v7419 = vunpack.c.l.b16 %v6915
  %v7420 = vunpack.c.l.b16 %v6916
  %v7421 = vunpack.c.l.b16 %v6917
  %v7422 = vunpack.c.l.b16 %v6918
  %v7423 = vunpack.c.l.b16 %v6919
  %v7424 = vunpack.c.l.b16 %v6920
  %v7425 = vunpack.c.l.b16 %v6921
  %v7426 = vunpack.c.l.b16 %v6922
  %v7427 = vunpack.c.l.b16 %v6923
  %v7428 = vunpack.c.l.b16 %v6924
  %v7429 = vunpack.c.l.b16 %v6925
  %v7430 = vunpack.c.l.b16 %v6926
  %v7431 = vunpack.c.l.b16 %v6927
  %v7432 = vunpack.c.l.b16 %v6928
  %v7433 = vunpack.c.l.b16 %v6929
  %v7434 = vunpack.c.l.b16 %v6930
  %v7435 = vunpack.c.l.b16 %v6931
  %v7436 = vunpack.c.l.b16 %v6932
  %v7437 = vunpack.c.l.b16 %v6933
  %v7438 = vunpack.c.l.b16 %v6934
  %v7439 = vunpack.c.l.b16 %v6935
  %v7440 = vunpack.c.l.b16 %v6936
  %v7441 = vunpack.c.l.b16 %v6937
  %v7442 = vunpack.c.l.b16 %v6938
  %v7443 = vunpack.c.l.b16 %v6939
  %v7444 = vunpack.c.l.b16 %v6940
  %v7445 = vunpack.c.l.b16 %v6941
  %v7446 = vunpack.c.l.b16 %v6942
  %v7447 = vunpack.c.l.b16 %v6943
  %v7448 = vunpack.c.l.b16 %v6944
  %v7449 = vunpack.c.l.b16 %v6945
  %v7450 = vunpack.c.l.b16 %v6946
  %v7451 = vunpack.c.l.b16 %v6947
  %v7452 = vunpack.c.l.b16 %v6948
  %v7453 = vunpack.c.l.b16 %v6949
  %v7454 = vunpack.c.l.b16 %v6950
  %v7455 = vunpack.c.l.b16 %v6951
  %v7456 = vunpack.c.l.b16 %v6952
  %v7457 = vunpack.c.l.b16 %v6953
  %v7458 = vunpack.c.l.b16 %v6954
  %v7459 = vunpack.c.l.b16 %v6955
  %v7460 = vunpack.c.l.b16 %v6956
  %v7461 = vunpack.c.l.b16 %v6957
  %v7462 = vunpack.c.l.b16 %v6958
  %v7463 = vunpack.c.l.b16 %v6959
  %v7464 = vunpack.c.l.b16 %v6960
  %v7465 = vunpack.c.l.b16 %v6961
  %v7466 = vunpack.c.l.b16 %v6962
  %v7467 = vunpack.c.l.b16 %v6963
  %v7468 = vunpack.c.l.b16 %v6964
  %v7469 = vunpack.c.l.b16 %v6965
  %v7470 = vunpack.c.l.b16 %v6966
  %v7471 = vunpack.c.l.b16 %v6967
  %v7472 = vunpack.c.l.b16 %v6968
  %v7473 = vunpack.c.l.b16 %v6969
  %v7474 = vunpack.c.l.b16 %v6970
  %v7475 = vunpack.c.l.b16 %v6971
  %v7476 = vunpack.c.l.b16 %v6972
  %v7477 = vunpack.c.l.b16 %v6973
  %v7478 = vunpack.c.l.b16 %v6974
  %v7479 = vunpack.c.l.b16 %v6975
  %v7480 = vunpack.c.l.b16 %v6976
  %v7481 = vunpack.c.l.b16 %v6977
  %v7482 = vunpack.c.l.b16 %v6978
  %v7483 = vunpack.c.l.b16 %v6979
  %v7484 = vunpack.c.l.b16 %v6980
  %v7485 = vunpack.c.l.b16 %v6981
  %v7486 = vunpack.c.l.b16 %v6982
  %v7487 = vunpack.c.l.b16 %v6983
  %v7488 = vunpack.c.l.b16 %v6984
  %v7489 = vunpack.c.l.b16 %v6985
  %v7490 = vunpack.c.l.b16 %v6986
  %v7491 = vunpack.c.l.b16 %v6987
  %v7492 = vunpack.c.l.b16 %v6988
  %v7493 = vunpack.c.l.b16 %v6989
  %v7494 = vunpack.c.l.b16 %v6990
  %v7495 = vrot.slane %v7305, 7
  %vm7496 = vcmask 1041409
  %v7497 = vsel %vm7496, %v7495, %v7303
  %v7498 = vrot.slane %v7307, 6
  %vm7499 = vcmask 1042434
  %v7500 = vsel %vm7499, %v7498, %v7497
  %v7501 = vrot.slane %v7309, 5
  %vm7502 = vcmask 1043459
  %v7503 = vsel %vm7502, %v7501, %v7500
  %v7504 = vrot.slane %v7311, 4
  %v7505 = vsel %vm3503, %v7504, %v7503
  %v7506 = vrot.slane %v7313, 3
  %vm7507 = vcmask 1045509
  %v7508 = vsel %vm7507, %v7506, %v7505
  %v7509 = vrot.slane %v7315, 2
  %vm7510 = vcmask 1046534
  %v7511 = vsel %vm7510, %v7509, %v7508
  %v7512 = vrot.slane %v7317, 1
  %vm7513 = vcmask 1047559
  %v7514 = vsel %vm7513, %v7512, %v7511
  %v7515 = vrot.slane %v7306, 7
  %v7516 = vsel %vm7496, %v7515, %v7304
  %v7517 = vrot.slane %v7308, 6
  %v7518 = vsel %vm7499, %v7517, %v7516
  %v7519 = vrot.slane %v7310, 5
  %v7520 = vsel %vm7502, %v7519, %v7518
  %v7521 = vrot.slane %v7312, 4
  %v7522 = vsel %vm3503, %v7521, %v7520
  %v7523 = vrot.slane %v7314, 3
  %v7524 = vsel %vm7507, %v7523, %v7522
  %v7525 = vrot.slane %v7316, 2
  %v7526 = vsel %vm7510, %v7525, %v7524
  %v7527 = vrot.slane %v7318, 1
  %v7528 = vsel %vm7513, %v7527, %v7526
  %v7529 = vrot.slane %v7321, 7
  %v7530 = vsel %vm7496, %v7529, %v7319
  %v7531 = vrot.slane %v7323, 6
  %v7532 = vsel %vm7499, %v7531, %v7530
  %v7533 = vrot.slane %v7325, 5
  %v7534 = vsel %vm7502, %v7533, %v7532
  %v7535 = vrot.slane %v7327, 4
  %v7536 = vsel %vm3503, %v7535, %v7534
  %v7537 = vrot.slane %v7329, 3
  %v7538 = vsel %vm7507, %v7537, %v7536
  %v7539 = vrot.slane %v7331, 2
  %v7540 = vsel %vm7510, %v7539, %v7538
  %v7541 = vrot.slane %v7333, 1
  %v7542 = vsel %vm7513, %v7541, %v7540
  %v7543 = vrot.slane %v7322, 7
  %v7544 = vsel %vm7496, %v7543, %v7320
  %v7545 = vrot.slane %v7324, 6
  %v7546 = vsel %vm7499, %v7545, %v7544
  %v7547 = vrot.slane %v7326, 5
  %v7548 = vsel %vm7502, %v7547, %v7546
  %v7549 = vrot.slane %v7328, 4
  %v7550 = vsel %vm3503, %v7549, %v7548
  %v7551 = vrot.slane %v7330, 3
  %v7552 = vsel %vm7507, %v7551, %v7550
  %v7553 = vrot.slane %v7332, 2
  %v7554 = vsel %vm7510, %v7553, %v7552
  %v7555 = vrot.slane %v7334, 1
  %v7556 = vsel %vm7513, %v7555, %v7554
  %v7557 = vrot.slane %v7337, 7
  %v7558 = vsel %vm7496, %v7557, %v7335
  %v7559 = vrot.slane %v7339, 6
  %v7560 = vsel %vm7499, %v7559, %v7558
  %v7561 = vrot.slane %v7341, 5
  %v7562 = vsel %vm7502, %v7561, %v7560
  %v7563 = vrot.slane %v7343, 4
  %v7564 = vsel %vm3503, %v7563, %v7562
  %v7565 = vrot.slane %v7345, 3
  %v7566 = vsel %vm7507, %v7565, %v7564
  %v7567 = vrot.slane %v7347, 2
  %v7568 = vsel %vm7510, %v7567, %v7566
  %v7569 = vrot.slane %v7349, 1
  %v7570 = vsel %vm7513, %v7569, %v7568
  %v7571 = vrot.slane %v7338, 7
  %v7572 = vsel %vm7496, %v7571, %v7336
  %v7573 = vrot.slane %v7340, 6
  %v7574 = vsel %vm7499, %v7573, %v7572
  %v7575 = vrot.slane %v7342, 5
  %v7576 = vsel %vm7502, %v7575, %v7574
  %v7577 = vrot.slane %v7344, 4
  %v7578 = vsel %vm3503, %v7577, %v7576
  %v7579 = vrot.slane %v7346, 3
  %v7580 = vsel %vm7507, %v7579, %v7578
  %v7581 = vrot.slane %v7348, 2
  %v7582 = vsel %vm7510, %v7581, %v7580
  %v7583 = vrot.slane %v7350, 1
  %v7584 = vsel %vm7513, %v7583, %v7582
  %v7585 = vrot.slane %v7353, 7
  %v7586 = vsel %vm7496, %v7585, %v7351
  %v7587 = vrot.slane %v7355, 6
  %v7588 = vsel %vm7499, %v7587, %v7586
  %v7589 = vrot.slane %v7357, 5
  %v7590 = vsel %vm7502, %v7589, %v7588
  %v7591 = vrot.slane %v7359, 4
  %v7592 = vsel %vm3503, %v7591, %v7590
  %v7593 = vrot.slane %v7361, 3
  %v7594 = vsel %vm7507, %v7593, %v7592
  %v7595 = vrot.slane %v7363, 2
  %v7596 = vsel %vm7510, %v7595, %v7594
  %v7597 = vrot.slane %v7365, 1
  %v7598 = vsel %vm7513, %v7597, %v7596
  %v7599 = vrot.slane %v7354, 7
  %v7600 = vsel %vm7496, %v7599, %v7352
  %v7601 = vrot.slane %v7356, 6
  %v7602 = vsel %vm7499, %v7601, %v7600
  %v7603 = vrot.slane %v7358, 5
  %v7604 = vsel %vm7502, %v7603, %v7602
  %v7605 = vrot.slane %v7360, 4
  %v7606 = vsel %vm3503, %v7605, %v7604
  %v7607 = vrot.slane %v7362, 3
  %v7608 = vsel %vm7507, %v7607, %v7606
  %v7609 = vrot.slane %v7364, 2
  %v7610 = vsel %vm7510, %v7609, %v7608
  %v7611 = vrot.slane %v7366, 1
  %v7612 = vsel %vm7513, %v7611, %v7610
  %v7613 = vrot.slane %v7369, 7
  %v7614 = vsel %vm7496, %v7613, %v7367
  %v7615 = vrot.slane %v7371, 6
  %v7616 = vsel %vm7499, %v7615, %v7614
  %v7617 = vrot.slane %v7373, 5
  %v7618 = vsel %vm7502, %v7617, %v7616
  %v7619 = vrot.slane %v7375, 4
  %v7620 = vsel %vm3503, %v7619, %v7618
  %v7621 = vrot.slane %v7377, 3
  %v7622 = vsel %vm7507, %v7621, %v7620
  %v7623 = vrot.slane %v7379, 2
  %v7624 = vsel %vm7510, %v7623, %v7622
  %v7625 = vrot.slane %v7381, 1
  %v7626 = vsel %vm7513, %v7625, %v7624
  %v7627 = vrot.slane %v7370, 7
  %v7628 = vsel %vm7496, %v7627, %v7368
  %v7629 = vrot.slane %v7372, 6
  %v7630 = vsel %vm7499, %v7629, %v7628
  %v7631 = vrot.slane %v7374, 5
  %v7632 = vsel %vm7502, %v7631, %v7630
  %v7633 = vrot.slane %v7376, 4
  %v7634 = vsel %vm3503, %v7633, %v7632
  %v7635 = vrot.slane %v7378, 3
  %v7636 = vsel %vm7507, %v7635, %v7634
  %v7637 = vrot.slane %v7380, 2
  %v7638 = vsel %vm7510, %v7637, %v7636
  %v7639 = vrot.slane %v7382, 1
  %v7640 = vsel %vm7513, %v7639, %v7638
  %v7641 = vrot.slane %v7385, 7
  %v7642 = vsel %vm7496, %v7641, %v7383
  %v7643 = vrot.slane %v7387, 6
  %v7644 = vsel %vm7499, %v7643, %v7642
  %v7645 = vrot.slane %v7389, 5
  %v7646 = vsel %vm7502, %v7645, %v7644
  %v7647 = vrot.slane %v7391, 4
  %v7648 = vsel %vm3503, %v7647, %v7646
  %v7649 = vrot.slane %v7393, 3
  %v7650 = vsel %vm7507, %v7649, %v7648
  %v7651 = vrot.slane %v7395, 2
  %v7652 = vsel %vm7510, %v7651, %v7650
  %v7653 = vrot.slane %v7397, 1
  %v7654 = vsel %vm7513, %v7653, %v7652
  %v7655 = vrot.slane %v7386, 7
  %v7656 = vsel %vm7496, %v7655, %v7384
  %v7657 = vrot.slane %v7388, 6
  %v7658 = vsel %vm7499, %v7657, %v7656
  %v7659 = vrot.slane %v7390, 5
  %v7660 = vsel %vm7502, %v7659, %v7658
  %v7661 = vrot.slane %v7392, 4
  %v7662 = vsel %vm3503, %v7661, %v7660
  %v7663 = vrot.slane %v7394, 3
  %v7664 = vsel %vm7507, %v7663, %v7662
  %v7665 = vrot.slane %v7396, 2
  %v7666 = vsel %vm7510, %v7665, %v7664
  %v7667 = vrot.slane %v7398, 1
  %v7668 = vsel %vm7513, %v7667, %v7666
  %v7669 = vrot.slane %v7401, 7
  %v7670 = vsel %vm7496, %v7669, %v7399
  %v7671 = vrot.slane %v7403, 6
  %v7672 = vsel %vm7499, %v7671, %v7670
  %v7673 = vrot.slane %v7405, 5
  %v7674 = vsel %vm7502, %v7673, %v7672
  %v7675 = vrot.slane %v7407, 4
  %v7676 = vsel %vm3503, %v7675, %v7674
  %v7677 = vrot.slane %v7409, 3
  %v7678 = vsel %vm7507, %v7677, %v7676
  %v7679 = vrot.slane %v7411, 2
  %v7680 = vsel %vm7510, %v7679, %v7678
  %v7681 = vrot.slane %v7413, 1
  %v7682 = vsel %vm7513, %v7681, %v7680
  %v7683 = vrot.slane %v7402, 7
  %v7684 = vsel %vm7496, %v7683, %v7400
  %v7685 = vrot.slane %v7404, 6
  %v7686 = vsel %vm7499, %v7685, %v7684
  %v7687 = vrot.slane %v7406, 5
  %v7688 = vsel %vm7502, %v7687, %v7686
  %v7689 = vrot.slane %v7408, 4
  %v7690 = vsel %vm3503, %v7689, %v7688
  %v7691 = vrot.slane %v7410, 3
  %v7692 = vsel %vm7507, %v7691, %v7690
  %v7693 = vrot.slane %v7412, 2
  %v7694 = vsel %vm7510, %v7693, %v7692
  %v7695 = vrot.slane %v7414, 1
  %v7696 = vsel %vm7513, %v7695, %v7694
  %v7697 = vrot.slane %v7417, 7
  %v7698 = vsel %vm7496, %v7697, %v7415
  %v7699 = vrot.slane %v7419, 6
  %v7700 = vsel %vm7499, %v7699, %v7698
  %v7701 = vrot.slane %v7421, 5
  %v7702 = vsel %vm7502, %v7701, %v7700
  %v7703 = vrot.slane %v7423, 4
  %v7704 = vsel %vm3503, %v7703, %v7702
  %v7705 = vrot.slane %v7425, 3
  %v7706 = vsel %vm7507, %v7705, %v7704
  %v7707 = vrot.slane %v7427, 2
  %v7708 = vsel %vm7510, %v7707, %v7706
  %v7709 = vrot.slane %v7429, 1
  %v7710 = vsel %vm7513, %v7709, %v7708
  %v7711 = vrot.slane %v7418, 7
  %v7712 = vsel %vm7496, %v7711, %v7416
  %v7713 = vrot.slane %v7420, 6
  %v7714 = vsel %vm7499, %v7713, %v7712
  %v7715 = vrot.slane %v7422, 5
  %v7716 = vsel %vm7502, %v7715, %v7714
  %v7717 = vrot.slane %v7424, 4
  %v7718 = vsel %vm3503, %v7717, %v7716
  %v7719 = vrot.slane %v7426, 3
  %v7720 = vsel %vm7507, %v7719, %v7718
  %v7721 = vrot.slane %v7428, 2
  %v7722 = vsel %vm7510, %v7721, %v7720
  %v7723 = vrot.slane %v7430, 1
  %v7724 = vsel %vm7513, %v7723, %v7722
  %v7725 = vrot.slane %v7433, 7
  %v7726 = vsel %vm7496, %v7725, %v7431
  %v7727 = vrot.slane %v7435, 6
  %v7728 = vsel %vm7499, %v7727, %v7726
  %v7729 = vrot.slane %v7437, 5
  %v7730 = vsel %vm7502, %v7729, %v7728
  %v7731 = vrot.slane %v7439, 4
  %v7732 = vsel %vm3503, %v7731, %v7730
  %v7733 = vrot.slane %v7441, 3
  %v7734 = vsel %vm7507, %v7733, %v7732
  %v7735 = vrot.slane %v7443, 2
  %v7736 = vsel %vm7510, %v7735, %v7734
  %v7737 = vrot.slane %v7445, 1
  %v7738 = vsel %vm7513, %v7737, %v7736
  %v7739 = vrot.slane %v7434, 7
  %v7740 = vsel %vm7496, %v7739, %v7432
  %v7741 = vrot.slane %v7436, 6
  %v7742 = vsel %vm7499, %v7741, %v7740
  %v7743 = vrot.slane %v7438, 5
  %v7744 = vsel %vm7502, %v7743, %v7742
  %v7745 = vrot.slane %v7440, 4
  %v7746 = vsel %vm3503, %v7745, %v7744
  %v7747 = vrot.slane %v7442, 3
  %v7748 = vsel %vm7507, %v7747, %v7746
  %v7749 = vrot.slane %v7444, 2
  %v7750 = vsel %vm7510, %v7749, %v7748
  %v7751 = vrot.slane %v7446, 1
  %v7752 = vsel %vm7513, %v7751, %v7750
  %v7753 = vrot.slane %v7449, 7
  %v7754 = vsel %vm7496, %v7753, %v7447
  %v7755 = vrot.slane %v7451, 6
  %v7756 = vsel %vm7499, %v7755, %v7754
  %v7757 = vrot.slane %v7453, 5
  %v7758 = vsel %vm7502, %v7757, %v7756
  %v7759 = vrot.slane %v7455, 4
  %v7760 = vsel %vm3503, %v7759, %v7758
  %v7761 = vrot.slane %v7457, 3
  %v7762 = vsel %vm7507, %v7761, %v7760
  %v7763 = vrot.slane %v7459, 2
  %v7764 = vsel %vm7510, %v7763, %v7762
  %v7765 = vrot.slane %v7461, 1
  %v7766 = vsel %vm7513, %v7765, %v7764
  %v7767 = vrot.slane %v7450, 7
  %v7768 = vsel %vm7496, %v7767, %v7448
  %v7769 = vrot.slane %v7452, 6
  %v7770 = vsel %vm7499, %v7769, %v7768
  %v7771 = vrot.slane %v7454, 5
  %v7772 = vsel %vm7502, %v7771, %v7770
  %v7773 = vrot.slane %v7456, 4
  %v7774 = vsel %vm3503, %v7773, %v7772
  %v7775 = vrot.slane %v7458, 3
  %v7776 = vsel %vm7507, %v7775, %v7774
  %v7777 = vrot.slane %v7460, 2
  %v7778 = vsel %vm7510, %v7777, %v7776
  %v7779 = vrot.slane %v7462, 1
  %v7780 = vsel %vm7513, %v7779, %v7778
  %v7781 = vrot.slane %v7465, 7
  %v7782 = vsel %vm7496, %v7781, %v7463
  %v7783 = vrot.slane %v7467, 6
  %v7784 = vsel %vm7499, %v7783, %v7782
  %v7785 = vrot.slane %v7469, 5
  %v7786 = vsel %vm7502, %v7785, %v7784
  %v7787 = vrot.slane %v7471, 4
  %v7788 = vsel %vm3503, %v7787, %v7786
  %v7789 = vrot.slane %v7473, 3
  %v7790 = vsel %vm7507, %v7789, %v7788
  %v7791 = vrot.slane %v7475, 2
  %v7792 = vsel %vm7510, %v7791, %v7790
  %v7793 = vrot.slane %v7477, 1
  %v7794 = vsel %vm7513, %v7793, %v7792
  %v7795 = vrot.slane %v7466, 7
  %v7796 = vsel %vm7496, %v7795, %v7464
  %v7797 = vrot.slane %v7468, 6
  %v7798 = vsel %vm7499, %v7797, %v7796
  %v7799 = vrot.slane %v7470, 5
  %v7800 = vsel %vm7502, %v7799, %v7798
  %v7801 = vrot.slane %v7472, 4
  %v7802 = vsel %vm3503, %v7801, %v7800
  %v7803 = vrot.slane %v7474, 3
  %v7804 = vsel %vm7507, %v7803, %v7802
  %v7805 = vrot.slane %v7476, 2
  %v7806 = vsel %vm7510, %v7805, %v7804
  %v7807 = vrot.slane %v7478, 1
  %v7808 = vsel %vm7513, %v7807, %v7806
  %v7809 = vrot.slane %v7481, 7
  %v7810 = vsel %vm7496, %v7809, %v7479
  %v7811 = vrot.slane %v7483, 6
  %v7812 = vsel %vm7499, %v7811, %v7810
  %v7813 = vrot.slane %v7485, 5
  %v7814 = vsel %vm7502, %v7813, %v7812
  %v7815 = vrot.slane %v7487, 4
  %v7816 = vsel %vm3503, %v7815, %v7814
  %v7817 = vrot.slane %v7489, 3
  %v7818 = vsel %vm7507, %v7817, %v7816
  %v7819 = vrot.slane %v7491, 2
  %v7820 = vsel %vm7510, %v7819, %v7818
  %v7821 = vrot.slane %v7493, 1
  %v7822 = vsel %vm7513, %v7821, %v7820
  %v7823 = vrot.slane %v7482, 7
  %v7824 = vsel %vm7496, %v7823, %v7480
  %v7825 = vrot.slane %v7484, 6
  %v7826 = vsel %vm7499, %v7825, %v7824
  %v7827 = vrot.slane %v7486, 5
  %v7828 = vsel %vm7502, %v7827, %v7826
  %v7829 = vrot.slane %v7488, 4
  %v7830 = vsel %vm3503, %v7829, %v7828
  %v7831 = vrot.slane %v7490, 3
  %v7832 = vsel %vm7507, %v7831, %v7830
  %v7833 = vrot.slane %v7492, 2
  %v7834 = vsel %vm7510, %v7833, %v7832
  %v7835 = vrot.slane %v7494, 1
  %v7836 = vsel %vm7513, %v7835, %v7834
  %v7837 = vpack.c.b16 %v7542, %v7514
  %v7838 = vpack.c.b16 %v7556, %v7528
  %v7839 = vpack.c.b16 %v7598, %v7570
  %v7840 = vpack.c.b16 %v7612, %v7584
  %v7841 = vpack.c.b16 %v7654, %v7626
  %v7842 = vpack.c.b16 %v7668, %v7640
  %v7843 = vpack.c.b16 %v7710, %v7682
  %v7844 = vpack.c.b16 %v7724, %v7696
  %v7845 = vpack.c.b16 %v7766, %v7738
  %v7846 = vpack.c.b16 %v7780, %v7752
  %v7847 = vpack.c.b16 %v7822, %v7794
  %v7848 = vpack.c.b16 %v7836, %v7808
  %v7975 = vunpack.c.l.b16 %v6991
  %v7976 = vunpack.c.h.b16 %v6991
  %v7977 = vunpack.c.l.b16 %v6992
  %v7978 = vunpack.c.h.b16 %v6992
  %v7979 = vunpack.c.l.b16 %v6993
  %v7980 = vunpack.c.h.b16 %v6993
  %v7981 = vunpack.c.l.b16 %v6994
  %v7982 = vunpack.c.l.b16 %v6995
  %v7983 = vunpack.c.h.b16 %v6995
  %v7984 = vunpack.c.l.b16 %v6996
  %v7985 = vunpack.c.h.b16 %v6996
  %v7986 = vunpack.c.l.b16 %v6997
  %v7987 = vunpack.c.h.b16 %v6997
  %v7988 = vunpack.c.l.b16 %v6998
  %v7989 = vunpack.c.l.b16 %v6999
  %v7990 = vunpack.c.h.b16 %v6999
  %v7991 = vunpack.c.l.b16 %v7000
  %v7992 = vunpack.c.h.b16 %v7000
  %v7993 = vunpack.c.l.b16 %v7001
  %v7994 = vunpack.c.h.b16 %v7001
  %v7995 = vunpack.c.l.b16 %v7002
  %v7996 = vunpack.c.l.b16 %v7003
  %v7997 = vunpack.c.h.b16 %v7003
  %v7998 = vunpack.c.l.b16 %v7004
  %v7999 = vunpack.c.h.b16 %v7004
  %v8000 = vunpack.c.l.b16 %v7005
  %v8001 = vunpack.c.h.b16 %v7005
  %v8002 = vunpack.c.l.b16 %v7006
  %v8003 = vunpack.c.l.b16 %v7007
  %v8004 = vunpack.c.h.b16 %v7007
  %v8005 = vunpack.c.l.b16 %v7008
  %v8006 = vunpack.c.h.b16 %v7008
  %v8007 = vunpack.c.l.b16 %v7009
  %v8008 = vunpack.c.h.b16 %v7009
  %v8009 = vunpack.c.l.b16 %v7010
  %v8010 = vunpack.c.l.b16 %v7011
  %v8011 = vunpack.c.h.b16 %v7011
  %v8012 = vunpack.c.l.b16 %v7012
  %v8013 = vunpack.c.h.b16 %v7012
  %v8014 = vunpack.c.l.b16 %v7013
  %v8015 = vunpack.c.h.b16 %v7013
  %v8016 = vunpack.c.l.b16 %v7014
  %v8017 = vunpack.c.l.b16 %v7015
  %v8018 = vunpack.c.h.b16 %v7015
  %v8019 = vunpack.c.l.b16 %v7016
  %v8020 = vunpack.c.h.b16 %v7016
  %v8021 = vunpack.c.l.b16 %v7017
  %v8022 = vunpack.c.h.b16 %v7017
  %v8023 = vunpack.c.l.b16 %v7018
  %v8024 = vunpack.c.l.b16 %v7019
  %v8025 = vunpack.c.h.b16 %v7019
  %v8026 = vunpack.c.l.b16 %v7020
  %v8027 = vunpack.c.h.b16 %v7020
  %v8028 = vunpack.c.l.b16 %v7021
  %v8029 = vunpack.c.h.b16 %v7021
  %v8030 = vunpack.c.l.b16 %v7022
  %v8031 = vunpack.c.l.b16 %v7023
  %v8032 = vunpack.c.h.b16 %v7023
  %v8033 = vunpack.c.l.b16 %v7024
  %v8034 = vunpack.c.h.b16 %v7024
  %v8035 = vunpack.c.l.b16 %v7025
  %v8036 = vunpack.c.h.b16 %v7025
  %v8037 = vunpack.c.l.b16 %v7026
  %v8038 = vunpack.c.l.b16 %v7027
  %v8039 = vunpack.c.h.b16 %v7027
  %v8040 = vunpack.c.l.b16 %v7028
  %v8041 = vunpack.c.h.b16 %v7028
  %v8042 = vunpack.c.l.b16 %v7029
  %v8043 = vunpack.c.h.b16 %v7029
  %v8044 = vunpack.c.l.b16 %v7030
  %v8045 = vunpack.c.l.b16 %v7031
  %v8046 = vunpack.c.h.b16 %v7031
  %v8047 = vunpack.c.l.b16 %v7032
  %v8048 = vunpack.c.h.b16 %v7032
  %v8049 = vunpack.c.l.b16 %v7033
  %v8050 = vunpack.c.h.b16 %v7033
  %v8051 = vunpack.c.l.b16 %v7034
  %v8052 = vunpack.c.l.b16 %v7035
  %v8053 = vunpack.c.h.b16 %v7035
  %v8054 = vunpack.c.l.b16 %v7036
  %v8055 = vunpack.c.h.b16 %v7036
  %v8056 = vunpack.c.l.b16 %v7037
  %v8057 = vunpack.c.h.b16 %v7037
  %v8058 = vunpack.c.l.b16 %v7038
  %v8059 = vunpack.c.l.b16 %v7039
  %v8060 = vunpack.c.h.b16 %v7039
  %v8061 = vunpack.c.l.b16 %v7040
  %v8062 = vunpack.c.h.b16 %v7040
  %v8063 = vunpack.c.l.b16 %v7041
  %v8064 = vunpack.c.h.b16 %v7041
  %v8065 = vunpack.c.l.b16 %v7042
  %v8066 = vunpack.c.l.b16 %v7043
  %v8067 = vunpack.c.h.b16 %v7043
  %v8068 = vunpack.c.l.b16 %v7044
  %v8069 = vunpack.c.h.b16 %v7044
  %v8070 = vunpack.c.l.b16 %v7045
  %v8071 = vunpack.c.h.b16 %v7045
  %v8072 = vunpack.c.l.b16 %v7046
  %v8073 = vunpack.c.l.b16 %v7047
  %v8074 = vunpack.c.h.b16 %v7047
  %v8075 = vunpack.c.l.b16 %v7048
  %v8076 = vunpack.c.h.b16 %v7048
  %v8077 = vunpack.c.l.b16 %v7049
  %v8078 = vunpack.c.h.b16 %v7049
  %v8079 = vunpack.c.l.b16 %v7050
  %v8080 = vunpack.c.l.b16 %v7051
  %v8081 = vunpack.c.h.b16 %v7051
  %v8082 = vunpack.c.l.b16 %v7052
  %v8083 = vunpack.c.h.b16 %v7052
  %v8084 = vunpack.c.l.b16 %v7053
  %v8085 = vunpack.c.h.b16 %v7053
  %v8086 = vunpack.c.l.b16 %v7054
  %v8087 = vunpack.c.l.b16 %v7055
  %v8088 = vunpack.c.h.b16 %v7055
  %v8089 = vunpack.c.l.b16 %v7056
  %v8090 = vunpack.c.h.b16 %v7056
  %v8091 = vunpack.c.l.b16 %v7057
  %v8092 = vunpack.c.h.b16 %v7057
  %v8093 = vunpack.c.l.b16 %v7058
  %v8094 = vunpack.c.l.b16 %v7059
  %v8095 = vunpack.c.h.b16 %v7059
  %v8096 = vunpack.c.l.b16 %v7060
  %v8097 = vunpack.c.h.b16 %v7060
  %v8098 = vunpack.c.l.b16 %v7061
  %v8099 = vunpack.c.h.b16 %v7061
  %v8100 = vunpack.c.l.b16 %v7062
  %v8101 = vunpack.c.l.b16 %v7063
  %v8102 = vunpack.c.h.b16 %v7063
  %v8103 = vunpack.c.l.b16 %v7064
  %v8104 = vunpack.c.h.b16 %v7064
  %v8105 = vunpack.c.l.b16 %v7065
  %v8106 = vunpack.c.h.b16 %v7065
  %v8107 = vunpack.c.l.b16 %v7066
  %v8108 = vunpack.c.l.b16 %v7067
  %v8109 = vunpack.c.h.b16 %v7067
  %v8110 = vunpack.c.l.b16 %v7068
  %v8111 = vunpack.c.h.b16 %v7068
  %v8112 = vunpack.c.l.b16 %v7069
  %v8113 = vunpack.c.h.b16 %v7069
  %v8114 = vunpack.c.l.b16 %v7070
  %v8115 = vunpack.c.l.b16 %v7071
  %v8116 = vunpack.c.h.b16 %v7071
  %v8117 = vunpack.c.l.b16 %v7072
  %v8118 = vunpack.c.h.b16 %v7072
  %v8119 = vunpack.c.l.b16 %v7073
  %v8120 = vunpack.c.h.b16 %v7073
  %v8121 = vunpack.c.l.b16 %v7074
  %v8122 = vunpack.c.l.b16 %v7075
  %v8123 = vunpack.c.h.b16 %v7075
  %v8124 = vunpack.c.l.b16 %v7076
  %v8125 = vunpack.c.h.b16 %v7076
  %v8126 = vunpack.c.l.b16 %v7077
  %v8127 = vunpack.c.h.b16 %v7077
  %v8128 = vunpack.c.l.b16 %v7078
  %v8129 = vunpack.c.l.b16 %v7079
  %v8130 = vunpack.c.h.b16 %v7079
  %v8131 = vunpack.c.l.b16 %v7080
  %v8132 = vunpack.c.h.b16 %v7080
  %v8133 = vunpack.c.l.b16 %v7081
  %v8134 = vunpack.c.h.b16 %v7081
  %v8135 = vunpack.c.l.b16 %v7082
  %v8136 = vunpack.c.l.b16 %v7083
  %v8137 = vunpack.c.h.b16 %v7083
  %v8138 = vunpack.c.l.b16 %v7084
  %v8139 = vunpack.c.h.b16 %v7084
  %v8140 = vunpack.c.l.b16 %v7085
  %v8141 = vunpack.c.h.b16 %v7085
  %v8142 = vunpack.c.l.b16 %v7086
  %v8143 = vunpack.c.l.b16 %v7087
  %v8144 = vunpack.c.h.b16 %v7087
  %v8145 = vunpack.c.l.b16 %v7088
  %v8146 = vunpack.c.h.b16 %v7088
  %v8147 = vunpack.c.l.b16 %v7089
  %v8148 = vunpack.c.h.b16 %v7089
  %v8149 = vunpack.c.l.b16 %v7090
  %v8150 = vunpack.c.l.b16 %v7091
  %v8151 = vunpack.c.h.b16 %v7091
  %v8152 = vunpack.c.l.b16 %v7092
  %v8153 = vunpack.c.h.b16 %v7092
  %v8154 = vunpack.c.l.b16 %v7093
  %v8155 = vunpack.c.h.b16 %v7093
  %v8156 = vunpack.c.l.b16 %v7094
  %v8157 = vunpack.c.l.b16 %v7095
  %v8158 = vunpack.c.h.b16 %v7095
  %v8159 = vunpack.c.l.b16 %v7096
  %v8160 = vunpack.c.h.b16 %v7096
  %v8161 = vunpack.c.l.b16 %v7097
  %v8162 = vunpack.c.h.b16 %v7097
  %v8163 = vunpack.c.l.b16 %v7098
  %v8164 = vunpack.c.l.b16 %v7099
  %v8165 = vunpack.c.h.b16 %v7099
  %v8166 = vunpack.c.l.b16 %v7100
  %v8167 = vunpack.c.h.b16 %v7100
  %v8168 = vunpack.c.l.b16 %v7101
  %v8169 = vunpack.c.h.b16 %v7101
  %v8170 = vunpack.c.l.b16 %v7102
  %v8171 = vunpack.c.l.b16 %v7103
  %v8172 = vunpack.c.h.b16 %v7103
  %v8173 = vunpack.c.l.b16 %v7104
  %v8174 = vunpack.c.h.b16 %v7104
  %v8175 = vunpack.c.l.b16 %v7105
  %v8176 = vunpack.c.h.b16 %v7105
  %v8177 = vunpack.c.l.b16 %v7106
  %v8178 = vunpack.c.l.b16 %v7107
  %v8179 = vunpack.c.h.b16 %v7107
  %v8180 = vunpack.c.l.b16 %v7108
  %v8181 = vunpack.c.h.b16 %v7108
  %v8182 = vunpack.c.l.b16 %v7109
  %v8183 = vunpack.c.h.b16 %v7109
  %v8184 = vunpack.c.l.b16 %v7110
  %v8185 = vpack.c.b16 %v7982, %v7975
  %v8186 = vpack.c.b16 %v7983, %v7976
  %v8187 = vpack.c.b16 %v7984, %v7977
  %v8188 = vpack.c.b16 %v7985, %v7978
  %v8189 = vpack.c.b16 %v7986, %v7979
  %v8190 = vpack.c.b16 %v7987, %v7980
  %v8191 = vpack.c.b16 %v7988, %v7981
  %v8192 = vpack.c.b16 %v7996, %v7989
  %v8193 = vpack.c.b16 %v7997, %v7990
  %v8194 = vpack.c.b16 %v7998, %v7991
  %v8195 = vpack.c.b16 %v7999, %v7992
  %v8196 = vpack.c.b16 %v8000, %v7993
  %v8197 = vpack.c.b16 %v8001, %v7994
  %v8198 = vpack.c.b16 %v8002, %v7995
  %v8199 = vpack.c.b16 %v8010, %v8003
  %v8200 = vpack.c.b16 %v8011, %v8004
  %v8201 = vpack.c.b16 %v8012, %v8005
  %v8202 = vpack.c.b16 %v8013, %v8006
  %v8203 = vpack.c.b16 %v8014, %v8007
  %v8204 = vpack.c.b16 %v8015, %v8008
  %v8205 = vpack.c.b16 %v8016, %v8009
  %v8206 = vpack.c.b16 %v8024, %v8017
  %v8207 = vpack.c.b16 %v8025, %v8018
  %v8208 = vpack.c.b16 %v8026, %v8019
  %v8209 = vpack.c.b16 %v8027, %v8020
  %v8210 = vpack.c.b16 %v8028, %v8021
  %v8211 = vpack.c.b16 %v8029, %v8022
  %v8212 = vpack.c.b16 %v8030, %v8023
  %v8213 = vpack.c.b16 %v8038, %v8031
  %v8214 = vpack.c.b16 %v8039, %v8032
  %v8215 = vpack.c.b16 %v8040, %v8033
  %v8216 = vpack.c.b16 %v8041, %v8034
  %v8217 = vpack.c.b16 %v8042, %v8035
  %v8218 = vpack.c.b16 %v8043, %v8036
  %v8219 = vpack.c.b16 %v8044, %v8037
  %v8220 = vpack.c.b16 %v8052, %v8045
  %v8221 = vpack.c.b16 %v8053, %v8046
  %v8222 = vpack.c.b16 %v8054, %v8047
  %v8223 = vpack.c.b16 %v8055, %v8048
  %v8224 = vpack.c.b16 %v8056, %v8049
  %v8225 = vpack.c.b16 %v8057, %v8050
  %v8226 = vpack.c.b16 %v8058, %v8051
  %v8227 = vpack.c.b16 %v8066, %v8059
  %v8228 = vpack.c.b16 %v8067, %v8060
  %v8229 = vpack.c.b16 %v8068, %v8061
  %v8230 = vpack.c.b16 %v8069, %v8062
  %v8231 = vpack.c.b16 %v8070, %v8063
  %v8232 = vpack.c.b16 %v8071, %v8064
  %v8233 = vpack.c.b16 %v8072, %v8065
  %v8234 = vpack.c.b16 %v8080, %v8073
  %v8235 = vpack.c.b16 %v8081, %v8074
  %v8236 = vpack.c.b16 %v8082, %v8075
  %v8237 = vpack.c.b16 %v8083, %v8076
  %v8238 = vpack.c.b16 %v8084, %v8077
  %v8239 = vpack.c.b16 %v8085, %v8078
  %v8240 = vpack.c.b16 %v8086, %v8079
  %v8241 = vpack.c.b16 %v8094, %v8087
  %v8242 = vpack.c.b16 %v8095, %v8088
  %v8243 = vpack.c.b16 %v8096, %v8089
  %v8244 = vpack.c.b16 %v8097, %v8090
  %v8245 = vpack.c.b16 %v8098, %v8091
  %v8246 = vpack.c.b16 %v8099, %v8092
  %v8247 = vpack.c.b16 %v8100, %v8093
  %v8248 = vpack.c.b16 %v8108, %v8101
  %v8249 = vpack.c.b16 %v8109, %v8102
  %v8250 = vpack.c.b16 %v8110, %v8103
  %v8251 = vpack.c.b16 %v8111, %v8104
  %v8252 = vpack.c.b16 %v8112, %v8105
  %v8253 = vpack.c.b16 %v8113, %v8106
  %v8254 = vpack.c.b16 %v8114, %v8107
  %v8255 = vpack.c.b16 %v8122, %v8115
  %v8256 = vpack.c.b16 %v8123, %v8116
  %v8257 = vpack.c.b16 %v8124, %v8117
  %v8258 = vpack.c.b16 %v8125, %v8118
  %v8259 = vpack.c.b16 %v8126, %v8119
  %v8260 = vpack.c.b16 %v8127, %v8120
  %v8261 = vpack.c.b16 %v8128, %v8121
  %v8262 = vpack.c.b16 %v8136, %v8129
  %v8263 = vpack.c.b16 %v8137, %v8130
  %v8264 = vpack.c.b16 %v8138, %v8131
  %v8265 = vpack.c.b16 %v8139, %v8132
  %v8266 = vpack.c.b16 %v8140, %v8133
  %v8267 = vpack.c.b16 %v8141, %v8134
  %v8268 = vpack.c.b16 %v8142, %v8135
  %v8269 = vpack.c.b16 %v8150, %v8143
  %v8270 = vpack.c.b16 %v8151, %v8144
  %v8271 = vpack.c.b16 %v8152, %v8145
  %v8272 = vpack.c.b16 %v8153, %v8146
  %v8273 = vpack.c.b16 %v8154, %v8147
  %v8274 = vpack.c.b16 %v8155, %v8148
  %v8275 = vpack.c.b16 %v8156, %v8149
  %v8276 = vpack.c.b16 %v8164, %v8157
  %v8277 = vpack.c.b16 %v8165, %v8158
  %v8278 = vpack.c.b16 %v8166, %v8159
  %v8279 = vpack.c.b16 %v8167, %v8160
  %v8280 = vpack.c.b16 %v8168, %v8161
  %v8281 = vpack.c.b16 %v8169, %v8162
  %v8282 = vpack.c.b16 %v8170, %v8163
  %v8283 = vpack.c.b16 %v8178, %v8171
  %v8284 = vpack.c.b16 %v8179, %v8172
  %v8285 = vpack.c.b16 %v8180, %v8173
  %v8286 = vpack.c.b16 %v8181, %v8174
  %v8287 = vpack.c.b16 %v8182, %v8175
  %v8288 = vpack.c.b16 %v8183, %v8176
  %v8289 = vpack.c.b16 %v8184, %v8177
  %vm8388 = vcmask 908288
  %v8390 = vsel %vm8388, %v7838, 0
  %v8393 = vsel %vm8388, %v7840, 0
  %v8396 = vsel %vm8388, %v7842, 0
  %v8399 = vsel %vm8388, %v7844, 0
  %v8402 = vsel %vm8388, %v7846, 0
  %v8405 = vsel %vm8388, %v7848, 0
  %vm8407 = vcmask 1046528
  %vm8408 = vcmask 1047552
  %v8409 = vsel %vm8407, 4294967295, 65535
  %v8410 = vsel %vm8408, %v8409, 0
  %v8412 = vand.u32 %v8283, %v8410
  %v8415 = vand.u32 %v8284, %v8410
  %v8418 = vand.u32 %v8285, %v8410
  %v8421 = vand.u32 %v8286, %v8410
  %v8424 = vand.u32 %v8287, %v8410
  %v8427 = vand.u32 %v8288, %v8410
  %v8430 = vand.u32 %v8289, %v8410
  %8432 = vmatpush.bf16.msra.mxu0 %v8234
  %8433 = vmatpush.bf16.msra.mxu0 %v8227
  %8434 = vmatpush.bf16.msra.mxu0 %v8220
  %8435 = vmatpush.bf16.msra.mxu0 %v8213
  %8436 = vmatpush.bf16.msra.mxu0 %v8206
  %8437 = vmatpush.bf16.msra.mxu0 %v8199
  %8438 = vmatpush.bf16.msra.mxu0 %v8192
  %8439 = vmatpush.bf16.msra.mxu0 %v8185
  %8440 = vmatmul.bf16.gmra.mxu0 %v7837
  %v8441 = vpop.f32.mrf.mxu0
  %v8442 = vadd.f32 0.0, %v8441
  %v8443 = vpop.f32.mrf.mxu0
  %v8444 = vadd.f32 0.0, %v8443
  %8445 = vmatmul.bf16.gmra.mxu0 %v7839
  %v8446 = vpop.f32.mrf.mxu0
  %v8447 = vadd.f32 0.0, %v8446
  %v8448 = vpop.f32.mrf.mxu0
  %v8449 = vadd.f32 0.0, %v8448
  %8450 = vmatmul.bf16.gmra.mxu0 %v7841
  %v8451 = vpop.f32.mrf.mxu0
  %v8452 = vadd.f32 0.0, %v8451
  %v8453 = vpop.f32.mrf.mxu0
  %v8454 = vadd.f32 0.0, %v8453
  %8455 = vmatmul.bf16.gmra.mxu0 %v7843
  %v8456 = vpop.f32.mrf.mxu0
  %v8457 = vadd.f32 0.0, %v8456
  %v8458 = vpop.f32.mrf.mxu0
  %v8459 = vadd.f32 0.0, %v8458
  %8460 = vmatmul.bf16.gmra.mxu0 %v7845
  %v8461 = vpop.f32.mrf.mxu0
  %v8462 = vadd.f32 0.0, %v8461
  %v8463 = vpop.f32.mrf.mxu0
  %v8464 = vadd.f32 0.0, %v8463
  %8465 = vmatmul.bf16.gmra.mxu0 %v7847
  %v8466 = vpop.f32.mrf.mxu0
  %v8467 = vadd.f32 0.0, %v8466
  %v8468 = vpop.f32.mrf.mxu0
  %v8469 = vadd.f32 0.0, %v8468
  %8470 = vdwg.mxu0
  %8471 = vmatpush.bf16.msra.mxu0 0
  %8472 = vmatpush.bf16.msra.mxu0 %v8412
  %8473 = vmatpush.bf16.msra.mxu0 %v8276
  %8474 = vmatpush.bf16.msra.mxu0 %v8269
  %8475 = vmatpush.bf16.msra.mxu0 %v8262
  %8476 = vmatpush.bf16.msra.mxu0 %v8255
  %8477 = vmatpush.bf16.msra.mxu0 %v8248
  %8478 = vmatpush.bf16.msra.mxu0 %v8241
  %8479 = vmatmul.bf16.gmra.mxu0 %v8390
  %v8480 = vpop.f32.mrf.mxu0
  %v8481 = vadd.f32 %v8442, %v8480
  %v8482 = vpop.f32.mrf.mxu0
  %v8483 = vadd.f32 %v8444, %v8482
  %8484 = vmatmul.bf16.gmra.mxu0 %v8393
  %v8485 = vpop.f32.mrf.mxu0
  %v8486 = vadd.f32 %v8447, %v8485
  %v8487 = vpop.f32.mrf.mxu0
  %v8488 = vadd.f32 %v8449, %v8487
  %8489 = vmatmul.bf16.gmra.mxu0 %v8396
  %v8490 = vpop.f32.mrf.mxu0
  %v8491 = vadd.f32 %v8452, %v8490
  %v8492 = vpop.f32.mrf.mxu0
  %v8493 = vadd.f32 %v8454, %v8492
  %8494 = vmatmul.bf16.gmra.mxu0 %v8399
  %v8495 = vpop.f32.mrf.mxu0
  %v8496 = vadd.f32 %v8457, %v8495
  %v8497 = vpop.f32.mrf.mxu0
  %v8498 = vadd.f32 %v8459, %v8497
  %8499 = vmatmul.bf16.gmra.mxu0 %v8402
  %v8500 = vpop.f32.mrf.mxu0
  %v8501 = vadd.f32 %v8462, %v8500
  %v8502 = vpop.f32.mrf.mxu0
  %v8503 = vadd.f32 %v8464, %v8502
  %8504 = vmatmul.bf16.gmra.mxu0 %v8405
  %v8505 = vpop.f32.mrf.mxu0
  %v8506 = vadd.f32 %v8467, %v8505
  %v8507 = vpop.f32.mrf.mxu0
  %v8508 = vadd.f32 %v8469, %v8507
  %8509 = vdwg.mxu0
  %8510 = vmatpush.bf16.msra.mxu0 %v8235
  %8511 = vmatpush.bf16.msra.mxu0 %v8228
  %8512 = vmatpush.bf16.msra.mxu0 %v8221
  %8513 = vmatpush.bf16.msra.mxu0 %v8214
  %8514 = vmatpush.bf16.msra.mxu0 %v8207
  %8515 = vmatpush.bf16.msra.mxu0 %v8200
  %8516 = vmatpush.bf16.msra.mxu0 %v8193
  %8517 = vmatpush.bf16.msra.mxu0 %v8186
  %8518 = vmatmul.bf16.gmra.mxu0 %v7837
  %v8519 = vpop.f32.mrf.mxu0
  %v8520 = vadd.f32 0.0, %v8519
  %v8521 = vpop.f32.mrf.mxu0
  %v8522 = vadd.f32 0.0, %v8521
  %8523 = vmatmul.bf16.gmra.mxu0 %v7839
  %v8524 = vpop.f32.mrf.mxu0
  %v8525 = vadd.f32 0.0, %v8524
  %v8526 = vpop.f32.mrf.mxu0
  %v8527 = vadd.f32 0.0, %v8526
  %8528 = vmatmul.bf16.gmra.mxu0 %v7841
  %v8529 = vpop.f32.mrf.mxu0
  %v8530 = vadd.f32 0.0, %v8529
  %v8531 = vpop.f32.mrf.mxu0
  %v8532 = vadd.f32 0.0, %v8531
  %8533 = vmatmul.bf16.gmra.mxu0 %v7843
  %v8534 = vpop.f32.mrf.mxu0
  %v8535 = vadd.f32 0.0, %v8534
  %v8536 = vpop.f32.mrf.mxu0
  %v8537 = vadd.f32 0.0, %v8536
  %8538 = vmatmul.bf16.gmra.mxu0 %v7845
  %v8539 = vpop.f32.mrf.mxu0
  %v8540 = vadd.f32 0.0, %v8539
  %v8541 = vpop.f32.mrf.mxu0
  %v8542 = vadd.f32 0.0, %v8541
  %8543 = vmatmul.bf16.gmra.mxu0 %v7847
  %v8544 = vpop.f32.mrf.mxu0
  %v8545 = vadd.f32 0.0, %v8544
  %v8546 = vpop.f32.mrf.mxu0
  %v8547 = vadd.f32 0.0, %v8546
  %8548 = vdwg.mxu0
  %8549 = vmatpush.bf16.msra.mxu0 0
  %8550 = vmatpush.bf16.msra.mxu0 %v8415
  %8551 = vmatpush.bf16.msra.mxu0 %v8277
  %8552 = vmatpush.bf16.msra.mxu0 %v8270
  %8553 = vmatpush.bf16.msra.mxu0 %v8263
  %8554 = vmatpush.bf16.msra.mxu0 %v8256
  %8555 = vmatpush.bf16.msra.mxu0 %v8249
  %8556 = vmatpush.bf16.msra.mxu0 %v8242
  %8557 = vmatmul.bf16.gmra.mxu0 %v8390
  %v8558 = vpop.f32.mrf.mxu0
  %v8559 = vadd.f32 %v8520, %v8558
  %v8560 = vpop.f32.mrf.mxu0
  %v8561 = vadd.f32 %v8522, %v8560
  %8562 = vmatmul.bf16.gmra.mxu0 %v8393
  %v8563 = vpop.f32.mrf.mxu0
  %v8564 = vadd.f32 %v8525, %v8563
  %v8565 = vpop.f32.mrf.mxu0
  %v8566 = vadd.f32 %v8527, %v8565
  %8567 = vmatmul.bf16.gmra.mxu0 %v8396
  %v8568 = vpop.f32.mrf.mxu0
  %v8569 = vadd.f32 %v8530, %v8568
  %v8570 = vpop.f32.mrf.mxu0
  %v8571 = vadd.f32 %v8532, %v8570
  %8572 = vmatmul.bf16.gmra.mxu0 %v8399
  %v8573 = vpop.f32.mrf.mxu0
  %v8574 = vadd.f32 %v8535, %v8573
  %v8575 = vpop.f32.mrf.mxu0
  %v8576 = vadd.f32 %v8537, %v8575
  %8577 = vmatmul.bf16.gmra.mxu0 %v8402
  %v8578 = vpop.f32.mrf.mxu0
  %v8579 = vadd.f32 %v8540, %v8578
  %v8580 = vpop.f32.mrf.mxu0
  %v8581 = vadd.f32 %v8542, %v8580
  %8582 = vmatmul.bf16.gmra.mxu0 %v8405
  %v8583 = vpop.f32.mrf.mxu0
  %v8584 = vadd.f32 %v8545, %v8583
  %v8585 = vpop.f32.mrf.mxu0
  %v8586 = vadd.f32 %v8547, %v8585
  %8587 = vdwg.mxu0
  %8588 = vmatpush.bf16.msra.mxu0 %v8236
  %8589 = vmatpush.bf16.msra.mxu0 %v8229
  %8590 = vmatpush.bf16.msra.mxu0 %v8222
  %8591 = vmatpush.bf16.msra.mxu0 %v8215
  %8592 = vmatpush.bf16.msra.mxu0 %v8208
  %8593 = vmatpush.bf16.msra.mxu0 %v8201
  %8594 = vmatpush.bf16.msra.mxu0 %v8194
  %8595 = vmatpush.bf16.msra.mxu0 %v8187
  %8596 = vmatmul.bf16.gmra.mxu0 %v7837
  %v8597 = vpop.f32.mrf.mxu0
  %v8598 = vadd.f32 0.0, %v8597
  %v8599 = vpop.f32.mrf.mxu0
  %v8600 = vadd.f32 0.0, %v8599
  %8601 = vmatmul.bf16.gmra.mxu0 %v7839
  %v8602 = vpop.f32.mrf.mxu0
  %v8603 = vadd.f32 0.0, %v8602
  %v8604 = vpop.f32.mrf.mxu0
  %v8605 = vadd.f32 0.0, %v8604
  %8606 = vmatmul.bf16.gmra.mxu0 %v7841
  %v8607 = vpop.f32.mrf.mxu0
  %v8608 = vadd.f32 0.0, %v8607
  %v8609 = vpop.f32.mrf.mxu0
  %v8610 = vadd.f32 0.0, %v8609
  %8611 = vmatmul.bf16.gmra.mxu0 %v7843
  %v8612 = vpop.f32.mrf.mxu0
  %v8613 = vadd.f32 0.0, %v8612
  %v8614 = vpop.f32.mrf.mxu0
  %v8615 = vadd.f32 0.0, %v8614
  %8616 = vmatmul.bf16.gmra.mxu0 %v7845
  %v8617 = vpop.f32.mrf.mxu0
  %v8618 = vadd.f32 0.0, %v8617
  %v8619 = vpop.f32.mrf.mxu0
  %v8620 = vadd.f32 0.0, %v8619
  %8621 = vmatmul.bf16.gmra.mxu0 %v7847
  %v8622 = vpop.f32.mrf.mxu0
  %v8623 = vadd.f32 0.0, %v8622
  %v8624 = vpop.f32.mrf.mxu0
  %v8625 = vadd.f32 0.0, %v8624
  %8626 = vdwg.mxu0
  %8627 = vmatpush.bf16.msra.mxu0 0
  %8628 = vmatpush.bf16.msra.mxu0 %v8418
  %8629 = vmatpush.bf16.msra.mxu0 %v8278
  %8630 = vmatpush.bf16.msra.mxu0 %v8271
  %8631 = vmatpush.bf16.msra.mxu0 %v8264
  %8632 = vmatpush.bf16.msra.mxu0 %v8257
  %8633 = vmatpush.bf16.msra.mxu0 %v8250
  %8634 = vmatpush.bf16.msra.mxu0 %v8243
  %8635 = vmatmul.bf16.gmra.mxu0 %v8390
  %v8636 = vpop.f32.mrf.mxu0
  %v8637 = vadd.f32 %v8598, %v8636
  %v8638 = vpop.f32.mrf.mxu0
  %v8639 = vadd.f32 %v8600, %v8638
  %8640 = vmatmul.bf16.gmra.mxu0 %v8393
  %v8641 = vpop.f32.mrf.mxu0
  %v8642 = vadd.f32 %v8603, %v8641
  %v8643 = vpop.f32.mrf.mxu0
  %v8644 = vadd.f32 %v8605, %v8643
  %8645 = vmatmul.bf16.gmra.mxu0 %v8396
  %v8646 = vpop.f32.mrf.mxu0
  %v8647 = vadd.f32 %v8608, %v8646
  %v8648 = vpop.f32.mrf.mxu0
  %v8649 = vadd.f32 %v8610, %v8648
  %8650 = vmatmul.bf16.gmra.mxu0 %v8399
  %v8651 = vpop.f32.mrf.mxu0
  %v8652 = vadd.f32 %v8613, %v8651
  %v8653 = vpop.f32.mrf.mxu0
  %v8654 = vadd.f32 %v8615, %v8653
  %8655 = vmatmul.bf16.gmra.mxu0 %v8402
  %v8656 = vpop.f32.mrf.mxu0
  %v8657 = vadd.f32 %v8618, %v8656
  %v8658 = vpop.f32.mrf.mxu0
  %v8659 = vadd.f32 %v8620, %v8658
  %8660 = vmatmul.bf16.gmra.mxu0 %v8405
  %v8661 = vpop.f32.mrf.mxu0
  %v8662 = vadd.f32 %v8623, %v8661
  %v8663 = vpop.f32.mrf.mxu0
  %v8664 = vadd.f32 %v8625, %v8663
  %8665 = vdwg.mxu0
  %8666 = vmatpush.bf16.msra.mxu0 %v8237
  %8667 = vmatpush.bf16.msra.mxu0 %v8230
  %8668 = vmatpush.bf16.msra.mxu0 %v8223
  %8669 = vmatpush.bf16.msra.mxu0 %v8216
  %8670 = vmatpush.bf16.msra.mxu0 %v8209
  %8671 = vmatpush.bf16.msra.mxu0 %v8202
  %8672 = vmatpush.bf16.msra.mxu0 %v8195
  %8673 = vmatpush.bf16.msra.mxu0 %v8188
  %8674 = vmatmul.bf16.gmra.mxu0 %v7837
  %v8675 = vpop.f32.mrf.mxu0
  %v8676 = vadd.f32 0.0, %v8675
  %v8677 = vpop.f32.mrf.mxu0
  %v8678 = vadd.f32 0.0, %v8677
  %8679 = vmatmul.bf16.gmra.mxu0 %v7839
  %v8680 = vpop.f32.mrf.mxu0
  %v8681 = vadd.f32 0.0, %v8680
  %v8682 = vpop.f32.mrf.mxu0
  %v8683 = vadd.f32 0.0, %v8682
  %8684 = vmatmul.bf16.gmra.mxu0 %v7841
  %v8685 = vpop.f32.mrf.mxu0
  %v8686 = vadd.f32 0.0, %v8685
  %v8687 = vpop.f32.mrf.mxu0
  %v8688 = vadd.f32 0.0, %v8687
  %8689 = vmatmul.bf16.gmra.mxu0 %v7843
  %v8690 = vpop.f32.mrf.mxu0
  %v8691 = vadd.f32 0.0, %v8690
  %v8692 = vpop.f32.mrf.mxu0
  %v8693 = vadd.f32 0.0, %v8692
  %8694 = vmatmul.bf16.gmra.mxu0 %v7845
  %v8695 = vpop.f32.mrf.mxu0
  %v8696 = vadd.f32 0.0, %v8695
  %v8697 = vpop.f32.mrf.mxu0
  %v8698 = vadd.f32 0.0, %v8697
  %8699 = vmatmul.bf16.gmra.mxu0 %v7847
  %v8700 = vpop.f32.mrf.mxu0
  %v8701 = vadd.f32 0.0, %v8700
  %v8702 = vpop.f32.mrf.mxu0
  %v8703 = vadd.f32 0.0, %v8702
  %8704 = vdwg.mxu0
  %8705 = vmatpush.bf16.msra.mxu0 0
  %8706 = vmatpush.bf16.msra.mxu0 %v8421
  %8707 = vmatpush.bf16.msra.mxu0 %v8279
  %8708 = vmatpush.bf16.msra.mxu0 %v8272
  %8709 = vmatpush.bf16.msra.mxu0 %v8265
  %8710 = vmatpush.bf16.msra.mxu0 %v8258
  %8711 = vmatpush.bf16.msra.mxu0 %v8251
  %8712 = vmatpush.bf16.msra.mxu0 %v8244
  %8713 = vmatmul.bf16.gmra.mxu0 %v8390
  %v8714 = vpop.f32.mrf.mxu0
  %v8715 = vadd.f32 %v8676, %v8714
  %v8716 = vpop.f32.mrf.mxu0
  %v8717 = vadd.f32 %v8678, %v8716
  %8718 = vmatmul.bf16.gmra.mxu0 %v8393
  %v8719 = vpop.f32.mrf.mxu0
  %v8720 = vadd.f32 %v8681, %v8719
  %v8721 = vpop.f32.mrf.mxu0
  %v8722 = vadd.f32 %v8683, %v8721
  %8723 = vmatmul.bf16.gmra.mxu0 %v8396
  %v8724 = vpop.f32.mrf.mxu0
  %v8725 = vadd.f32 %v8686, %v8724
  %v8726 = vpop.f32.mrf.mxu0
  %v8727 = vadd.f32 %v8688, %v8726
  %8728 = vmatmul.bf16.gmra.mxu0 %v8399
  %v8729 = vpop.f32.mrf.mxu0
  %v8730 = vadd.f32 %v8691, %v8729
  %v8731 = vpop.f32.mrf.mxu0
  %v8732 = vadd.f32 %v8693, %v8731
  %8733 = vmatmul.bf16.gmra.mxu0 %v8402
  %v8734 = vpop.f32.mrf.mxu0
  %v8735 = vadd.f32 %v8696, %v8734
  %v8736 = vpop.f32.mrf.mxu0
  %v8737 = vadd.f32 %v8698, %v8736
  %8738 = vmatmul.bf16.gmra.mxu0 %v8405
  %v8739 = vpop.f32.mrf.mxu0
  %v8740 = vadd.f32 %v8701, %v8739
  %v8741 = vpop.f32.mrf.mxu0
  %v8742 = vadd.f32 %v8703, %v8741
  %8743 = vdwg.mxu0
  %8744 = vmatpush.bf16.msra.mxu0 %v8238
  %8745 = vmatpush.bf16.msra.mxu0 %v8231
  %8746 = vmatpush.bf16.msra.mxu0 %v8224
  %8747 = vmatpush.bf16.msra.mxu0 %v8217
  %8748 = vmatpush.bf16.msra.mxu0 %v8210
  %8749 = vmatpush.bf16.msra.mxu0 %v8203
  %8750 = vmatpush.bf16.msra.mxu0 %v8196
  %8751 = vmatpush.bf16.msra.mxu0 %v8189
  %8752 = vmatmul.bf16.gmra.mxu0 %v7837
  %v8753 = vpop.f32.mrf.mxu0
  %v8754 = vadd.f32 0.0, %v8753
  %v8755 = vpop.f32.mrf.mxu0
  %v8756 = vadd.f32 0.0, %v8755
  %8757 = vmatmul.bf16.gmra.mxu0 %v7839
  %v8758 = vpop.f32.mrf.mxu0
  %v8759 = vadd.f32 0.0, %v8758
  %v8760 = vpop.f32.mrf.mxu0
  %v8761 = vadd.f32 0.0, %v8760
  %8762 = vmatmul.bf16.gmra.mxu0 %v7841
  %v8763 = vpop.f32.mrf.mxu0
  %v8764 = vadd.f32 0.0, %v8763
  %v8765 = vpop.f32.mrf.mxu0
  %v8766 = vadd.f32 0.0, %v8765
  %8767 = vmatmul.bf16.gmra.mxu0 %v7843
  %v8768 = vpop.f32.mrf.mxu0
  %v8769 = vadd.f32 0.0, %v8768
  %v8770 = vpop.f32.mrf.mxu0
  %v8771 = vadd.f32 0.0, %v8770
  %8772 = vmatmul.bf16.gmra.mxu0 %v7845
  %v8773 = vpop.f32.mrf.mxu0
  %v8774 = vadd.f32 0.0, %v8773
  %v8775 = vpop.f32.mrf.mxu0
  %v8776 = vadd.f32 0.0, %v8775
  %8777 = vmatmul.bf16.gmra.mxu0 %v7847
  %v8778 = vpop.f32.mrf.mxu0
  %v8779 = vadd.f32 0.0, %v8778
  %v8780 = vpop.f32.mrf.mxu0
  %v8781 = vadd.f32 0.0, %v8780
  %8782 = vdwg.mxu0
  %8783 = vmatpush.bf16.msra.mxu0 0
  %8784 = vmatpush.bf16.msra.mxu0 %v8424
  %8785 = vmatpush.bf16.msra.mxu0 %v8280
  %8786 = vmatpush.bf16.msra.mxu0 %v8273
  %8787 = vmatpush.bf16.msra.mxu0 %v8266
  %8788 = vmatpush.bf16.msra.mxu0 %v8259
  %8789 = vmatpush.bf16.msra.mxu0 %v8252
  %8790 = vmatpush.bf16.msra.mxu0 %v8245
  %8791 = vmatmul.bf16.gmra.mxu0 %v8390
  %v8792 = vpop.f32.mrf.mxu0
  %v8793 = vadd.f32 %v8754, %v8792
  %v8794 = vpop.f32.mrf.mxu0
  %v8795 = vadd.f32 %v8756, %v8794
  %8796 = vmatmul.bf16.gmra.mxu0 %v8393
  %v8797 = vpop.f32.mrf.mxu0
  %v8798 = vadd.f32 %v8759, %v8797
  %v8799 = vpop.f32.mrf.mxu0
  %v8800 = vadd.f32 %v8761, %v8799
  %8801 = vmatmul.bf16.gmra.mxu0 %v8396
  %v8802 = vpop.f32.mrf.mxu0
  %v8803 = vadd.f32 %v8764, %v8802
  %v8804 = vpop.f32.mrf.mxu0
  %v8805 = vadd.f32 %v8766, %v8804
  %8806 = vmatmul.bf16.gmra.mxu0 %v8399
  %v8807 = vpop.f32.mrf.mxu0
  %v8808 = vadd.f32 %v8769, %v8807
  %v8809 = vpop.f32.mrf.mxu0
  %v8810 = vadd.f32 %v8771, %v8809
  %8811 = vmatmul.bf16.gmra.mxu0 %v8402
  %v8812 = vpop.f32.mrf.mxu0
  %v8813 = vadd.f32 %v8774, %v8812
  %v8814 = vpop.f32.mrf.mxu0
  %v8815 = vadd.f32 %v8776, %v8814
  %8816 = vmatmul.bf16.gmra.mxu0 %v8405
  %v8817 = vpop.f32.mrf.mxu0
  %v8818 = vadd.f32 %v8779, %v8817
  %v8819 = vpop.f32.mrf.mxu0
  %v8820 = vadd.f32 %v8781, %v8819
  %8821 = vdwg.mxu0
  %8822 = vmatpush.bf16.msra.mxu0 %v8239
  %8823 = vmatpush.bf16.msra.mxu0 %v8232
  %8824 = vmatpush.bf16.msra.mxu0 %v8225
  %8825 = vmatpush.bf16.msra.mxu0 %v8218
  %8826 = vmatpush.bf16.msra.mxu0 %v8211
  %8827 = vmatpush.bf16.msra.mxu0 %v8204
  %8828 = vmatpush.bf16.msra.mxu0 %v8197
  %8829 = vmatpush.bf16.msra.mxu0 %v8190
  %8830 = vmatmul.bf16.gmra.mxu0 %v7837
  %v8831 = vpop.f32.mrf.mxu0
  %v8832 = vadd.f32 0.0, %v8831
  %v8833 = vpop.f32.mrf.mxu0
  %v8834 = vadd.f32 0.0, %v8833
  %8835 = vmatmul.bf16.gmra.mxu0 %v7839
  %v8836 = vpop.f32.mrf.mxu0
  %v8837 = vadd.f32 0.0, %v8836
  %v8838 = vpop.f32.mrf.mxu0
  %v8839 = vadd.f32 0.0, %v8838
  %8840 = vmatmul.bf16.gmra.mxu0 %v7841
  %v8841 = vpop.f32.mrf.mxu0
  %v8842 = vadd.f32 0.0, %v8841
  %v8843 = vpop.f32.mrf.mxu0
  %v8844 = vadd.f32 0.0, %v8843
  %8845 = vmatmul.bf16.gmra.mxu0 %v7843
  %v8846 = vpop.f32.mrf.mxu0
  %v8847 = vadd.f32 0.0, %v8846
  %v8848 = vpop.f32.mrf.mxu0
  %v8849 = vadd.f32 0.0, %v8848
  %8850 = vmatmul.bf16.gmra.mxu0 %v7845
  %v8851 = vpop.f32.mrf.mxu0
  %v8852 = vadd.f32 0.0, %v8851
  %v8853 = vpop.f32.mrf.mxu0
  %v8854 = vadd.f32 0.0, %v8853
  %8855 = vmatmul.bf16.gmra.mxu0 %v7847
  %v8856 = vpop.f32.mrf.mxu0
  %v8857 = vadd.f32 0.0, %v8856
  %v8858 = vpop.f32.mrf.mxu0
  %v8859 = vadd.f32 0.0, %v8858
  %8860 = vdwg.mxu0
  %8861 = vmatpush.bf16.msra.mxu0 0
  %8862 = vmatpush.bf16.msra.mxu0 %v8427
  %8863 = vmatpush.bf16.msra.mxu0 %v8281
  %8864 = vmatpush.bf16.msra.mxu0 %v8274
  %8865 = vmatpush.bf16.msra.mxu0 %v8267
  %8866 = vmatpush.bf16.msra.mxu0 %v8260
  %8867 = vmatpush.bf16.msra.mxu0 %v8253
  %8868 = vmatpush.bf16.msra.mxu0 %v8246
  %8869 = vmatmul.bf16.gmra.mxu0 %v8390
  %v8870 = vpop.f32.mrf.mxu0
  %v8871 = vadd.f32 %v8832, %v8870
  %v8872 = vpop.f32.mrf.mxu0
  %v8873 = vadd.f32 %v8834, %v8872
  %8874 = vmatmul.bf16.gmra.mxu0 %v8393
  %v8875 = vpop.f32.mrf.mxu0
  %v8876 = vadd.f32 %v8837, %v8875
  %v8877 = vpop.f32.mrf.mxu0
  %v8878 = vadd.f32 %v8839, %v8877
  %8879 = vmatmul.bf16.gmra.mxu0 %v8396
  %v8880 = vpop.f32.mrf.mxu0
  %v8881 = vadd.f32 %v8842, %v8880
  %v8882 = vpop.f32.mrf.mxu0
  %v8883 = vadd.f32 %v8844, %v8882
  %8884 = vmatmul.bf16.gmra.mxu0 %v8399
  %v8885 = vpop.f32.mrf.mxu0
  %v8886 = vadd.f32 %v8847, %v8885
  %v8887 = vpop.f32.mrf.mxu0
  %v8888 = vadd.f32 %v8849, %v8887
  %8889 = vmatmul.bf16.gmra.mxu0 %v8402
  %v8890 = vpop.f32.mrf.mxu0
  %v8891 = vadd.f32 %v8852, %v8890
  %v8892 = vpop.f32.mrf.mxu0
  %v8893 = vadd.f32 %v8854, %v8892
  %8894 = vmatmul.bf16.gmra.mxu0 %v8405
  %v8895 = vpop.f32.mrf.mxu0
  %v8896 = vadd.f32 %v8857, %v8895
  %v8897 = vpop.f32.mrf.mxu0
  %v8898 = vadd.f32 %v8859, %v8897
  %8899 = vdwg.mxu0
  %8900 = vmatpush.bf16.msra.mxu0 %v8240
  %8901 = vmatpush.bf16.msra.mxu0 %v8233
  %8902 = vmatpush.bf16.msra.mxu0 %v8226
  %8903 = vmatpush.bf16.msra.mxu0 %v8219
  %8904 = vmatpush.bf16.msra.mxu0 %v8212
  %8905 = vmatpush.bf16.msra.mxu0 %v8205
  %8906 = vmatpush.bf16.msra.mxu0 %v8198
  %8907 = vmatpush.bf16.msra.mxu0 %v8191
  %8908 = vmatmul.bf16.gmra.mxu0 %v7837
  %v8909 = vpop.f32.mrf.mxu0
  %v8910 = vadd.f32 0.0, %v8909
  %v8911 = vpop.f32.mrf.mxu0
  %v8912 = vadd.f32 0.0, %v8911
  %8913 = vmatmul.bf16.gmra.mxu0 %v7839
  %v8914 = vpop.f32.mrf.mxu0
  %v8915 = vadd.f32 0.0, %v8914
  %v8916 = vpop.f32.mrf.mxu0
  %v8917 = vadd.f32 0.0, %v8916
  %8918 = vmatmul.bf16.gmra.mxu0 %v7841
  %v8919 = vpop.f32.mrf.mxu0
  %v8920 = vadd.f32 0.0, %v8919
  %v8921 = vpop.f32.mrf.mxu0
  %v8922 = vadd.f32 0.0, %v8921
  %8923 = vmatmul.bf16.gmra.mxu0 %v7843
  %v8924 = vpop.f32.mrf.mxu0
  %v8925 = vadd.f32 0.0, %v8924
  %v8926 = vpop.f32.mrf.mxu0
  %v8927 = vadd.f32 0.0, %v8926
  %8928 = vmatmul.bf16.gmra.mxu0 %v7845
  %v8929 = vpop.f32.mrf.mxu0
  %v8930 = vadd.f32 0.0, %v8929
  %v8931 = vpop.f32.mrf.mxu0
  %v8932 = vadd.f32 0.0, %v8931
  %8933 = vmatmul.bf16.gmra.mxu0 %v7847
  %v8934 = vpop.f32.mrf.mxu0
  %v8935 = vadd.f32 0.0, %v8934
  %v8936 = vpop.f32.mrf.mxu0
  %v8937 = vadd.f32 0.0, %v8936
  %8938 = vdwg.mxu0
  %8939 = vmatpush.bf16.msra.mxu0 0
  %8940 = vmatpush.bf16.msra.mxu0 %v8430
  %8941 = vmatpush.bf16.msra.mxu0 %v8282
  %8942 = vmatpush.bf16.msra.mxu0 %v8275
  %8943 = vmatpush.bf16.msra.mxu0 %v8268
  %8944 = vmatpush.bf16.msra.mxu0 %v8261
  %8945 = vmatpush.bf16.msra.mxu0 %v8254
  %8946 = vmatpush.bf16.msra.mxu0 %v8247
  %8947 = vmatmul.bf16.gmra.mxu0 %v8390
  %v8948 = vpop.f32.mrf.mxu0
  %v8949 = vadd.f32 %v8910, %v8948
  %v8950 = vpop.f32.mrf.mxu0
  %v8951 = vadd.f32 %v8912, %v8950
  %8952 = vmatmul.bf16.gmra.mxu0 %v8393
  %v8953 = vpop.f32.mrf.mxu0
  %v8954 = vadd.f32 %v8915, %v8953
  %v8955 = vpop.f32.mrf.mxu0
  %v8956 = vadd.f32 %v8917, %v8955
  %8957 = vmatmul.bf16.gmra.mxu0 %v8396
  %v8958 = vpop.f32.mrf.mxu0
  %v8959 = vadd.f32 %v8920, %v8958
  %v8960 = vpop.f32.mrf.mxu0
  %v8961 = vadd.f32 %v8922, %v8960
  %8962 = vmatmul.bf16.gmra.mxu0 %v8399
  %v8963 = vpop.f32.mrf.mxu0
  %v8964 = vadd.f32 %v8925, %v8963
  %v8965 = vpop.f32.mrf.mxu0
  %v8966 = vadd.f32 %v8927, %v8965
  %8967 = vmatmul.bf16.gmra.mxu0 %v8402
  %v8968 = vpop.f32.mrf.mxu0
  %v8969 = vadd.f32 %v8930, %v8968
  %v8970 = vpop.f32.mrf.mxu0
  %v8971 = vadd.f32 %v8932, %v8970
  %8972 = vmatmul.bf16.gmra.mxu0 %v8405
  %v8973 = vpop.f32.mrf.mxu0
  %v8974 = vadd.f32 %v8935, %v8973
  %v8975 = vpop.f32.mrf.mxu0
  %v8976 = vadd.f32 %v8937, %v8975
  %8977 = vdwg.mxu0
  %v9062 = vrot.slane %v8559, 4
  %v9063 = vrot.slane %v8715, 4
  %v9064 = vrot.slane %v8871, 4
  %v9065 = vrot.slane %v8561, 4
  %v9066 = vrot.slane %v8717, 4
  %v9067 = vrot.slane %v8873, 4
  %v9068 = vrot.slane %v8564, 4
  %v9069 = vrot.slane %v8720, 4
  %v9070 = vrot.slane %v8876, 4
  %v9071 = vrot.slane %v8566, 4
  %v9072 = vrot.slane %v8722, 4
  %v9073 = vrot.slane %v8878, 4
  %v9074 = vrot.slane %v8569, 4
  %v9075 = vrot.slane %v8725, 4
  %v9076 = vrot.slane %v8881, 4
  %v9077 = vrot.slane %v8571, 4
  %v9078 = vrot.slane %v8727, 4
  %v9079 = vrot.slane %v8883, 4
  %v9080 = vrot.slane %v8574, 4
  %v9081 = vrot.slane %v8730, 4
  %v9082 = vrot.slane %v8886, 4
  %v9083 = vrot.slane %v8576, 4
  %v9084 = vrot.slane %v8732, 4
  %v9085 = vrot.slane %v8888, 4
  %v9086 = vrot.slane %v8579, 4
  %v9087 = vrot.slane %v8735, 4
  %v9088 = vrot.slane %v8891, 4
  %v9089 = vrot.slane %v8581, 4
  %v9090 = vrot.slane %v8737, 4
  %v9091 = vrot.slane %v8893, 4
  %v9092 = vrot.slane %v8584, 4
  %v9093 = vrot.slane %v8740, 4
  %v9094 = vrot.slane %v8896, 4
  %v9095 = vrot.slane %v8586, 4
  %v9096 = vrot.slane %v8742, 4
  %v9097 = vrot.slane %v8898, 4
  %v9098 = vsel %vm1469, %v8481, %v9062
  %v9099 = vsel %vm1469, %v8637, %v9063
  %v9100 = vsel %vm1469, %v8793, %v9064
  %v9101 = vsel %vm1469, %v9062, %v8481
  %v9102 = vrot.slane %v9101, 4
  %v9103 = vsel %vm1469, %v9063, %v8637
  %v9104 = vrot.slane %v9103, 4
  %v9105 = vsel %vm1469, %v9064, %v8793
  %v9106 = vrot.slane %v9105, 4
  %v9107 = vrot.slane %v8949, 4
  %v9108 = vsel %vm1469, %v8483, %v9065
  %v9109 = vsel %vm1469, %v8639, %v9066
  %v9110 = vsel %vm1469, %v8795, %v9067
  %v9111 = vsel %vm1469, %v9065, %v8483
  %v9112 = vrot.slane %v9111, 4
  %v9113 = vsel %vm1469, %v9066, %v8639
  %v9114 = vrot.slane %v9113, 4
  %v9115 = vsel %vm1469, %v9067, %v8795
  %v9116 = vrot.slane %v9115, 4
  %v9117 = vsel %vm1469, %v8486, %v9068
  %v9118 = vsel %vm1469, %v8642, %v9069
  %v9119 = vsel %vm1469, %v8798, %v9070
  %v9120 = vsel %vm1469, %v9068, %v8486
  %v9121 = vrot.slane %v9120, 4
  %v9122 = vsel %vm1469, %v9069, %v8642
  %v9123 = vrot.slane %v9122, 4
  %v9124 = vsel %vm1469, %v9070, %v8798
  %v9125 = vrot.slane %v9124, 4
  %v9126 = vrot.slane %v8954, 4
  %v9127 = vsel %vm1469, %v8488, %v9071
  %v9128 = vsel %vm1469, %v8644, %v9072
  %v9129 = vsel %vm1469, %v8800, %v9073
  %v9130 = vsel %vm1469, %v9071, %v8488
  %v9131 = vrot.slane %v9130, 4
  %v9132 = vsel %vm1469, %v9072, %v8644
  %v9133 = vrot.slane %v9132, 4
  %v9134 = vsel %vm1469, %v9073, %v8800
  %v9135 = vrot.slane %v9134, 4
  %v9136 = vrot.slane %v8956, 4
  %v9137 = vsel %vm1469, %v8491, %v9074
  %v9138 = vsel %vm1469, %v8647, %v9075
  %v9139 = vsel %vm1469, %v8803, %v9076
  %v9140 = vsel %vm1469, %v9074, %v8491
  %v9141 = vrot.slane %v9140, 4
  %v9142 = vsel %vm1469, %v9075, %v8647
  %v9143 = vrot.slane %v9142, 4
  %v9144 = vsel %vm1469, %v9076, %v8803
  %v9145 = vrot.slane %v9144, 4
  %v9146 = vsel %vm1469, %v8493, %v9077
  %v9147 = vsel %vm1469, %v8649, %v9078
  %v9148 = vsel %vm1469, %v8805, %v9079
  %v9149 = vsel %vm1469, %v9077, %v8493
  %v9150 = vrot.slane %v9149, 4
  %v9151 = vsel %vm1469, %v9078, %v8649
  %v9152 = vrot.slane %v9151, 4
  %v9153 = vsel %vm1469, %v9079, %v8805
  %v9154 = vrot.slane %v9153, 4
  %v9155 = vrot.slane %v8961, 4
  %v9156 = vsel %vm1469, %v8496, %v9080
  %v9157 = vsel %vm1469, %v8652, %v9081
  %v9158 = vsel %vm1469, %v8808, %v9082
  %v9159 = vsel %vm1469, %v9080, %v8496
  %v9160 = vrot.slane %v9159, 4
  %v9161 = vsel %vm1469, %v9081, %v8652
  %v9162 = vrot.slane %v9161, 4
  %v9163 = vsel %vm1469, %v9082, %v8808
  %v9164 = vrot.slane %v9163, 4
  %v9165 = vrot.slane %v8964, 4
  %v9166 = vsel %vm1469, %v8498, %v9083
  %v9167 = vsel %vm1469, %v8654, %v9084
  %v9168 = vsel %vm1469, %v8810, %v9085
  %v9169 = vsel %vm1469, %v9083, %v8498
  %v9170 = vrot.slane %v9169, 4
  %v9171 = vsel %vm1469, %v9084, %v8654
  %v9172 = vrot.slane %v9171, 4
  %v9173 = vsel %vm1469, %v9085, %v8810
  %v9174 = vrot.slane %v9173, 4
  %v9175 = vsel %vm1469, %v8501, %v9086
  %v9176 = vsel %vm1469, %v8657, %v9087
  %v9177 = vsel %vm1469, %v8813, %v9088
  %v9178 = vsel %vm1469, %v9086, %v8501
  %v9179 = vrot.slane %v9178, 4
  %v9180 = vsel %vm1469, %v9087, %v8657
  %v9181 = vrot.slane %v9180, 4
  %v9182 = vsel %vm1469, %v9088, %v8813
  %v9183 = vrot.slane %v9182, 4
  %v9184 = vrot.slane %v8969, 4
  %v9185 = vsel %vm1469, %v8503, %v9089
  %v9186 = vsel %vm1469, %v8659, %v9090
  %v9187 = vsel %vm1469, %v8815, %v9091
  %v9188 = vsel %vm1469, %v9089, %v8503
  %v9189 = vrot.slane %v9188, 4
  %v9190 = vsel %vm1469, %v9090, %v8659
  %v9191 = vrot.slane %v9190, 4
  %v9192 = vsel %vm1469, %v9091, %v8815
  %v9193 = vrot.slane %v9192, 4
  %v9194 = vrot.slane %v8971, 4
  %v9195 = vsel %vm1469, %v8506, %v9092
  %v9196 = vsel %vm1469, %v8662, %v9093
  %v9197 = vsel %vm1469, %v8818, %v9094
  %v9198 = vsel %vm1469, %v9092, %v8506
  %v9199 = vrot.slane %v9198, 4
  %v9200 = vsel %vm1469, %v9093, %v8662
  %v9201 = vrot.slane %v9200, 4
  %v9202 = vsel %vm1469, %v9094, %v8818
  %v9203 = vrot.slane %v9202, 4
  %v9204 = vsel %vm1469, %v8508, %v9095
  %v9205 = vsel %vm1469, %v8664, %v9096
  %v9206 = vsel %vm1469, %v8820, %v9097
  %v9207 = vsel %vm1469, %v9095, %v8508
  %v9208 = vrot.slane %v9207, 4
  %v9209 = vsel %vm1469, %v9096, %v8664
  %v9210 = vrot.slane %v9209, 4
  %v9211 = vsel %vm1469, %v9097, %v8820
  %v9212 = vrot.slane %v9211, 4
  %v9213 = vrot.slane %v8976, 4
  %v9230 = vrot.slane %v9098, 5
  %v9231 = vrot.slane %v9230, 4
  %v9232 = vrot.slane %v9102, 5
  %v9233 = vsel %vm1928, %v9231, %v9232
  %v9234 = vrot.slane %v9099, 5
  %v9235 = vrot.slane %v9234, 4
  %v9236 = vrot.slane %v9104, 5
  %v9237 = vsel %vm1928, %v9235, %v9236
  %v9238 = vrot.slane %v9232, 4
  %v9239 = vrot.slane %v9108, 5
  %v9240 = vsel %vm1928, %v9238, %v9239
  %v9241 = vrot.slane %v9236, 4
  %v9242 = vrot.slane %v9109, 5
  %v9243 = vsel %vm1928, %v9241, %v9242
  %v9244 = vrot.slane %v9112, 5
  %v9245 = vrot.slane %v9244, 4
  %v9246 = vrot.slane %v9117, 5
  %v9247 = vsel %vm1928, %v9245, %v9246
  %v9248 = vrot.slane %v9114, 5
  %v9249 = vrot.slane %v9248, 4
  %v9250 = vrot.slane %v9118, 5
  %v9251 = vsel %vm1928, %v9249, %v9250
  %v9252 = vrot.slane %v9246, 4
  %v9253 = vrot.slane %v9121, 5
  %v9254 = vsel %vm1928, %v9252, %v9253
  %v9255 = vrot.slane %v9250, 4
  %v9256 = vrot.slane %v9123, 5
  %v9257 = vsel %vm1928, %v9255, %v9256
  %v9258 = vrot.slane %v9127, 5
  %v9259 = vrot.slane %v9258, 4
  %v9260 = vrot.slane %v9131, 5
  %v9261 = vsel %vm1928, %v9259, %v9260
  %v9262 = vrot.slane %v9128, 5
  %v9263 = vrot.slane %v9262, 4
  %v9264 = vrot.slane %v9133, 5
  %v9265 = vsel %vm1928, %v9263, %v9264
  %v9266 = vrot.slane %v9260, 4
  %v9267 = vrot.slane %v9137, 5
  %v9268 = vsel %vm1928, %v9266, %v9267
  %v9269 = vrot.slane %v9264, 4
  %v9270 = vrot.slane %v9138, 5
  %v9271 = vsel %vm1928, %v9269, %v9270
  %v9272 = vrot.slane %v9141, 5
  %v9273 = vrot.slane %v9272, 4
  %v9274 = vrot.slane %v9146, 5
  %v9275 = vsel %vm1928, %v9273, %v9274
  %v9276 = vrot.slane %v9143, 5
  %v9277 = vrot.slane %v9276, 4
  %v9278 = vrot.slane %v9147, 5
  %v9279 = vsel %vm1928, %v9277, %v9278
  %v9280 = vrot.slane %v9274, 4
  %v9281 = vrot.slane %v9150, 5
  %v9282 = vsel %vm1928, %v9280, %v9281
  %v9283 = vrot.slane %v9278, 4
  %v9284 = vrot.slane %v9152, 5
  %v9285 = vsel %vm1928, %v9283, %v9284
  %v9286 = vrot.slane %v9156, 5
  %v9287 = vrot.slane %v9286, 4
  %v9288 = vrot.slane %v9160, 5
  %v9289 = vsel %vm1928, %v9287, %v9288
  %v9290 = vrot.slane %v9157, 5
  %v9291 = vrot.slane %v9290, 4
  %v9292 = vrot.slane %v9162, 5
  %v9293 = vsel %vm1928, %v9291, %v9292
  %v9294 = vrot.slane %v9288, 4
  %v9295 = vrot.slane %v9166, 5
  %v9296 = vsel %vm1928, %v9294, %v9295
  %v9297 = vrot.slane %v9292, 4
  %v9298 = vrot.slane %v9167, 5
  %v9299 = vsel %vm1928, %v9297, %v9298
  %v9300 = vrot.slane %v9170, 5
  %v9301 = vrot.slane %v9300, 4
  %v9302 = vrot.slane %v9175, 5
  %v9303 = vsel %vm1928, %v9301, %v9302
  %v9304 = vrot.slane %v9172, 5
  %v9305 = vrot.slane %v9304, 4
  %v9306 = vrot.slane %v9176, 5
  %v9307 = vsel %vm1928, %v9305, %v9306
  %v9308 = vrot.slane %v9302, 4
  %v9309 = vrot.slane %v9179, 5
  %v9310 = vsel %vm1928, %v9308, %v9309
  %v9311 = vrot.slane %v9306, 4
  %v9312 = vrot.slane %v9181, 5
  %v9313 = vsel %vm1928, %v9311, %v9312
  %v9314 = vrot.slane %v9185, 5
  %v9315 = vrot.slane %v9314, 4
  %v9316 = vrot.slane %v9189, 5
  %v9317 = vsel %vm1928, %v9315, %v9316
  %v9318 = vrot.slane %v9186, 5
  %v9319 = vrot.slane %v9318, 4
  %v9320 = vrot.slane %v9191, 5
  %v9321 = vsel %vm1928, %v9319, %v9320
  %v9322 = vrot.slane %v9316, 4
  %v9323 = vrot.slane %v9195, 5
  %v9324 = vsel %vm1928, %v9322, %v9323
  %v9325 = vrot.slane %v9320, 4
  %v9326 = vrot.slane %v9196, 5
  %v9327 = vsel %vm1928, %v9325, %v9326
  %v9328 = vrot.slane %v9199, 5
  %v9329 = vrot.slane %v9328, 4
  %v9330 = vrot.slane %v9204, 5
  %v9331 = vsel %vm1928, %v9329, %v9330
  %v9332 = vrot.slane %v9201, 5
  %v9333 = vrot.slane %v9332, 4
  %v9334 = vrot.slane %v9205, 5
  %v9335 = vsel %vm1928, %v9333, %v9334
  %v9336 = vrot.slane %v9330, 4
  %v9337 = vrot.slane %v9208, 5
  %v9338 = vsel %vm1928, %v9336, %v9337
  %v9339 = vrot.slane %v9334, 4
  %v9340 = vrot.slane %v9210, 5
  %v9341 = vsel %vm1928, %v9339, %v9340
  %9342 = vrot.lane.b32.xlu0 %v9233, 96
  %v9343 = vpop.permute.xlu0 %9342
  %9344 = vrot.lane.b32.xlu0 %v9237, 96
  %v9345 = vpop.permute.xlu0 %9344
  %9346 = vrot.lane.b32.xlu0 %v9240, 96
  %v9347 = vpop.permute.xlu0 %9346
  %9348 = vrot.lane.b32.xlu0 %v9243, 96
  %v9349 = vpop.permute.xlu0 %9348
  %9350 = vrot.lane.b32.xlu0 %v9247, 96
  %v9351 = vpop.permute.xlu0 %9350
  %9352 = vrot.lane.b32.xlu0 %v9251, 96
  %v9353 = vpop.permute.xlu0 %9352
  %9354 = vrot.lane.b32.xlu0 %v9254, 96
  %v9355 = vpop.permute.xlu0 %9354
  %9356 = vrot.lane.b32.xlu0 %v9257, 96
  %v9357 = vpop.permute.xlu0 %9356
  %9358 = vrot.lane.b32.xlu0 %v9261, 96
  %v9359 = vpop.permute.xlu0 %9358
  %9360 = vrot.lane.b32.xlu0 %v9265, 96
  %v9361 = vpop.permute.xlu0 %9360
  %9362 = vrot.lane.b32.xlu0 %v9268, 96
  %v9363 = vpop.permute.xlu0 %9362
  %9364 = vrot.lane.b32.xlu0 %v9271, 96
  %v9365 = vpop.permute.xlu0 %9364
  %9366 = vrot.lane.b32.xlu0 %v9275, 96
  %v9367 = vpop.permute.xlu0 %9366
  %9368 = vrot.lane.b32.xlu0 %v9279, 96
  %v9369 = vpop.permute.xlu0 %9368
  %9370 = vrot.lane.b32.xlu0 %v9282, 96
  %v9371 = vpop.permute.xlu0 %9370
  %9372 = vrot.lane.b32.xlu0 %v9285, 96
  %v9373 = vpop.permute.xlu0 %9372
  %9374 = vrot.lane.b32.xlu0 %v9289, 96
  %v9375 = vpop.permute.xlu0 %9374
  %9376 = vrot.lane.b32.xlu0 %v9293, 96
  %v9377 = vpop.permute.xlu0 %9376
  %9378 = vrot.lane.b32.xlu0 %v9296, 96
  %v9379 = vpop.permute.xlu0 %9378
  %9380 = vrot.lane.b32.xlu0 %v9299, 96
  %v9381 = vpop.permute.xlu0 %9380
  %9382 = vrot.lane.b32.xlu0 %v9303, 96
  %v9383 = vpop.permute.xlu0 %9382
  %9384 = vrot.lane.b32.xlu0 %v9307, 96
  %v9385 = vpop.permute.xlu0 %9384
  %9386 = vrot.lane.b32.xlu0 %v9310, 96
  %v9387 = vpop.permute.xlu0 %9386
  %9388 = vrot.lane.b32.xlu0 %v9313, 96
  %v9389 = vpop.permute.xlu0 %9388
  %9390 = vrot.lane.b32.xlu0 %v9317, 96
  %v9391 = vpop.permute.xlu0 %9390
  %9392 = vrot.lane.b32.xlu0 %v9321, 96
  %v9393 = vpop.permute.xlu0 %9392
  %9394 = vrot.lane.b32.xlu0 %v9324, 96
  %v9395 = vpop.permute.xlu0 %9394
  %9396 = vrot.lane.b32.xlu0 %v9327, 96
  %v9397 = vpop.permute.xlu0 %9396
  %9398 = vrot.lane.b32.xlu0 %v9331, 96
  %v9399 = vpop.permute.xlu0 %9398
  %9400 = vrot.lane.b32.xlu0 %v9335, 96
  %v9401 = vpop.permute.xlu0 %9400
  %9402 = vrot.lane.b32.xlu0 %v9338, 96
  %v9403 = vpop.permute.xlu0 %9402
  %9404 = vrot.lane.b32.xlu0 %v9341, 96
  %v9405 = vpop.permute.xlu0 %9404
  %v9406 = vrot.slane %v9343, 4
  %v9407 = vrot.slane %v9345, 4
  %v9408 = vrot.slane %v9347, 4
  %v9409 = vrot.slane %v9349, 4
  %v9410 = vrot.slane %v9351, 4
  %v9411 = vrot.slane %v9353, 4
  %v9412 = vrot.slane %v9355, 4
  %v9413 = vrot.slane %v9357, 4
  %v9414 = vrot.slane %v9359, 4
  %v9415 = vrot.slane %v9361, 4
  %v9416 = vrot.slane %v9363, 4
  %v9417 = vrot.slane %v9365, 4
  %v9418 = vrot.slane %v9367, 4
  %v9419 = vrot.slane %v9369, 4
  %v9420 = vrot.slane %v9371, 4
  %v9421 = vrot.slane %v9373, 4
  %v9422 = vrot.slane %v9375, 4
  %v9423 = vrot.slane %v9377, 4
  %v9424 = vrot.slane %v9379, 4
  %v9425 = vrot.slane %v9381, 4
  %v9426 = vrot.slane %v9383, 4
  %v9427 = vrot.slane %v9385, 4
  %v9428 = vrot.slane %v9387, 4
  %v9429 = vrot.slane %v9389, 4
  %v9430 = vrot.slane %v9391, 4
  %v9431 = vrot.slane %v9393, 4
  %v9432 = vrot.slane %v9395, 4
  %v9433 = vrot.slane %v9397, 4
  %v9434 = vrot.slane %v9399, 4
  %v9435 = vrot.slane %v9401, 4
  %v9436 = vrot.slane %v9403, 4
  %v9437 = vrot.slane %v9405, 4
  %v9438 = vsel %vm1469, %v9406, %v9407
  %vm9439 = vcmask 785408
  %v9440 = vsel %vm9439, %v9438, %v9345
  %v9441 = vsel %vm1469, %v9408, %v9409
  %v9442 = vsel %vm9439, %v9441, %v9349
  %v9443 = vsel %vm1469, %v9410, %v9411
  %v9444 = vsel %vm9439, %v9443, %v9353
  %v9445 = vsel %vm1469, %v9412, %v9413
  %v9446 = vsel %vm9439, %v9445, %v9357
  %v9447 = vsel %vm1469, %v9414, %v9415
  %v9448 = vsel %vm9439, %v9447, %v9361
  %v9449 = vsel %vm1469, %v9416, %v9417
  %v9450 = vsel %vm9439, %v9449, %v9365
  %v9451 = vsel %vm1469, %v9418, %v9419
  %v9452 = vsel %vm9439, %v9451, %v9369
  %v9453 = vsel %vm1469, %v9420, %v9421
  %v9454 = vsel %vm9439, %v9453, %v9373
  %v9455 = vsel %vm1469, %v9422, %v9423
  %v9456 = vsel %vm9439, %v9455, %v9377
  %v9457 = vsel %vm1469, %v9424, %v9425
  %v9458 = vsel %vm9439, %v9457, %v9381
  %v9459 = vsel %vm1469, %v9426, %v9427
  %v9460 = vsel %vm9439, %v9459, %v9385
  %v9461 = vsel %vm1469, %v9428, %v9429
  %v9462 = vsel %vm9439, %v9461, %v9389
  %v9463 = vsel %vm1469, %v9430, %v9431
  %v9464 = vsel %vm9439, %v9463, %v9393
  %v9465 = vsel %vm1469, %v9432, %v9433
  %v9466 = vsel %vm9439, %v9465, %v9397
  %v9467 = vsel %vm1469, %v9434, %v9435
  %v9468 = vsel %vm9439, %v9467, %v9401
  %v9469 = vsel %vm1469, %v9436, %v9437
  %v9470 = vsel %vm9439, %v9469, %v9405
  %v9487 = vadd.f32 %v9098, %v9440
  %v9488 = vadd.f32 %v9102, %v9442
  %v9489 = vadd.f32 %v9112, %v9444
  %v9490 = vadd.f32 %v9117, %v9446
  %v9491 = vadd.f32 %v9127, %v9448
  %v9492 = vadd.f32 %v9131, %v9450
  %v9493 = vadd.f32 %v9141, %v9452
  %v9494 = vadd.f32 %v9146, %v9454
  %v9495 = vadd.f32 %v9156, %v9456
  %v9496 = vadd.f32 %v9160, %v9458
  %v9497 = vadd.f32 %v9170, %v9460
  %v9498 = vadd.f32 %v9175, %v9462
  %v9499 = vadd.f32 %v9185, %v9464
  %v9500 = vadd.f32 %v9189, %v9466
  %v9501 = vadd.f32 %v9199, %v9468
  %v9502 = vadd.f32 %v9204, %v9470
  %v9503 = vrot.slane %v9099, 6
  %v9504 = vrot.slane %v9503, 4
  %v9505 = vrot.slane %v9104, 6
  %v9506 = vsel %vm2716, %v9504, %v9505
  %v9507 = vrot.slane %v9505, 4
  %v9508 = vrot.slane %v9109, 6
  %v9509 = vsel %vm2716, %v9507, %v9508
  %v9510 = vrot.slane %v9114, 6
  %v9511 = vrot.slane %v9510, 4
  %v9512 = vrot.slane %v9118, 6
  %v9513 = vsel %vm2716, %v9511, %v9512
  %v9514 = vrot.slane %v9512, 4
  %v9515 = vrot.slane %v9123, 6
  %v9516 = vsel %vm2716, %v9514, %v9515
  %v9517 = vrot.slane %v9128, 6
  %v9518 = vrot.slane %v9517, 4
  %v9519 = vrot.slane %v9133, 6
  %v9520 = vsel %vm2716, %v9518, %v9519
  %v9521 = vrot.slane %v9519, 4
  %v9522 = vrot.slane %v9138, 6
  %v9523 = vsel %vm2716, %v9521, %v9522
  %v9524 = vrot.slane %v9143, 6
  %v9525 = vrot.slane %v9524, 4
  %v9526 = vrot.slane %v9147, 6
  %v9527 = vsel %vm2716, %v9525, %v9526
  %v9528 = vrot.slane %v9526, 4
  %v9529 = vrot.slane %v9152, 6
  %v9530 = vsel %vm2716, %v9528, %v9529
  %v9531 = vrot.slane %v9157, 6
  %v9532 = vrot.slane %v9531, 4
  %v9533 = vrot.slane %v9162, 6
  %v9534 = vsel %vm2716, %v9532, %v9533
  %v9535 = vrot.slane %v9533, 4
  %v9536 = vrot.slane %v9167, 6
  %v9537 = vsel %vm2716, %v9535, %v9536
  %v9538 = vrot.slane %v9172, 6
  %v9539 = vrot.slane %v9538, 4
  %v9540 = vrot.slane %v9176, 6
  %v9541 = vsel %vm2716, %v9539, %v9540
  %v9542 = vrot.slane %v9540, 4
  %v9543 = vrot.slane %v9181, 6
  %v9544 = vsel %vm2716, %v9542, %v9543
  %v9545 = vrot.slane %v9186, 6
  %v9546 = vrot.slane %v9545, 4
  %v9547 = vrot.slane %v9191, 6
  %v9548 = vsel %vm2716, %v9546, %v9547
  %v9549 = vrot.slane %v9547, 4
  %v9550 = vrot.slane %v9196, 6
  %v9551 = vsel %vm2716, %v9549, %v9550
  %v9552 = vrot.slane %v9201, 6
  %v9553 = vrot.slane %v9552, 4
  %v9554 = vrot.slane %v9205, 6
  %v9555 = vsel %vm2716, %v9553, %v9554
  %v9556 = vrot.slane %v9554, 4
  %v9557 = vrot.slane %v9210, 6
  %v9558 = vsel %vm2716, %v9556, %v9557
  %9559 = vrot.lane.b32.xlu0 %v9506, 64
  %v9560 = vpop.permute.xlu0 %9559
  %9561 = vrot.lane.b32.xlu0 %v9509, 64
  %v9562 = vpop.permute.xlu0 %9561
  %9563 = vrot.lane.b32.xlu0 %v9513, 64
  %v9564 = vpop.permute.xlu0 %9563
  %9565 = vrot.lane.b32.xlu0 %v9516, 64
  %v9566 = vpop.permute.xlu0 %9565
  %9567 = vrot.lane.b32.xlu0 %v9520, 64
  %v9568 = vpop.permute.xlu0 %9567
  %9569 = vrot.lane.b32.xlu0 %v9523, 64
  %v9570 = vpop.permute.xlu0 %9569
  %9571 = vrot.lane.b32.xlu0 %v9527, 64
  %v9572 = vpop.permute.xlu0 %9571
  %9573 = vrot.lane.b32.xlu0 %v9530, 64
  %v9574 = vpop.permute.xlu0 %9573
  %9575 = vrot.lane.b32.xlu0 %v9534, 64
  %v9576 = vpop.permute.xlu0 %9575
  %9577 = vrot.lane.b32.xlu0 %v9537, 64
  %v9578 = vpop.permute.xlu0 %9577
  %9579 = vrot.lane.b32.xlu0 %v9541, 64
  %v9580 = vpop.permute.xlu0 %9579
  %9581 = vrot.lane.b32.xlu0 %v9544, 64
  %v9582 = vpop.permute.xlu0 %9581
  %9583 = vrot.lane.b32.xlu0 %v9548, 64
  %v9584 = vpop.permute.xlu0 %9583
  %9585 = vrot.lane.b32.xlu0 %v9551, 64
  %v9586 = vpop.permute.xlu0 %9585
  %9587 = vrot.lane.b32.xlu0 %v9555, 64
  %v9588 = vpop.permute.xlu0 %9587
  %9589 = vrot.lane.b32.xlu0 %v9558, 64
  %v9590 = vpop.permute.xlu0 %9589
  %v9591 = vrot.slane %v9560, 4
  %v9592 = vrot.slane %v9562, 4
  %v9593 = vrot.slane %v9564, 4
  %v9594 = vrot.slane %v9566, 4
  %v9595 = vrot.slane %v9568, 4
  %v9596 = vrot.slane %v9570, 4
  %v9597 = vrot.slane %v9572, 4
  %v9598 = vrot.slane %v9574, 4
  %v9599 = vrot.slane %v9576, 4
  %v9600 = vrot.slane %v9578, 4
  %v9601 = vrot.slane %v9580, 4
  %v9602 = vrot.slane %v9582, 4
  %v9603 = vrot.slane %v9584, 4
  %v9604 = vrot.slane %v9586, 4
  %v9605 = vrot.slane %v9588, 4
  %v9606 = vrot.slane %v9590, 4
  %v9607 = vsel %vm4579, %v9560, %v9591
  %v9608 = vsel %vm4579, %v9562, %v9592
  %v9609 = vsel %vm4579, %v9564, %v9593
  %v9610 = vsel %vm4579, %v9566, %v9594
  %v9611 = vsel %vm4579, %v9568, %v9595
  %v9612 = vsel %vm4579, %v9570, %v9596
  %v9613 = vsel %vm4579, %v9572, %v9597
  %v9614 = vsel %vm4579, %v9574, %v9598
  %v9615 = vsel %vm4579, %v9576, %v9599
  %v9616 = vsel %vm4579, %v9578, %v9600
  %v9617 = vsel %vm4579, %v9580, %v9601
  %v9618 = vsel %vm4579, %v9582, %v9602
  %v9619 = vsel %vm4579, %v9584, %v9603
  %v9620 = vsel %vm4579, %v9586, %v9604
  %v9621 = vsel %vm4579, %v9588, %v9605
  %v9622 = vsel %vm4579, %v9590, %v9606
  %v9639 = vadd.f32 %v9487, %v9607
  %v9640 = vadd.f32 %v9488, %v9608
  %v9641 = vadd.f32 %v9489, %v9609
  %v9642 = vadd.f32 %v9490, %v9610
  %v9643 = vadd.f32 %v9491, %v9611
  %v9644 = vadd.f32 %v9492, %v9612
  %v9645 = vadd.f32 %v9493, %v9613
  %v9646 = vadd.f32 %v9494, %v9614
  %v9647 = vadd.f32 %v9495, %v9615
  %v9648 = vadd.f32 %v9496, %v9616
  %v9649 = vadd.f32 %v9497, %v9617
  %v9650 = vadd.f32 %v9498, %v9618
  %v9651 = vadd.f32 %v9499, %v9619
  %v9652 = vadd.f32 %v9500, %v9620
  %v9653 = vadd.f32 %v9501, %v9621
  %v9654 = vadd.f32 %v9502, %v9622
  %v9655 = vrot.slane %v9099, 7
  %v9656 = vrot.slane %v9655, 4
  %v9657 = vrot.slane %v9104, 7
  %v9658 = vsel %vm3504, %v9656, %v9657
  %v9659 = vrot.slane %v9100, 7
  %v9660 = vrot.slane %v9659, 4
  %v9661 = vrot.slane %v9106, 7
  %v9662 = vsel %vm3504, %v9660, %v9661
  %v9663 = vrot.slane %v9657, 4
  %v9664 = vrot.slane %v9109, 7
  %v9665 = vsel %vm3504, %v9663, %v9664
  %v9666 = vrot.slane %v9661, 4
  %v9667 = vrot.slane %v9110, 7
  %v9668 = vsel %vm3504, %v9666, %v9667
  %v9669 = vrot.slane %v9114, 7
  %v9670 = vrot.slane %v9669, 4
  %v9671 = vrot.slane %v9118, 7
  %v9672 = vsel %vm3504, %v9670, %v9671
  %v9673 = vrot.slane %v9116, 7
  %v9674 = vrot.slane %v9673, 4
  %v9675 = vrot.slane %v9119, 7
  %v9676 = vsel %vm3504, %v9674, %v9675
  %v9677 = vrot.slane %v9671, 4
  %v9678 = vrot.slane %v9123, 7
  %v9679 = vsel %vm3504, %v9677, %v9678
  %v9680 = vrot.slane %v9675, 4
  %v9681 = vrot.slane %v9125, 7
  %v9682 = vsel %vm3504, %v9680, %v9681
  %v9683 = vrot.slane %v9128, 7
  %v9684 = vrot.slane %v9683, 4
  %v9685 = vrot.slane %v9133, 7
  %v9686 = vsel %vm3504, %v9684, %v9685
  %v9687 = vrot.slane %v9129, 7
  %v9688 = vrot.slane %v9687, 4
  %v9689 = vrot.slane %v9135, 7
  %v9690 = vsel %vm3504, %v9688, %v9689
  %v9691 = vrot.slane %v9685, 4
  %v9692 = vrot.slane %v9138, 7
  %v9693 = vsel %vm3504, %v9691, %v9692
  %v9694 = vrot.slane %v9689, 4
  %v9695 = vrot.slane %v9139, 7
  %v9696 = vsel %vm3504, %v9694, %v9695
  %v9697 = vrot.slane %v9143, 7
  %v9698 = vrot.slane %v9697, 4
  %v9699 = vrot.slane %v9147, 7
  %v9700 = vsel %vm3504, %v9698, %v9699
  %v9701 = vrot.slane %v9145, 7
  %v9702 = vrot.slane %v9701, 4
  %v9703 = vrot.slane %v9148, 7
  %v9704 = vsel %vm3504, %v9702, %v9703
  %v9705 = vrot.slane %v9699, 4
  %v9706 = vrot.slane %v9152, 7
  %v9707 = vsel %vm3504, %v9705, %v9706
  %v9708 = vrot.slane %v9703, 4
  %v9709 = vrot.slane %v9154, 7
  %v9710 = vsel %vm3504, %v9708, %v9709
  %v9711 = vrot.slane %v9157, 7
  %v9712 = vrot.slane %v9711, 4
  %v9713 = vrot.slane %v9162, 7
  %v9714 = vsel %vm3504, %v9712, %v9713
  %v9715 = vrot.slane %v9158, 7
  %v9716 = vrot.slane %v9715, 4
  %v9717 = vrot.slane %v9164, 7
  %v9718 = vsel %vm3504, %v9716, %v9717
  %v9719 = vrot.slane %v9713, 4
  %v9720 = vrot.slane %v9167, 7
  %v9721 = vsel %vm3504, %v9719, %v9720
  %v9722 = vrot.slane %v9717, 4
  %v9723 = vrot.slane %v9168, 7
  %v9724 = vsel %vm3504, %v9722, %v9723
  %v9725 = vrot.slane %v9172, 7
  %v9726 = vrot.slane %v9725, 4
  %v9727 = vrot.slane %v9176, 7
  %v9728 = vsel %vm3504, %v9726, %v9727
  %v9729 = vrot.slane %v9174, 7
  %v9730 = vrot.slane %v9729, 4
  %v9731 = vrot.slane %v9177, 7
  %v9732 = vsel %vm3504, %v9730, %v9731
  %v9733 = vrot.slane %v9727, 4
  %v9734 = vrot.slane %v9181, 7
  %v9735 = vsel %vm3504, %v9733, %v9734
  %v9736 = vrot.slane %v9731, 4
  %v9737 = vrot.slane %v9183, 7
  %v9738 = vsel %vm3504, %v9736, %v9737
  %v9739 = vrot.slane %v9186, 7
  %v9740 = vrot.slane %v9739, 4
  %v9741 = vrot.slane %v9191, 7
  %v9742 = vsel %vm3504, %v9740, %v9741
  %v9743 = vrot.slane %v9187, 7
  %v9744 = vrot.slane %v9743, 4
  %v9745 = vrot.slane %v9193, 7
  %v9746 = vsel %vm3504, %v9744, %v9745
  %v9747 = vrot.slane %v9741, 4
  %v9748 = vrot.slane %v9196, 7
  %v9749 = vsel %vm3504, %v9747, %v9748
  %v9750 = vrot.slane %v9745, 4
  %v9751 = vrot.slane %v9197, 7
  %v9752 = vsel %vm3504, %v9750, %v9751
  %v9753 = vrot.slane %v9201, 7
  %v9754 = vrot.slane %v9753, 4
  %v9755 = vrot.slane %v9205, 7
  %v9756 = vsel %vm3504, %v9754, %v9755
  %v9757 = vrot.slane %v9203, 7
  %v9758 = vrot.slane %v9757, 4
  %v9759 = vrot.slane %v9206, 7
  %v9760 = vsel %vm3504, %v9758, %v9759
  %v9761 = vrot.slane %v9755, 4
  %v9762 = vrot.slane %v9210, 7
  %v9763 = vsel %vm3504, %v9761, %v9762
  %v9764 = vrot.slane %v9759, 4
  %v9765 = vrot.slane %v9212, 7
  %v9766 = vsel %vm3504, %v9764, %v9765
  %9767 = vrot.lane.b32.xlu0 %v9658, 32
  %v9768 = vpop.permute.xlu0 %9767
  %9769 = vrot.lane.b32.xlu0 %v9662, 32
  %v9770 = vpop.permute.xlu0 %9769
  %9771 = vrot.lane.b32.xlu0 %v9665, 32
  %v9772 = vpop.permute.xlu0 %9771
  %9773 = vrot.lane.b32.xlu0 %v9668, 32
  %v9774 = vpop.permute.xlu0 %9773
  %9775 = vrot.lane.b32.xlu0 %v9672, 32
  %v9776 = vpop.permute.xlu0 %9775
  %9777 = vrot.lane.b32.xlu0 %v9676, 32
  %v9778 = vpop.permute.xlu0 %9777
  %9779 = vrot.lane.b32.xlu0 %v9679, 32
  %v9780 = vpop.permute.xlu0 %9779
  %9781 = vrot.lane.b32.xlu0 %v9682, 32
  %v9782 = vpop.permute.xlu0 %9781
  %9783 = vrot.lane.b32.xlu0 %v9686, 32
  %v9784 = vpop.permute.xlu0 %9783
  %9785 = vrot.lane.b32.xlu0 %v9690, 32
  %v9786 = vpop.permute.xlu0 %9785
  %9787 = vrot.lane.b32.xlu0 %v9693, 32
  %v9788 = vpop.permute.xlu0 %9787
  %9789 = vrot.lane.b32.xlu0 %v9696, 32
  %v9790 = vpop.permute.xlu0 %9789
  %9791 = vrot.lane.b32.xlu0 %v9700, 32
  %v9792 = vpop.permute.xlu0 %9791
  %9793 = vrot.lane.b32.xlu0 %v9704, 32
  %v9794 = vpop.permute.xlu0 %9793
  %9795 = vrot.lane.b32.xlu0 %v9707, 32
  %v9796 = vpop.permute.xlu0 %9795
  %9797 = vrot.lane.b32.xlu0 %v9710, 32
  %v9798 = vpop.permute.xlu0 %9797
  %9799 = vrot.lane.b32.xlu0 %v9714, 32
  %v9800 = vpop.permute.xlu0 %9799
  %9801 = vrot.lane.b32.xlu0 %v9718, 32
  %v9802 = vpop.permute.xlu0 %9801
  %9803 = vrot.lane.b32.xlu0 %v9721, 32
  %v9804 = vpop.permute.xlu0 %9803
  %9805 = vrot.lane.b32.xlu0 %v9724, 32
  %v9806 = vpop.permute.xlu0 %9805
  %9807 = vrot.lane.b32.xlu0 %v9728, 32
  %v9808 = vpop.permute.xlu0 %9807
  %9809 = vrot.lane.b32.xlu0 %v9732, 32
  %v9810 = vpop.permute.xlu0 %9809
  %9811 = vrot.lane.b32.xlu0 %v9735, 32
  %v9812 = vpop.permute.xlu0 %9811
  %9813 = vrot.lane.b32.xlu0 %v9738, 32
  %v9814 = vpop.permute.xlu0 %9813
  %9815 = vrot.lane.b32.xlu0 %v9742, 32
  %v9816 = vpop.permute.xlu0 %9815
  %9817 = vrot.lane.b32.xlu0 %v9746, 32
  %v9818 = vpop.permute.xlu0 %9817
  %9819 = vrot.lane.b32.xlu0 %v9749, 32
  %v9820 = vpop.permute.xlu0 %9819
  %9821 = vrot.lane.b32.xlu0 %v9752, 32
  %v9822 = vpop.permute.xlu0 %9821
  %9823 = vrot.lane.b32.xlu0 %v9756, 32
  %v9824 = vpop.permute.xlu0 %9823
  %9825 = vrot.lane.b32.xlu0 %v9760, 32
  %v9826 = vpop.permute.xlu0 %9825
  %9827 = vrot.lane.b32.xlu0 %v9763, 32
  %v9828 = vpop.permute.xlu0 %9827
  %9829 = vrot.lane.b32.xlu0 %v9766, 32
  %v9830 = vpop.permute.xlu0 %9829
  %v9831 = vrot.slane %v9768, 4
  %v9832 = vrot.slane %v9770, 4
  %v9833 = vrot.slane %v9772, 4
  %v9834 = vrot.slane %v9774, 4
  %v9835 = vrot.slane %v9776, 4
  %v9836 = vrot.slane %v9778, 4
  %v9837 = vrot.slane %v9780, 4
  %v9838 = vrot.slane %v9782, 4
  %v9839 = vrot.slane %v9784, 4
  %v9840 = vrot.slane %v9786, 4
  %v9841 = vrot.slane %v9788, 4
  %v9842 = vrot.slane %v9790, 4
  %v9843 = vrot.slane %v9792, 4
  %v9844 = vrot.slane %v9794, 4
  %v9845 = vrot.slane %v9796, 4
  %v9846 = vrot.slane %v9798, 4
  %v9847 = vrot.slane %v9800, 4
  %v9848 = vrot.slane %v9802, 4
  %v9849 = vrot.slane %v9804, 4
  %v9850 = vrot.slane %v9806, 4
  %v9851 = vrot.slane %v9808, 4
  %v9852 = vrot.slane %v9810, 4
  %v9853 = vrot.slane %v9812, 4
  %v9854 = vrot.slane %v9814, 4
  %v9855 = vrot.slane %v9816, 4
  %v9856 = vrot.slane %v9818, 4
  %v9857 = vrot.slane %v9820, 4
  %v9858 = vrot.slane %v9822, 4
  %v9859 = vrot.slane %v9824, 4
  %v9860 = vrot.slane %v9826, 4
  %v9861 = vrot.slane %v9828, 4
  %v9862 = vrot.slane %v9830, 4
  %v9863 = vsel %vm1469, %v9831, %v9832
  %v9864 = vsel %vm3310, %v9863, %v9770
  %v9865 = vsel %vm1469, %v9833, %v9834
  %v9866 = vsel %vm3310, %v9865, %v9774
  %v9867 = vsel %vm1469, %v9835, %v9836
  %v9868 = vsel %vm3310, %v9867, %v9778
  %v9869 = vsel %vm1469, %v9837, %v9838
  %v9870 = vsel %vm3310, %v9869, %v9782
  %v9871 = vsel %vm1469, %v9839, %v9840
  %v9872 = vsel %vm3310, %v9871, %v9786
  %v9873 = vsel %vm1469, %v9841, %v9842
  %v9874 = vsel %vm3310, %v9873, %v9790
  %v9875 = vsel %vm1469, %v9843, %v9844
  %v9876 = vsel %vm3310, %v9875, %v9794
  %v9877 = vsel %vm1469, %v9845, %v9846
  %v9878 = vsel %vm3310, %v9877, %v9798
  %v9879 = vsel %vm1469, %v9847, %v9848
  %v9880 = vsel %vm3310, %v9879, %v9802
  %v9881 = vsel %vm1469, %v9849, %v9850
  %v9882 = vsel %vm3310, %v9881, %v9806
  %v9883 = vsel %vm1469, %v9851, %v9852
  %v9884 = vsel %vm3310, %v9883, %v9810
  %v9885 = vsel %vm1469, %v9853, %v9854
  %v9886 = vsel %vm3310, %v9885, %v9814
  %v9887 = vsel %vm1469, %v9855, %v9856
  %v9888 = vsel %vm3310, %v9887, %v9818
  %v9889 = vsel %vm1469, %v9857, %v9858
  %v9890 = vsel %vm3310, %v9889, %v9822
  %v9891 = vsel %vm1469, %v9859, %v9860
  %v9892 = vsel %vm3310, %v9891, %v9826
  %v9893 = vsel %vm1469, %v9861, %v9862
  %v9894 = vsel %vm3310, %v9893, %v9830
  %v9911 = vadd.f32 %v9639, %v9864
  %v9912 = vadd.f32 %v9640, %v9866
  %v9913 = vadd.f32 %v9641, %v9868
  %v9914 = vadd.f32 %v9642, %v9870
  %v9915 = vadd.f32 %v9643, %v9872
  %v9916 = vadd.f32 %v9644, %v9874
  %v9917 = vadd.f32 %v9645, %v9876
  %v9918 = vadd.f32 %v9646, %v9878
  %v9919 = vadd.f32 %v9647, %v9880
  %v9920 = vadd.f32 %v9648, %v9882
  %v9921 = vadd.f32 %v9649, %v9884
  %v9922 = vadd.f32 %v9650, %v9886
  %v9923 = vadd.f32 %v9651, %v9888
  %v9924 = vadd.f32 %v9652, %v9890
  %v9925 = vadd.f32 %v9653, %v9892
  %v9926 = vadd.f32 %v9654, %v9894
  %v9927 = vrot.slane %v9106, 4
  %v9928 = vrot.slane %v9107, 4
  %v9929 = vrot.slane %v9110, 4
  %v9930 = vrot.slane %v8951, 4
  %v9931 = vrot.slane %v9119, 4
  %v9932 = vrot.slane %v9125, 4
  %v9933 = vrot.slane %v9126, 4
  %v9934 = vrot.slane %v9135, 4
  %v9935 = vrot.slane %v9136, 4
  %v9936 = vrot.slane %v9139, 4
  %v9937 = vrot.slane %v8959, 4
  %v9938 = vrot.slane %v9148, 4
  %v9939 = vrot.slane %v9154, 4
  %v9940 = vrot.slane %v9155, 4
  %v9941 = vrot.slane %v9164, 4
  %v9942 = vrot.slane %v9165, 4
  %v9943 = vrot.slane %v9168, 4
  %v9944 = vrot.slane %v8966, 4
  %v9945 = vrot.slane %v9177, 4
  %v9946 = vrot.slane %v9183, 4
  %v9947 = vrot.slane %v9184, 4
  %v9948 = vrot.slane %v9193, 4
  %v9949 = vrot.slane %v9194, 4
  %v9950 = vrot.slane %v9197, 4
  %v9951 = vrot.slane %v8974, 4
  %v9952 = vrot.slane %v9206, 4
  %v9953 = vrot.slane %v9212, 4
  %v9954 = vrot.slane %v9213, 4
  %v9955 = vsel %vm1469, %v9927, %v9928
  %v9956 = vsel %vm1469, %v9929, %v9930
  %v9957 = vsel %vm1469, %v9931, %v9126
  %v9958 = vsel %vm1469, %v9932, %v9933
  %v9959 = vsel %vm1469, %v9934, %v9935
  %v9960 = vsel %vm1469, %v9936, %v9937
  %v9961 = vsel %vm1469, %v9938, %v9155
  %v9962 = vsel %vm1469, %v9939, %v9940
  %v9963 = vsel %vm1469, %v9941, %v9942
  %v9964 = vsel %vm1469, %v9943, %v9944
  %v9965 = vsel %vm1469, %v9945, %v9184
  %v9966 = vsel %vm1469, %v9946, %v9947
  %v9967 = vsel %vm1469, %v9948, %v9949
  %v9968 = vsel %vm1469, %v9950, %v9951
  %v9969 = vsel %vm1469, %v9952, %v9213
  %v9970 = vsel %vm1469, %v9953, %v9954
  %v9987 = vadd.f32 %v9911, %v9955
  %v9988 = vadd.f32 %v9912, %v9956
  %v9989 = vadd.f32 %v9913, %v9957
  %v9990 = vadd.f32 %v9914, %v9958
  %v9991 = vadd.f32 %v9915, %v9959
  %v9992 = vadd.f32 %v9916, %v9960
  %v9993 = vadd.f32 %v9917, %v9961
  %v9994 = vadd.f32 %v9918, %v9962
  %v9995 = vadd.f32 %v9919, %v9963
  %v9996 = vadd.f32 %v9920, %v9964
  %v9997 = vadd.f32 %v9921, %v9965
  %v9998 = vadd.f32 %v9922, %v9966
  %v9999 = vadd.f32 %v9923, %v9967
  %v10000 = vadd.f32 %v9924, %v9968
  %v10001 = vadd.f32 %v9925, %v9969
  %v10002 = vadd.f32 %v9926, %v9970
  %v10003 = vld [vmem:[%s4] sm:$0x3]
  %v10005 = vperm.slane %v10003, 0
  %v10006 = vperm.slane %v10003, 1
  %v10007 = vrot.slane %v10006, 4
  %v10008 = vsel %vm1469, %v10005, %v10007
  %v10009 = vsel %vm1469, %v10007, %v10005
  %v10010 = vrot.slane %v10009, 4
  %v10013 = vadd.f32 %v9987, %v10008
  %v10014 = vadd.f32 %v9988, %v10010
  %v10015 = vadd.f32 %v9989, %v10008
  %v10016 = vadd.f32 %v9990, %v10010
  %v10017 = vadd.f32 %v9991, %v10008
  %v10018 = vadd.f32 %v9992, %v10010
  %v10019 = vadd.f32 %v9993, %v10008
  %v10020 = vadd.f32 %v9994, %v10010
  %v10021 = vadd.f32 %v9995, %v10008
  %v10022 = vadd.f32 %v9996, %v10010
  %v10023 = vadd.f32 %v9997, %v10008
  %v10024 = vadd.f32 %v9998, %v10010
  %v10025 = vadd.f32 %v9999, %v10008
  %v10026 = vadd.f32 %v10000, %v10010
  %v10027 = vadd.f32 %v10001, %v10008
  %v10028 = vadd.f32 %v10002, %v10010
  %v10045 = vrot.slane %v10013, 2
  %v10046 = vrot.slane %v10014, 2
  %v10047 = vrot.slane %v10015, 2
  %v10048 = vrot.slane %v10016, 2
  %v10049 = vrot.slane %v10017, 2
  %v10050 = vrot.slane %v10018, 2
  %v10051 = vrot.slane %v10019, 2
  %v10052 = vrot.slane %v10020, 2
  %v10053 = vrot.slane %v10021, 2
  %v10054 = vrot.slane %v10022, 2
  %v10055 = vrot.slane %v10023, 2
  %v10056 = vrot.slane %v10024, 2
  %v10057 = vrot.slane %v10025, 2
  %v10058 = vrot.slane %v10026, 2
  %v10059 = vrot.slane %v10027, 2
  %v10060 = vrot.slane %v10028, 2
  %v10061 = vsel %vm2714, %v10013, %v10045
  %v10062 = vsel %vm4926, %v10013, %v10045
  %v10063 = vrot.slane %v10062, 2
  %v10064 = vsel %vm2714, %v10014, %v10046
  %v10065 = vsel %vm4926, %v10014, %v10046
  %v10066 = vrot.slane %v10065, 2
  %v10067 = vsel %vm2714, %v10015, %v10047
  %v10068 = vsel %vm4926, %v10015, %v10047
  %v10069 = vrot.slane %v10068, 2
  %v10070 = vsel %vm2714, %v10016, %v10048
  %v10071 = vsel %vm4926, %v10016, %v10048
  %v10072 = vrot.slane %v10071, 2
  %v10073 = vsel %vm2714, %v10017, %v10049
  %v10074 = vsel %vm4926, %v10017, %v10049
  %v10075 = vrot.slane %v10074, 2
  %v10076 = vsel %vm2714, %v10018, %v10050
  %v10077 = vsel %vm4926, %v10018, %v10050
  %v10078 = vrot.slane %v10077, 2
  %v10079 = vsel %vm2714, %v10019, %v10051
  %v10080 = vsel %vm4926, %v10019, %v10051
  %v10081 = vrot.slane %v10080, 2
  %v10082 = vsel %vm2714, %v10020, %v10052
  %v10083 = vsel %vm4926, %v10020, %v10052
  %v10084 = vrot.slane %v10083, 2
  %v10085 = vsel %vm2714, %v10021, %v10053
  %v10086 = vsel %vm4926, %v10021, %v10053
  %v10087 = vrot.slane %v10086, 2
  %v10088 = vsel %vm2714, %v10022, %v10054
  %v10089 = vsel %vm4926, %v10022, %v10054
  %v10090 = vrot.slane %v10089, 2
  %v10091 = vsel %vm2714, %v10023, %v10055
  %v10092 = vsel %vm4926, %v10023, %v10055
  %v10093 = vrot.slane %v10092, 2
  %v10094 = vsel %vm2714, %v10024, %v10056
  %v10095 = vsel %vm4926, %v10024, %v10056
  %v10096 = vrot.slane %v10095, 2
  %v10097 = vsel %vm2714, %v10025, %v10057
  %v10098 = vsel %vm4926, %v10025, %v10057
  %v10099 = vrot.slane %v10098, 2
  %v10100 = vsel %vm2714, %v10026, %v10058
  %v10101 = vsel %vm4926, %v10026, %v10058
  %v10102 = vrot.slane %v10101, 2
  %v10103 = vsel %vm2714, %v10027, %v10059
  %v10104 = vsel %vm4926, %v10027, %v10059
  %v10105 = vrot.slane %v10104, 2
  %v10106 = vsel %vm2714, %v10028, %v10060
  %v10107 = vsel %vm4926, %v10028, %v10060
  %v10108 = vrot.slane %v10107, 2
  %v10141 = vrot.slane %v10061, 7
  %v10142 = vrot.slane %v10141, 2
  %v10143 = vrot.slane %v10063, 7
  %v10144 = vrot.slane %v10143, 2
  %v10145 = vrot.slane %v10064, 7
  %v10146 = vrot.slane %v10145, 2
  %v10147 = vrot.slane %v10066, 7
  %v10148 = vrot.slane %v10147, 2
  %v10149 = vrot.slane %v10067, 7
  %v10150 = vrot.slane %v10149, 2
  %v10151 = vrot.slane %v10069, 7
  %v10152 = vrot.slane %v10151, 2
  %v10153 = vrot.slane %v10070, 7
  %v10154 = vrot.slane %v10153, 2
  %v10155 = vrot.slane %v10072, 7
  %v10156 = vrot.slane %v10155, 2
  %v10157 = vrot.slane %v10073, 7
  %v10158 = vrot.slane %v10157, 2
  %v10159 = vrot.slane %v10075, 7
  %v10160 = vrot.slane %v10159, 2
  %v10161 = vrot.slane %v10076, 7
  %v10162 = vrot.slane %v10161, 2
  %v10163 = vrot.slane %v10078, 7
  %v10164 = vrot.slane %v10163, 2
  %v10165 = vrot.slane %v10079, 7
  %v10166 = vrot.slane %v10165, 2
  %v10167 = vrot.slane %v10081, 7
  %v10168 = vrot.slane %v10167, 2
  %v10169 = vrot.slane %v10082, 7
  %v10170 = vrot.slane %v10169, 2
  %v10171 = vrot.slane %v10084, 7
  %v10172 = vrot.slane %v10171, 2
  %v10173 = vrot.slane %v10085, 7
  %v10174 = vrot.slane %v10173, 2
  %v10175 = vrot.slane %v10087, 7
  %v10176 = vrot.slane %v10175, 2
  %v10177 = vrot.slane %v10088, 7
  %v10178 = vrot.slane %v10177, 2
  %v10179 = vrot.slane %v10090, 7
  %v10180 = vrot.slane %v10179, 2
  %v10181 = vrot.slane %v10091, 7
  %v10182 = vrot.slane %v10181, 2
  %v10183 = vrot.slane %v10093, 7
  %v10184 = vrot.slane %v10183, 2
  %v10185 = vrot.slane %v10094, 7
  %v10186 = vrot.slane %v10185, 2
  %v10187 = vrot.slane %v10096, 7
  %v10188 = vrot.slane %v10187, 2
  %v10189 = vrot.slane %v10097, 7
  %v10190 = vrot.slane %v10189, 2
  %v10191 = vrot.slane %v10099, 7
  %v10192 = vrot.slane %v10191, 2
  %v10193 = vrot.slane %v10100, 7
  %v10194 = vrot.slane %v10193, 2
  %v10195 = vrot.slane %v10102, 7
  %v10196 = vrot.slane %v10195, 2
  %v10197 = vrot.slane %v10103, 7
  %v10198 = vrot.slane %v10197, 2
  %v10199 = vrot.slane %v10105, 7
  %v10200 = vrot.slane %v10199, 2
  %v10201 = vrot.slane %v10106, 7
  %v10202 = vrot.slane %v10201, 2
  %v10203 = vrot.slane %v10108, 7
  %v10204 = vrot.slane %v10203, 2
  %v10237 = vmax.f32 %v10061, %v10142
  %v10238 = vmax.f32 %v10063, %v10144
  %v10239 = vmax.f32 %v10064, %v10146
  %v10240 = vmax.f32 %v10066, %v10148
  %v10241 = vmax.f32 %v10067, %v10150
  %v10242 = vmax.f32 %v10069, %v10152
  %v10243 = vmax.f32 %v10070, %v10154
  %v10244 = vmax.f32 %v10072, %v10156
  %v10245 = vmax.f32 %v10073, %v10158
  %v10246 = vmax.f32 %v10075, %v10160
  %v10247 = vmax.f32 %v10076, %v10162
  %v10248 = vmax.f32 %v10078, %v10164
  %v10249 = vmax.f32 %v10079, %v10166
  %v10250 = vmax.f32 %v10081, %v10168
  %v10251 = vmax.f32 %v10082, %v10170
  %v10252 = vmax.f32 %v10084, %v10172
  %v10253 = vmax.f32 %v10085, %v10174
  %v10254 = vmax.f32 %v10087, %v10176
  %v10255 = vmax.f32 %v10088, %v10178
  %v10256 = vmax.f32 %v10090, %v10180
  %v10257 = vmax.f32 %v10091, %v10182
  %v10258 = vmax.f32 %v10093, %v10184
  %v10259 = vmax.f32 %v10094, %v10186
  %v10260 = vmax.f32 %v10096, %v10188
  %v10261 = vmax.f32 %v10097, %v10190
  %v10262 = vmax.f32 %v10099, %v10192
  %v10263 = vmax.f32 %v10100, %v10194
  %v10264 = vmax.f32 %v10102, %v10196
  %v10265 = vmax.f32 %v10103, %v10198
  %v10266 = vmax.f32 %v10105, %v10200
  %v10267 = vmax.f32 %v10106, %v10202
  %v10268 = vmax.f32 %v10108, %v10204
  %10301 = vrot.lane.b32.xlu0 %v10237, 127
  %v10302 = vpop.permute.xlu0 %10301
  %10303 = vrot.lane.b32.xlu0 %v10238, 127
  %v10304 = vpop.permute.xlu0 %10303
  %10305 = vrot.lane.b32.xlu0 %v10239, 127
  %v10306 = vpop.permute.xlu0 %10305
  %10307 = vrot.lane.b32.xlu0 %v10240, 127
  %v10308 = vpop.permute.xlu0 %10307
  %10309 = vrot.lane.b32.xlu0 %v10241, 127
  %v10310 = vpop.permute.xlu0 %10309
  %10311 = vrot.lane.b32.xlu0 %v10242, 127
  %v10312 = vpop.permute.xlu0 %10311
  %10313 = vrot.lane.b32.xlu0 %v10243, 127
  %v10314 = vpop.permute.xlu0 %10313
  %10315 = vrot.lane.b32.xlu0 %v10244, 127
  %v10316 = vpop.permute.xlu0 %10315
  %10317 = vrot.lane.b32.xlu0 %v10245, 127
  %v10318 = vpop.permute.xlu0 %10317
  %10319 = vrot.lane.b32.xlu0 %v10246, 127
  %v10320 = vpop.permute.xlu0 %10319
  %10321 = vrot.lane.b32.xlu0 %v10247, 127
  %v10322 = vpop.permute.xlu0 %10321
  %10323 = vrot.lane.b32.xlu0 %v10248, 127
  %v10324 = vpop.permute.xlu0 %10323
  %10325 = vrot.lane.b32.xlu0 %v10249, 127
  %v10326 = vpop.permute.xlu0 %10325
  %10327 = vrot.lane.b32.xlu0 %v10250, 127
  %v10328 = vpop.permute.xlu0 %10327
  %10329 = vrot.lane.b32.xlu0 %v10251, 127
  %v10330 = vpop.permute.xlu0 %10329
  %10331 = vrot.lane.b32.xlu0 %v10252, 127
  %v10332 = vpop.permute.xlu0 %10331
  %10333 = vrot.lane.b32.xlu0 %v10253, 127
  %v10334 = vpop.permute.xlu0 %10333
  %10335 = vrot.lane.b32.xlu0 %v10254, 127
  %v10336 = vpop.permute.xlu0 %10335
  %10337 = vrot.lane.b32.xlu0 %v10255, 127
  %v10338 = vpop.permute.xlu0 %10337
  %10339 = vrot.lane.b32.xlu0 %v10256, 127
  %v10340 = vpop.permute.xlu0 %10339
  %10341 = vrot.lane.b32.xlu0 %v10257, 127
  %v10342 = vpop.permute.xlu0 %10341
  %10343 = vrot.lane.b32.xlu0 %v10258, 127
  %v10344 = vpop.permute.xlu0 %10343
  %10345 = vrot.lane.b32.xlu0 %v10259, 127
  %v10346 = vpop.permute.xlu0 %10345
  %10347 = vrot.lane.b32.xlu0 %v10260, 127
  %v10348 = vpop.permute.xlu0 %10347
  %10349 = vrot.lane.b32.xlu0 %v10261, 127
  %v10350 = vpop.permute.xlu0 %10349
  %10351 = vrot.lane.b32.xlu0 %v10262, 127
  %v10352 = vpop.permute.xlu0 %10351
  %10353 = vrot.lane.b32.xlu0 %v10263, 127
  %v10354 = vpop.permute.xlu0 %10353
  %10355 = vrot.lane.b32.xlu0 %v10264, 127
  %v10356 = vpop.permute.xlu0 %10355
  %10357 = vrot.lane.b32.xlu0 %v10265, 127
  %v10358 = vpop.permute.xlu0 %10357
  %10359 = vrot.lane.b32.xlu0 %v10266, 127
  %v10360 = vpop.permute.xlu0 %10359
  %10361 = vrot.lane.b32.xlu0 %v10267, 127
  %v10362 = vpop.permute.xlu0 %10361
  %10363 = vrot.lane.b32.xlu0 %v10268, 127
  %v10364 = vpop.permute.xlu0 %10363
  %v10365 = vrot.slane %v10302, 2
  %v10366 = vrot.slane %v10304, 2
  %v10367 = vrot.slane %v10306, 2
  %v10368 = vrot.slane %v10308, 2
  %v10369 = vrot.slane %v10310, 2
  %v10370 = vrot.slane %v10312, 2
  %v10371 = vrot.slane %v10314, 2
  %v10372 = vrot.slane %v10316, 2
  %v10373 = vrot.slane %v10318, 2
  %v10374 = vrot.slane %v10320, 2
  %v10375 = vrot.slane %v10322, 2
  %v10376 = vrot.slane %v10324, 2
  %v10377 = vrot.slane %v10326, 2
  %v10378 = vrot.slane %v10328, 2
  %v10379 = vrot.slane %v10330, 2
  %v10380 = vrot.slane %v10332, 2
  %v10381 = vrot.slane %v10334, 2
  %v10382 = vrot.slane %v10336, 2
  %v10383 = vrot.slane %v10338, 2
  %v10384 = vrot.slane %v10340, 2
  %v10385 = vrot.slane %v10342, 2
  %v10386 = vrot.slane %v10344, 2
  %v10387 = vrot.slane %v10346, 2
  %v10388 = vrot.slane %v10348, 2
  %v10389 = vrot.slane %v10350, 2
  %v10390 = vrot.slane %v10352, 2
  %v10391 = vrot.slane %v10354, 2
  %v10392 = vrot.slane %v10356, 2
  %v10393 = vrot.slane %v10358, 2
  %v10394 = vrot.slane %v10360, 2
  %v10395 = vrot.slane %v10362, 2
  %v10396 = vrot.slane %v10364, 2
  %v10397 = vsel %vm5934, %v10302, %v10365
  %v10398 = vsel %vm5934, %v10304, %v10366
  %v10399 = vsel %vm5934, %v10306, %v10367
  %v10400 = vsel %vm5934, %v10308, %v10368
  %v10401 = vsel %vm5934, %v10310, %v10369
  %v10402 = vsel %vm5934, %v10312, %v10370
  %v10403 = vsel %vm5934, %v10314, %v10371
  %v10404 = vsel %vm5934, %v10316, %v10372
  %v10405 = vsel %vm5934, %v10318, %v10373
  %v10406 = vsel %vm5934, %v10320, %v10374
  %v10407 = vsel %vm5934, %v10322, %v10375
  %v10408 = vsel %vm5934, %v10324, %v10376
  %v10409 = vsel %vm5934, %v10326, %v10377
  %v10410 = vsel %vm5934, %v10328, %v10378
  %v10411 = vsel %vm5934, %v10330, %v10379
  %v10412 = vsel %vm5934, %v10332, %v10380
  %v10413 = vsel %vm5934, %v10334, %v10381
  %v10414 = vsel %vm5934, %v10336, %v10382
  %v10415 = vsel %vm5934, %v10338, %v10383
  %v10416 = vsel %vm5934, %v10340, %v10384
  %v10417 = vsel %vm5934, %v10342, %v10385
  %v10418 = vsel %vm5934, %v10344, %v10386
  %v10419 = vsel %vm5934, %v10346, %v10387
  %v10420 = vsel %vm5934, %v10348, %v10388
  %v10421 = vsel %vm5934, %v10350, %v10389
  %v10422 = vsel %vm5934, %v10352, %v10390
  %v10423 = vsel %vm5934, %v10354, %v10391
  %v10424 = vsel %vm5934, %v10356, %v10392
  %v10425 = vsel %vm5934, %v10358, %v10393
  %v10426 = vsel %vm5934, %v10360, %v10394
  %v10427 = vsel %vm5934, %v10362, %v10395
  %v10428 = vsel %vm5934, %v10364, %v10396
  %v10461 = vmax.f32 %v10237, %v10397
  %v10462 = vmax.f32 %v10238, %v10398
  %v10463 = vmax.f32 %v10239, %v10399
  %v10464 = vmax.f32 %v10240, %v10400
  %v10465 = vmax.f32 %v10241, %v10401
  %v10466 = vmax.f32 %v10242, %v10402
  %v10467 = vmax.f32 %v10243, %v10403
  %v10468 = vmax.f32 %v10244, %v10404
  %v10469 = vmax.f32 %v10245, %v10405
  %v10470 = vmax.f32 %v10246, %v10406
  %v10471 = vmax.f32 %v10247, %v10407
  %v10472 = vmax.f32 %v10248, %v10408
  %v10473 = vmax.f32 %v10249, %v10409
  %v10474 = vmax.f32 %v10250, %v10410
  %v10475 = vmax.f32 %v10251, %v10411
  %v10476 = vmax.f32 %v10252, %v10412
  %v10477 = vmax.f32 %v10253, %v10413
  %v10478 = vmax.f32 %v10254, %v10414
  %v10479 = vmax.f32 %v10255, %v10415
  %v10480 = vmax.f32 %v10256, %v10416
  %v10481 = vmax.f32 %v10257, %v10417
  %v10482 = vmax.f32 %v10258, %v10418
  %v10483 = vmax.f32 %v10259, %v10419
  %v10484 = vmax.f32 %v10260, %v10420
  %v10485 = vmax.f32 %v10261, %v10421
  %v10486 = vmax.f32 %v10262, %v10422
  %v10487 = vmax.f32 %v10263, %v10423
  %v10488 = vmax.f32 %v10264, %v10424
  %v10489 = vmax.f32 %v10265, %v10425
  %v10490 = vmax.f32 %v10266, %v10426
  %v10491 = vmax.f32 %v10267, %v10427
  %v10492 = vmax.f32 %v10268, %v10428
  %v10493 = vmax.f32 %v10461, 0.0
  %v10494 = vmax.f32 %v10462, 0.0
  %v10495 = vmax.f32 %v10463, 0.0
  %v10496 = vmax.f32 %v10464, 0.0
  %v10497 = vmax.f32 %v10465, 0.0
  %v10498 = vmax.f32 %v10466, 0.0
  %v10499 = vmax.f32 %v10467, 0.0
  %v10500 = vmax.f32 %v10468, 0.0
  %v10501 = vmax.f32 %v10469, 0.0
  %v10502 = vmax.f32 %v10470, 0.0
  %v10503 = vmax.f32 %v10471, 0.0
  %v10504 = vmax.f32 %v10472, 0.0
  %v10505 = vmax.f32 %v10473, 0.0
  %v10506 = vmax.f32 %v10474, 0.0
  %v10507 = vmax.f32 %v10475, 0.0
  %v10508 = vmax.f32 %v10476, 0.0
  %v10509 = vmax.f32 %v10477, 0.0
  %v10510 = vmax.f32 %v10478, 0.0
  %v10511 = vmax.f32 %v10479, 0.0
  %v10512 = vmax.f32 %v10480, 0.0
  %v10513 = vmax.f32 %v10481, 0.0
  %v10514 = vmax.f32 %v10482, 0.0
  %v10515 = vmax.f32 %v10483, 0.0
  %v10516 = vmax.f32 %v10484, 0.0
  %v10517 = vmax.f32 %v10485, 0.0
  %v10518 = vmax.f32 %v10486, 0.0
  %v10519 = vmax.f32 %v10487, 0.0
  %v10520 = vmax.f32 %v10488, 0.0
  %v10521 = vmax.f32 %v10489, 0.0
  %v10522 = vmax.f32 %v10490, 0.0
  %v10523 = vmax.f32 %v10491, 0.0
  %v10524 = vmax.f32 %v10492, 0.0
  %v10557 = vperm.slane %v10493, 0
  %v10558 = vperm.slane %v10493, 2
  %v10559 = vperm.slane %v10494, 0
  %v10560 = vperm.slane %v10494, 2
  %v10561 = vperm.slane %v10495, 0
  %v10562 = vperm.slane %v10495, 2
  %v10563 = vperm.slane %v10496, 0
  %v10564 = vperm.slane %v10496, 2
  %v10565 = vperm.slane %v10497, 0
  %v10566 = vperm.slane %v10497, 2
  %v10567 = vperm.slane %v10498, 0
  %v10568 = vperm.slane %v10498, 2
  %v10569 = vperm.slane %v10499, 0
  %v10570 = vperm.slane %v10499, 2
  %v10571 = vperm.slane %v10500, 0
  %v10572 = vperm.slane %v10500, 2
  %v10573 = vperm.slane %v10501, 0
  %v10574 = vperm.slane %v10501, 2
  %v10575 = vperm.slane %v10502, 0
  %v10576 = vperm.slane %v10502, 2
  %v10577 = vperm.slane %v10503, 0
  %v10578 = vperm.slane %v10503, 2
  %v10579 = vperm.slane %v10504, 0
  %v10580 = vperm.slane %v10504, 2
  %v10581 = vperm.slane %v10505, 0
  %v10582 = vperm.slane %v10505, 2
  %v10583 = vperm.slane %v10506, 0
  %v10584 = vperm.slane %v10506, 2
  %v10585 = vperm.slane %v10507, 0
  %v10586 = vperm.slane %v10507, 2
  %v10587 = vperm.slane %v10508, 0
  %v10588 = vperm.slane %v10508, 2
  %v10589 = vperm.slane %v10509, 0
  %v10590 = vperm.slane %v10509, 2
  %v10591 = vperm.slane %v10510, 0
  %v10592 = vperm.slane %v10510, 2
  %v10593 = vperm.slane %v10511, 0
  %v10594 = vperm.slane %v10511, 2
  %v10595 = vperm.slane %v10512, 0
  %v10596 = vperm.slane %v10512, 2
  %v10597 = vperm.slane %v10513, 0
  %v10598 = vperm.slane %v10513, 2
  %v10599 = vperm.slane %v10514, 0
  %v10600 = vperm.slane %v10514, 2
  %v10601 = vperm.slane %v10515, 0
  %v10602 = vperm.slane %v10515, 2
  %v10603 = vperm.slane %v10516, 0
  %v10604 = vperm.slane %v10516, 2
  %v10605 = vperm.slane %v10517, 0
  %v10606 = vperm.slane %v10517, 2
  %v10607 = vperm.slane %v10518, 0
  %v10608 = vperm.slane %v10518, 2
  %v10609 = vperm.slane %v10519, 0
  %v10610 = vperm.slane %v10519, 2
  %v10611 = vperm.slane %v10520, 0
  %v10612 = vperm.slane %v10520, 2
  %v10613 = vperm.slane %v10521, 0
  %v10614 = vperm.slane %v10521, 2
  %v10615 = vperm.slane %v10522, 0
  %v10616 = vperm.slane %v10522, 2
  %v10617 = vperm.slane %v10523, 0
  %v10618 = vperm.slane %v10523, 2
  %v10619 = vperm.slane %v10524, 0
  %v10620 = vperm.slane %v10524, 2
  %v10685 = vpack.c.bf16 %v10558, %v10557
  %v10686 = vpack.c.bf16 %v10560, %v10559
  %v10687 = vpack.c.bf16 %v10562, %v10561
  %v10688 = vpack.c.bf16 %v10564, %v10563
  %v10689 = vpack.c.bf16 %v10566, %v10565
  %v10690 = vpack.c.bf16 %v10568, %v10567
  %v10691 = vpack.c.bf16 %v10570, %v10569
  %v10692 = vpack.c.bf16 %v10572, %v10571
  %v10693 = vpack.c.bf16 %v10574, %v10573
  %v10694 = vpack.c.bf16 %v10576, %v10575
  %v10695 = vpack.c.bf16 %v10578, %v10577
  %v10696 = vpack.c.bf16 %v10580, %v10579
  %v10697 = vpack.c.bf16 %v10582, %v10581
  %v10698 = vpack.c.bf16 %v10584, %v10583
  %v10699 = vpack.c.bf16 %v10586, %v10585
  %v10700 = vpack.c.bf16 %v10588, %v10587
  %v10701 = vpack.c.bf16 %v10590, %v10589
  %v10702 = vpack.c.bf16 %v10592, %v10591
  %v10703 = vpack.c.bf16 %v10594, %v10593
  %v10704 = vpack.c.bf16 %v10596, %v10595
  %v10705 = vpack.c.bf16 %v10598, %v10597
  %v10706 = vpack.c.bf16 %v10600, %v10599
  %v10707 = vpack.c.bf16 %v10602, %v10601
  %v10708 = vpack.c.bf16 %v10604, %v10603
  %v10709 = vpack.c.bf16 %v10606, %v10605
  %v10710 = vpack.c.bf16 %v10608, %v10607
  %v10711 = vpack.c.bf16 %v10610, %v10609
  %v10712 = vpack.c.bf16 %v10612, %v10611
  %v10713 = vpack.c.bf16 %v10614, %v10613
  %v10714 = vpack.c.bf16 %v10616, %v10615
  %v10715 = vpack.c.bf16 %v10618, %v10617
  %v10716 = vpack.c.bf16 %v10620, %v10619
  %v10717 = vld [vmem:[%s5] sm:$0xf]
  %v10718 = vld [vmem:[%s5 + $0x4] sm:$0xf]
  %v10719 = vld [vmem:[%s5 + $0x8] sm:$0xf]
  %v10720 = vld [vmem:[%s5 + $0xc] sm:$0xf]
  %v10721 = vld [vmem:[%s5 + $0x10] sm:$0xf]
  %v10722 = vld [vmem:[%s5 + $0x14] sm:$0xf]
  %v10723 = vld [vmem:[%s5 + $0x18] sm:$0xf]
  %v10724 = vld [vmem:[%s5 + $0x1c] sm:$0xf]
  %v10725 = vld [vmem:[%s5 + $0x20] sm:$0xf]
  %v10726 = vld [vmem:[%s5 + $0x24] sm:$0xf]
  %v10727 = vld [vmem:[%s5 + $0x28] sm:$0xf]
  %v10728 = vld [vmem:[%s5 + $0x2c] sm:$0xf]
  %v10729 = vld [vmem:[%s5 + $0x30] sm:$0xf]
  %v10730 = vld [vmem:[%s5 + $0x34] sm:$0xf]
  %v10731 = vld [vmem:[%s5 + $0x38] sm:$0xf]
  %v10732 = vld [vmem:[%s5 + $0x3c] sm:$0xf]
  %v10733 = vld [vmem:[%s5 + $0x40] sm:$0xf]
  %v10734 = vld [vmem:[%s5 + $0x44] sm:$0xf]
  %v10735 = vld [vmem:[%s5 + $0x48] sm:$0xf]
  %v10736 = vld [vmem:[%s5 + $0x4c] sm:$0xf]
  %s10737 = scalar_lea.vmem %s5, 80
  %v10738 = vld [vmem:[%s10737] sm:$0xf]
  %v10739 = vld [vmem:[%s10737 + $0x4] sm:$0xf]
  %v10740 = vld [vmem:[%s10737 + $0x8] sm:$0xf]
  %v10741 = vld [vmem:[%s10737 + $0xc] sm:$0xf]
  %v10742 = vld [vmem:[%s10737 + $0x10] sm:$0xf]
  %v10743 = vld [vmem:[%s10737 + $0x14] sm:$0xf]
  %v10744 = vld [vmem:[%s10737 + $0x18] sm:$0xf]
  %v10745 = vld [vmem:[%s10737 + $0x1c] sm:$0xf]
  %v10746 = vld [vmem:[%s10737 + $0x20] sm:$0xf]
  %v10747 = vld [vmem:[%s10737 + $0x24] sm:$0xf]
  %v10748 = vld [vmem:[%s10737 + $0x28] sm:$0xf]
  %v10749 = vld [vmem:[%s10737 + $0x2c] sm:$0xf]
  %v10750 = vld [vmem:[%s10737 + $0x30] sm:$0xf]
  %v10751 = vld [vmem:[%s10737 + $0x34] sm:$0xf]
  %v10752 = vld [vmem:[%s10737 + $0x38] sm:$0xf]
  %v10753 = vld [vmem:[%s10737 + $0x3c] sm:$0xf]
  %v10754 = vld [vmem:[%s10737 + $0x40] sm:$0xf]
  %v10755 = vld [vmem:[%s10737 + $0x44] sm:$0xf]
  %v10756 = vld [vmem:[%s10737 + $0x48] sm:$0xf]
  %v10757 = vld [vmem:[%s10737 + $0x4c] sm:$0xf]
  %v10766 = vunpack.c.l.b16 %v10686
  %v10767 = vunpack.c.h.b16 %v10686
  %v10768 = vunpack.c.l.b16 %v10690
  %v10769 = vunpack.c.h.b16 %v10690
  %v10770 = vunpack.c.l.b16 %v10694
  %v10771 = vunpack.c.h.b16 %v10694
  %v10772 = vunpack.c.l.b16 %v10698
  %v10773 = vunpack.c.h.b16 %v10698
  %v10774 = vunpack.c.l.b16 %v10702
  %v10775 = vunpack.c.h.b16 %v10702
  %v10776 = vunpack.c.l.b16 %v10706
  %v10777 = vunpack.c.h.b16 %v10706
  %v10778 = vunpack.c.l.b16 %v10710
  %v10779 = vunpack.c.h.b16 %v10710
  %v10780 = vunpack.c.l.b16 %v10714
  %v10781 = vunpack.c.h.b16 %v10714
  %v10782 = vpack.c.b16 %v10766, %v10766
  %v10783 = vpack.c.b16 %v10767, %v10767
  %v10784 = vpack.c.b16 %v10768, %v10768
  %v10785 = vpack.c.b16 %v10769, %v10769
  %v10786 = vpack.c.b16 %v10770, %v10770
  %v10787 = vpack.c.b16 %v10771, %v10771
  %v10788 = vpack.c.b16 %v10772, %v10772
  %v10789 = vpack.c.b16 %v10773, %v10773
  %v10790 = vpack.c.b16 %v10774, %v10774
  %v10791 = vpack.c.b16 %v10775, %v10775
  %v10792 = vpack.c.b16 %v10776, %v10776
  %v10793 = vpack.c.b16 %v10777, %v10777
  %v10794 = vpack.c.b16 %v10778, %v10778
  %v10795 = vpack.c.b16 %v10779, %v10779
  %v10796 = vpack.c.b16 %v10780, %v10780
  %v10797 = vpack.c.b16 %v10781, %v10781
  %v10798 = vunpack.c.l.b16 %v10782
  %v10799 = vunpack.c.l.b16 %v10783
  %v10800 = vunpack.c.l.b16 %v10784
  %v10801 = vunpack.c.l.b16 %v10785
  %v10802 = vunpack.c.l.b16 %v10786
  %v10803 = vunpack.c.l.b16 %v10787
  %v10804 = vunpack.c.l.b16 %v10788
  %v10805 = vunpack.c.l.b16 %v10789
  %v10806 = vunpack.c.l.b16 %v10790
  %v10807 = vunpack.c.l.b16 %v10791
  %v10808 = vunpack.c.l.b16 %v10792
  %v10809 = vunpack.c.l.b16 %v10793
  %v10810 = vunpack.c.l.b16 %v10794
  %v10811 = vunpack.c.l.b16 %v10795
  %v10812 = vunpack.c.l.b16 %v10796
  %v10813 = vunpack.c.l.b16 %v10797
  %v10814 = vrot.slane %v10800, 7
  %v10815 = vsel %vm7496, %v10814, %v10798
  %v10816 = vrot.slane %v10802, 6
  %v10817 = vsel %vm7499, %v10816, %v10815
  %v10818 = vrot.slane %v10804, 5
  %v10819 = vsel %vm7502, %v10818, %v10817
  %v10820 = vrot.slane %v10806, 4
  %v10821 = vsel %vm3503, %v10820, %v10819
  %v10822 = vrot.slane %v10808, 3
  %v10823 = vsel %vm7507, %v10822, %v10821
  %v10824 = vrot.slane %v10810, 2
  %v10825 = vsel %vm7510, %v10824, %v10823
  %v10826 = vrot.slane %v10812, 1
  %v10827 = vsel %vm7513, %v10826, %v10825
  %v10828 = vrot.slane %v10801, 7
  %v10829 = vsel %vm7496, %v10828, %v10799
  %v10830 = vrot.slane %v10803, 6
  %v10831 = vsel %vm7499, %v10830, %v10829
  %v10832 = vrot.slane %v10805, 5
  %v10833 = vsel %vm7502, %v10832, %v10831
  %v10834 = vrot.slane %v10807, 4
  %v10835 = vsel %vm3503, %v10834, %v10833
  %v10836 = vrot.slane %v10809, 3
  %v10837 = vsel %vm7507, %v10836, %v10835
  %v10838 = vrot.slane %v10811, 2
  %v10839 = vsel %vm7510, %v10838, %v10837
  %v10840 = vrot.slane %v10813, 1
  %v10841 = vsel %vm7513, %v10840, %v10839
  %v10842 = vpack.c.b16 %v10827, %v10827
  %v10843 = vpack.c.b16 %v10841, %v10841
  %v10865 = vunpack.c.l.b16 %v10738
  %v10866 = vunpack.c.l.b16 %v10739
  %v10867 = vunpack.c.l.b16 %v10740
  %v10868 = vunpack.c.l.b16 %v10741
  %v10869 = vunpack.c.l.b16 %v10742
  %v10870 = vunpack.c.l.b16 %v10743
  %v10871 = vunpack.c.l.b16 %v10744
  %v10872 = vunpack.c.l.b16 %v10745
  %v10873 = vunpack.c.l.b16 %v10746
  %v10874 = vunpack.c.l.b16 %v10747
  %v10875 = vunpack.c.l.b16 %v10748
  %v10876 = vunpack.c.l.b16 %v10749
  %v10877 = vunpack.c.l.b16 %v10750
  %v10878 = vunpack.c.l.b16 %v10751
  %v10879 = vunpack.c.l.b16 %v10752
  %v10880 = vunpack.c.l.b16 %v10753
  %v10881 = vunpack.c.l.b16 %v10754
  %v10882 = vunpack.c.l.b16 %v10755
  %v10883 = vunpack.c.l.b16 %v10756
  %v10884 = vunpack.c.l.b16 %v10757
  %v10885 = vpack.c.b16 %v10866, %v10865
  %v10886 = vpack.c.b16 %v10868, %v10867
  %v10887 = vpack.c.b16 %v10870, %v10869
  %v10888 = vpack.c.b16 %v10872, %v10871
  %v10889 = vpack.c.b16 %v10874, %v10873
  %v10890 = vpack.c.b16 %v10876, %v10875
  %v10891 = vpack.c.b16 %v10878, %v10877
  %v10892 = vpack.c.b16 %v10880, %v10879
  %v10893 = vpack.c.b16 %v10882, %v10881
  %v10894 = vpack.c.b16 %v10884, %v10883
  %vm10904 = vcmask 252928
  %v10906 = vsel %vm10904, %v10843, 0
  %v10909 = vand.u32 %v10894, %v8410
  %10911 = vmatpush.bf16.msra.mxu0 %v10892
  %10912 = vmatpush.bf16.msra.mxu0 %v10891
  %10913 = vmatpush.bf16.msra.mxu0 %v10890
  %10914 = vmatpush.bf16.msra.mxu0 %v10889
  %10915 = vmatpush.bf16.msra.mxu0 %v10888
  %10916 = vmatpush.bf16.msra.mxu0 %v10887
  %10917 = vmatpush.bf16.msra.mxu0 %v10886
  %10918 = vmatpush.bf16.msra.mxu0 %v10885
  %10919 = vmatmul.bf16.gmra.mxu0 %v10842
  %v10920 = vpop.f32.mrf.mxu0
  %v10921 = vadd.f32 0.0, %v10920
  %v10922 = vpop.f32.mrf.mxu0
  %10923 = vdwg.mxu0
  %10924 = vmatpush.bf16.msra.mxu0 0
  %10925 = vmatpush.bf16.msra.mxu0 0
  %10926 = vmatpush.bf16.msra.mxu0 0
  %10927 = vmatpush.bf16.msra.mxu0 0
  %10928 = vmatpush.bf16.msra.mxu0 0
  %10929 = vmatpush.bf16.msra.mxu0 0
  %10930 = vmatpush.bf16.msra.mxu0 %v10909
  %10931 = vmatpush.bf16.msra.mxu0 %v10893
  %10932 = vmatmul.bf16.gmra.mxu0 %v10906
  %v10933 = vpop.f32.mrf.mxu0
  %v10934 = vadd.f32 %v10921, %v10933
  %v10935 = vpop.f32.mrf.mxu0
  %10936 = vdwg.mxu0
  %v10945 = vunpack.c.l.b16 %v10685
  %v10946 = vunpack.c.h.b16 %v10685
  %v10947 = vunpack.c.l.b16 %v10689
  %v10948 = vunpack.c.h.b16 %v10689
  %v10949 = vunpack.c.l.b16 %v10693
  %v10950 = vunpack.c.h.b16 %v10693
  %v10951 = vunpack.c.l.b16 %v10697
  %v10952 = vunpack.c.h.b16 %v10697
  %v10953 = vunpack.c.l.b16 %v10701
  %v10954 = vunpack.c.h.b16 %v10701
  %v10955 = vunpack.c.l.b16 %v10705
  %v10956 = vunpack.c.h.b16 %v10705
  %v10957 = vunpack.c.l.b16 %v10709
  %v10958 = vunpack.c.h.b16 %v10709
  %v10959 = vunpack.c.l.b16 %v10713
  %v10960 = vunpack.c.h.b16 %v10713
  %v10961 = vpack.c.b16 %v10945, %v10945
  %v10962 = vpack.c.b16 %v10946, %v10946
  %v10963 = vpack.c.b16 %v10947, %v10947
  %v10964 = vpack.c.b16 %v10948, %v10948
  %v10965 = vpack.c.b16 %v10949, %v10949
  %v10966 = vpack.c.b16 %v10950, %v10950
  %v10967 = vpack.c.b16 %v10951, %v10951
  %v10968 = vpack.c.b16 %v10952, %v10952
  %v10969 = vpack.c.b16 %v10953, %v10953
  %v10970 = vpack.c.b16 %v10954, %v10954
  %v10971 = vpack.c.b16 %v10955, %v10955
  %v10972 = vpack.c.b16 %v10956, %v10956
  %v10973 = vpack.c.b16 %v10957, %v10957
  %v10974 = vpack.c.b16 %v10958, %v10958
  %v10975 = vpack.c.b16 %v10959, %v10959
  %v10976 = vpack.c.b16 %v10960, %v10960
  %v10977 = vunpack.c.l.b16 %v10961
  %v10978 = vunpack.c.l.b16 %v10962
  %v10979 = vunpack.c.l.b16 %v10963
  %v10980 = vunpack.c.l.b16 %v10964
  %v10981 = vunpack.c.l.b16 %v10965
  %v10982 = vunpack.c.l.b16 %v10966
  %v10983 = vunpack.c.l.b16 %v10967
  %v10984 = vunpack.c.l.b16 %v10968
  %v10985 = vunpack.c.l.b16 %v10969
  %v10986 = vunpack.c.l.b16 %v10970
  %v10987 = vunpack.c.l.b16 %v10971
  %v10988 = vunpack.c.l.b16 %v10972
  %v10989 = vunpack.c.l.b16 %v10973
  %v10990 = vunpack.c.l.b16 %v10974
  %v10991 = vunpack.c.l.b16 %v10975
  %v10992 = vunpack.c.l.b16 %v10976
  %v10993 = vrot.slane %v10979, 7
  %v10994 = vsel %vm7496, %v10993, %v10977
  %v10995 = vrot.slane %v10981, 6
  %v10996 = vsel %vm7499, %v10995, %v10994
  %v10997 = vrot.slane %v10983, 5
  %v10998 = vsel %vm7502, %v10997, %v10996
  %v10999 = vrot.slane %v10985, 4
  %v11000 = vsel %vm3503, %v10999, %v10998
  %v11001 = vrot.slane %v10987, 3
  %v11002 = vsel %vm7507, %v11001, %v11000
  %v11003 = vrot.slane %v10989, 2
  %v11004 = vsel %vm7510, %v11003, %v11002
  %v11005 = vrot.slane %v10991, 1
  %v11006 = vsel %vm7513, %v11005, %v11004
  %v11007 = vrot.slane %v10980, 7
  %v11008 = vsel %vm7496, %v11007, %v10978
  %v11009 = vrot.slane %v10982, 6
  %v11010 = vsel %vm7499, %v11009, %v11008
  %v11011 = vrot.slane %v10984, 5
  %v11012 = vsel %vm7502, %v11011, %v11010
  %v11013 = vrot.slane %v10986, 4
  %v11014 = vsel %vm3503, %v11013, %v11012
  %v11015 = vrot.slane %v10988, 3
  %v11016 = vsel %vm7507, %v11015, %v11014
  %v11017 = vrot.slane %v10990, 2
  %v11018 = vsel %vm7510, %v11017, %v11016
  %v11019 = vrot.slane %v10992, 1
  %v11020 = vsel %vm7513, %v11019, %v11018
  %v11021 = vpack.c.b16 %v11006, %v11006
  %v11022 = vpack.c.b16 %v11020, %v11020
  %v11044 = vunpack.c.l.b16 %v10717
  %v11045 = vunpack.c.l.b16 %v10718
  %v11046 = vunpack.c.l.b16 %v10719
  %v11047 = vunpack.c.l.b16 %v10720
  %v11048 = vunpack.c.l.b16 %v10721
  %v11049 = vunpack.c.l.b16 %v10722
  %v11050 = vunpack.c.l.b16 %v10723
  %v11051 = vunpack.c.l.b16 %v10724
  %v11052 = vunpack.c.l.b16 %v10725
  %v11053 = vunpack.c.l.b16 %v10726
  %v11054 = vunpack.c.l.b16 %v10727
  %v11055 = vunpack.c.l.b16 %v10728
  %v11056 = vunpack.c.l.b16 %v10729
  %v11057 = vunpack.c.l.b16 %v10730
  %v11058 = vunpack.c.l.b16 %v10731
  %v11059 = vunpack.c.l.b16 %v10732
  %v11060 = vunpack.c.l.b16 %v10733
  %v11061 = vunpack.c.l.b16 %v10734
  %v11062 = vunpack.c.l.b16 %v10735
  %v11063 = vunpack.c.l.b16 %v10736
  %v11064 = vpack.c.b16 %v11045, %v11044
  %v11065 = vpack.c.b16 %v11047, %v11046
  %v11066 = vpack.c.b16 %v11049, %v11048
  %v11067 = vpack.c.b16 %v11051, %v11050
  %v11068 = vpack.c.b16 %v11053, %v11052
  %v11069 = vpack.c.b16 %v11055, %v11054
  %v11070 = vpack.c.b16 %v11057, %v11056
  %v11071 = vpack.c.b16 %v11059, %v11058
  %v11072 = vpack.c.b16 %v11061, %v11060
  %v11073 = vpack.c.b16 %v11063, %v11062
  %v11084 = vsel %vm10904, %v11022, 0
  %v11087 = vand.u32 %v11073, %v8410
  %11089 = vmatpush.bf16.msra.mxu0 %v11071
  %11090 = vmatpush.bf16.msra.mxu0 %v11070
  %11091 = vmatpush.bf16.msra.mxu0 %v11069
  %11092 = vmatpush.bf16.msra.mxu0 %v11068
  %11093 = vmatpush.bf16.msra.mxu0 %v11067
  %11094 = vmatpush.bf16.msra.mxu0 %v11066
  %11095 = vmatpush.bf16.msra.mxu0 %v11065
  %11096 = vmatpush.bf16.msra.mxu0 %v11064
  %11097 = vmatmul.bf16.gmra.mxu0 %v11021
  %v11098 = vpop.f32.mrf.mxu0
  %v11099 = vadd.f32 %v10934, %v11098
  %v11100 = vpop.f32.mrf.mxu0
  %11101 = vdwg.mxu0
  %11102 = vmatpush.bf16.msra.mxu0 0
  %11103 = vmatpush.bf16.msra.mxu0 0
  %11104 = vmatpush.bf16.msra.mxu0 0
  %11105 = vmatpush.bf16.msra.mxu0 0
  %11106 = vmatpush.bf16.msra.mxu0 0
  %11107 = vmatpush.bf16.msra.mxu0 0
  %11108 = vmatpush.bf16.msra.mxu0 %v11087
  %11109 = vmatpush.bf16.msra.mxu0 %v11072
  %11110 = vmatmul.bf16.gmra.mxu0 %v11084
  %v11111 = vpop.f32.mrf.mxu0
  %v11112 = vadd.f32 %v11099, %v11111
  %v11113 = vpop.f32.mrf.mxu0
  %11114 = vdwg.mxu0
  %s11115 = scalar_lea.vmem %s5, 160
  %v11116 = vld [vmem:[%s11115] sm:$0xf]
  %v11117 = vld [vmem:[%s11115 + $0x4] sm:$0xf]
  %v11118 = vld [vmem:[%s11115 + $0x8] sm:$0xf]
  %v11119 = vld [vmem:[%s11115 + $0xc] sm:$0xf]
  %v11120 = vld [vmem:[%s11115 + $0x10] sm:$0xf]
  %v11121 = vld [vmem:[%s11115 + $0x14] sm:$0xf]
  %v11122 = vld [vmem:[%s11115 + $0x18] sm:$0xf]
  %v11123 = vld [vmem:[%s11115 + $0x1c] sm:$0xf]
  %v11124 = vld [vmem:[%s11115 + $0x20] sm:$0xf]
  %v11125 = vld [vmem:[%s11115 + $0x24] sm:$0xf]
  %v11126 = vld [vmem:[%s11115 + $0x28] sm:$0xf]
  %v11127 = vld [vmem:[%s11115 + $0x2c] sm:$0xf]
  %v11128 = vld [vmem:[%s11115 + $0x30] sm:$0xf]
  %v11129 = vld [vmem:[%s11115 + $0x34] sm:$0xf]
  %v11130 = vld [vmem:[%s11115 + $0x38] sm:$0xf]
  %v11131 = vld [vmem:[%s11115 + $0x3c] sm:$0xf]
  %v11132 = vld [vmem:[%s11115 + $0x40] sm:$0xf]
  %v11133 = vld [vmem:[%s11115 + $0x44] sm:$0xf]
  %v11134 = vld [vmem:[%s11115 + $0x48] sm:$0xf]
  %v11135 = vld [vmem:[%s11115 + $0x4c] sm:$0xf]
  %v11144 = vunpack.c.l.b16 %v10687
  %v11145 = vunpack.c.h.b16 %v10687
  %v11146 = vunpack.c.l.b16 %v10691
  %v11147 = vunpack.c.h.b16 %v10691
  %v11148 = vunpack.c.l.b16 %v10695
  %v11149 = vunpack.c.h.b16 %v10695
  %v11150 = vunpack.c.l.b16 %v10699
  %v11151 = vunpack.c.h.b16 %v10699
  %v11152 = vunpack.c.l.b16 %v10703
  %v11153 = vunpack.c.h.b16 %v10703
  %v11154 = vunpack.c.l.b16 %v10707
  %v11155 = vunpack.c.h.b16 %v10707
  %v11156 = vunpack.c.l.b16 %v10711
  %v11157 = vunpack.c.h.b16 %v10711
  %v11158 = vunpack.c.l.b16 %v10715
  %v11159 = vunpack.c.h.b16 %v10715
  %v11160 = vpack.c.b16 %v11144, %v11144
  %v11161 = vpack.c.b16 %v11145, %v11145
  %v11162 = vpack.c.b16 %v11146, %v11146
  %v11163 = vpack.c.b16 %v11147, %v11147
  %v11164 = vpack.c.b16 %v11148, %v11148
  %v11165 = vpack.c.b16 %v11149, %v11149
  %v11166 = vpack.c.b16 %v11150, %v11150
  %v11167 = vpack.c.b16 %v11151, %v11151
  %v11168 = vpack.c.b16 %v11152, %v11152
  %v11169 = vpack.c.b16 %v11153, %v11153
  %v11170 = vpack.c.b16 %v11154, %v11154
  %v11171 = vpack.c.b16 %v11155, %v11155
  %v11172 = vpack.c.b16 %v11156, %v11156
  %v11173 = vpack.c.b16 %v11157, %v11157
  %v11174 = vpack.c.b16 %v11158, %v11158
  %v11175 = vpack.c.b16 %v11159, %v11159
  %v11176 = vunpack.c.l.b16 %v11160
  %v11177 = vunpack.c.l.b16 %v11161
  %v11178 = vunpack.c.l.b16 %v11162
  %v11179 = vunpack.c.l.b16 %v11163
  %v11180 = vunpack.c.l.b16 %v11164
  %v11181 = vunpack.c.l.b16 %v11165
  %v11182 = vunpack.c.l.b16 %v11166
  %v11183 = vunpack.c.l.b16 %v11167
  %v11184 = vunpack.c.l.b16 %v11168
  %v11185 = vunpack.c.l.b16 %v11169
  %v11186 = vunpack.c.l.b16 %v11170
  %v11187 = vunpack.c.l.b16 %v11171
  %v11188 = vunpack.c.l.b16 %v11172
  %v11189 = vunpack.c.l.b16 %v11173
  %v11190 = vunpack.c.l.b16 %v11174
  %v11191 = vunpack.c.l.b16 %v11175
  %v11192 = vrot.slane %v11178, 7
  %v11193 = vsel %vm7496, %v11192, %v11176
  %v11194 = vrot.slane %v11180, 6
  %v11195 = vsel %vm7499, %v11194, %v11193
  %v11196 = vrot.slane %v11182, 5
  %v11197 = vsel %vm7502, %v11196, %v11195
  %v11198 = vrot.slane %v11184, 4
  %v11199 = vsel %vm3503, %v11198, %v11197
  %v11200 = vrot.slane %v11186, 3
  %v11201 = vsel %vm7507, %v11200, %v11199
  %v11202 = vrot.slane %v11188, 2
  %v11203 = vsel %vm7510, %v11202, %v11201
  %v11204 = vrot.slane %v11190, 1
  %v11205 = vsel %vm7513, %v11204, %v11203
  %v11206 = vrot.slane %v11179, 7
  %v11207 = vsel %vm7496, %v11206, %v11177
  %v11208 = vrot.slane %v11181, 6
  %v11209 = vsel %vm7499, %v11208, %v11207
  %v11210 = vrot.slane %v11183, 5
  %v11211 = vsel %vm7502, %v11210, %v11209
  %v11212 = vrot.slane %v11185, 4
  %v11213 = vsel %vm3503, %v11212, %v11211
  %v11214 = vrot.slane %v11187, 3
  %v11215 = vsel %vm7507, %v11214, %v11213
  %v11216 = vrot.slane %v11189, 2
  %v11217 = vsel %vm7510, %v11216, %v11215
  %v11218 = vrot.slane %v11191, 1
  %v11219 = vsel %vm7513, %v11218, %v11217
  %v11220 = vpack.c.b16 %v11205, %v11205
  %v11221 = vpack.c.b16 %v11219, %v11219
  %v11243 = vunpack.c.l.b16 %v11116
  %v11244 = vunpack.c.l.b16 %v11117
  %v11245 = vunpack.c.l.b16 %v11118
  %v11246 = vunpack.c.l.b16 %v11119
  %v11247 = vunpack.c.l.b16 %v11120
  %v11248 = vunpack.c.l.b16 %v11121
  %v11249 = vunpack.c.l.b16 %v11122
  %v11250 = vunpack.c.l.b16 %v11123
  %v11251 = vunpack.c.l.b16 %v11124
  %v11252 = vunpack.c.l.b16 %v11125
  %v11253 = vunpack.c.l.b16 %v11126
  %v11254 = vunpack.c.l.b16 %v11127
  %v11255 = vunpack.c.l.b16 %v11128
  %v11256 = vunpack.c.l.b16 %v11129
  %v11257 = vunpack.c.l.b16 %v11130
  %v11258 = vunpack.c.l.b16 %v11131
  %v11259 = vunpack.c.l.b16 %v11132
  %v11260 = vunpack.c.l.b16 %v11133
  %v11261 = vunpack.c.l.b16 %v11134
  %v11262 = vunpack.c.l.b16 %v11135
  %v11263 = vpack.c.b16 %v11244, %v11243
  %v11264 = vpack.c.b16 %v11246, %v11245
  %v11265 = vpack.c.b16 %v11248, %v11247
  %v11266 = vpack.c.b16 %v11250, %v11249
  %v11267 = vpack.c.b16 %v11252, %v11251
  %v11268 = vpack.c.b16 %v11254, %v11253
  %v11269 = vpack.c.b16 %v11256, %v11255
  %v11270 = vpack.c.b16 %v11258, %v11257
  %v11271 = vpack.c.b16 %v11260, %v11259
  %v11272 = vpack.c.b16 %v11262, %v11261
  %v11283 = vsel %vm10904, %v11221, 0
  %v11286 = vand.u32 %v11272, %v8410
  %11288 = vmatpush.bf16.msra.mxu0 %v11270
  %11289 = vmatpush.bf16.msra.mxu0 %v11269
  %11290 = vmatpush.bf16.msra.mxu0 %v11268
  %11291 = vmatpush.bf16.msra.mxu0 %v11267
  %11292 = vmatpush.bf16.msra.mxu0 %v11266
  %11293 = vmatpush.bf16.msra.mxu0 %v11265
  %11294 = vmatpush.bf16.msra.mxu0 %v11264
  %11295 = vmatpush.bf16.msra.mxu0 %v11263
  %11296 = vmatmul.bf16.gmra.mxu0 %v11220
  %v11297 = vpop.f32.mrf.mxu0
  %v11298 = vadd.f32 0.0, %v11297
  %v11299 = vpop.f32.mrf.mxu0
  %11300 = vdwg.mxu0
  %11301 = vmatpush.bf16.msra.mxu0 0
  %11302 = vmatpush.bf16.msra.mxu0 0
  %11303 = vmatpush.bf16.msra.mxu0 0
  %11304 = vmatpush.bf16.msra.mxu0 0
  %11305 = vmatpush.bf16.msra.mxu0 0
  %11306 = vmatpush.bf16.msra.mxu0 0
  %11307 = vmatpush.bf16.msra.mxu0 %v11286
  %11308 = vmatpush.bf16.msra.mxu0 %v11271
  %11309 = vmatmul.bf16.gmra.mxu0 %v11283
  %v11310 = vpop.f32.mrf.mxu0
  %v11311 = vadd.f32 %v11298, %v11310
  %v11312 = vpop.f32.mrf.mxu0
  %11313 = vdwg.mxu0
  %v11314 = vadd.f32 %v11112, %v11311
  %s11315 = scalar_lea.vmem %s5, 240
  %v11316 = vld [vmem:[%s11315] sm:$0xf]
  %v11317 = vld [vmem:[%s11315 + $0x4] sm:$0xf]
  %v11318 = vld [vmem:[%s11315 + $0x8] sm:$0xf]
  %v11319 = vld [vmem:[%s11315 + $0xc] sm:$0xf]
  %v11320 = vld [vmem:[%s11315 + $0x10] sm:$0xf]
  %v11321 = vld [vmem:[%s11315 + $0x14] sm:$0xf]
  %v11322 = vld [vmem:[%s11315 + $0x18] sm:$0xf]
  %v11323 = vld [vmem:[%s11315 + $0x1c] sm:$0xf]
  %v11324 = vld [vmem:[%s11315 + $0x20] sm:$0xf]
  %v11325 = vld [vmem:[%s11315 + $0x24] sm:$0xf]
  %v11326 = vld [vmem:[%s11315 + $0x28] sm:$0xf]
  %v11327 = vld [vmem:[%s11315 + $0x2c] sm:$0xf]
  %v11328 = vld [vmem:[%s11315 + $0x30] sm:$0xf]
  %v11329 = vld [vmem:[%s11315 + $0x34] sm:$0xf]
  %v11330 = vld [vmem:[%s11315 + $0x38] sm:$0xf]
  %v11331 = vld [vmem:[%s11315 + $0x3c] sm:$0xf]
  %v11332 = vld [vmem:[%s11315 + $0x40] sm:$0xf]
  %v11333 = vld [vmem:[%s11315 + $0x44] sm:$0xf]
  %v11334 = vld [vmem:[%s11315 + $0x48] sm:$0xf]
  %v11335 = vld [vmem:[%s11315 + $0x4c] sm:$0xf]
  %v11344 = vunpack.c.l.b16 %v10688
  %v11345 = vunpack.c.h.b16 %v10688
  %v11346 = vunpack.c.l.b16 %v10692
  %v11347 = vunpack.c.h.b16 %v10692
  %v11348 = vunpack.c.l.b16 %v10696
  %v11349 = vunpack.c.h.b16 %v10696
  %v11350 = vunpack.c.l.b16 %v10700
  %v11351 = vunpack.c.h.b16 %v10700
  %v11352 = vunpack.c.l.b16 %v10704
  %v11353 = vunpack.c.h.b16 %v10704
  %v11354 = vunpack.c.l.b16 %v10708
  %v11355 = vunpack.c.h.b16 %v10708
  %v11356 = vunpack.c.l.b16 %v10712
  %v11357 = vunpack.c.h.b16 %v10712
  %v11358 = vunpack.c.l.b16 %v10716
  %v11359 = vunpack.c.h.b16 %v10716
  %v11360 = vpack.c.b16 %v11344, %v11344
  %v11361 = vpack.c.b16 %v11345, %v11345
  %v11362 = vpack.c.b16 %v11346, %v11346
  %v11363 = vpack.c.b16 %v11347, %v11347
  %v11364 = vpack.c.b16 %v11348, %v11348
  %v11365 = vpack.c.b16 %v11349, %v11349
  %v11366 = vpack.c.b16 %v11350, %v11350
  %v11367 = vpack.c.b16 %v11351, %v11351
  %v11368 = vpack.c.b16 %v11352, %v11352
  %v11369 = vpack.c.b16 %v11353, %v11353
  %v11370 = vpack.c.b16 %v11354, %v11354
  %v11371 = vpack.c.b16 %v11355, %v11355
  %v11372 = vpack.c.b16 %v11356, %v11356
  %v11373 = vpack.c.b16 %v11357, %v11357
  %v11374 = vpack.c.b16 %v11358, %v11358
  %v11375 = vpack.c.b16 %v11359, %v11359
  %v11376 = vunpack.c.l.b16 %v11360
  %v11377 = vunpack.c.l.b16 %v11361
  %v11378 = vunpack.c.l.b16 %v11362
  %v11379 = vunpack.c.l.b16 %v11363
  %v11380 = vunpack.c.l.b16 %v11364
  %v11381 = vunpack.c.l.b16 %v11365
  %v11382 = vunpack.c.l.b16 %v11366
  %v11383 = vunpack.c.l.b16 %v11367
  %v11384 = vunpack.c.l.b16 %v11368
  %v11385 = vunpack.c.l.b16 %v11369
  %v11386 = vunpack.c.l.b16 %v11370
  %v11387 = vunpack.c.l.b16 %v11371
  %v11388 = vunpack.c.l.b16 %v11372
  %v11389 = vunpack.c.l.b16 %v11373
  %v11390 = vunpack.c.l.b16 %v11374
  %v11391 = vunpack.c.l.b16 %v11375
  %v11392 = vrot.slane %v11378, 7
  %v11393 = vsel %vm7496, %v11392, %v11376
  %v11394 = vrot.slane %v11380, 6
  %v11395 = vsel %vm7499, %v11394, %v11393
  %v11396 = vrot.slane %v11382, 5
  %v11397 = vsel %vm7502, %v11396, %v11395
  %v11398 = vrot.slane %v11384, 4
  %v11399 = vsel %vm3503, %v11398, %v11397
  %v11400 = vrot.slane %v11386, 3
  %v11401 = vsel %vm7507, %v11400, %v11399
  %v11402 = vrot.slane %v11388, 2
  %v11403 = vsel %vm7510, %v11402, %v11401
  %v11404 = vrot.slane %v11390, 1
  %v11405 = vsel %vm7513, %v11404, %v11403
  %v11406 = vrot.slane %v11379, 7
  %v11407 = vsel %vm7496, %v11406, %v11377
  %v11408 = vrot.slane %v11381, 6
  %v11409 = vsel %vm7499, %v11408, %v11407
  %v11410 = vrot.slane %v11383, 5
  %v11411 = vsel %vm7502, %v11410, %v11409
  %v11412 = vrot.slane %v11385, 4
  %v11413 = vsel %vm3503, %v11412, %v11411
  %v11414 = vrot.slane %v11387, 3
  %v11415 = vsel %vm7507, %v11414, %v11413
  %v11416 = vrot.slane %v11389, 2
  %v11417 = vsel %vm7510, %v11416, %v11415
  %v11418 = vrot.slane %v11391, 1
  %v11419 = vsel %vm7513, %v11418, %v11417
  %v11420 = vpack.c.b16 %v11405, %v11405
  %v11421 = vpack.c.b16 %v11419, %v11419
  %v11443 = vunpack.c.l.b16 %v11316
  %v11444 = vunpack.c.l.b16 %v11317
  %v11445 = vunpack.c.l.b16 %v11318
  %v11446 = vunpack.c.l.b16 %v11319
  %v11447 = vunpack.c.l.b16 %v11320
  %v11448 = vunpack.c.l.b16 %v11321
  %v11449 = vunpack.c.l.b16 %v11322
  %v11450 = vunpack.c.l.b16 %v11323
  %v11451 = vunpack.c.l.b16 %v11324
  %v11452 = vunpack.c.l.b16 %v11325
  %v11453 = vunpack.c.l.b16 %v11326
  %v11454 = vunpack.c.l.b16 %v11327
  %v11455 = vunpack.c.l.b16 %v11328
  %v11456 = vunpack.c.l.b16 %v11329
  %v11457 = vunpack.c.l.b16 %v11330
  %v11458 = vunpack.c.l.b16 %v11331
  %v11459 = vunpack.c.l.b16 %v11332
  %v11460 = vunpack.c.l.b16 %v11333
  %v11461 = vunpack.c.l.b16 %v11334
  %v11462 = vunpack.c.l.b16 %v11335
  %v11463 = vpack.c.b16 %v11444, %v11443
  %v11464 = vpack.c.b16 %v11446, %v11445
  %v11465 = vpack.c.b16 %v11448, %v11447
  %v11466 = vpack.c.b16 %v11450, %v11449
  %v11467 = vpack.c.b16 %v11452, %v11451
  %v11468 = vpack.c.b16 %v11454, %v11453
  %v11469 = vpack.c.b16 %v11456, %v11455
  %v11470 = vpack.c.b16 %v11458, %v11457
  %v11471 = vpack.c.b16 %v11460, %v11459
  %v11472 = vpack.c.b16 %v11462, %v11461
  %v11483 = vsel %vm10904, %v11421, 0
  %v11486 = vand.u32 %v11472, %v8410
  %11488 = vmatpush.bf16.msra.mxu0 %v11470
  %11489 = vmatpush.bf16.msra.mxu0 %v11469
  %11490 = vmatpush.bf16.msra.mxu0 %v11468
  %11491 = vmatpush.bf16.msra.mxu0 %v11467
  %11492 = vmatpush.bf16.msra.mxu0 %v11466
  %11493 = vmatpush.bf16.msra.mxu0 %v11465
  %11494 = vmatpush.bf16.msra.mxu0 %v11464
  %11495 = vmatpush.bf16.msra.mxu0 %v11463
  %11496 = vmatmul.bf16.gmra.mxu0 %v11420
  %v11497 = vpop.f32.mrf.mxu0
  %v11498 = vadd.f32 0.0, %v11497
  %v11499 = vpop.f32.mrf.mxu0
  %11500 = vdwg.mxu0
  %11501 = vmatpush.bf16.msra.mxu0 0
  %11502 = vmatpush.bf16.msra.mxu0 0
  %11503 = vmatpush.bf16.msra.mxu0 0
  %11504 = vmatpush.bf16.msra.mxu0 0
  %11505 = vmatpush.bf16.msra.mxu0 0
  %11506 = vmatpush.bf16.msra.mxu0 0
  %11507 = vmatpush.bf16.msra.mxu0 %v11486
  %11508 = vmatpush.bf16.msra.mxu0 %v11471
  %11509 = vmatmul.bf16.gmra.mxu0 %v11483
  %v11510 = vpop.f32.mrf.mxu0
  %v11511 = vadd.f32 %v11498, %v11510
  %v11512 = vpop.f32.mrf.mxu0
  %11513 = vdwg.mxu0
  %v11514 = vadd.f32 %v11314, %v11511
  %v11515 = vld [vmem:[%s6] sm:$0x1]
  %v11517 = vperm.slane %v11515, 0
  %v11519 = vadd.f32 %v11514, %v11517
  %v11520 = vmax.f32 %v11519, 0.0
  %v11521 = vpack.c.bf16 %v11520, %v11520
  %v11522 = vld [vmem:[%s7] sm:$0xf]
  %v11523 = vld [vmem:[%s7 + $0x4] sm:$0xf]
  %v11524 = vld [vmem:[%s7 + $0x8] sm:$0xf]
  %v11525 = vld [vmem:[%s7 + $0xc] sm:$0xf]
  %v11526 = vld [vmem:[%s7 + $0x10] sm:$0xf]
  %v11527 = vld [vmem:[%s7 + $0x14] sm:$0xf]
  %v11528 = vld [vmem:[%s7 + $0x18] sm:$0x1]
  %v11529 = vld [vmem:[%s8] sm:$0x1]
  %v11531 = vperm.slane %v11529, 0
  %v11540 = vunpack.c.l.b16 %v11522
  %v11541 = vunpack.c.l.b16 %v11523
  %v11542 = vunpack.c.l.b16 %v11524
  %v11543 = vunpack.c.l.b16 %v11525
  %v11544 = vunpack.c.l.b16 %v11526
  %v11545 = vunpack.c.l.b16 %v11527
  %v11546 = vunpack.c.l.b16 %v11528
  %v11547 = vpack.c.b16 %v11541, %v11540
  %v11548 = vpack.c.b16 %v11543, %v11542
  %v11549 = vpack.c.b16 %v11545, %v11544
  %v11550 = vpack.c.b16 %v11546, %v11546
  %vm11554 = vcmask 408576
  %v11556 = vsel %vm11554, %v11521, 0
  %v11559 = vsel %vm3502, %v11550, 0
  %11561 = vmatpush.bf16.msra.mxu0 0
  %11562 = vmatpush.bf16.msra.mxu0 0
  %11563 = vmatpush.bf16.msra.mxu0 0
  %11564 = vmatpush.bf16.msra.mxu0 0
  %11565 = vmatpush.bf16.msra.mxu0 %v11559
  %11566 = vmatpush.bf16.msra.mxu0 %v11549
  %11567 = vmatpush.bf16.msra.mxu0 %v11548
  %11568 = vmatpush.bf16.msra.mxu0 %v11547
  %11569 = vmatmul.bf16.gmra.mxu0 %v11556
  %v11570 = vpop.f32.mrf.mxu0
  %v11571 = vadd.f32 %v11531, %v11570
  %v11572 = vpop.f32.mrf.mxu0
  %11573 = vdwg.mxu0
  %vm11574 = vcmask 80896
  %v11575 = vsel %vm11574, %v11571, -inf
  %11576 = vmax.xlane.f32.xlu0 %v11575
  %v11577 = vpop.xlane.xlu0 %11576
  %v11578 = vsub.f32 %v11571, %v11577
  %v11579 = vmul.f32 %v11578, 1.442695
  %v11580 = vpow.pop %v11579
  %v11581 = vsel %vm11574, %v11580, 0.0
  %11582 = vadd.xlane.f32.xlu0 %v11581
  %v11583 = vpop.xlane.xlu0 %11582
  %v11584 = vlog2.pop %v11583
  %v11585 = vmul.f32 %v11584, 0.6931472
  %v11586 = vadd.f32 %v11577, %v11585
  %v11587 = vsub.f32 %v11571, %v11586
  %11588 = vst.msk [vmem:[%s9] sm:$0xff] %vm11574, %v11587
  // Predicated region
  $region38: #{forward.1} parent=0 // pred_check
    _
  $region39: #{forward.1} parent=0 // pred_check_branch
    %11590 = sbr.rel (0) target = $region41
  $region40: #{forward.1} parent=0 // pred_region
    _
  $region41: #{forward.1} parent=0 // pred_fallthru
    _
  // Predicated region
  $region42: #{forward.1} parent=0 // pred_check
    _
  $region43: #{forward.1} parent=0 // pred_check_branch
    %11592 = sbr.rel (0) target = $region45
  $region44: #{forward.1} parent=0 // pred_region
    _
  $region45: #{forward.1} parent=0 // pred_fallthru
    _

</llo_original>
